<compile_context>
chip_gen: v5e
topology: v5e:2x2
jax: 0.10.0
libtpu: 0.0.40
codegen_flags: <defaults>
</compile_context>

<pallas_src>
import functools
import numpy as np
import jax
import jax.numpy as jnp
from jax.experimental import pallas as pl
from jax.experimental.pallas import tpu as pltpu


# ------------------------------- Pallas kernel ------------------------------

def _basic_block_kernel(x_ref, w1_ref, b1_ref, w2_ref, b2_ref, *rest,
                        stride, has_down):
    """Fused BasicBlock: relu(bn2(conv2(relu(bn1(conv1(x))))) + identity)."""
    if has_down:
        wd_ref, bd_ref, o_ref, xpad, midpad = rest
    else:
        o_ref, xpad, midpad = rest

    _, H, W, Cin = x_ref.shape
    _, Ho, Wo, Cout = o_ref.shape
    Cmid = w1_ref.shape[-1]

    x = x_ref[0]                                   # (H, W, Cin)  float32

    # ---- zero-padded input (1-pixel halo) kept in VMEM ----
    xpad[...] = jnp.zeros_like(xpad)
    xpad[pl.ds(1, H), pl.ds(1, W), :] = x

    def tap(ref, dy, dx, ho, wo, s):
        """Shifted (optionally strided) window, flattened & cast for the MXU."""
        if s == 1:
            p = ref[pl.ds(dy, ho), pl.ds(dx, wo), :]
        else:                                      # stride>1 convolutions
            p = ref[pl.ds(dy, ho, s), pl.ds(dx, wo, s), :]
        return p.reshape(ho * wo, ref.shape[-1]).astype(jnp.bfloat16)

    # ---- conv1 (3x3, stride) + folded BN1 + ReLU, f32 accumulation ----
    acc1 = jnp.zeros((Ho * Wo, Cmid), jnp.float32)
    for dy in range(3):
        for dx in range(3):
            acc1 += jnp.dot(tap(xpad, dy, dx, Ho, Wo, stride),
                            w1_ref[dy * 3 + dx],
                            preferred_element_type=jnp.float32)
    y1 = jnp.maximum(acc1 + b1_ref[...], 0.0)

    # ---- intermediate stays in VMEM (re-padded for conv2) ----
    midpad[...] = jnp.zeros_like(midpad)
    midpad[pl.ds(1, Ho), pl.ds(1, Wo), :] = y1.reshape(Ho, Wo, Cmid)

    # ---- conv2 (3x3, stride 1) + folded BN2 ----
    acc2 = jnp.zeros((Ho * Wo, Cout), jnp.float32)
    for dy in range(3):
        for dx in range(3):
            acc2 += jnp.dot(tap(midpad, dy, dx, Ho, Wo, 1),
                            w2_ref[dy * 3 + dx],
                            preferred_element_type=jnp.float32)
    out = acc2 + b2_ref[...]

    # ---- identity / downsample (1x1 conv + folded BN) ----
    if has_down:
        idp = tap(xpad, 1, 1, Ho, Wo, stride)      # == x[::s, ::s, :]
        ident = jnp.dot(idp, wd_ref[...],
                        preferred_element_type=jnp.float32) + bd_ref[...]
    else:
        ident = x.reshape(Ho * Wo, Cout)           # stride==1 and Cin==Cout

    # single fused store of the final result
    o_ref[0] = jnp.maximum(out + ident, 0.0).reshape(Ho, Wo, Cout)


# --------------------------------- wrapper ----------------------------------

def basic_block(x_nchw, p):
    """PyTorch BasicBlock.forward().  x_nchw: (N, Cin, H, W) f32 -> (N, Cout, Ho, Wo)."""
    x = jnp.transpose(x_nchw, (0, 2, 3, 1)).astype(jnp.float32)   # NCHW -> NHWC
    N, H, W, Cin = x.shape
    stride = p['stride']
    Ho = (H + 2 - 3) // stride + 1
    Wo = (W + 2 - 3) // stride + 1
    Cmid = p['w1'].shape[-1]
    Cout = p['w2'].shape[-1]
    has_down = 'wd' in p

    args = [x, p['w1'], p['b1'], p['w2'], p['b2']]
    in_specs = [
        pl.BlockSpec((1, H, W, Cin), lambda n: (n, 0, 0, 0)),
        pl.BlockSpec((9, Cin, Cmid), lambda n: (0, 0, 0)),   # weights stay resident
        pl.BlockSpec((1, Cmid), lambda n: (0, 0)),
        pl.BlockSpec((9, Cmid, Cout), lambda n: (0, 0, 0)),
        pl.BlockSpec((1, Cout), lambda n: (0, 0)),
    ]
    if has_down:
        args += [p['wd'], p['bd']]
        in_specs += [pl.BlockSpec((Cin, Cout), lambda n: (0, 0)),
                     pl.BlockSpec((1, Cout), lambda n: (0, 0))]

    out = pl.pallas_call(
        functools.partial(_basic_block_kernel, stride=stride, has_down=has_down),
        out_shape=jax.ShapeDtypeStruct((N, Ho, Wo, Cout), jnp.float32),
        grid=(N,),
        in_specs=in_specs,
        out_specs=pl.BlockSpec((1, Ho, Wo, Cout), lambda n: (n, 0, 0, 0)),
        scratch_shapes=[pltpu.VMEM((H + 2, W + 2, Cin), jnp.float32),
                        pltpu.VMEM((Ho + 2, Wo + 2, Cmid), jnp.float32)],
        compiler_params=pltpu.CompilerParams(
            dimension_semantics=("parallel",)),
    )(*args)
    return jnp.transpose(out, (0, 3, 1, 2))                       # NHWC -> NCHW


# ---------------------------- parameter factory -----------------------------

def make_basic_block(inplanes, planes, stride=1, rng=None, eps=1e-5):
    """Deterministic random BasicBlock params with BN folded (inference-mode)."""
    rng = np.random.default_rng(0) if rng is None else rng

    def convbn(cin, cout, k):
        w = rng.standard_normal((k, k, cin, cout)).astype(np.float32)
        w *= np.sqrt(2.0 / (k * k * cin))
        gamma = (1.0 + 0.1 * rng.standard_normal(cout)).astype(np.float32)
        beta = (0.1 * rng.standard_normal(cout)).astype(np.float32)
        mean = (0.1 * rng.standard_normal(cout)).astype(np.float32)
        var = (1.0 + 0.1 * np.abs(rng.standard_normal(cout))).astype(np.float32)
        scale = gamma / np.sqrt(var + eps)
        return (w * scale).astype(np.float32), (beta - mean * scale).astype(np.float32)

    w1, b1 = convbn(inplanes, planes, 3)
    w2, b2 = convbn(planes, planes, 3)
    p = dict(
        stride=stride,
        w1=jnp.asarray(w1.reshape(9, inplanes, planes), jnp.bfloat16),
        b1=jnp.asarray(b1.reshape(1, -1)),
        w2=jnp.asarray(w2.reshape(9, planes, planes), jnp.bfloat16),
        b2=jnp.asarray(b2.reshape(1, -1)),
        ref=dict(w1=jnp.asarray(w1), b1=jnp.asarray(b1),
                 w2=jnp.asarray(w2), b2=jnp.asarray(b2)),
    )
    if stride != 1 or inplanes != planes:          # same rule PyTorch _make_layer uses
        wd, bd = convbn(inplanes, planes, 1)
        p['wd'] = jnp.asarray(wd.reshape(inplanes, planes), jnp.bfloat16)
        p['bd'] = jnp.asarray(bd.reshape(1, -1))
        p['ref']['wd'] = jnp.asarray(wd)
        p['ref']['bd'] = jnp.asarray(bd)
    return p


# ---------------------------- pure-JAX reference ----------------------------

def basic_block_ref(x_nchw, p):
    """f32 reference with identical folded-BN math (for correctness checking)."""
    x = jnp.transpose(x_nchw, (0, 2, 3, 1)).astype(jnp.float32)
    r = p['ref']
    dn = ('NHWC', 'HWIO', 'NHWC')

    def conv(h, w, b, s, pad):
        y = jax.lax.conv_general_dilated(h, w, (s, s), pad, dimension_numbers=dn)
        return y + b.reshape(1, 1, 1, -1)

    out = jax.nn.relu(conv(x, r['w1'], r['b1'], p['stride'], ((1, 1), (1, 1))))
    out = conv(out, r['w2'], r['b2'], 1, ((1, 1), (1, 1)))
    if 'wd' in r:
        ident = conv(x, r['wd'], r['bd'], p['stride'], ((0, 0), (0, 0)))
    else:
        ident = x
    out = jax.nn.relu(out + ident)
    return jnp.transpose(out, (0, 3, 1, 2))


# ----------------------------------- main ------------------------------------

if __name__ == "__main__":
    key = jax.random.PRNGKey(0)
    N, Cin, H, W = 2, 32, 16, 16
    x = jax.random.normal(key, (N, Cin, H, W), dtype=jnp.float32)     # NCHW like PyTorch

    rng = np.random.default_rng(0)
    # Block 1: stride=1, no downsample (inplanes == planes) -- the HRNet-branch case.
    blk1 = make_basic_block(32, 32, stride=1, rng=rng)
    # Block 2: channel expansion 32 -> 64, exercises the downsample branch.
    blk2 = make_basic_block(32, 64, stride=1, rng=rng)

    fwd = jax.jit(lambda inp: basic_block(basic_block(inp, blk1), blk2))
    out = jax.block_until_ready(fwd(x))

    assert out.shape == (N, 64, H, W), out.shape
    assert bool(jnp.all(jnp.isfinite(out)))

    # Correctness vs pure-JAX f32 reference (bf16 GEMM operands -> loose tolerance).
    ref = basic_block_ref(basic_block_ref(x, blk1), blk2)
    max_err = float(jnp.max(jnp.abs(out - ref)))
    assert bool(jnp.allclose(out, ref, rtol=1e-1, atol=1e-1)), max_err

    print("KERNEL_OK")
</pallas_src>

<mosaic_0001>
module attributes {stable_mosaic.version = 11 : i64} {
  func.func @_basic_block_kernel(%arg0: i32, %arg1: memref<1x16x16x32xf32, #tpu.memory_space<vmem>>, %arg2: memref<9x32x32xbf16, #tpu.memory_space<vmem>>, %arg3: memref<1x32xf32, #tpu.memory_space<vmem>>, %arg4: memref<9x32x32xbf16, #tpu.memory_space<vmem>>, %arg5: memref<1x32xf32, #tpu.memory_space<vmem>>, %arg6: memref<1x16x16x32xf32, #tpu.memory_space<vmem>>, %arg7: memref<18x18x32xf32, #tpu.memory_space<vmem>>, %arg8: memref<18x18x32xf32, #tpu.memory_space<vmem>>) attributes {dimension_semantics = [#tpu.dimension_semantics<parallel>], iteration_bounds = array<i64: 2>, scalar_prefetch = 0 : i64, scratch_operands = 2 : i64, tpu.core_type = #tpu.core_type<tc>, window_params = [{transform_indices = @transform_0, window_bounds = array<i64: 1, 16, 16, 32>}, {pipeline_mode = #tpu.pipeline_mode<synchronous>, transform_indices = @transform_1, window_bounds = array<i64: 9, 32, 32>}, {pipeline_mode = #tpu.pipeline_mode<synchronous>, transform_indices = @transform_2, window_bounds = array<i64: 1, 32>}, {pipeline_mode = #tpu.pipeline_mode<synchronous>, transform_indices = @transform_3, window_bounds = array<i64: 9, 32, 32>}, {pipeline_mode = #tpu.pipeline_mode<synchronous>, transform_indices = @transform_4, window_bounds = array<i64: 1, 32>}, {transform_indices = @transform_5, window_bounds = array<i64: 1, 16, 16, 32>}]} {
    %c0 = arith.constant 0 : index
    %c0_0 = arith.constant 0 : index
    %c0_1 = arith.constant 0 : index
    %c0_2 = arith.constant 0 : index
    %0 = vector.load %arg1[%c0, %c0_0, %c0_1, %c0_2] : memref<1x16x16x32xf32, #tpu.memory_space<vmem>>, vector<1x16x16x32xf32>
    %1 = vector.shape_cast %0 : vector<1x16x16x32xf32> to vector<16x16x32xf32>
    %cst = arith.constant 0.000000e+00 : f32
    %2 = vector.broadcast %cst : f32 to vector<18x18x32xf32>
    %c0_3 = arith.constant 0 : index
    %c0_4 = arith.constant 0 : index
    %c0_5 = arith.constant 0 : index
    %3 = vector.load %arg7[%c0_3, %c0_4, %c0_5] : memref<18x18x32xf32, #tpu.memory_space<vmem>>, vector<18x18x32xf32>
    tpu.vector_store %arg7[%c0_3, %c0_4, %c0_5], %2 {strides = array<i32>} : memref<18x18x32xf32, #tpu.memory_space<vmem>>, vector<18x18x32xf32>,
    %c1 = arith.constant 1 : index
    %c1_6 = arith.constant 1 : index
    %c0_7 = arith.constant 0 : index
    %4 = vector.load %arg7[%c1, %c1_6, %c0_7] : memref<18x18x32xf32, #tpu.memory_space<vmem>>, vector<16x16x32xf32>
    tpu.vector_store %arg7[%c1, %c1_6, %c0_7], %1 {strides = array<i32>} : memref<18x18x32xf32, #tpu.memory_space<vmem>>, vector<16x16x32xf32>,
    %cst_8 = arith.constant 0.000000e+00 : f32
    %5 = vector.broadcast %cst_8 : f32 to vector<256x32xf32>
    %c0_9 = arith.constant 0 : index
    %c0_10 = arith.constant 0 : index
    %c0_11 = arith.constant 0 : index
    %6 = vector.load %arg7[%c0_9, %c0_10, %c0_11] : memref<18x18x32xf32, #tpu.memory_space<vmem>>, vector<16x16x32xf32>
    %7 = vector.shape_cast %6 : vector<16x16x32xf32> to vector<256x32xf32>
    %8 = arith.truncf %7 : vector<256x32xf32> to vector<256x32xbf16>
    %c0_12 = arith.constant 0 : index
    %c0_13 = arith.constant 0 : index
    %c0_14 = arith.constant 0 : index
    %9 = vector.load %arg2[%c0_12, %c0_13, %c0_14] : memref<9x32x32xbf16, #tpu.memory_space<vmem>>, vector<1x32x32xbf16>
    %10 = vector.shape_cast %9 : vector<1x32x32xbf16> to vector<32x32xbf16>
    %cst_15 = arith.constant dense<0.000000e+00> : vector<256x32xf32>
    %11 = tpu.matmul %8, %10, %cst_15 {dimension_numbers = #tpu.dot_dimension_numbers<[1], [0], [0], [1], [0, 0, 1, 1], [], []>} : vector<256x32xbf16>, vector<32x32xbf16>, vector<256x32xf32> -> vector<256x32xf32>
    %12 = arith.addf %5, %11 : vector<256x32xf32>
    %c0_16 = arith.constant 0 : index
    %c1_17 = arith.constant 1 : index
    %c0_18 = arith.constant 0 : index
    %13 = vector.load %arg7[%c0_16, %c1_17, %c0_18] : memref<18x18x32xf32, #tpu.memory_space<vmem>>, vector<16x16x32xf32>
    %14 = vector.shape_cast %13 : vector<16x16x32xf32> to vector<256x32xf32>
    %15 = arith.truncf %14 : vector<256x32xf32> to vector<256x32xbf16>
    %c1_19 = arith.constant 1 : index
    %c0_20 = arith.constant 0 : index
    %c0_21 = arith.constant 0 : index
    %16 = vector.load %arg2[%c1_19, %c0_20, %c0_21] : memref<9x32x32xbf16, #tpu.memory_space<vmem>>, vector<1x32x32xbf16>
    %17 = vector.shape_cast %16 : vector<1x32x32xbf16> to vector<32x32xbf16>
    %cst_22 = arith.constant dense<0.000000e+00> : vector<256x32xf32>
    %18 = tpu.matmul %15, %17, %cst_22 {dimension_numbers = #tpu.dot_dimension_numbers<[1], [0], [0], [1], [0, 0, 1, 1], [], []>} : vector<256x32xbf16>, vector<32x32xbf16>, vector<256x32xf32> -> vector<256x32xf32>
    %19 = arith.addf %12, %18 : vector<256x32xf32>
    %c0_23 = arith.constant 0 : index
    %c2 = arith.constant 2 : index
    %c0_24 = arith.constant 0 : index
    %20 = vector.load %arg7[%c0_23, %c2, %c0_24] : memref<18x18x32xf32, #tpu.memory_space<vmem>>, vector<16x16x32xf32>
    %21 = vector.shape_cast %20 : vector<16x16x32xf32> to vector<256x32xf32>
    %22 = arith.truncf %21 : vector<256x32xf32> to vector<256x32xbf16>
    %c2_25 = arith.constant 2 : index
    %c0_26 = arith.constant 0 : index
    %c0_27 = arith.constant 0 : index
    %23 = vector.load %arg2[%c2_25, %c0_26, %c0_27] : memref<9x32x32xbf16, #tpu.memory_space<vmem>>, vector<1x32x32xbf16>
    %24 = vector.shape_cast %23 : vector<1x32x32xbf16> to vector<32x32xbf16>
    %cst_28 = arith.constant dense<0.000000e+00> : vector<256x32xf32>
    %25 = tpu.matmul %22, %24, %cst_28 {dimension_numbers = #tpu.dot_dimension_numbers<[1], [0], [0], [1], [0, 0, 1, 1], [], []>} : vector<256x32xbf16>, vector<32x32xbf16>, vector<256x32xf32> -> vector<256x32xf32>
    %26 = arith.addf %19, %25 : vector<256x32xf32>
    %c1_29 = arith.constant 1 : index
    %c0_30 = arith.constant 0 : index
    %c0_31 = arith.constant 0 : index
    %27 = vector.load %arg7[%c1_29, %c0_30, %c0_31] : memref<18x18x32xf32, #tpu.memory_space<vmem>>, vector<16x16x32xf32>
    %28 = vector.shape_cast %27 : vector<16x16x32xf32> to vector<256x32xf32>
    %29 = arith.truncf %28 : vector<256x32xf32> to vector<256x32xbf16>
    %c3 = arith.constant 3 : index
    %c0_32 = arith.constant 0 : index
    %c0_33 = arith.constant 0 : index
    %30 = vector.load %arg2[%c3, %c0_32, %c0_33] : memref<9x32x32xbf16, #tpu.memory_space<vmem>>, vector<1x32x32xbf16>
    %31 = vector.shape_cast %30 : vector<1x32x32xbf16> to vector<32x32xbf16>
    %cst_34 = arith.constant dense<0.000000e+00> : vector<256x32xf32>
    %32 = tpu.matmul %29, %31, %cst_34 {dimension_numbers = #tpu.dot_dimension_numbers<[1], [0], [0], [1], [0, 0, 1, 1], [], []>} : vector<256x32xbf16>, vector<32x32xbf16>, vector<256x32xf32> -> vector<256x32xf32>
    %33 = arith.addf %26, %32 : vector<256x32xf32>
    %c1_35 = arith.constant 1 : index
    %c1_36 = arith.constant 1 : index
    %c0_37 = arith.constant 0 : index
    %34 = vector.load %arg7[%c1_35, %c1_36, %c0_37] : memref<18x18x32xf32, #tpu.memory_space<vmem>>, vector<16x16x32xf32>
    %35 = vector.shape_cast %34 : vector<16x16x32xf32> to vector<256x32xf32>
    %36 = arith.truncf %35 : vector<256x32xf32> to vector<256x32xbf16>
    %c4 = arith.constant 4 : index
    %c0_38 = arith.constant 0 : index
    %c0_39 = arith.constant 0 : index
    %37 = vector.load %arg2[%c4, %c0_38, %c0_39] : memref<9x32x32xbf16, #tpu.memory_space<vmem>>, vector<1x32x32xbf16>
    %38 = vector.shape_cast %37 : vector<1x32x32xbf16> to vector<32x32xbf16>
    %cst_40 = arith.constant dense<0.000000e+00> : vector<256x32xf32>
    %39 = tpu.matmul %36, %38, %cst_40 {dimension_numbers = #tpu.dot_dimension_numbers<[1], [0], [0], [1], [0, 0, 1, 1], [], []>} : vector<256x32xbf16>, vector<32x32xbf16>, vector<256x32xf32> -> vector<256x32xf32>
    %40 = arith.addf %33, %39 : vector<256x32xf32>
    %c1_41 = arith.constant 1 : index
    %c2_42 = arith.constant 2 : index
    %c0_43 = arith.constant 0 : index
    %41 = vector.load %arg7[%c1_41, %c2_42, %c0_43] : memref<18x18x32xf32, #tpu.memory_space<vmem>>, vector<16x16x32xf32>
    %42 = vector.shape_cast %41 : vector<16x16x32xf32> to vector<256x32xf32>
    %43 = arith.truncf %42 : vector<256x32xf32> to vector<256x32xbf16>
    %c5 = arith.constant 5 : index
    %c0_44 = arith.constant 0 : index
    %c0_45 = arith.constant 0 : index
    %44 = vector.load %arg2[%c5, %c0_44, %c0_45] : memref<9x32x32xbf16, #tpu.memory_space<vmem>>, vector<1x32x32xbf16>
    %45 = vector.shape_cast %44 : vector<1x32x32xbf16> to vector<32x32xbf16>
    %cst_46 = arith.constant dense<0.000000e+00> : vector<256x32xf32>
    %46 = tpu.matmul %43, %45, %cst_46 {dimension_numbers = #tpu.dot_dimension_numbers<[1], [0], [0], [1], [0, 0, 1, 1], [], []>} : vector<256x32xbf16>, vector<32x32xbf16>, vector<256x32xf32> -> vector<256x32xf32>
    %47 = arith.addf %40, %46 : vector<256x32xf32>
    %c2_47 = arith.constant 2 : index
    %c0_48 = arith.constant 0 : index
    %c0_49 = arith.constant 0 : index
    %48 = vector.load %arg7[%c2_47, %c0_48, %c0_49] : memref<18x18x32xf32, #tpu.memory_space<vmem>>, vector<16x16x32xf32>
    %49 = vector.shape_cast %48 : vector<16x16x32xf32> to vector<256x32xf32>
    %50 = arith.truncf %49 : vector<256x32xf32> to vector<256x32xbf16>
    %c6 = arith.constant 6 : index
    %c0_50 = arith.constant 0 : index
    %c0_51 = arith.constant 0 : index
    %51 = vector.load %arg2[%c6, %c0_50, %c0_51] : memref<9x32x32xbf16, #tpu.memory_space<vmem>>, vector<1x32x32xbf16>
    %52 = vector.shape_cast %51 : vector<1x32x32xbf16> to vector<32x32xbf16>
    %cst_52 = arith.constant dense<0.000000e+00> : vector<256x32xf32>
    %53 = tpu.matmul %50, %52, %cst_52 {dimension_numbers = #tpu.dot_dimension_numbers<[1], [0], [0], [1], [0, 0, 1, 1], [], []>} : vector<256x32xbf16>, vector<32x32xbf16>, vector<256x32xf32> -> vector<256x32xf32>
    %54 = arith.addf %47, %53 : vector<256x32xf32>
    %c2_53 = arith.constant 2 : index
    %c1_54 = arith.constant 1 : index
    %c0_55 = arith.constant 0 : index
    %55 = vector.load %arg7[%c2_53, %c1_54, %c0_55] : memref<18x18x32xf32, #tpu.memory_space<vmem>>, vector<16x16x32xf32>
    %56 = vector.shape_cast %55 : vector<16x16x32xf32> to vector<256x32xf32>
    %57 = arith.truncf %56 : vector<256x32xf32> to vector<256x32xbf16>
    %c7 = arith.constant 7 : index
    %c0_56 = arith.constant 0 : index
    %c0_57 = arith.constant 0 : index
    %58 = vector.load %arg2[%c7, %c0_56, %c0_57] : memref<9x32x32xbf16, #tpu.memory_space<vmem>>, vector<1x32x32xbf16>
    %59 = vector.shape_cast %58 : vector<1x32x32xbf16> to vector<32x32xbf16>
    %cst_58 = arith.constant dense<0.000000e+00> : vector<256x32xf32>
    %60 = tpu.matmul %57, %59, %cst_58 {dimension_numbers = #tpu.dot_dimension_numbers<[1], [0], [0], [1], [0, 0, 1, 1], [], []>} : vector<256x32xbf16>, vector<32x32xbf16>, vector<256x32xf32> -> vector<256x32xf32>
    %61 = arith.addf %54, %60 : vector<256x32xf32>
    %c2_59 = arith.constant 2 : index
    %c2_60 = arith.constant 2 : index
    %c0_61 = arith.constant 0 : index
    %62 = vector.load %arg7[%c2_59, %c2_60, %c0_61] : memref<18x18x32xf32, #tpu.memory_space<vmem>>, vector<16x16x32xf32>
    %63 = vector.shape_cast %62 : vector<16x16x32xf32> to vector<256x32xf32>
    %64 = arith.truncf %63 : vector<256x32xf32> to vector<256x32xbf16>
    %c8 = arith.constant 8 : index
    %c0_62 = arith.constant 0 : index
    %c0_63 = arith.constant 0 : index
    %65 = vector.load %arg2[%c8, %c0_62, %c0_63] : memref<9x32x32xbf16, #tpu.memory_space<vmem>>, vector<1x32x32xbf16>
    %66 = vector.shape_cast %65 : vector<1x32x32xbf16> to vector<32x32xbf16>
    %cst_64 = arith.constant dense<0.000000e+00> : vector<256x32xf32>
    %67 = tpu.matmul %64, %66, %cst_64 {dimension_numbers = #tpu.dot_dimension_numbers<[1], [0], [0], [1], [0, 0, 1, 1], [], []>} : vector<256x32xbf16>, vector<32x32xbf16>, vector<256x32xf32> -> vector<256x32xf32>
    %68 = arith.addf %61, %67 : vector<256x32xf32>
    %c0_65 = arith.constant 0 : index
    %c0_66 = arith.constant 0 : index
    %69 = vector.load %arg3[%c0_65, %c0_66] : memref<1x32xf32, #tpu.memory_space<vmem>>, vector<1x32xf32>
    %70 = vector.broadcast %69 : vector<1x32xf32> to vector<256x32xf32>
    %71 = arith.addf %68, %70 : vector<256x32xf32>
    %cst_67 = arith.constant 0.000000e+00 : f32
    %72 = vector.broadcast %cst_67 : f32 to vector<256x32xf32>
    %73 = arith.maximumf %71, %72 : vector<256x32xf32>
    %cst_68 = arith.constant 0.000000e+00 : f32
    %74 = vector.broadcast %cst_68 : f32 to vector<18x18x32xf32>
    %c0_69 = arith.constant 0 : index
    %c0_70 = arith.constant 0 : index
    %c0_71 = arith.constant 0 : index
    %75 = vector.load %arg8[%c0_69, %c0_70, %c0_71] : memref<18x18x32xf32, #tpu.memory_space<vmem>>, vector<18x18x32xf32>
    tpu.vector_store %arg8[%c0_69, %c0_70, %c0_71], %74 {strides = array<i32>} : memref<18x18x32xf32, #tpu.memory_space<vmem>>, vector<18x18x32xf32>,
    %76 = vector.shape_cast %73 : vector<256x32xf32> to vector<16x16x32xf32>
    %c1_72 = arith.constant 1 : index
    %c1_73 = arith.constant 1 : index
    %c0_74 = arith.constant 0 : index
    %77 = vector.load %arg8[%c1_72, %c1_73, %c0_74] : memref<18x18x32xf32, #tpu.memory_space<vmem>>, vector<16x16x32xf32>
    tpu.vector_store %arg8[%c1_72, %c1_73, %c0_74], %76 {strides = array<i32>} : memref<18x18x32xf32, #tpu.memory_space<vmem>>, vector<16x16x32xf32>,
    %cst_75 = arith.constant 0.000000e+00 : f32
    %78 = vector.broadcast %cst_75 : f32 to vector<256x32xf32>
    %c0_76 = arith.constant 0 : index
    %c0_77 = arith.constant 0 : index
    %c0_78 = arith.constant 0 : index
    %79 = vector.load %arg8[%c0_76, %c0_77, %c0_78] : memref<18x18x32xf32, #tpu.memory_space<vmem>>, vector<16x16x32xf32>
    %80 = vector.shape_cast %79 : vector<16x16x32xf32> to vector<256x32xf32>
    %81 = arith.truncf %80 : vector<256x32xf32> to vector<256x32xbf16>
    %c0_79 = arith.constant 0 : index
    %c0_80 = arith.constant 0 : index
    %c0_81 = arith.constant 0 : index
    %82 = vector.load %arg4[%c0_79, %c0_80, %c0_81] : memref<9x32x32xbf16, #tpu.memory_space<vmem>>, vector<1x32x32xbf16>
    %83 = vector.shape_cast %82 : vector<1x32x32xbf16> to vector<32x32xbf16>
    %cst_82 = arith.constant dense<0.000000e+00> : vector<256x32xf32>
    %84 = tpu.matmul %81, %83, %cst_82 {dimension_numbers = #tpu.dot_dimension_numbers<[1], [0], [0], [1], [0, 0, 1, 1], [], []>} : vector<256x32xbf16>, vector<32x32xbf16>, vector<256x32xf32> -> vector<256x32xf32>
    %85 = arith.addf %78, %84 : vector<256x32xf32>
    %c0_83 = arith.constant 0 : index
    %c1_84 = arith.constant 1 : index
    %c0_85 = arith.constant 0 : index
    %86 = vector.load %arg8[%c0_83, %c1_84, %c0_85] : memref<18x18x32xf32, #tpu.memory_space<vmem>>, vector<16x16x32xf32>
    %87 = vector.shape_cast %86 : vector<16x16x32xf32> to vector<256x32xf32>
    %88 = arith.truncf %87 : vector<256x32xf32> to vector<256x32xbf16>
    %c1_86 = arith.constant 1 : index
    %c0_87 = arith.constant 0 : index
    %c0_88 = arith.constant 0 : index
    %89 = vector.load %arg4[%c1_86, %c0_87, %c0_88] : memref<9x32x32xbf16, #tpu.memory_space<vmem>>, vector<1x32x32xbf16>
    %90 = vector.shape_cast %89 : vector<1x32x32xbf16> to vector<32x32xbf16>
    %cst_89 = arith.constant dense<0.000000e+00> : vector<256x32xf32>
    %91 = tpu.matmul %88, %90, %cst_89 {dimension_numbers = #tpu.dot_dimension_numbers<[1], [0], [0], [1], [0, 0, 1, 1], [], []>} : vector<256x32xbf16>, vector<32x32xbf16>, vector<256x32xf32> -> vector<256x32xf32>
    %92 = arith.addf %85, %91 : vector<256x32xf32>
    %c0_90 = arith.constant 0 : index
    %c2_91 = arith.constant 2 : index
    %c0_92 = arith.constant 0 : index
    %93 = vector.load %arg8[%c0_90, %c2_91, %c0_92] : memref<18x18x32xf32, #tpu.memory_space<vmem>>, vector<16x16x32xf32>
    %94 = vector.shape_cast %93 : vector<16x16x32xf32> to vector<256x32xf32>
    %95 = arith.truncf %94 : vector<256x32xf32> to vector<256x32xbf16>
    %c2_93 = arith.constant 2 : index
    %c0_94 = arith.constant 0 : index
    %c0_95 = arith.constant 0 : index
    %96 = vector.load %arg4[%c2_93, %c0_94, %c0_95] : memref<9x32x32xbf16, #tpu.memory_space<vmem>>, vector<1x32x32xbf16>
    %97 = vector.shape_cast %96 : vector<1x32x32xbf16> to vector<32x32xbf16>
    %cst_96 = arith.constant dense<0.000000e+00> : vector<256x32xf32>
    %98 = tpu.matmul %95, %97, %cst_96 {dimension_numbers = #tpu.dot_dimension_numbers<[1], [0], [0], [1], [0, 0, 1, 1], [], []>} : vector<256x32xbf16>, vector<32x32xbf16>, vector<256x32xf32> -> vector<256x32xf32>
    %99 = arith.addf %92, %98 : vector<256x32xf32>
    %c1_97 = arith.constant 1 : index
    %c0_98 = arith.constant 0 : index
    %c0_99 = arith.constant 0 : index
    %100 = vector.load %arg8[%c1_97, %c0_98, %c0_99] : memref<18x18x32xf32, #tpu.memory_space<vmem>>, vector<16x16x32xf32>
    %101 = vector.shape_cast %100 : vector<16x16x32xf32> to vector<256x32xf32>
    %102 = arith.truncf %101 : vector<256x32xf32> to vector<256x32xbf16>
    %c3_100 = arith.constant 3 : index
    %c0_101 = arith.constant 0 : index
    %c0_102 = arith.constant 0 : index
    %103 = vector.load %arg4[%c3_100, %c0_101, %c0_102] : memref<9x32x32xbf16, #tpu.memory_space<vmem>>, vector<1x32x32xbf16>
    %104 = vector.shape_cast %103 : vector<1x32x32xbf16> to vector<32x32xbf16>
    %cst_103 = arith.constant dense<0.000000e+00> : vector<256x32xf32>
    %105 = tpu.matmul %102, %104, %cst_103 {dimension_numbers = #tpu.dot_dimension_numbers<[1], [0], [0], [1], [0, 0, 1, 1], [], []>} : vector<256x32xbf16>, vector<32x32xbf16>, vector<256x32xf32> -> vector<256x32xf32>
    %106 = arith.addf %99, %105 : vector<256x32xf32>
    %c1_104 = arith.constant 1 : index
    %c1_105 = arith.constant 1 : index
    %c0_106 = arith.constant 0 : index
    %107 = vector.load %arg8[%c1_104, %c1_105, %c0_106] : memref<18x18x32xf32, #tpu.memory_space<vmem>>, vector<16x16x32xf32>
    %108 = vector.shape_cast %107 : vector<16x16x32xf32> to vector<256x32xf32>
    %109 = arith.truncf %108 : vector<256x32xf32> to vector<256x32xbf16>
    %c4_107 = arith.constant 4 : index
    %c0_108 = arith.constant 0 : index
    %c0_109 = arith.constant 0 : index
    %110 = vector.load %arg4[%c4_107, %c0_108, %c0_109] : memref<9x32x32xbf16, #tpu.memory_space<vmem>>, vector<1x32x32xbf16>
    %111 = vector.shape_cast %110 : vector<1x32x32xbf16> to vector<32x32xbf16>
    %cst_110 = arith.constant dense<0.000000e+00> : vector<256x32xf32>
    %112 = tpu.matmul %109, %111, %cst_110 {dimension_numbers = #tpu.dot_dimension_numbers<[1], [0], [0], [1], [0, 0, 1, 1], [], []>} : vector<256x32xbf16>, vector<32x32xbf16>, vector<256x32xf32> -> vector<256x32xf32>
    %113 = arith.addf %106, %112 : vector<256x32xf32>
    %c1_111 = arith.constant 1 : index
    %c2_112 = arith.constant 2 : index
    %c0_113 = arith.constant 0 : index
    %114 = vector.load %arg8[%c1_111, %c2_112, %c0_113] : memref<18x18x32xf32, #tpu.memory_space<vmem>>, vector<16x16x32xf32>
    %115 = vector.shape_cast %114 : vector<16x16x32xf32> to vector<256x32xf32>
    %116 = arith.truncf %115 : vector<256x32xf32> to vector<256x32xbf16>
    %c5_114 = arith.constant 5 : index
    %c0_115 = arith.constant 0 : index
    %c0_116 = arith.constant 0 : index
    %117 = vector.load %arg4[%c5_114, %c0_115, %c0_116] : memref<9x32x32xbf16, #tpu.memory_space<vmem>>, vector<1x32x32xbf16>
    %118 = vector.shape_cast %117 : vector<1x32x32xbf16> to vector<32x32xbf16>
    %cst_117 = arith.constant dense<0.000000e+00> : vector<256x32xf32>
    %119 = tpu.matmul %116, %118, %cst_117 {dimension_numbers = #tpu.dot_dimension_numbers<[1], [0], [0], [1], [0, 0, 1, 1], [], []>} : vector<256x32xbf16>, vector<32x32xbf16>, vector<256x32xf32> -> vector<256x32xf32>
    %120 = arith.addf %113, %119 : vector<256x32xf32>
    %c2_118 = arith.constant 2 : index
    %c0_119 = arith.constant 0 : index
    %c0_120 = arith.constant 0 : index
    %121 = vector.load %arg8[%c2_118, %c0_119, %c0_120] : memref<18x18x32xf32, #tpu.memory_space<vmem>>, vector<16x16x32xf32>
    %122 = vector.shape_cast %121 : vector<16x16x32xf32> to vector<256x32xf32>
    %123 = arith.truncf %122 : vector<256x32xf32> to vector<256x32xbf16>
    %c6_121 = arith.constant 6 : index
    %c0_122 = arith.constant 0 : index
    %c0_123 = arith.constant 0 : index
    %124 = vector.load %arg4[%c6_121, %c0_122, %c0_123] : memref<9x32x32xbf16, #tpu.memory_space<vmem>>, vector<1x32x32xbf16>
    %125 = vector.shape_cast %124 : vector<1x32x32xbf16> to vector<32x32xbf16>
    %cst_124 = arith.constant dense<0.000000e+00> : vector<256x32xf32>
    %126 = tpu.matmul %123, %125, %cst_124 {dimension_numbers = #tpu.dot_dimension_numbers<[1], [0], [0], [1], [0, 0, 1, 1], [], []>} : vector<256x32xbf16>, vector<32x32xbf16>, vector<256x32xf32> -> vector<256x32xf32>
    %127 = arith.addf %120, %126 : vector<256x32xf32>
    %c2_125 = arith.constant 2 : index
    %c1_126 = arith.constant 1 : index
    %c0_127 = arith.constant 0 : index
    %128 = vector.load %arg8[%c2_125, %c1_126, %c0_127] : memref<18x18x32xf32, #tpu.memory_space<vmem>>, vector<16x16x32xf32>
    %129 = vector.shape_cast %128 : vector<16x16x32xf32> to vector<256x32xf32>
    %130 = arith.truncf %129 : vector<256x32xf32> to vector<256x32xbf16>
    %c7_128 = arith.constant 7 : index
    %c0_129 = arith.constant 0 : index
    %c0_130 = arith.constant 0 : index
    %131 = vector.load %arg4[%c7_128, %c0_129, %c0_130] : memref<9x32x32xbf16, #tpu.memory_space<vmem>>, vector<1x32x32xbf16>
    %132 = vector.shape_cast %131 : vector<1x32x32xbf16> to vector<32x32xbf16>
    %cst_131 = arith.constant dense<0.000000e+00> : vector<256x32xf32>
    %133 = tpu.matmul %130, %132, %cst_131 {dimension_numbers = #tpu.dot_dimension_numbers<[1], [0], [0], [1], [0, 0, 1, 1], [], []>} : vector<256x32xbf16>, vector<32x32xbf16>, vector<256x32xf32> -> vector<256x32xf32>
    %134 = arith.addf %127, %133 : vector<256x32xf32>
    %c2_132 = arith.constant 2 : index
    %c2_133 = arith.constant 2 : index
    %c0_134 = arith.constant 0 : index
    %135 = vector.load %arg8[%c2_132, %c2_133, %c0_134] : memref<18x18x32xf32, #tpu.memory_space<vmem>>, vector<16x16x32xf32>
    %136 = vector.shape_cast %135 : vector<16x16x32xf32> to vector<256x32xf32>
    %137 = arith.truncf %136 : vector<256x32xf32> to vector<256x32xbf16>
    %c8_135 = arith.constant 8 : index
    %c0_136 = arith.constant 0 : index
    %c0_137 = arith.constant 0 : index
    %138 = vector.load %arg4[%c8_135, %c0_136, %c0_137] : memref<9x32x32xbf16, #tpu.memory_space<vmem>>, vector<1x32x32xbf16>
    %139 = vector.shape_cast %138 : vector<1x32x32xbf16> to vector<32x32xbf16>
    %cst_138 = arith.constant dense<0.000000e+00> : vector<256x32xf32>
    %140 = tpu.matmul %137, %139, %cst_138 {dimension_numbers = #tpu.dot_dimension_numbers<[1], [0], [0], [1], [0, 0, 1, 1], [], []>} : vector<256x32xbf16>, vector<32x32xbf16>, vector<256x32xf32> -> vector<256x32xf32>
    %141 = arith.addf %134, %140 : vector<256x32xf32>
    %c0_139 = arith.constant 0 : index
    %c0_140 = arith.constant 0 : index
    %142 = vector.load %arg5[%c0_139, %c0_140] : memref<1x32xf32, #tpu.memory_space<vmem>>, vector<1x32xf32>
    %143 = vector.broadcast %142 : vector<1x32xf32> to vector<256x32xf32>
    %144 = arith.addf %141, %143 : vector<256x32xf32>
    %145 = vector.shape_cast %1 : vector<16x16x32xf32> to vector<256x32xf32>
    %146 = arith.addf %144, %145 : vector<256x32xf32>
    %cst_141 = arith.constant 0.000000e+00 : f32
    %147 = vector.broadcast %cst_141 : f32 to vector<256x32xf32>
    %148 = arith.maximumf %146, %147 : vector<256x32xf32>
    %149 = vector.shape_cast %148 : vector<256x32xf32> to vector<16x16x32xf32>
    %c0_142 = arith.constant 0 : index
    %c0_143 = arith.constant 0 : index
    %c0_144 = arith.constant 0 : index
    %c0_145 = arith.constant 0 : index
    %150 = vector.load %arg6[%c0_142, %c0_143, %c0_144, %c0_145] : memref<1x16x16x32xf32, #tpu.memory_space<vmem>>, vector<1x16x16x32xf32>
    %151 = vector.shape_cast %150 : vector<1x16x16x32xf32> to vector<16x16x32xf32>
    %152 = vector.shape_cast %149 : vector<16x16x32xf32> to vector<1x16x16x32xf32>
    tpu.vector_store %arg6[%c0_142, %c0_143, %c0_144, %c0_145], %152 {strides = array<i32>} : memref<1x16x16x32xf32, #tpu.memory_space<vmem>>, vector<1x16x16x32xf32>,
    return
  }
  func.func @transform_0(%arg0: i32) -> (i32, i32, i32, i32) {
    %c0_i32 = arith.constant 0 : i32
    %c0_i32_0 = arith.constant 0 : i32
    %c0_i32_1 = arith.constant 0 : i32
    %c0_i32_2 = arith.constant 0 : i32
    return %arg0, %c0_i32, %c0_i32_0, %c0_i32_1 : i32, i32, i32, i32
  }
  func.func @transform_1(%arg0: i32) -> (i32, i32, i32) {
    %c0_i32 = arith.constant 0 : i32
    %c0_i32_0 = arith.constant 0 : i32
    %c0_i32_1 = arith.constant 0 : i32
    %c0_i32_2 = arith.constant 0 : i32
    return %c0_i32, %c0_i32_0, %c0_i32_1 : i32, i32, i32
  }
  func.func @transform_2(%arg0: i32) -> (i32, i32) {
    %c0_i32 = arith.constant 0 : i32
    %c0_i32_0 = arith.constant 0 : i32
    %c0_i32_1 = arith.constant 0 : i32
    return %c0_i32, %c0_i32_0 : i32, i32
  }
  func.func @transform_3(%arg0: i32) -> (i32, i32, i32) {
    %c0_i32 = arith.constant 0 : i32
    %c0_i32_0 = arith.constant 0 : i32
    %c0_i32_1 = arith.constant 0 : i32
    %c0_i32_2 = arith.constant 0 : i32
    return %c0_i32, %c0_i32_0, %c0_i32_1 : i32, i32, i32
  }
  func.func @transform_4(%arg0: i32) -> (i32, i32) {
    %c0_i32 = arith.constant 0 : i32
    %c0_i32_0 = arith.constant 0 : i32
    %c0_i32_1 = arith.constant 0 : i32
    return %c0_i32, %c0_i32_0 : i32, i32
  }
  func.func @transform_5(%arg0: i32) -> (i32, i32, i32, i32) {
    %c0_i32 = arith.constant 0 : i32
    %c0_i32_0 = arith.constant 0 : i32
    %c0_i32_1 = arith.constant 0 : i32
    %c0_i32_2 = arith.constant 0 : i32
    return %arg0, %c0_i32, %c0_i32_0, %c0_i32_1 : i32, i32, i32, i32
  }
}

module attributes {stable_mosaic.version = 11 : i64} {
  func.func @_basic_block_kernel(%arg0: i32, %arg1: memref<1x16x16x32xf32, #tpu.memory_space<vmem>>, %arg2: memref<9x32x64xbf16, #tpu.memory_space<vmem>>, %arg3: memref<1x64xf32, #tpu.memory_space<vmem>>, %arg4: memref<9x64x64xbf16, #tpu.memory_space<vmem>>, %arg5: memref<1x64xf32, #tpu.memory_space<vmem>>, %arg6: memref<32x64xbf16, #tpu.memory_space<vmem>>, %arg7: memref<1x64xf32, #tpu.memory_space<vmem>>, %arg8: memref<1x16x16x64xf32, #tpu.memory_space<vmem>>, %arg9: memref<18x18x32xf32, #tpu.memory_space<vmem>>, %arg10: memref<18x18x64xf32, #tpu.memory_space<vmem>>) attributes {dimension_semantics = [#tpu.dimension_semantics<parallel>], iteration_bounds = array<i64: 2>, scalar_prefetch = 0 : i64, scratch_operands = 2 : i64, tpu.core_type = #tpu.core_type<tc>, window_params = [{transform_indices = @transform_0, window_bounds = array<i64: 1, 16, 16, 32>}, {pipeline_mode = #tpu.pipeline_mode<synchronous>, transform_indices = @transform_1, window_bounds = array<i64: 9, 32, 64>}, {pipeline_mode = #tpu.pipeline_mode<synchronous>, transform_indices = @transform_2, window_bounds = array<i64: 1, 64>}, {pipeline_mode = #tpu.pipeline_mode<synchronous>, transform_indices = @transform_3, window_bounds = array<i64: 9, 64, 64>}, {pipeline_mode = #tpu.pipeline_mode<synchronous>, transform_indices = @transform_4, window_bounds = array<i64: 1, 64>}, {pipeline_mode = #tpu.pipeline_mode<synchronous>, transform_indices = @transform_5, window_bounds = array<i64: 32, 64>}, {pipeline_mode = #tpu.pipeline_mode<synchronous>, transform_indices = @transform_6, window_bounds = array<i64: 1, 64>}, {transform_indices = @transform_7, window_bounds = array<i64: 1, 16, 16, 64>}]} {
    %c0 = arith.constant 0 : index
    %c0_0 = arith.constant 0 : index
    %c0_1 = arith.constant 0 : index
    %c0_2 = arith.constant 0 : index
    %0 = vector.load %arg1[%c0, %c0_0, %c0_1, %c0_2] : memref<1x16x16x32xf32, #tpu.memory_space<vmem>>, vector<1x16x16x32xf32>
    %1 = vector.shape_cast %0 : vector<1x16x16x32xf32> to vector<16x16x32xf32>
    %cst = arith.constant 0.000000e+00 : f32
    %2 = vector.broadcast %cst : f32 to vector<18x18x32xf32>
    %c0_3 = arith.constant 0 : index
    %c0_4 = arith.constant 0 : index
    %c0_5 = arith.constant 0 : index
    %3 = vector.load %arg9[%c0_3, %c0_4, %c0_5] : memref<18x18x32xf32, #tpu.memory_space<vmem>>, vector<18x18x32xf32>
    tpu.vector_store %arg9[%c0_3, %c0_4, %c0_5], %2 {strides = array<i32>} : memref<18x18x32xf32, #tpu.memory_space<vmem>>, vector<18x18x32xf32>,
    %c1 = arith.constant 1 : index
    %c1_6 = arith.constant 1 : index
    %c0_7 = arith.constant 0 : index
    %4 = vector.load %arg9[%c1, %c1_6, %c0_7] : memref<18x18x32xf32, #tpu.memory_space<vmem>>, vector<16x16x32xf32>
    tpu.vector_store %arg9[%c1, %c1_6, %c0_7], %1 {strides = array<i32>} : memref<18x18x32xf32, #tpu.memory_space<vmem>>, vector<16x16x32xf32>,
    %cst_8 = arith.constant 0.000000e+00 : f32
    %5 = vector.broadcast %cst_8 : f32 to vector<256x64xf32>
    %c0_9 = arith.constant 0 : index
    %c0_10 = arith.constant 0 : index
    %c0_11 = arith.constant 0 : index
    %6 = vector.load %arg9[%c0_9, %c0_10, %c0_11] : memref<18x18x32xf32, #tpu.memory_space<vmem>>, vector<16x16x32xf32>
    %7 = vector.shape_cast %6 : vector<16x16x32xf32> to vector<256x32xf32>
    %8 = arith.truncf %7 : vector<256x32xf32> to vector<256x32xbf16>
    %c0_12 = arith.constant 0 : index
    %c0_13 = arith.constant 0 : index
    %c0_14 = arith.constant 0 : index
    %9 = vector.load %arg2[%c0_12, %c0_13, %c0_14] : memref<9x32x64xbf16, #tpu.memory_space<vmem>>, vector<1x32x64xbf16>
    %10 = vector.shape_cast %9 : vector<1x32x64xbf16> to vector<32x64xbf16>
    %cst_15 = arith.constant dense<0.000000e+00> : vector<256x64xf32>
    %11 = tpu.matmul %8, %10, %cst_15 {dimension_numbers = #tpu.dot_dimension_numbers<[1], [0], [0], [1], [0, 0, 1, 1], [], []>} : vector<256x32xbf16>, vector<32x64xbf16>, vector<256x64xf32> -> vector<256x64xf32>
    %12 = arith.addf %5, %11 : vector<256x64xf32>
    %c0_16 = arith.constant 0 : index
    %c1_17 = arith.constant 1 : index
    %c0_18 = arith.constant 0 : index
    %13 = vector.load %arg9[%c0_16, %c1_17, %c0_18] : memref<18x18x32xf32, #tpu.memory_space<vmem>>, vector<16x16x32xf32>
    %14 = vector.shape_cast %13 : vector<16x16x32xf32> to vector<256x32xf32>
    %15 = arith.truncf %14 : vector<256x32xf32> to vector<256x32xbf16>
    %c1_19 = arith.constant 1 : index
    %c0_20 = arith.constant 0 : index
    %c0_21 = arith.constant 0 : index
    %16 = vector.load %arg2[%c1_19, %c0_20, %c0_21] : memref<9x32x64xbf16, #tpu.memory_space<vmem>>, vector<1x32x64xbf16>
    %17 = vector.shape_cast %16 : vector<1x32x64xbf16> to vector<32x64xbf16>
    %cst_22 = arith.constant dense<0.000000e+00> : vector<256x64xf32>
    %18 = tpu.matmul %15, %17, %cst_22 {dimension_numbers = #tpu.dot_dimension_numbers<[1], [0], [0], [1], [0, 0, 1, 1], [], []>} : vector<256x32xbf16>, vector<32x64xbf16>, vector<256x64xf32> -> vector<256x64xf32>
    %19 = arith.addf %12, %18 : vector<256x64xf32>
    %c0_23 = arith.constant 0 : index
    %c2 = arith.constant 2 : index
    %c0_24 = arith.constant 0 : index
    %20 = vector.load %arg9[%c0_23, %c2, %c0_24] : memref<18x18x32xf32, #tpu.memory_space<vmem>>, vector<16x16x32xf32>
    %21 = vector.shape_cast %20 : vector<16x16x32xf32> to vector<256x32xf32>
    %22 = arith.truncf %21 : vector<256x32xf32> to vector<256x32xbf16>
    %c2_25 = arith.constant 2 : index
    %c0_26 = arith.constant 0 : index
    %c0_27 = arith.constant 0 : index
    %23 = vector.load %arg2[%c2_25, %c0_26, %c0_27] : memref<9x32x64xbf16, #tpu.memory_space<vmem>>, vector<1x32x64xbf16>
    %24 = vector.shape_cast %23 : vector<1x32x64xbf16> to vector<32x64xbf16>
    %cst_28 = arith.constant dense<0.000000e+00> : vector<256x64xf32>
    %25 = tpu.matmul %22, %24, %cst_28 {dimension_numbers = #tpu.dot_dimension_numbers<[1], [0], [0], [1], [0, 0, 1, 1], [], []>} : vector<256x32xbf16>, vector<32x64xbf16>, vector<256x64xf32> -> vector<256x64xf32>
    %26 = arith.addf %19, %25 : vector<256x64xf32>
    %c1_29 = arith.constant 1 : index
    %c0_30 = arith.constant 0 : index
    %c0_31 = arith.constant 0 : index
    %27 = vector.load %arg9[%c1_29, %c0_30, %c0_31] : memref<18x18x32xf32, #tpu.memory_space<vmem>>, vector<16x16x32xf32>
    %28 = vector.shape_cast %27 : vector<16x16x32xf32> to vector<256x32xf32>
    %29 = arith.truncf %28 : vector<256x32xf32> to vector<256x32xbf16>
    %c3 = arith.constant 3 : index
    %c0_32 = arith.constant 0 : index
    %c0_33 = arith.constant 0 : index
    %30 = vector.load %arg2[%c3, %c0_32, %c0_33] : memref<9x32x64xbf16, #tpu.memory_space<vmem>>, vector<1x32x64xbf16>
    %31 = vector.shape_cast %30 : vector<1x32x64xbf16> to vector<32x64xbf16>
    %cst_34 = arith.constant dense<0.000000e+00> : vector<256x64xf32>
    %32 = tpu.matmul %29, %31, %cst_34 {dimension_numbers = #tpu.dot_dimension_numbers<[1], [0], [0], [1], [0, 0, 1, 1], [], []>} : vector<256x32xbf16>, vector<32x64xbf16>, vector<256x64xf32> -> vector<256x64xf32>
    %33 = arith.addf %26, %32 : vector<256x64xf32>
    %c1_35 = arith.constant 1 : index
    %c1_36 = arith.constant 1 : index
    %c0_37 = arith.constant 0 : index
    %34 = vector.load %arg9[%c1_35, %c1_36, %c0_37] : memref<18x18x32xf32, #tpu.memory_space<vmem>>, vector<16x16x32xf32>
    %35 = vector.shape_cast %34 : vector<16x16x32xf32> to vector<256x32xf32>
    %36 = arith.truncf %35 : vector<256x32xf32> to vector<256x32xbf16>
    %c4 = arith.constant 4 : index
    %c0_38 = arith.constant 0 : index
    %c0_39 = arith.constant 0 : index
    %37 = vector.load %arg2[%c4, %c0_38, %c0_39] : memref<9x32x64xbf16, #tpu.memory_space<vmem>>, vector<1x32x64xbf16>
    %38 = vector.shape_cast %37 : vector<1x32x64xbf16> to vector<32x64xbf16>
    %cst_40 = arith.constant dense<0.000000e+00> : vector<256x64xf32>
    %39 = tpu.matmul %36, %38, %cst_40 {dimension_numbers = #tpu.dot_dimension_numbers<[1], [0], [0], [1], [0, 0, 1, 1], [], []>} : vector<256x32xbf16>, vector<32x64xbf16>, vector<256x64xf32> -> vector<256x64xf32>
    %40 = arith.addf %33, %39 : vector<256x64xf32>
    %c1_41 = arith.constant 1 : index
    %c2_42 = arith.constant 2 : index
    %c0_43 = arith.constant 0 : index
    %41 = vector.load %arg9[%c1_41, %c2_42, %c0_43] : memref<18x18x32xf32, #tpu.memory_space<vmem>>, vector<16x16x32xf32>
    %42 = vector.shape_cast %41 : vector<16x16x32xf32> to vector<256x32xf32>
    %43 = arith.truncf %42 : vector<256x32xf32> to vector<256x32xbf16>
    %c5 = arith.constant 5 : index
    %c0_44 = arith.constant 0 : index
    %c0_45 = arith.constant 0 : index
    %44 = vector.load %arg2[%c5, %c0_44, %c0_45] : memref<9x32x64xbf16, #tpu.memory_space<vmem>>, vector<1x32x64xbf16>
    %45 = vector.shape_cast %44 : vector<1x32x64xbf16> to vector<32x64xbf16>
    %cst_46 = arith.constant dense<0.000000e+00> : vector<256x64xf32>
    %46 = tpu.matmul %43, %45, %cst_46 {dimension_numbers = #tpu.dot_dimension_numbers<[1], [0], [0], [1], [0, 0, 1, 1], [], []>} : vector<256x32xbf16>, vector<32x64xbf16>, vector<256x64xf32> -> vector<256x64xf32>
    %47 = arith.addf %40, %46 : vector<256x64xf32>
    %c2_47 = arith.constant 2 : index
    %c0_48 = arith.constant 0 : index
    %c0_49 = arith.constant 0 : index
    %48 = vector.load %arg9[%c2_47, %c0_48, %c0_49] : memref<18x18x32xf32, #tpu.memory_space<vmem>>, vector<16x16x32xf32>
    %49 = vector.shape_cast %48 : vector<16x16x32xf32> to vector<256x32xf32>
    %50 = arith.truncf %49 : vector<256x32xf32> to vector<256x32xbf16>
    %c6 = arith.constant 6 : index
    %c0_50 = arith.constant 0 : index
    %c0_51 = arith.constant 0 : index
    %51 = vector.load %arg2[%c6, %c0_50, %c0_51] : memref<9x32x64xbf16, #tpu.memory_space<vmem>>, vector<1x32x64xbf16>
    %52 = vector.shape_cast %51 : vector<1x32x64xbf16> to vector<32x64xbf16>
    %cst_52 = arith.constant dense<0.000000e+00> : vector<256x64xf32>
    %53 = tpu.matmul %50, %52, %cst_52 {dimension_numbers = #tpu.dot_dimension_numbers<[1], [0], [0], [1], [0, 0, 1, 1], [], []>} : vector<256x32xbf16>, vector<32x64xbf16>, vector<256x64xf32> -> vector<256x64xf32>
    %54 = arith.addf %47, %53 : vector<256x64xf32>
    %c2_53 = arith.constant 2 : index
    %c1_54 = arith.constant 1 : index
    %c0_55 = arith.constant 0 : index
    %55 = vector.load %arg9[%c2_53, %c1_54, %c0_55] : memref<18x18x32xf32, #tpu.memory_space<vmem>>, vector<16x16x32xf32>
    %56 = vector.shape_cast %55 : vector<16x16x32xf32> to vector<256x32xf32>
    %57 = arith.truncf %56 : vector<256x32xf32> to vector<256x32xbf16>
    %c7 = arith.constant 7 : index
    %c0_56 = arith.constant 0 : index
    %c0_57 = arith.constant 0 : index
    %58 = vector.load %arg2[%c7, %c0_56, %c0_57] : memref<9x32x64xbf16, #tpu.memory_space<vmem>>, vector<1x32x64xbf16>
    %59 = vector.shape_cast %58 : vector<1x32x64xbf16> to vector<32x64xbf16>
    %cst_58 = arith.constant dense<0.000000e+00> : vector<256x64xf32>
    %60 = tpu.matmul %57, %59, %cst_58 {dimension_numbers = #tpu.dot_dimension_numbers<[1], [0], [0], [1], [0, 0, 1, 1], [], []>} : vector<256x32xbf16>, vector<32x64xbf16>, vector<256x64xf32> -> vector<256x64xf32>
    %61 = arith.addf %54, %60 : vector<256x64xf32>
    %c2_59 = arith.constant 2 : index
    %c2_60 = arith.constant 2 : index
    %c0_61 = arith.constant 0 : index
    %62 = vector.load %arg9[%c2_59, %c2_60, %c0_61] : memref<18x18x32xf32, #tpu.memory_space<vmem>>, vector<16x16x32xf32>
    %63 = vector.shape_cast %62 : vector<16x16x32xf32> to vector<256x32xf32>
    %64 = arith.truncf %63 : vector<256x32xf32> to vector<256x32xbf16>
    %c8 = arith.constant 8 : index
    %c0_62 = arith.constant 0 : index
    %c0_63 = arith.constant 0 : index
    %65 = vector.load %arg2[%c8, %c0_62, %c0_63] : memref<9x32x64xbf16, #tpu.memory_space<vmem>>, vector<1x32x64xbf16>
    %66 = vector.shape_cast %65 : vector<1x32x64xbf16> to vector<32x64xbf16>
    %cst_64 = arith.constant dense<0.000000e+00> : vector<256x64xf32>
    %67 = tpu.matmul %64, %66, %cst_64 {dimension_numbers = #tpu.dot_dimension_numbers<[1], [0], [0], [1], [0, 0, 1, 1], [], []>} : vector<256x32xbf16>, vector<32x64xbf16>, vector<256x64xf32> -> vector<256x64xf32>
    %68 = arith.addf %61, %67 : vector<256x64xf32>
    %c0_65 = arith.constant 0 : index
    %c0_66 = arith.constant 0 : index
    %69 = vector.load %arg3[%c0_65, %c0_66] : memref<1x64xf32, #tpu.memory_space<vmem>>, vector<1x64xf32>
    %70 = vector.broadcast %69 : vector<1x64xf32> to vector<256x64xf32>
    %71 = arith.addf %68, %70 : vector<256x64xf32>
    %cst_67 = arith.constant 0.000000e+00 : f32
    %72 = vector.broadcast %cst_67 : f32 to vector<256x64xf32>
    %73 = arith.maximumf %71, %72 : vector<256x64xf32>
    %cst_68 = arith.constant 0.000000e+00 : f32
    %74 = vector.broadcast %cst_68 : f32 to vector<18x18x64xf32>
    %c0_69 = arith.constant 0 : index
    %c0_70 = arith.constant 0 : index
    %c0_71 = arith.constant 0 : index
    %75 = vector.load %arg10[%c0_69, %c0_70, %c0_71] : memref<18x18x64xf32, #tpu.memory_space<vmem>>, vector<18x18x64xf32>
    tpu.vector_store %arg10[%c0_69, %c0_70, %c0_71], %74 {strides = array<i32>} : memref<18x18x64xf32, #tpu.memory_space<vmem>>, vector<18x18x64xf32>,
    %76 = vector.shape_cast %73 : vector<256x64xf32> to vector<16x16x64xf32>
    %c1_72 = arith.constant 1 : index
    %c1_73 = arith.constant 1 : index
    %c0_74 = arith.constant 0 : index
    %77 = vector.load %arg10[%c1_72, %c1_73, %c0_74] : memref<18x18x64xf32, #tpu.memory_space<vmem>>, vector<16x16x64xf32>
    tpu.vector_store %arg10[%c1_72, %c1_73, %c0_74], %76 {strides = array<i32>} : memref<18x18x64xf32, #tpu.memory_space<vmem>>, vector<16x16x64xf32>,
    %cst_75 = arith.constant 0.000000e+00 : f32
    %78 = vector.broadcast %cst_75 : f32 to vector<256x64xf32>
    %c0_76 = arith.constant 0 : index
    %c0_77 = arith.constant 0 : index
    %c0_78 = arith.constant 0 : index
    %79 = vector.load %arg10[%c0_76, %c0_77, %c0_78] : memref<18x18x64xf32, #tpu.memory_space<vmem>>, vector<16x16x64xf32>
    %80 = vector.shape_cast %79 : vector<16x16x64xf32> to vector<256x64xf32>
    %81 = arith.truncf %80 : vector<256x64xf32> to vector<256x64xbf16>
    %c0_79 = arith.constant 0 : index
    %c0_80 = arith.constant 0 : index
    %c0_81 = arith.constant 0 : index
    %82 = vector.load %arg4[%c0_79, %c0_80, %c0_81] : memref<9x64x64xbf16, #tpu.memory_space<vmem>>, vector<1x64x64xbf16>
    %83 = vector.shape_cast %82 : vector<1x64x64xbf16> to vector<64x64xbf16>
    %cst_82 = arith.constant dense<0.000000e+00> : vector<256x64xf32>
    %84 = tpu.matmul %81, %83, %cst_82 {dimension_numbers = #tpu.dot_dimension_numbers<[1], [0], [0], [1], [0, 0, 1, 1], [], []>} : vector<256x64xbf16>, vector<64x64xbf16>, vector<256x64xf32> -> vector<256x64xf32>
    %85 = arith.addf %78, %84 : vector<256x64xf32>
    %c0_83 = arith.constant 0 : index
    %c1_84 = arith.constant 1 : index
    %c0_85 = arith.constant 0 : index
    %86 = vector.load %arg10[%c0_83, %c1_84, %c0_85] : memref<18x18x64xf32, #tpu.memory_space<vmem>>, vector<16x16x64xf32>
    %87 = vector.shape_cast %86 : vector<16x16x64xf32> to vector<256x64xf32>
    %88 = arith.truncf %87 : vector<256x64xf32> to vector<256x64xbf16>
    %c1_86 = arith.constant 1 : index
    %c0_87 = arith.constant 0 : index
    %c0_88 = arith.constant 0 : index
    %89 = vector.load %arg4[%c1_86, %c0_87, %c0_88] : memref<9x64x64xbf16, #tpu.memory_space<vmem>>, vector<1x64x64xbf16>
    %90 = vector.shape_cast %89 : vector<1x64x64xbf16> to vector<64x64xbf16>
    %cst_89 = arith.constant dense<0.000000e+00> : vector<256x64xf32>
    %91 = tpu.matmul %88, %90, %cst_89 {dimension_numbers = #tpu.dot_dimension_numbers<[1], [0], [0], [1], [0, 0, 1, 1], [], []>} : vector<256x64xbf16>, vector<64x64xbf16>, vector<256x64xf32> -> vector<256x64xf32>
    %92 = arith.addf %85, %91 : vector<256x64xf32>
    %c0_90 = arith.constant 0 : index
    %c2_91 = arith.constant 2 : index
    %c0_92 = arith.constant 0 : index
    %93 = vector.load %arg10[%c0_90, %c2_91, %c0_92] : memref<18x18x64xf32, #tpu.memory_space<vmem>>, vector<16x16x64xf32>
    %94 = vector.shape_cast %93 : vector<16x16x64xf32> to vector<256x64xf32>
    %95 = arith.truncf %94 : vector<256x64xf32> to vector<256x64xbf16>
    %c2_93 = arith.constant 2 : index
    %c0_94 = arith.constant 0 : index
    %c0_95 = arith.constant 0 : index
    %96 = vector.load %arg4[%c2_93, %c0_94, %c0_95] : memref<9x64x64xbf16, #tpu.memory_space<vmem>>, vector<1x64x64xbf16>
    %97 = vector.shape_cast %96 : vector<1x64x64xbf16> to vector<64x64xbf16>
    %cst_96 = arith.constant dense<0.000000e+00> : vector<256x64xf32>
    %98 = tpu.matmul %95, %97, %cst_96 {dimension_numbers = #tpu.dot_dimension_numbers<[1], [0], [0], [1], [0, 0, 1, 1], [], []>} : vector<256x64xbf16>, vector<64x64xbf16>, vector<256x64xf32> -> vector<256x64xf32>
    %99 = arith.addf %92, %98 : vector<256x64xf32>
    %c1_97 = arith.constant 1 : index
    %c0_98 = arith.constant 0 : index
    %c0_99 = arith.constant 0 : index
    %100 = vector.load %arg10[%c1_97, %c0_98, %c0_99] : memref<18x18x64xf32, #tpu.memory_space<vmem>>, vector<16x16x64xf32>
    %101 = vector.shape_cast %100 : vector<16x16x64xf32> to vector<256x64xf32>
    %102 = arith.truncf %101 : vector<256x64xf32> to vector<256x64xbf16>
    %c3_100 = arith.constant 3 : index
    %c0_101 = arith.constant 0 : index
    %c0_102 = arith.constant 0 : index
    %103 = vector.load %arg4[%c3_100, %c0_101, %c0_102] : memref<9x64x64xbf16, #tpu.memory_space<vmem>>, vector<1x64x64xbf16>
    %104 = vector.shape_cast %103 : vector<1x64x64xbf16> to vector<64x64xbf16>
    %cst_103 = arith.constant dense<0.000000e+00> : vector<256x64xf32>
    %105 = tpu.matmul %102, %104, %cst_103 {dimension_numbers = #tpu.dot_dimension_numbers<[1], [0], [0], [1], [0, 0, 1, 1], [], []>} : vector<256x64xbf16>, vector<64x64xbf16>, vector<256x64xf32> -> vector<256x64xf32>
    %106 = arith.addf %99, %105 : vector<256x64xf32>
    %c1_104 = arith.constant 1 : index
    %c1_105 = arith.constant 1 : index
    %c0_106 = arith.constant 0 : index
    %107 = vector.load %arg10[%c1_104, %c1_105, %c0_106] : memref<18x18x64xf32, #tpu.memory_space<vmem>>, vector<16x16x64xf32>
    %108 = vector.shape_cast %107 : vector<16x16x64xf32> to vector<256x64xf32>
    %109 = arith.truncf %108 : vector<256x64xf32> to vector<256x64xbf16>
    %c4_107 = arith.constant 4 : index
    %c0_108 = arith.constant 0 : index
    %c0_109 = arith.constant 0 : index
    %110 = vector.load %arg4[%c4_107, %c0_108, %c0_109] : memref<9x64x64xbf16, #tpu.memory_space<vmem>>, vector<1x64x64xbf16>
    %111 = vector.shape_cast %110 : vector<1x64x64xbf16> to vector<64x64xbf16>
    %cst_110 = arith.constant dense<0.000000e+00> : vector<256x64xf32>
    %112 = tpu.matmul %109, %111, %cst_110 {dimension_numbers = #tpu.dot_dimension_numbers<[1], [0], [0], [1], [0, 0, 1, 1], [], []>} : vector<256x64xbf16>, vector<64x64xbf16>, vector<256x64xf32> -> vector<256x64xf32>
    %113 = arith.addf %106, %112 : vector<256x64xf32>
    %c1_111 = arith.constant 1 : index
    %c2_112 = arith.constant 2 : index
    %c0_113 = arith.constant 0 : index
    %114 = vector.load %arg10[%c1_111, %c2_112, %c0_113] : memref<18x18x64xf32, #tpu.memory_space<vmem>>, vector<16x16x64xf32>
    %115 = vector.shape_cast %114 : vector<16x16x64xf32> to vector<256x64xf32>
    %116 = arith.truncf %115 : vector<256x64xf32> to vector<256x64xbf16>
    %c5_114 = arith.constant 5 : index
    %c0_115 = arith.constant 0 : index
    %c0_116 = arith.constant 0 : index
    %117 = vector.load %arg4[%c5_114, %c0_115, %c0_116] : memref<9x64x64xbf16, #tpu.memory_space<vmem>>, vector<1x64x64xbf16>
    %118 = vector.shape_cast %117 : vector<1x64x64xbf16> to vector<64x64xbf16>
    %cst_117 = arith.constant dense<0.000000e+00> : vector<256x64xf32>
    %119 = tpu.matmul %116, %118, %cst_117 {dimension_numbers = #tpu.dot_dimension_numbers<[1], [0], [0], [1], [0, 0, 1, 1], [], []>} : vector<256x64xbf16>, vector<64x64xbf16>, vector<256x64xf32> -> vector<256x64xf32>
    %120 = arith.addf %113, %119 : vector<256x64xf32>
    %c2_118 = arith.constant 2 : index
    %c0_119 = arith.constant 0 : index
    %c0_120 = arith.constant 0 : index
    %121 = vector.load %arg10[%c2_118, %c0_119, %c0_120] : memref<18x18x64xf32, #tpu.memory_space<vmem>>, vector<16x16x64xf32>
    %122 = vector.shape_cast %121 : vector<16x16x64xf32> to vector<256x64xf32>
    %123 = arith.truncf %122 : vector<256x64xf32> to vector<256x64xbf16>
    %c6_121 = arith.constant 6 : index
    %c0_122 = arith.constant 0 : index
    %c0_123 = arith.constant 0 : index
    %124 = vector.load %arg4[%c6_121, %c0_122, %c0_123] : memref<9x64x64xbf16, #tpu.memory_space<vmem>>, vector<1x64x64xbf16>
    %125 = vector.shape_cast %124 : vector<1x64x64xbf16> to vector<64x64xbf16>
    %cst_124 = arith.constant dense<0.000000e+00> : vector<256x64xf32>
    %126 = tpu.matmul %123, %125, %cst_124 {dimension_numbers = #tpu.dot_dimension_numbers<[1], [0], [0], [1], [0, 0, 1, 1], [], []>} : vector<256x64xbf16>, vector<64x64xbf16>, vector<256x64xf32> -> vector<256x64xf32>
    %127 = arith.addf %120, %126 : vector<256x64xf32>
    %c2_125 = arith.constant 2 : index
    %c1_126 = arith.constant 1 : index
    %c0_127 = arith.constant 0 : index
    %128 = vector.load %arg10[%c2_125, %c1_126, %c0_127] : memref<18x18x64xf32, #tpu.memory_space<vmem>>, vector<16x16x64xf32>
    %129 = vector.shape_cast %128 : vector<16x16x64xf32> to vector<256x64xf32>
    %130 = arith.truncf %129 : vector<256x64xf32> to vector<256x64xbf16>
    %c7_128 = arith.constant 7 : index
    %c0_129 = arith.constant 0 : index
    %c0_130 = arith.constant 0 : index
    %131 = vector.load %arg4[%c7_128, %c0_129, %c0_130] : memref<9x64x64xbf16, #tpu.memory_space<vmem>>, vector<1x64x64xbf16>
    %132 = vector.shape_cast %131 : vector<1x64x64xbf16> to vector<64x64xbf16>
    %cst_131 = arith.constant dense<0.000000e+00> : vector<256x64xf32>
    %133 = tpu.matmul %130, %132, %cst_131 {dimension_numbers = #tpu.dot_dimension_numbers<[1], [0], [0], [1], [0, 0, 1, 1], [], []>} : vector<256x64xbf16>, vector<64x64xbf16>, vector<256x64xf32> -> vector<256x64xf32>
    %134 = arith.addf %127, %133 : vector<256x64xf32>
    %c2_132 = arith.constant 2 : index
    %c2_133 = arith.constant 2 : index
    %c0_134 = arith.constant 0 : index
    %135 = vector.load %arg10[%c2_132, %c2_133, %c0_134] : memref<18x18x64xf32, #tpu.memory_space<vmem>>, vector<16x16x64xf32>
    %136 = vector.shape_cast %135 : vector<16x16x64xf32> to vector<256x64xf32>
    %137 = arith.truncf %136 : vector<256x64xf32> to vector<256x64xbf16>
    %c8_135 = arith.constant 8 : index
    %c0_136 = arith.constant 0 : index
    %c0_137 = arith.constant 0 : index
    %138 = vector.load %arg4[%c8_135, %c0_136, %c0_137] : memref<9x64x64xbf16, #tpu.memory_space<vmem>>, vector<1x64x64xbf16>
    %139 = vector.shape_cast %138 : vector<1x64x64xbf16> to vector<64x64xbf16>
    %cst_138 = arith.constant dense<0.000000e+00> : vector<256x64xf32>
    %140 = tpu.matmul %137, %139, %cst_138 {dimension_numbers = #tpu.dot_dimension_numbers<[1], [0], [0], [1], [0, 0, 1, 1], [], []>} : vector<256x64xbf16>, vector<64x64xbf16>, vector<256x64xf32> -> vector<256x64xf32>
    %141 = arith.addf %134, %140 : vector<256x64xf32>
    %c0_139 = arith.constant 0 : index
    %c0_140 = arith.constant 0 : index
    %142 = vector.load %arg5[%c0_139, %c0_140] : memref<1x64xf32, #tpu.memory_space<vmem>>, vector<1x64xf32>
    %143 = vector.broadcast %142 : vector<1x64xf32> to vector<256x64xf32>
    %144 = arith.addf %141, %143 : vector<256x64xf32>
    %c1_141 = arith.constant 1 : index
    %c1_142 = arith.constant 1 : index
    %c0_143 = arith.constant 0 : index
    %145 = vector.load %arg9[%c1_141, %c1_142, %c0_143] : memref<18x18x32xf32, #tpu.memory_space<vmem>>, vector<16x16x32xf32>
    %146 = vector.shape_cast %145 : vector<16x16x32xf32> to vector<256x32xf32>
    %147 = arith.truncf %146 : vector<256x32xf32> to vector<256x32xbf16>
    %c0_144 = arith.constant 0 : index
    %c0_145 = arith.constant 0 : index
    %148 = vector.load %arg6[%c0_144, %c0_145] : memref<32x64xbf16, #tpu.memory_space<vmem>>, vector<32x64xbf16>
    %cst_146 = arith.constant dense<0.000000e+00> : vector<256x64xf32>
    %149 = tpu.matmul %147, %148, %cst_146 {dimension_numbers = #tpu.dot_dimension_numbers<[1], [0], [0], [1], [0, 0, 1, 1], [], []>} : vector<256x32xbf16>, vector<32x64xbf16>, vector<256x64xf32> -> vector<256x64xf32>
    %c0_147 = arith.constant 0 : index
    %c0_148 = arith.constant 0 : index
    %150 = vector.load %arg7[%c0_147, %c0_148] : memref<1x64xf32, #tpu.memory_space<vmem>>, vector<1x64xf32>
    %151 = vector.broadcast %150 : vector<1x64xf32> to vector<256x64xf32>
    %152 = arith.addf %149, %151 : vector<256x64xf32>
    %153 = arith.addf %144, %152 : vector<256x64xf32>
    %cst_149 = arith.constant 0.000000e+00 : f32
    %154 = vector.broadcast %cst_149 : f32 to vector<256x64xf32>
    %155 = arith.maximumf %153, %154 : vector<256x64xf32>
    %156 = vector.shape_cast %155 : vector<256x64xf32> to vector<16x16x64xf32>
    %c0_150 = arith.constant 0 : index
    %c0_151 = arith.constant 0 : index
    %c0_152 = arith.constant 0 : index
    %c0_153 = arith.constant 0 : index
    %157 = vector.load %arg8[%c0_150, %c0_151, %c0_152, %c0_153] : memref<1x16x16x64xf32, #tpu.memory_space<vmem>>, vector<1x16x16x64xf32>
    %158 = vector.shape_cast %157 : vector<1x16x16x64xf32> to vector<16x16x64xf32>
    %159 = vector.shape_cast %156 : vector<16x16x64xf32> to vector<1x16x16x64xf32>
    tpu.vector_store %arg8[%c0_150, %c0_151, %c0_152, %c0_153], %159 {strides = array<i32>} : memref<1x16x16x64xf32, #tpu.memory_space<vmem>>, vector<1x16x16x64xf32>,
    return
  }
  func.func @transform_0(%arg0: i32) -> (i32, i32, i32, i32) {
    %c0_i32 = arith.constant 0 : i32
    %c0_i32_0 = arith.constant 0 : i32
    %c0_i32_1 = arith.constant 0 : i32
    %c0_i32_2 = arith.constant 0 : i32
    return %arg0, %c0_i32, %c0_i32_0, %c0_i32_1 : i32, i32, i32, i32
  }
  func.func @transform_1(%arg0: i32) -> (i32, i32, i32) {
    %c0_i32 = arith.constant 0 : i32
    %c0_i32_0 = arith.constant 0 : i32
    %c0_i32_1 = arith.constant 0 : i32
    %c0_i32_2 = arith.constant 0 : i32
    return %c0_i32, %c0_i32_0, %c0_i32_1 : i32, i32, i32
  }
  func.func @transform_2(%arg0: i32) -> (i32, i32) {
    %c0_i32 = arith.constant 0 : i32
    %c0_i32_0 = arith.constant 0 : i32
    %c0_i32_1 = arith.constant 0 : i32
    return %c0_i32, %c0_i32_0 : i32, i32
  }
  func.func @transform_3(%arg0: i32) -> (i32, i32, i32) {
    %c0_i32 = arith.constant 0 : i32
    %c0_i32_0 = arith.constant 0 : i32
    %c0_i32_1 = arith.constant 0 : i32
    %c0_i32_2 = arith.constant 0 : i32
    return %c0_i32, %c0_i32_0, %c0_i32_1 : i32, i32, i32
  }
  func.func @transform_4(%arg0: i32) -> (i32, i32) {
    %c0_i32 = arith.constant 0 : i32
    %c0_i32_0 = arith.constant 0 : i32
    %c0_i32_1 = arith.constant 0 : i32
    return %c0_i32, %c0_i32_0 : i32, i32
  }
  func.func @transform_5(%arg0: i32) -> (i32, i32) {
    %c0_i32 = arith.constant 0 : i32
    %c0_i32_0 = arith.constant 0 : i32
    %c0_i32_1 = arith.constant 0 : i32
    return %c0_i32, %c0_i32_0 : i32, i32
  }
  func.func @transform_6(%arg0: i32) -> (i32, i32) {
    %c0_i32 = arith.constant 0 : i32
    %c0_i32_0 = arith.constant 0 : i32
    %c0_i32_1 = arith.constant 0 : i32
    return %c0_i32, %c0_i32_0 : i32, i32
  }
  func.func @transform_7(%arg0: i32) -> (i32, i32, i32, i32) {
    %c0_i32 = arith.constant 0 : i32
    %c0_i32_0 = arith.constant 0 : i32
    %c0_i32_1 = arith.constant 0 : i32
    %c0_i32_2 = arith.constant 0 : i32
    return %arg0, %c0_i32, %c0_i32_0, %c0_i32_1 : i32, i32, i32, i32
  }
}

</mosaic_0001>

<llo_original>
// kernel: _lambda_.2
$region0: #{_lambda_.2}
  #allocation0 [shape = 'u32[]', space=smem, size = 0x4, offset = 0x4, fixed_abs, tag = 'smem constant byte address 0x4 - core index']
  #allocation1 [shape = 'u32[72,128]{1,0:T(1,128)}', space=vmem, size = 0x9000, scoped, tag = 'internal scratch']
  #allocation2 [shape = 'f32[18,18,32]{2,1,0:T(8,128)}', space=vmem, size = 0x36000, scoped, tag = 'scratch operand']
  #allocation3 [shape = 'f32[18,18,32]{2,1,0:T(8,128)}', space=vmem, size = 0x36000, scoped, tag = 'scratch operand']
  %s0 = inlined_call_operand.hbm [shape: f32[2,16,16,32], index: 0, kind: input, shape index: {}]
  %s1 = inlined_call_operand.hbm [shape: bf16[9,32,32], index: 1, kind: input, shape index: {}]
  %s2 = inlined_call_operand.vmem [shape: f32[1,32], index: 2, kind: input, shape index: {}]
  %s3 = inlined_call_operand.hbm [shape: bf16[9,32,32], index: 3, kind: input, shape index: {}]
  %s4 = inlined_call_operand.vmem [shape: f32[1,32], index: 4, kind: input, shape index: {}]
  %s5 = inlined_call_operand.vmem [shape: f32[2,16,16,32], index: 5, kind: output, shape index: {}]
  %s6 = sld [smem:[#allocation0]]
  $region65: #{_lambda_.2} parent=0
    _
  %s8 = ssub.s32 1, %s6
  %s9 = scalar_select 0, %s8, %s6
  $region1: #{_lambda_.2} parent=0
    #allocation4 [shape = 'u8[262144]{0}', space=vmem, size = 0x40000, scoped, tag = 'input window, operand 0']
    #allocation5 [shape = 's32[2]{0}', space=sflag, size = 0x8, scoped, tag = 'scoped memory for _lambda_.2']
    #allocation6 [shape = 'u8[73728]{0}', space=vmem, size = 0x12000, scoped, tag = 'input window, operand 1, single buffered']
    #allocation7 [shape = 's32[1]{0}', space=sflag, size = 0x4, scoped, tag = 'scoped memory for _lambda_.2']
    #allocation8 [shape = 'u8[73728]{0}', space=vmem, size = 0x12000, scoped, tag = 'input window, operand 3, single buffered']
    %10 = vsyncpa [#allocation5], 0
    %s11 = scalar_lea.sflag [#allocation5], 1
    %12 = vsyncpa %s11, 0
    %13 = vsyncpa [#allocation7], 0
    loop: start=0, step=1, limit=4
    $region2: #{_lambda_.2} parent=1 // loop_pre_header
      _
    $region3: #{_lambda_.2} parent=1 // loop_header
      %s15 = sphi 0, %s19
      %p16 = scmp.ge.s32.totalorder %s15, 4
      %s25 = sphi 0, %s27
      %s28 = sphi 0, %s25
      %s29 = sphi 0, %s28
      %s45 = sphi 0, %s29
      %s49 = sphi 0, %s49
      %s51 = sphi 0, %s49
      %s52 = sphi 0, %s51
      %s66 = sphi 0, %s52
      %s70 = sphi 0, %s70
      %s72 = sphi 0, %s70
      %s73 = sphi 0, %s72
      %s87 = sphi 0, %s73
      %s91 = sphi 0, %s91
      %s93 = sphi 0, %s91
      %s94 = sphi 0, %s93
      %s108 = sphi 0, %s94
      %s112 = sphi 0, %s112
      %s114 = sphi 0, %s112
      %s115 = sphi 0, %s114
      %s129 = sphi 0, %s115
      %s135 = sphi 0, %s137
      %s138 = sphi 0, %s135
      %s139 = sphi 0, %s138
      %s155 = sphi 0, %s139
    $region4: #{_lambda_.2} parent=1 // loop_header_branch
      %18 = sbr.rel (%p16) target = $region8
    $region5: #{_lambda_.2} parent=1 // loop_body
      %s20 = ssub.s32 %s15, 1
      %s21 = ssub.s32 %s15, 2
      %s22 = sadd.s32 %s15, 1
      %s23 = ssub.s32 %s15, %s22
      %p24 = scmp.eq.s32.totalorder %s23, 0
      %s26 = sadd.s32 %s25, 1
      %s27 = scalar_select %p24, %s25, %s26
      %p30 = pneg %p24
      %p31 = scmp.eq.s32.totalorder %s15, 1
      %p32 = por %p30, %p31
      %p33 = scmp.ne.s32.totalorder %s25, %s28
      %p34 = scmp.eq.s32.totalorder %s15, 0
      %p35 = por %p33, %p34
      %p36 = scmp.ne.s32.totalorder %s25, %s28
      %p37 = scmp.eq.s32.totalorder %s20, 1
      %p38 = por %p36, %p37
      %p39 = scmp.ne.s32.totalorder %s28, %s29
      %p40 = scmp.eq.s32.totalorder %s20, 0
      %p41 = por %p39, %p40
      %p42 = scmp.ne.s32.totalorder %s28, %s29
      %p43 = scmp.eq.s32.totalorder %s21, 1
      %p44 = por %p42, %p43
      %p46 = scmp.ne.s32.totalorder %s29, %s45
      %p47 = scmp.eq.s32.totalorder %s21, 0
      %p48 = por %p46, %p47
      %s50 = sadd.s32 %s49, 1
      %p53 = scmp.eq.s32.totalorder %s15, 1
      %p54 = scmp.ne.s32.totalorder %s49, %s51
      %p55 = scmp.eq.s32.totalorder %s15, 0
      %p56 = por %p54, %p55
      %p57 = scmp.ne.s32.totalorder %s49, %s51
      %p58 = scmp.eq.s32.totalorder %s20, 1
      %p59 = por %p57, %p58
      %p60 = scmp.ne.s32.totalorder %s51, %s52
      %p61 = scmp.eq.s32.totalorder %s20, 0
      %p62 = por %p60, %p61
      %p63 = scmp.ne.s32.totalorder %s51, %s52
      %p64 = scmp.eq.s32.totalorder %s21, 1
      %p65 = por %p63, %p64
      %p67 = scmp.ne.s32.totalorder %s52, %s66
      %p68 = scmp.eq.s32.totalorder %s21, 0
      %p69 = por %p67, %p68
      %s71 = sadd.s32 %s70, 1
      %p74 = scmp.eq.s32.totalorder %s15, 1
      %p75 = scmp.ne.s32.totalorder %s70, %s72
      %p76 = scmp.eq.s32.totalorder %s15, 0
      %p77 = por %p75, %p76
      %p78 = scmp.ne.s32.totalorder %s70, %s72
      %p79 = scmp.eq.s32.totalorder %s20, 1
      %p80 = por %p78, %p79
      %p81 = scmp.ne.s32.totalorder %s72, %s73
      %p82 = scmp.eq.s32.totalorder %s20, 0
      %p83 = por %p81, %p82
      %p84 = scmp.ne.s32.totalorder %s72, %s73
      %p85 = scmp.eq.s32.totalorder %s21, 1
      %p86 = por %p84, %p85
      %p88 = scmp.ne.s32.totalorder %s73, %s87
      %p89 = scmp.eq.s32.totalorder %s21, 0
      %p90 = por %p88, %p89
      %s92 = sadd.s32 %s91, 1
      %p95 = scmp.eq.s32.totalorder %s15, 1
      %p96 = scmp.ne.s32.totalorder %s91, %s93
      %p97 = scmp.eq.s32.totalorder %s15, 0
      %p98 = por %p96, %p97
      %p99 = scmp.ne.s32.totalorder %s91, %s93
      %p100 = scmp.eq.s32.totalorder %s20, 1
      %p101 = por %p99, %p100
      %p102 = scmp.ne.s32.totalorder %s93, %s94
      %p103 = scmp.eq.s32.totalorder %s20, 0
      %p104 = por %p102, %p103
      %p105 = scmp.ne.s32.totalorder %s93, %s94
      %p106 = scmp.eq.s32.totalorder %s21, 1
      %p107 = por %p105, %p106
      %p109 = scmp.ne.s32.totalorder %s94, %s108
      %p110 = scmp.eq.s32.totalorder %s21, 0
      %p111 = por %p109, %p110
      %s113 = sadd.s32 %s112, 1
      %p116 = scmp.eq.s32.totalorder %s15, 1
      %p117 = scmp.ne.s32.totalorder %s112, %s114
      %p118 = scmp.eq.s32.totalorder %s15, 0
      %p119 = por %p117, %p118
      %p120 = scmp.ne.s32.totalorder %s112, %s114
      %p121 = scmp.eq.s32.totalorder %s20, 1
      %p122 = por %p120, %p121
      %p123 = scmp.ne.s32.totalorder %s114, %s115
      %p124 = scmp.eq.s32.totalorder %s20, 0
      %p125 = por %p123, %p124
      %p126 = scmp.ne.s32.totalorder %s114, %s115
      %p127 = scmp.eq.s32.totalorder %s21, 1
      %p128 = por %p126, %p127
      %p130 = scmp.ne.s32.totalorder %s115, %s129
      %p131 = scmp.eq.s32.totalorder %s21, 0
      %p132 = por %p130, %p131
      %s133 = ssub.s32 %s15, %s22
      %p134 = scmp.eq.s32.totalorder %s133, 0
      %s136 = sadd.s32 %s135, 1
      %s137 = scalar_select %p134, %s135, %s136
      %p140 = pneg %p134
      %p141 = scmp.eq.s32.totalorder %s15, 1
      %p142 = por %p140, %p141
      %p143 = scmp.ne.s32.totalorder %s135, %s138
      %p144 = scmp.eq.s32.totalorder %s15, 0
      %p145 = por %p143, %p144
      %p146 = scmp.ne.s32.totalorder %s135, %s138
      %p147 = scmp.eq.s32.totalorder %s20, 1
      %p148 = por %p146, %p147
      %p149 = scmp.ne.s32.totalorder %s138, %s139
      %p150 = scmp.eq.s32.totalorder %s20, 0
      %p151 = por %p149, %p150
      %p152 = scmp.ne.s32.totalorder %s138, %s139
      %p153 = scmp.eq.s32.totalorder %s21, 1
      %p154 = por %p152, %p153
      %p156 = scmp.ne.s32.totalorder %s139, %s155
      %p157 = scmp.eq.s32.totalorder %s21, 0
      %p158 = por %p156, %p157
      %p159 = scmp.le.s32.totalorder 1, %s15
      %p160 = scmp.lt.s32.totalorder %s15, 3
      %p161 = pnand %p159, %p160
      %p162 = pneg %p161
      // Predicated region
      $region9: #{_lambda_.2} parent=5 // pred_check
        _
      $region10: #{_lambda_.2} parent=5 // pred_check_branch
        %164 = sbr.rel (%p161) target = $region12
      $region11: #{_lambda_.2} parent=5 // pred_region
        %s165 = ssub.s32 %s15, 1
        // Predicated region
        $region13: #{_lambda_.2} parent=11 // pred_check
          %p166 = pneg %p62
        $region14: #{_lambda_.2} parent=11 // pred_check_branch
          %168 = sbr.rel (%p166) target = $region16
        $region15: #{_lambda_.2} parent=11 // pred_region
          %170 = vsyncadd [#allocation7], 0
          %s171 = sshll.u32 %s1, 4
          %s172 = int_to_ptr.hbm [resolvable:$true] %s171
          %s173 = sshll.u32 [#allocation6], 4
          %s174 = int_to_ptr.vmem [resolvable:$true] %s173
          %179 = dma.hbm_to_vmem [thread:$0]  %s172, 2304, %s174, [#allocation7], 64, 64, 4
        $region16: #{_lambda_.2} parent=11 // pred_fallthru
          _
        // Predicated region
        $region17: #{_lambda_.2} parent=11 // pred_check
          %p180 = pneg %p83
        $region18: #{_lambda_.2} parent=11 // pred_check_branch
          %182 = sbr.rel (%p180) target = $region20
        $region19: #{_lambda_.2} parent=11 // pred_region
          _
        $region20: #{_lambda_.2} parent=11 // pred_fallthru
          _
        // Predicated region
        $region21: #{_lambda_.2} parent=11 // pred_check
          %p183 = pneg %p104
        $region22: #{_lambda_.2} parent=11 // pred_check_branch
          %185 = sbr.rel (%p183) target = $region24
        $region23: #{_lambda_.2} parent=11 // pred_region
          %187 = vsyncadd [#allocation7], 0
          %s188 = sshll.u32 %s3, 4
          %s189 = int_to_ptr.hbm [resolvable:$true] %s188
          %s190 = sshll.u32 [#allocation8], 4
          %s191 = int_to_ptr.vmem [resolvable:$true] %s190
          %196 = dma.hbm_to_vmem [thread:$0]  %s189, 2304, %s191, [#allocation7], 64, 64, 4
        $region24: #{_lambda_.2} parent=11 // pred_fallthru
          _
        // Predicated region
        $region25: #{_lambda_.2} parent=11 // pred_check
          %p197 = pneg %p125
        $region26: #{_lambda_.2} parent=11 // pred_check_branch
          %199 = sbr.rel (%p197) target = $region28
        $region27: #{_lambda_.2} parent=11 // pred_region
          _
        $region28: #{_lambda_.2} parent=11 // pred_fallthru
          _
      $region12: #{_lambda_.2} parent=5 // pred_fallthru
        _
      %p200 = scmp.lt.s32.totalorder %s15, 2
      // Predicated region
      $region29: #{_lambda_.2} parent=5 // pred_check
        %p201 = pneg %p200
      $region30: #{_lambda_.2} parent=5 // pred_check_branch
        %203 = sbr.rel (%p201) target = $region32
      $region31: #{_lambda_.2} parent=5 // pred_region
        // Predicated region
        $region33: #{_lambda_.2} parent=31 // pred_check
          %p204 = pneg %p35
        $region34: #{_lambda_.2} parent=31 // pred_check_branch
          %206 = sbr.rel (%p204) target = $region36
        $region35: #{_lambda_.2} parent=31 // pred_region
          %s207 = sand.u32 %s25, 1
          %s208 = scalar_lea.sflag [#allocation5], %s207
          %s209 = sand.u32 %s25, 1
          %s210 = smul.addr %s209, 256
          %s211 = scalar_lea.vmem [#allocation4], %s210
          %213 = vsyncadd %s208, 0
          %s214 = smul.addr %s15, 32
          %s215 = smul.addr %s214, 8
          %s216 = scalar_lea.hbm %s0, %s215
          %s217 = sshll.u32 %s216, 4
          %s218 = int_to_ptr.hbm [resolvable:$true] %s217
          %s219 = sshll.u32 %s211, 4
          %s220 = int_to_ptr.vmem [resolvable:$true] %s219
          %225 = dma.hbm_to_vmem [thread:$0]  %s218, 4096, %s220, %s208, 128, 128, 8
        $region36: #{_lambda_.2} parent=31 // pred_fallthru
          _
      $region32: #{_lambda_.2} parent=5 // pred_fallthru
        _
      %p226 = scmp.le.s32.totalorder 1, %s15
      %p227 = scmp.lt.s32.totalorder %s15, 3
      %p228 = pnand %p226, %p227
      %p229 = pneg %p228
      // Predicated region
      $region37: #{_lambda_.2} parent=5 // pred_check
        _
      $region38: #{_lambda_.2} parent=5 // pred_check_branch
        %231 = sbr.rel (%p228) target = $region40
      $region39: #{_lambda_.2} parent=5 // pred_region
        %s232 = ssub.s32 %s15, 1
        %s233 = sand.u32 %s28, 1
        %s234 = scalar_lea.sflag [#allocation5], %s233
        %s235 = sand.u32 %s28, 1
        %s236 = smul.addr %s235, 256
        %s237 = scalar_lea.vmem [#allocation4], %s236
        // Predicated region
        $region41: #{_lambda_.2} parent=39 // pred_check
          %p238 = pneg %p41
        $region42: #{_lambda_.2} parent=39 // pred_check_branch
          %240 = sbr.rel (%p238) target = $region44
        $region43: #{_lambda_.2} parent=39 // pred_region
          %242 = dma.done %s234, 4096
        $region44: #{_lambda_.2} parent=39 // pred_fallthru
          _
        // Predicated region
        $region45: #{_lambda_.2} parent=39 // pred_check
          %p243 = pneg %p62
        $region46: #{_lambda_.2} parent=39 // pred_check_branch
          %245 = sbr.rel (%p243) target = $region48
        $region47: #{_lambda_.2} parent=39 // pred_region
          %247 = dma.done [#allocation7], 2304
        $region48: #{_lambda_.2} parent=39 // pred_fallthru
          _
        // Predicated region
        $region49: #{_lambda_.2} parent=39 // pred_check
          %p248 = pneg %p104
        $region50: #{_lambda_.2} parent=39 // pred_check_branch
          %250 = sbr.rel (%p248) target = $region52
        $region51: #{_lambda_.2} parent=39 // pred_region
          %252 = dma.done [#allocation7], 2304
        $region52: #{_lambda_.2} parent=39 // pred_fallthru
          _
        %s253 = sand.u32 %s28, 1
        %s254 = scalar_lea.sflag [#allocation5], %s253
        %s255 = sand.u32 %s28, 1
        %s256 = smul.addr %s255, 256
        %s257 = scalar_lea.vmem [#allocation4], %s256
        %p258 = pneg %p41
        %p259 = pneg %p38
        %p260 = pneg %p62
        %p261 = pneg %p59
        %p262 = pneg %p83
        %p263 = pneg %p80
        %p264 = pneg %p104
        %p265 = pneg %p101
        %p266 = pneg %p125
        %p267 = pneg %p122
        %p268 = pneg %p151
        %p269 = pneg %p148
        %p270 = scmp.lt.s32.totalorder %s20, 1
        %s271 = scalar_select %p270, %s20, 1
        %s272 = smul.addr %s271, 32
        %s273 = smul.addr %s272, 8
        %s274 = scalar_lea.vmem %s5, %s273
        %p275 = scmp.lt.s32.totalorder %s20, 1
        %s276 = scalar_select %p275, %s20, 1
        %s277 = smul.addr %s276, 32
        %s278 = smul.addr %s277, 8
        %s279 = scalar_lea.vmem %s5, %s278
        %v281 = vld [vmem:[%s237] sm:$0xff]
        %v282 = vld [vmem:[%s237 + $0x8] sm:$0xff]
        %v283 = vld [vmem:[%s237 + $0x10] sm:$0xff]
        %v284 = vld [vmem:[%s237 + $0x18] sm:$0xff]
        %v285 = vld [vmem:[%s237 + $0x20] sm:$0xff]
        %v286 = vld [vmem:[%s237 + $0x28] sm:$0xff]
        %v287 = vld [vmem:[%s237 + $0x30] sm:$0xff]
        %v288 = vld [vmem:[%s237 + $0x38] sm:$0xff]
        %v289 = vld [vmem:[%s237 + $0x40] sm:$0xff]
        %v290 = vld [vmem:[%s237 + $0x48] sm:$0xff]
        %v291 = vld [vmem:[%s237 + $0x50] sm:$0xff]
        %v292 = vld [vmem:[%s237 + $0x58] sm:$0xff]
        %v293 = vld [vmem:[%s237 + $0x60] sm:$0xff]
        %v294 = vld [vmem:[%s237 + $0x68] sm:$0xff]
        %v295 = vld [vmem:[%s237 + $0x70] sm:$0xff]
        %v296 = vld [vmem:[%s237 + $0x78] sm:$0xff]
        %v297 = vld [vmem:[%s237 + $0x80] sm:$0xff]
        %v298 = vld [vmem:[%s237 + $0x88] sm:$0xff]
        %v299 = vld [vmem:[%s237 + $0x90] sm:$0xff]
        %v300 = vld [vmem:[%s237 + $0x98] sm:$0xff]
        %v301 = vld [vmem:[%s237 + $0xa0] sm:$0xff]
        %v302 = vld [vmem:[%s237 + $0xa8] sm:$0xff]
        %v303 = vld [vmem:[%s237 + $0xb0] sm:$0xff]
        %v304 = vld [vmem:[%s237 + $0xb8] sm:$0xff]
        %v305 = vld [vmem:[%s237 + $0xc0] sm:$0xff]
        %v306 = vld [vmem:[%s237 + $0xc8] sm:$0xff]
        %v307 = vld [vmem:[%s237 + $0xd0] sm:$0xff]
        %v308 = vld [vmem:[%s237 + $0xd8] sm:$0xff]
        %v309 = vld [vmem:[%s237 + $0xe0] sm:$0xff]
        %v310 = vld [vmem:[%s237 + $0xe8] sm:$0xff]
        %v311 = vld [vmem:[%s237 + $0xf0] sm:$0xff]
        %v312 = vld [vmem:[%s237 + $0xf8] sm:$0xff]
        %vm313 = vcmask 261120
        %314 = vst.msk [vmem:[#allocation2] sm:$0xff] %vm313, 0.0
        %315 = vst.msk [vmem:[#allocation2 + $0x8] sm:$0xff] %vm313, 0.0
        %vm316 = vcmask 254976
        %317 = vst.msk [vmem:[#allocation2 + $0x10] sm:$0x3] %vm316, 0.0
        %318 = vst.msk [vmem:[#allocation2 + $0x18] sm:$0xff] %vm313, 0.0
        %319 = vst.msk [vmem:[#allocation2 + $0x20] sm:$0xff] %vm313, 0.0
        %320 = vst.msk [vmem:[#allocation2 + $0x28] sm:$0x3] %vm316, 0.0
        %321 = vst.msk [vmem:[#allocation2 + $0x30] sm:$0xff] %vm313, 0.0
        %322 = vst.msk [vmem:[#allocation2 + $0x38] sm:$0xff] %vm313, 0.0
        %323 = vst.msk [vmem:[#allocation2 + $0x40] sm:$0x3] %vm316, 0.0
        %324 = vst.msk [vmem:[#allocation2 + $0x48] sm:$0xff] %vm313, 0.0
        %325 = vst.msk [vmem:[#allocation2 + $0x50] sm:$0xff] %vm313, 0.0
        %326 = vst.msk [vmem:[#allocation2 + $0x58] sm:$0x3] %vm316, 0.0
        %327 = vst.msk [vmem:[#allocation2 + $0x60] sm:$0xff] %vm313, 0.0
        %328 = vst.msk [vmem:[#allocation2 + $0x68] sm:$0xff] %vm313, 0.0
        %329 = vst.msk [vmem:[#allocation2 + $0x70] sm:$0x3] %vm316, 0.0
        %330 = vst.msk [vmem:[#allocation2 + $0x78] sm:$0xff] %vm313, 0.0
        %331 = vst.msk [vmem:[#allocation2 + $0x80] sm:$0xff] %vm313, 0.0
        %332 = vst.msk [vmem:[#allocation2 + $0x88] sm:$0x3] %vm316, 0.0
        %333 = vst.msk [vmem:[#allocation2 + $0x90] sm:$0xff] %vm313, 0.0
        %334 = vst.msk [vmem:[#allocation2 + $0x98] sm:$0xff] %vm313, 0.0
        %335 = vst.msk [vmem:[#allocation2 + $0xa0] sm:$0x3] %vm316, 0.0
        %336 = vst.msk [vmem:[#allocation2 + $0xa8] sm:$0xff] %vm313, 0.0
        %337 = vst.msk [vmem:[#allocation2 + $0xb0] sm:$0xff] %vm313, 0.0
        %338 = vst.msk [vmem:[#allocation2 + $0xb8] sm:$0x3] %vm316, 0.0
        %339 = vst.msk [vmem:[#allocation2 + $0xc0] sm:$0xff] %vm313, 0.0
        %340 = vst.msk [vmem:[#allocation2 + $0xc8] sm:$0xff] %vm313, 0.0
        %341 = vst.msk [vmem:[#allocation2 + $0xd0] sm:$0x3] %vm316, 0.0
        %342 = vst.msk [vmem:[#allocation2 + $0xd8] sm:$0xff] %vm313, 0.0
        %343 = vst.msk [vmem:[#allocation2 + $0xe0] sm:$0xff] %vm313, 0.0
        %344 = vst.msk [vmem:[#allocation2 + $0xe8] sm:$0x3] %vm316, 0.0
        %345 = vst.msk [vmem:[#allocation2 + $0xf0] sm:$0xff] %vm313, 0.0
        %346 = vst.msk [vmem:[#allocation2 + $0xf8] sm:$0xff] %vm313, 0.0
        %347 = vst.msk [vmem:[#allocation2 + $0x100] sm:$0x3] %vm316, 0.0
        %348 = vst.msk [vmem:[#allocation2 + $0x108] sm:$0xff] %vm313, 0.0
        %349 = vst.msk [vmem:[#allocation2 + $0x110] sm:$0xff] %vm313, 0.0
        %350 = vst.msk [vmem:[#allocation2 + $0x118] sm:$0x3] %vm316, 0.0
        %351 = vst.msk [vmem:[#allocation2 + $0x120] sm:$0xff] %vm313, 0.0
        %352 = vst.msk [vmem:[#allocation2 + $0x128] sm:$0xff] %vm313, 0.0
        %353 = vst.msk [vmem:[#allocation2 + $0x130] sm:$0x3] %vm316, 0.0
        %354 = vst.msk [vmem:[#allocation2 + $0x138] sm:$0xff] %vm313, 0.0
        %355 = vst.msk [vmem:[#allocation2 + $0x140] sm:$0xff] %vm313, 0.0
        %356 = vst.msk [vmem:[#allocation2 + $0x148] sm:$0x3] %vm316, 0.0
        %357 = vst.msk [vmem:[#allocation2 + $0x150] sm:$0xff] %vm313, 0.0
        %358 = vst.msk [vmem:[#allocation2 + $0x158] sm:$0xff] %vm313, 0.0
        %359 = vst.msk [vmem:[#allocation2 + $0x160] sm:$0x3] %vm316, 0.0
        %360 = vst.msk [vmem:[#allocation2 + $0x168] sm:$0xff] %vm313, 0.0
        %361 = vst.msk [vmem:[#allocation2 + $0x170] sm:$0xff] %vm313, 0.0
        %362 = vst.msk [vmem:[#allocation2 + $0x178] sm:$0x3] %vm316, 0.0
        %363 = vst.msk [vmem:[#allocation2 + $0x180] sm:$0xff] %vm313, 0.0
        %364 = vst.msk [vmem:[#allocation2 + $0x188] sm:$0xff] %vm313, 0.0
        %365 = vst.msk [vmem:[#allocation2 + $0x190] sm:$0x3] %vm316, 0.0
        %366 = vst.msk [vmem:[#allocation2 + $0x198] sm:$0xff] %vm313, 0.0
        %367 = vst.msk [vmem:[#allocation2 + $0x1a0] sm:$0xff] %vm313, 0.0
        %368 = vst.msk [vmem:[#allocation2 + $0x1a8] sm:$0x3] %vm316, 0.0
        %s369 = scalar_lea.vmem [#allocation2], 24
        %370 = vst.msk [vmem:[%s369 + $0x1] sm:$0xff] %vm313, %v281
        %371 = vst.msk [vmem:[%s369 + $0x9] sm:$0xff] %vm313, %v282
        %372 = vst.msk [vmem:[%s369 + $0x19] sm:$0xff] %vm313, %v283
        %373 = vst.msk [vmem:[%s369 + $0x21] sm:$0xff] %vm313, %v284
        %374 = vst.msk [vmem:[%s369 + $0x31] sm:$0xff] %vm313, %v285
        %375 = vst.msk [vmem:[%s369 + $0x39] sm:$0xff] %vm313, %v286
        %376 = vst.msk [vmem:[%s369 + $0x49] sm:$0xff] %vm313, %v287
        %377 = vst.msk [vmem:[%s369 + $0x51] sm:$0xff] %vm313, %v288
        %378 = vst.msk [vmem:[%s369 + $0x61] sm:$0xff] %vm313, %v289
        %379 = vst.msk [vmem:[%s369 + $0x69] sm:$0xff] %vm313, %v290
        %380 = vst.msk [vmem:[%s369 + $0x79] sm:$0xff] %vm313, %v291
        %381 = vst.msk [vmem:[%s369 + $0x81] sm:$0xff] %vm313, %v292
        %382 = vst.msk [vmem:[%s369 + $0x91] sm:$0xff] %vm313, %v293
        %383 = vst.msk [vmem:[%s369 + $0x99] sm:$0xff] %vm313, %v294
        %384 = vst.msk [vmem:[%s369 + $0xa9] sm:$0xff] %vm313, %v295
        %385 = vst.msk [vmem:[%s369 + $0xb1] sm:$0xff] %vm313, %v296
        %386 = vst.msk [vmem:[%s369 + $0xc1] sm:$0xff] %vm313, %v297
        %387 = vst.msk [vmem:[%s369 + $0xc9] sm:$0xff] %vm313, %v298
        %388 = vst.msk [vmem:[%s369 + $0xd9] sm:$0xff] %vm313, %v299
        %389 = vst.msk [vmem:[%s369 + $0xe1] sm:$0xff] %vm313, %v300
        %390 = vst.msk [vmem:[%s369 + $0xf1] sm:$0xff] %vm313, %v301
        %391 = vst.msk [vmem:[%s369 + $0xf9] sm:$0xff] %vm313, %v302
        %392 = vst.msk [vmem:[%s369 + $0x109] sm:$0xff] %vm313, %v303
        %393 = vst.msk [vmem:[%s369 + $0x111] sm:$0xff] %vm313, %v304
        %394 = vst.msk [vmem:[%s369 + $0x121] sm:$0xff] %vm313, %v305
        %395 = vst.msk [vmem:[%s369 + $0x129] sm:$0xff] %vm313, %v306
        %396 = vst.msk [vmem:[%s369 + $0x139] sm:$0xff] %vm313, %v307
        %397 = vst.msk [vmem:[%s369 + $0x141] sm:$0xff] %vm313, %v308
        %398 = vst.msk [vmem:[%s369 + $0x151] sm:$0xff] %vm313, %v309
        %399 = vst.msk [vmem:[%s369 + $0x159] sm:$0xff] %vm313, %v310
        %400 = vst.msk [vmem:[%s369 + $0x169] sm:$0xff] %vm313, %v311
        %401 = vst.msk [vmem:[%s369 + $0x171] sm:$0xff] %vm313, %v312
        %v402 = vld [vmem:[#allocation2] sm:$0xff]
        %v403 = vld [vmem:[#allocation2 + $0x8] sm:$0xff]
        %v404 = vld [vmem:[#allocation2 + $0x18] sm:$0xff]
        %v405 = vld [vmem:[#allocation2 + $0x20] sm:$0xff]
        %v406 = vld [vmem:[#allocation2 + $0x30] sm:$0xff]
        %v407 = vld [vmem:[#allocation2 + $0x38] sm:$0xff]
        %v408 = vld [vmem:[#allocation2 + $0x48] sm:$0xff]
        %v409 = vld [vmem:[#allocation2 + $0x50] sm:$0xff]
        %v410 = vld [vmem:[#allocation2 + $0x60] sm:$0xff]
        %v411 = vld [vmem:[#allocation2 + $0x68] sm:$0xff]
        %v412 = vld [vmem:[#allocation2 + $0x78] sm:$0xff]
        %v413 = vld [vmem:[#allocation2 + $0x80] sm:$0xff]
        %v414 = vld [vmem:[#allocation2 + $0x90] sm:$0xff]
        %v415 = vld [vmem:[#allocation2 + $0x98] sm:$0xff]
        %v416 = vld [vmem:[#allocation2 + $0xa8] sm:$0xff]
        %v417 = vld [vmem:[#allocation2 + $0xb0] sm:$0xff]
        %v418 = vld [vmem:[#allocation2 + $0xc0] sm:$0xff]
        %v419 = vld [vmem:[#allocation2 + $0xc8] sm:$0xff]
        %v420 = vld [vmem:[#allocation2 + $0xd8] sm:$0xff]
        %v421 = vld [vmem:[#allocation2 + $0xe0] sm:$0xff]
        %v422 = vld [vmem:[#allocation2 + $0xf0] sm:$0xff]
        %v423 = vld [vmem:[#allocation2 + $0xf8] sm:$0xff]
        %v424 = vld [vmem:[#allocation2 + $0x108] sm:$0xff]
        %v425 = vld [vmem:[#allocation2 + $0x110] sm:$0xff]
        %v426 = vld [vmem:[#allocation2 + $0x120] sm:$0xff]
        %v427 = vld [vmem:[#allocation2 + $0x128] sm:$0xff]
        %v428 = vld [vmem:[#allocation2 + $0x138] sm:$0xff]
        %v429 = vld [vmem:[#allocation2 + $0x140] sm:$0xff]
        %v430 = vld [vmem:[#allocation2 + $0x150] sm:$0xff]
        %v431 = vld [vmem:[#allocation2 + $0x158] sm:$0xff]
        %v432 = vld [vmem:[#allocation2 + $0x168] sm:$0xff]
        %v433 = vld [vmem:[#allocation2 + $0x170] sm:$0xff]
        %v434 = vpack.c.bf16 %v403, %v402
        %v435 = vpack.c.bf16 %v405, %v404
        %v436 = vpack.c.bf16 %v407, %v406
        %v437 = vpack.c.bf16 %v409, %v408
        %v438 = vpack.c.bf16 %v411, %v410
        %v439 = vpack.c.bf16 %v413, %v412
        %v440 = vpack.c.bf16 %v415, %v414
        %v441 = vpack.c.bf16 %v417, %v416
        %v442 = vpack.c.bf16 %v419, %v418
        %v443 = vpack.c.bf16 %v421, %v420
        %v444 = vpack.c.bf16 %v423, %v422
        %v445 = vpack.c.bf16 %v425, %v424
        %v446 = vpack.c.bf16 %v427, %v426
        %v447 = vpack.c.bf16 %v429, %v428
        %v448 = vpack.c.bf16 %v431, %v430
        %v449 = vpack.c.bf16 %v433, %v432
        %v450 = vld [vmem:[#allocation6] sm:$0xf]
        %v451 = vld [vmem:[#allocation6 + $0x4] sm:$0xf]
        %v452 = vld [vmem:[#allocation6 + $0x8] sm:$0xf]
        %v453 = vld [vmem:[#allocation6 + $0xc] sm:$0xf]
        %v454 = vld [vmem:[#allocation2 + $0x1] sm:$0xff]
        %v455 = vld [vmem:[#allocation2 + $0x9] sm:$0xff]
        %v456 = vld [vmem:[#allocation2 + $0x19] sm:$0xff]
        %v457 = vld [vmem:[#allocation2 + $0x21] sm:$0xff]
        %v458 = vld [vmem:[#allocation2 + $0x31] sm:$0xff]
        %v459 = vld [vmem:[#allocation2 + $0x39] sm:$0xff]
        %v460 = vld [vmem:[#allocation2 + $0x49] sm:$0xff]
        %v461 = vld [vmem:[#allocation2 + $0x51] sm:$0xff]
        %v462 = vld [vmem:[#allocation2 + $0x61] sm:$0xff]
        %v463 = vld [vmem:[#allocation2 + $0x69] sm:$0xff]
        %v464 = vld [vmem:[#allocation2 + $0x79] sm:$0xff]
        %v465 = vld [vmem:[#allocation2 + $0x81] sm:$0xff]
        %v466 = vld [vmem:[#allocation2 + $0x91] sm:$0xff]
        %v467 = vld [vmem:[#allocation2 + $0x99] sm:$0xff]
        %v468 = vld [vmem:[#allocation2 + $0xa9] sm:$0xff]
        %v469 = vld [vmem:[#allocation2 + $0xb1] sm:$0xff]
        %v470 = vld [vmem:[#allocation2 + $0xc1] sm:$0xff]
        %v471 = vld [vmem:[#allocation2 + $0xc9] sm:$0xff]
        %v472 = vld [vmem:[#allocation2 + $0xd9] sm:$0xff]
        %v473 = vld [vmem:[#allocation2 + $0xe1] sm:$0xff]
        %v474 = vld [vmem:[#allocation2 + $0xf1] sm:$0xff]
        %v475 = vld [vmem:[#allocation2 + $0xf9] sm:$0xff]
        %v476 = vld [vmem:[#allocation2 + $0x109] sm:$0xff]
        %v477 = vld [vmem:[#allocation2 + $0x111] sm:$0xff]
        %v478 = vld [vmem:[#allocation2 + $0x121] sm:$0xff]
        %v479 = vld [vmem:[#allocation2 + $0x129] sm:$0xff]
        %v480 = vld [vmem:[#allocation2 + $0x139] sm:$0xff]
        %v481 = vld [vmem:[#allocation2 + $0x141] sm:$0xff]
        %v482 = vld [vmem:[#allocation2 + $0x151] sm:$0xff]
        %v483 = vld [vmem:[#allocation2 + $0x159] sm:$0xff]
        %v484 = vld [vmem:[#allocation2 + $0x169] sm:$0xff]
        %v485 = vld [vmem:[#allocation2 + $0x171] sm:$0xff]
        %v486 = vpack.c.bf16 %v455, %v454
        %v487 = vpack.c.bf16 %v457, %v456
        %v488 = vpack.c.bf16 %v459, %v458
        %v489 = vpack.c.bf16 %v461, %v460
        %v490 = vpack.c.bf16 %v463, %v462
        %v491 = vpack.c.bf16 %v465, %v464
        %v492 = vpack.c.bf16 %v467, %v466
        %v493 = vpack.c.bf16 %v469, %v468
        %v494 = vpack.c.bf16 %v471, %v470
        %v495 = vpack.c.bf16 %v473, %v472
        %v496 = vpack.c.bf16 %v475, %v474
        %v497 = vpack.c.bf16 %v477, %v476
        %v498 = vpack.c.bf16 %v479, %v478
        %v499 = vpack.c.bf16 %v481, %v480
        %v500 = vpack.c.bf16 %v483, %v482
        %v501 = vpack.c.bf16 %v485, %v484
        %s502 = scalar_lea.vmem [#allocation6], 16
        %v503 = vld [vmem:[%s502] sm:$0xf]
        %v504 = vld [vmem:[%s502 + $0x4] sm:$0xf]
        %v505 = vld [vmem:[%s502 + $0x8] sm:$0xf]
        %v506 = vld [vmem:[%s502 + $0xc] sm:$0xf]
        %v511 = vunpack.c.l.b16 %v503
        %v512 = vunpack.c.l.b16 %v504
        %v513 = vunpack.c.l.b16 %v505
        %v514 = vunpack.c.l.b16 %v506
        %v515 = vpack.c.b16 %v512, %v511
        %v516 = vpack.c.b16 %v514, %v513
        %v520 = vsel %vm313, %v486, 0
        %v523 = vsel %vm313, %v487, 0
        %v526 = vsel %vm313, %v488, 0
        %v529 = vsel %vm313, %v489, 0
        %v532 = vsel %vm313, %v490, 0
        %v535 = vsel %vm313, %v491, 0
        %v538 = vsel %vm313, %v492, 0
        %v541 = vsel %vm313, %v493, 0
        %v544 = vsel %vm313, %v494, 0
        %v547 = vsel %vm313, %v495, 0
        %v550 = vsel %vm313, %v496, 0
        %v553 = vsel %vm313, %v497, 0
        %v556 = vsel %vm313, %v498, 0
        %v559 = vsel %vm313, %v499, 0
        %v562 = vsel %vm313, %v500, 0
        %v565 = vsel %vm313, %v501, 0
        %567 = vmatpush.bf16.msra.mxu0 0
        %568 = vmatpush.bf16.msra.mxu0 0
        %569 = vmatpush.bf16.msra.mxu0 0
        %570 = vmatpush.bf16.msra.mxu0 0
        %571 = vmatpush.bf16.msra.mxu0 0
        %572 = vmatpush.bf16.msra.mxu0 0
        %573 = vmatpush.bf16.msra.mxu0 %v516
        %574 = vmatpush.bf16.msra.mxu0 %v515
        %575 = vmatmul.bf16.gmra.mxu0 %v520
        %v576 = vpop.f32.mrf.mxu0
        %v577 = vadd.f32 0.0, %v576
        %v578 = vpop.f32.mrf.mxu0
        %v579 = vadd.f32 0.0, %v578
        %580 = vmatmul.bf16.gmra.mxu0 %v523
        %v581 = vpop.f32.mrf.mxu0
        %v582 = vadd.f32 0.0, %v581
        %v583 = vpop.f32.mrf.mxu0
        %v584 = vadd.f32 0.0, %v583
        %585 = vmatmul.bf16.gmra.mxu0 %v526
        %v586 = vpop.f32.mrf.mxu0
        %v587 = vadd.f32 0.0, %v586
        %v588 = vpop.f32.mrf.mxu0
        %v589 = vadd.f32 0.0, %v588
        %590 = vmatmul.bf16.gmra.mxu0 %v529
        %v591 = vpop.f32.mrf.mxu0
        %v592 = vadd.f32 0.0, %v591
        %v593 = vpop.f32.mrf.mxu0
        %v594 = vadd.f32 0.0, %v593
        %595 = vmatmul.bf16.gmra.mxu0 %v532
        %v596 = vpop.f32.mrf.mxu0
        %v597 = vadd.f32 0.0, %v596
        %v598 = vpop.f32.mrf.mxu0
        %v599 = vadd.f32 0.0, %v598
        %600 = vmatmul.bf16.gmra.mxu0 %v535
        %v601 = vpop.f32.mrf.mxu0
        %v602 = vadd.f32 0.0, %v601
        %v603 = vpop.f32.mrf.mxu0
        %v604 = vadd.f32 0.0, %v603
        %605 = vmatmul.bf16.gmra.mxu0 %v538
        %v606 = vpop.f32.mrf.mxu0
        %v607 = vadd.f32 0.0, %v606
        %v608 = vpop.f32.mrf.mxu0
        %v609 = vadd.f32 0.0, %v608
        %610 = vmatmul.bf16.gmra.mxu0 %v541
        %v611 = vpop.f32.mrf.mxu0
        %v612 = vadd.f32 0.0, %v611
        %v613 = vpop.f32.mrf.mxu0
        %v614 = vadd.f32 0.0, %v613
        %615 = vmatmul.bf16.gmra.mxu0 %v544
        %v616 = vpop.f32.mrf.mxu0
        %v617 = vadd.f32 0.0, %v616
        %v618 = vpop.f32.mrf.mxu0
        %v619 = vadd.f32 0.0, %v618
        %620 = vmatmul.bf16.gmra.mxu0 %v547
        %v621 = vpop.f32.mrf.mxu0
        %v622 = vadd.f32 0.0, %v621
        %v623 = vpop.f32.mrf.mxu0
        %v624 = vadd.f32 0.0, %v623
        %625 = vmatmul.bf16.gmra.mxu0 %v550
        %v626 = vpop.f32.mrf.mxu0
        %v627 = vadd.f32 0.0, %v626
        %v628 = vpop.f32.mrf.mxu0
        %v629 = vadd.f32 0.0, %v628
        %630 = vmatmul.bf16.gmra.mxu0 %v553
        %v631 = vpop.f32.mrf.mxu0
        %v632 = vadd.f32 0.0, %v631
        %v633 = vpop.f32.mrf.mxu0
        %v634 = vadd.f32 0.0, %v633
        %635 = vmatmul.bf16.gmra.mxu0 %v556
        %v636 = vpop.f32.mrf.mxu0
        %v637 = vadd.f32 0.0, %v636
        %v638 = vpop.f32.mrf.mxu0
        %v639 = vadd.f32 0.0, %v638
        %640 = vmatmul.bf16.gmra.mxu0 %v559
        %v641 = vpop.f32.mrf.mxu0
        %v642 = vadd.f32 0.0, %v641
        %v643 = vpop.f32.mrf.mxu0
        %v644 = vadd.f32 0.0, %v643
        %645 = vmatmul.bf16.gmra.mxu0 %v562
        %v646 = vpop.f32.mrf.mxu0
        %v647 = vadd.f32 0.0, %v646
        %v648 = vpop.f32.mrf.mxu0
        %v649 = vadd.f32 0.0, %v648
        %650 = vmatmul.bf16.gmra.mxu0 %v565
        %v651 = vpop.f32.mrf.mxu0
        %v652 = vadd.f32 0.0, %v651
        %v653 = vpop.f32.mrf.mxu0
        %v654 = vadd.f32 0.0, %v653
        %655 = vdwg.mxu0
        %v660 = vunpack.c.l.b16 %v450
        %v661 = vunpack.c.l.b16 %v451
        %v662 = vunpack.c.l.b16 %v452
        %v663 = vunpack.c.l.b16 %v453
        %v664 = vpack.c.b16 %v661, %v660
        %v665 = vpack.c.b16 %v663, %v662
        %v669 = vsel %vm313, %v434, 0
        %v672 = vsel %vm313, %v435, 0
        %v675 = vsel %vm313, %v436, 0
        %v678 = vsel %vm313, %v437, 0
        %v681 = vsel %vm313, %v438, 0
        %v684 = vsel %vm313, %v439, 0
        %v687 = vsel %vm313, %v440, 0
        %v690 = vsel %vm313, %v441, 0
        %v693 = vsel %vm313, %v442, 0
        %v696 = vsel %vm313, %v443, 0
        %v699 = vsel %vm313, %v444, 0
        %v702 = vsel %vm313, %v445, 0
        %v705 = vsel %vm313, %v446, 0
        %v708 = vsel %vm313, %v447, 0
        %v711 = vsel %vm313, %v448, 0
        %v714 = vsel %vm313, %v449, 0
        %716 = vmatpush.bf16.msra.mxu0 0
        %717 = vmatpush.bf16.msra.mxu0 0
        %718 = vmatpush.bf16.msra.mxu0 0
        %719 = vmatpush.bf16.msra.mxu0 0
        %720 = vmatpush.bf16.msra.mxu0 0
        %721 = vmatpush.bf16.msra.mxu0 0
        %722 = vmatpush.bf16.msra.mxu0 %v665
        %723 = vmatpush.bf16.msra.mxu0 %v664
        %724 = vmatmul.bf16.gmra.mxu0 %v669
        %v725 = vpop.f32.mrf.mxu0
        %v726 = vadd.f32 %v577, %v725
        %v727 = vpop.f32.mrf.mxu0
        %v728 = vadd.f32 %v579, %v727
        %729 = vmatmul.bf16.gmra.mxu0 %v672
        %v730 = vpop.f32.mrf.mxu0
        %v731 = vadd.f32 %v582, %v730
        %v732 = vpop.f32.mrf.mxu0
        %v733 = vadd.f32 %v584, %v732
        %734 = vmatmul.bf16.gmra.mxu0 %v675
        %v735 = vpop.f32.mrf.mxu0
        %v736 = vadd.f32 %v587, %v735
        %v737 = vpop.f32.mrf.mxu0
        %v738 = vadd.f32 %v589, %v737
        %739 = vmatmul.bf16.gmra.mxu0 %v678
        %v740 = vpop.f32.mrf.mxu0
        %v741 = vadd.f32 %v592, %v740
        %v742 = vpop.f32.mrf.mxu0
        %v743 = vadd.f32 %v594, %v742
        %744 = vmatmul.bf16.gmra.mxu0 %v681
        %v745 = vpop.f32.mrf.mxu0
        %v746 = vadd.f32 %v597, %v745
        %v747 = vpop.f32.mrf.mxu0
        %v748 = vadd.f32 %v599, %v747
        %749 = vmatmul.bf16.gmra.mxu0 %v684
        %v750 = vpop.f32.mrf.mxu0
        %v751 = vadd.f32 %v602, %v750
        %v752 = vpop.f32.mrf.mxu0
        %v753 = vadd.f32 %v604, %v752
        %754 = vmatmul.bf16.gmra.mxu0 %v687
        %v755 = vpop.f32.mrf.mxu0
        %v756 = vadd.f32 %v607, %v755
        %v757 = vpop.f32.mrf.mxu0
        %v758 = vadd.f32 %v609, %v757
        %759 = vmatmul.bf16.gmra.mxu0 %v690
        %v760 = vpop.f32.mrf.mxu0
        %v761 = vadd.f32 %v612, %v760
        %v762 = vpop.f32.mrf.mxu0
        %v763 = vadd.f32 %v614, %v762
        %764 = vmatmul.bf16.gmra.mxu0 %v693
        %v765 = vpop.f32.mrf.mxu0
        %v766 = vadd.f32 %v617, %v765
        %v767 = vpop.f32.mrf.mxu0
        %v768 = vadd.f32 %v619, %v767
        %769 = vmatmul.bf16.gmra.mxu0 %v696
        %v770 = vpop.f32.mrf.mxu0
        %v771 = vadd.f32 %v622, %v770
        %v772 = vpop.f32.mrf.mxu0
        %v773 = vadd.f32 %v624, %v772
        %774 = vmatmul.bf16.gmra.mxu0 %v699
        %v775 = vpop.f32.mrf.mxu0
        %v776 = vadd.f32 %v627, %v775
        %v777 = vpop.f32.mrf.mxu0
        %v778 = vadd.f32 %v629, %v777
        %779 = vmatmul.bf16.gmra.mxu0 %v702
        %v780 = vpop.f32.mrf.mxu0
        %v781 = vadd.f32 %v632, %v780
        %v782 = vpop.f32.mrf.mxu0
        %v783 = vadd.f32 %v634, %v782
        %784 = vmatmul.bf16.gmra.mxu0 %v705
        %v785 = vpop.f32.mrf.mxu0
        %v786 = vadd.f32 %v637, %v785
        %v787 = vpop.f32.mrf.mxu0
        %v788 = vadd.f32 %v639, %v787
        %789 = vmatmul.bf16.gmra.mxu0 %v708
        %v790 = vpop.f32.mrf.mxu0
        %v791 = vadd.f32 %v642, %v790
        %v792 = vpop.f32.mrf.mxu0
        %v793 = vadd.f32 %v644, %v792
        %794 = vmatmul.bf16.gmra.mxu0 %v711
        %v795 = vpop.f32.mrf.mxu0
        %v796 = vadd.f32 %v647, %v795
        %v797 = vpop.f32.mrf.mxu0
        %v798 = vadd.f32 %v649, %v797
        %799 = vmatmul.bf16.gmra.mxu0 %v714
        %v800 = vpop.f32.mrf.mxu0
        %v801 = vadd.f32 %v652, %v800
        %v802 = vpop.f32.mrf.mxu0
        %v803 = vadd.f32 %v654, %v802
        %804 = vdwg.mxu0
        %v805 = vld [vmem:[#allocation2 + $0x2] sm:$0xff]
        %v806 = vld [vmem:[#allocation2 + $0xa] sm:$0xff]
        %v807 = vld [vmem:[#allocation2 + $0x1a] sm:$0xff]
        %v808 = vld [vmem:[#allocation2 + $0x22] sm:$0xff]
        %v809 = vld [vmem:[#allocation2 + $0x32] sm:$0xff]
        %v810 = vld [vmem:[#allocation2 + $0x3a] sm:$0xff]
        %v811 = vld [vmem:[#allocation2 + $0x4a] sm:$0xff]
        %v812 = vld [vmem:[#allocation2 + $0x52] sm:$0xff]
        %v813 = vld [vmem:[#allocation2 + $0x62] sm:$0xff]
        %v814 = vld [vmem:[#allocation2 + $0x6a] sm:$0xff]
        %v815 = vld [vmem:[#allocation2 + $0x7a] sm:$0xff]
        %v816 = vld [vmem:[#allocation2 + $0x82] sm:$0xff]
        %v817 = vld [vmem:[#allocation2 + $0x92] sm:$0xff]
        %v818 = vld [vmem:[#allocation2 + $0x9a] sm:$0xff]
        %v819 = vld [vmem:[#allocation2 + $0xaa] sm:$0xff]
        %v820 = vld [vmem:[#allocation2 + $0xb2] sm:$0xff]
        %v821 = vld [vmem:[#allocation2 + $0xc2] sm:$0xff]
        %v822 = vld [vmem:[#allocation2 + $0xca] sm:$0xff]
        %v823 = vld [vmem:[#allocation2 + $0xda] sm:$0xff]
        %v824 = vld [vmem:[#allocation2 + $0xe2] sm:$0xff]
        %v825 = vld [vmem:[#allocation2 + $0xf2] sm:$0xff]
        %v826 = vld [vmem:[#allocation2 + $0xfa] sm:$0xff]
        %v827 = vld [vmem:[#allocation2 + $0x10a] sm:$0xff]
        %v828 = vld [vmem:[#allocation2 + $0x112] sm:$0xff]
        %v829 = vld [vmem:[#allocation2 + $0x122] sm:$0xff]
        %v830 = vld [vmem:[#allocation2 + $0x12a] sm:$0xff]
        %v831 = vld [vmem:[#allocation2 + $0x13a] sm:$0xff]
        %v832 = vld [vmem:[#allocation2 + $0x142] sm:$0xff]
        %v833 = vld [vmem:[#allocation2 + $0x152] sm:$0xff]
        %v834 = vld [vmem:[#allocation2 + $0x15a] sm:$0xff]
        %v835 = vld [vmem:[#allocation2 + $0x16a] sm:$0xff]
        %v836 = vld [vmem:[#allocation2 + $0x172] sm:$0xff]
        %v837 = vpack.c.bf16 %v806, %v805
        %v838 = vpack.c.bf16 %v808, %v807
        %v839 = vpack.c.bf16 %v810, %v809
        %v840 = vpack.c.bf16 %v812, %v811
        %v841 = vpack.c.bf16 %v814, %v813
        %v842 = vpack.c.bf16 %v816, %v815
        %v843 = vpack.c.bf16 %v818, %v817
        %v844 = vpack.c.bf16 %v820, %v819
        %v845 = vpack.c.bf16 %v822, %v821
        %v846 = vpack.c.bf16 %v824, %v823
        %v847 = vpack.c.bf16 %v826, %v825
        %v848 = vpack.c.bf16 %v828, %v827
        %v849 = vpack.c.bf16 %v830, %v829
        %v850 = vpack.c.bf16 %v832, %v831
        %v851 = vpack.c.bf16 %v834, %v833
        %v852 = vpack.c.bf16 %v836, %v835
        %s853 = scalar_lea.vmem [#allocation6], 32
        %v854 = vld [vmem:[%s853] sm:$0xf]
        %v855 = vld [vmem:[%s853 + $0x4] sm:$0xf]
        %v856 = vld [vmem:[%s853 + $0x8] sm:$0xf]
        %v857 = vld [vmem:[%s853 + $0xc] sm:$0xf]
        %v862 = vunpack.c.l.b16 %v854
        %v863 = vunpack.c.l.b16 %v855
        %v864 = vunpack.c.l.b16 %v856
        %v865 = vunpack.c.l.b16 %v857
        %v866 = vpack.c.b16 %v863, %v862
        %v867 = vpack.c.b16 %v865, %v864
        %v871 = vsel %vm313, %v837, 0
        %v874 = vsel %vm313, %v838, 0
        %v877 = vsel %vm313, %v839, 0
        %v880 = vsel %vm313, %v840, 0
        %v883 = vsel %vm313, %v841, 0
        %v886 = vsel %vm313, %v842, 0
        %v889 = vsel %vm313, %v843, 0
        %v892 = vsel %vm313, %v844, 0
        %v895 = vsel %vm313, %v845, 0
        %v898 = vsel %vm313, %v846, 0
        %v901 = vsel %vm313, %v847, 0
        %v904 = vsel %vm313, %v848, 0
        %v907 = vsel %vm313, %v849, 0
        %v910 = vsel %vm313, %v850, 0
        %v913 = vsel %vm313, %v851, 0
        %v916 = vsel %vm313, %v852, 0
        %918 = vmatpush.bf16.msra.mxu0 0
        %919 = vmatpush.bf16.msra.mxu0 0
        %920 = vmatpush.bf16.msra.mxu0 0
        %921 = vmatpush.bf16.msra.mxu0 0
        %922 = vmatpush.bf16.msra.mxu0 0
        %923 = vmatpush.bf16.msra.mxu0 0
        %924 = vmatpush.bf16.msra.mxu0 %v867
        %925 = vmatpush.bf16.msra.mxu0 %v866
        %926 = vmatmul.bf16.gmra.mxu0 %v871
        %v927 = vpop.f32.mrf.mxu0
        %v928 = vadd.f32 0.0, %v927
        %v929 = vpop.f32.mrf.mxu0
        %v930 = vadd.f32 0.0, %v929
        %931 = vmatmul.bf16.gmra.mxu0 %v874
        %v932 = vpop.f32.mrf.mxu0
        %v933 = vadd.f32 0.0, %v932
        %v934 = vpop.f32.mrf.mxu0
        %v935 = vadd.f32 0.0, %v934
        %936 = vmatmul.bf16.gmra.mxu0 %v877
        %v937 = vpop.f32.mrf.mxu0
        %v938 = vadd.f32 0.0, %v937
        %v939 = vpop.f32.mrf.mxu0
        %v940 = vadd.f32 0.0, %v939
        %941 = vmatmul.bf16.gmra.mxu0 %v880
        %v942 = vpop.f32.mrf.mxu0
        %v943 = vadd.f32 0.0, %v942
        %v944 = vpop.f32.mrf.mxu0
        %v945 = vadd.f32 0.0, %v944
        %946 = vmatmul.bf16.gmra.mxu0 %v883
        %v947 = vpop.f32.mrf.mxu0
        %v948 = vadd.f32 0.0, %v947
        %v949 = vpop.f32.mrf.mxu0
        %v950 = vadd.f32 0.0, %v949
        %951 = vmatmul.bf16.gmra.mxu0 %v886
        %v952 = vpop.f32.mrf.mxu0
        %v953 = vadd.f32 0.0, %v952
        %v954 = vpop.f32.mrf.mxu0
        %v955 = vadd.f32 0.0, %v954
        %956 = vmatmul.bf16.gmra.mxu0 %v889
        %v957 = vpop.f32.mrf.mxu0
        %v958 = vadd.f32 0.0, %v957
        %v959 = vpop.f32.mrf.mxu0
        %v960 = vadd.f32 0.0, %v959
        %961 = vmatmul.bf16.gmra.mxu0 %v892
        %v962 = vpop.f32.mrf.mxu0
        %v963 = vadd.f32 0.0, %v962
        %v964 = vpop.f32.mrf.mxu0
        %v965 = vadd.f32 0.0, %v964
        %966 = vmatmul.bf16.gmra.mxu0 %v895
        %v967 = vpop.f32.mrf.mxu0
        %v968 = vadd.f32 0.0, %v967
        %v969 = vpop.f32.mrf.mxu0
        %v970 = vadd.f32 0.0, %v969
        %971 = vmatmul.bf16.gmra.mxu0 %v898
        %v972 = vpop.f32.mrf.mxu0
        %v973 = vadd.f32 0.0, %v972
        %v974 = vpop.f32.mrf.mxu0
        %v975 = vadd.f32 0.0, %v974
        %976 = vmatmul.bf16.gmra.mxu0 %v901
        %v977 = vpop.f32.mrf.mxu0
        %v978 = vadd.f32 0.0, %v977
        %v979 = vpop.f32.mrf.mxu0
        %v980 = vadd.f32 0.0, %v979
        %981 = vmatmul.bf16.gmra.mxu0 %v904
        %v982 = vpop.f32.mrf.mxu0
        %v983 = vadd.f32 0.0, %v982
        %v984 = vpop.f32.mrf.mxu0
        %v985 = vadd.f32 0.0, %v984
        %986 = vmatmul.bf16.gmra.mxu0 %v907
        %v987 = vpop.f32.mrf.mxu0
        %v988 = vadd.f32 0.0, %v987
        %v989 = vpop.f32.mrf.mxu0
        %v990 = vadd.f32 0.0, %v989
        %991 = vmatmul.bf16.gmra.mxu0 %v910
        %v992 = vpop.f32.mrf.mxu0
        %v993 = vadd.f32 0.0, %v992
        %v994 = vpop.f32.mrf.mxu0
        %v995 = vadd.f32 0.0, %v994
        %996 = vmatmul.bf16.gmra.mxu0 %v913
        %v997 = vpop.f32.mrf.mxu0
        %v998 = vadd.f32 0.0, %v997
        %v999 = vpop.f32.mrf.mxu0
        %v1000 = vadd.f32 0.0, %v999
        %1001 = vmatmul.bf16.gmra.mxu0 %v916
        %v1002 = vpop.f32.mrf.mxu0
        %v1003 = vadd.f32 0.0, %v1002
        %v1004 = vpop.f32.mrf.mxu0
        %v1005 = vadd.f32 0.0, %v1004
        %1006 = vdwg.mxu0
        %v1007 = vadd.f32 %v726, %v928
        %v1008 = vadd.f32 %v728, %v930
        %v1009 = vadd.f32 %v731, %v933
        %v1010 = vadd.f32 %v733, %v935
        %v1011 = vadd.f32 %v736, %v938
        %v1012 = vadd.f32 %v738, %v940
        %v1013 = vadd.f32 %v741, %v943
        %v1014 = vadd.f32 %v743, %v945
        %v1015 = vadd.f32 %v746, %v948
        %v1016 = vadd.f32 %v748, %v950
        %v1017 = vadd.f32 %v751, %v953
        %v1018 = vadd.f32 %v753, %v955
        %v1019 = vadd.f32 %v756, %v958
        %v1020 = vadd.f32 %v758, %v960
        %v1021 = vadd.f32 %v761, %v963
        %v1022 = vadd.f32 %v763, %v965
        %v1023 = vadd.f32 %v766, %v968
        %v1024 = vadd.f32 %v768, %v970
        %v1025 = vadd.f32 %v771, %v973
        %v1026 = vadd.f32 %v773, %v975
        %v1027 = vadd.f32 %v776, %v978
        %v1028 = vadd.f32 %v778, %v980
        %v1029 = vadd.f32 %v781, %v983
        %v1030 = vadd.f32 %v783, %v985
        %v1031 = vadd.f32 %v786, %v988
        %v1032 = vadd.f32 %v788, %v990
        %v1033 = vadd.f32 %v791, %v993
        %v1034 = vadd.f32 %v793, %v995
        %v1035 = vadd.f32 %v796, %v998
        %v1036 = vadd.f32 %v798, %v1000
        %v1037 = vadd.f32 %v801, %v1003
        %v1038 = vadd.f32 %v803, %v1005
        %v1039 = vld [vmem:[%s369] sm:$0xff]
        %v1040 = vld [vmem:[%s369 + $0x8] sm:$0xff]
        %v1041 = vld [vmem:[%s369 + $0x18] sm:$0xff]
        %v1042 = vld [vmem:[%s369 + $0x20] sm:$0xff]
        %v1043 = vld [vmem:[%s369 + $0x30] sm:$0xff]
        %v1044 = vld [vmem:[%s369 + $0x38] sm:$0xff]
        %v1045 = vld [vmem:[%s369 + $0x48] sm:$0xff]
        %v1046 = vld [vmem:[%s369 + $0x50] sm:$0xff]
        %v1047 = vld [vmem:[%s369 + $0x60] sm:$0xff]
        %v1048 = vld [vmem:[%s369 + $0x68] sm:$0xff]
        %v1049 = vld [vmem:[%s369 + $0x78] sm:$0xff]
        %v1050 = vld [vmem:[%s369 + $0x80] sm:$0xff]
        %v1051 = vld [vmem:[%s369 + $0x90] sm:$0xff]
        %v1052 = vld [vmem:[%s369 + $0x98] sm:$0xff]
        %v1053 = vld [vmem:[%s369 + $0xa8] sm:$0xff]
        %v1054 = vld [vmem:[%s369 + $0xb0] sm:$0xff]
        %v1055 = vld [vmem:[%s369 + $0xc0] sm:$0xff]
        %v1056 = vld [vmem:[%s369 + $0xc8] sm:$0xff]
        %v1057 = vld [vmem:[%s369 + $0xd8] sm:$0xff]
        %v1058 = vld [vmem:[%s369 + $0xe0] sm:$0xff]
        %v1059 = vld [vmem:[%s369 + $0xf0] sm:$0xff]
        %v1060 = vld [vmem:[%s369 + $0xf8] sm:$0xff]
        %v1061 = vld [vmem:[%s369 + $0x108] sm:$0xff]
        %v1062 = vld [vmem:[%s369 + $0x110] sm:$0xff]
        %v1063 = vld [vmem:[%s369 + $0x120] sm:$0xff]
        %v1064 = vld [vmem:[%s369 + $0x128] sm:$0xff]
        %v1065 = vld [vmem:[%s369 + $0x138] sm:$0xff]
        %v1066 = vld [vmem:[%s369 + $0x140] sm:$0xff]
        %v1067 = vld [vmem:[%s369 + $0x150] sm:$0xff]
        %v1068 = vld [vmem:[%s369 + $0x158] sm:$0xff]
        %v1069 = vld [vmem:[%s369 + $0x168] sm:$0xff]
        %v1070 = vld [vmem:[%s369 + $0x170] sm:$0xff]
        %v1071 = vpack.c.bf16 %v1040, %v1039
        %v1072 = vpack.c.bf16 %v1042, %v1041
        %v1073 = vpack.c.bf16 %v1044, %v1043
        %v1074 = vpack.c.bf16 %v1046, %v1045
        %v1075 = vpack.c.bf16 %v1048, %v1047
        %v1076 = vpack.c.bf16 %v1050, %v1049
        %v1077 = vpack.c.bf16 %v1052, %v1051
        %v1078 = vpack.c.bf16 %v1054, %v1053
        %v1079 = vpack.c.bf16 %v1056, %v1055
        %v1080 = vpack.c.bf16 %v1058, %v1057
        %v1081 = vpack.c.bf16 %v1060, %v1059
        %v1082 = vpack.c.bf16 %v1062, %v1061
        %v1083 = vpack.c.bf16 %v1064, %v1063
        %v1084 = vpack.c.bf16 %v1066, %v1065
        %v1085 = vpack.c.bf16 %v1068, %v1067
        %v1086 = vpack.c.bf16 %v1070, %v1069
        %s1087 = scalar_lea.vmem [#allocation6], 48
        %v1088 = vld [vmem:[%s1087] sm:$0xf]
        %v1089 = vld [vmem:[%s1087 + $0x4] sm:$0xf]
        %v1090 = vld [vmem:[%s1087 + $0x8] sm:$0xf]
        %v1091 = vld [vmem:[%s1087 + $0xc] sm:$0xf]
        %v1096 = vunpack.c.l.b16 %v1088
        %v1097 = vunpack.c.l.b16 %v1089
        %v1098 = vunpack.c.l.b16 %v1090
        %v1099 = vunpack.c.l.b16 %v1091
        %v1100 = vpack.c.b16 %v1097, %v1096
        %v1101 = vpack.c.b16 %v1099, %v1098
        %v1105 = vsel %vm313, %v1071, 0
        %v1108 = vsel %vm313, %v1072, 0
        %v1111 = vsel %vm313, %v1073, 0
        %v1114 = vsel %vm313, %v1074, 0
        %v1117 = vsel %vm313, %v1075, 0
        %v1120 = vsel %vm313, %v1076, 0
        %v1123 = vsel %vm313, %v1077, 0
        %v1126 = vsel %vm313, %v1078, 0
        %v1129 = vsel %vm313, %v1079, 0
        %v1132 = vsel %vm313, %v1080, 0
        %v1135 = vsel %vm313, %v1081, 0
        %v1138 = vsel %vm313, %v1082, 0
        %v1141 = vsel %vm313, %v1083, 0
        %v1144 = vsel %vm313, %v1084, 0
        %v1147 = vsel %vm313, %v1085, 0
        %v1150 = vsel %vm313, %v1086, 0
        %1152 = vmatpush.bf16.msra.mxu0 0
        %1153 = vmatpush.bf16.msra.mxu0 0
        %1154 = vmatpush.bf16.msra.mxu0 0
        %1155 = vmatpush.bf16.msra.mxu0 0
        %1156 = vmatpush.bf16.msra.mxu0 0
        %1157 = vmatpush.bf16.msra.mxu0 0
        %1158 = vmatpush.bf16.msra.mxu0 %v1101
        %1159 = vmatpush.bf16.msra.mxu0 %v1100
        %1160 = vmatmul.bf16.gmra.mxu0 %v1105
        %v1161 = vpop.f32.mrf.mxu0
        %v1162 = vadd.f32 0.0, %v1161
        %v1163 = vpop.f32.mrf.mxu0
        %v1164 = vadd.f32 0.0, %v1163
        %1165 = vmatmul.bf16.gmra.mxu0 %v1108
        %v1166 = vpop.f32.mrf.mxu0
        %v1167 = vadd.f32 0.0, %v1166
        %v1168 = vpop.f32.mrf.mxu0
        %v1169 = vadd.f32 0.0, %v1168
        %1170 = vmatmul.bf16.gmra.mxu0 %v1111
        %v1171 = vpop.f32.mrf.mxu0
        %v1172 = vadd.f32 0.0, %v1171
        %v1173 = vpop.f32.mrf.mxu0
        %v1174 = vadd.f32 0.0, %v1173
        %1175 = vmatmul.bf16.gmra.mxu0 %v1114
        %v1176 = vpop.f32.mrf.mxu0
        %v1177 = vadd.f32 0.0, %v1176
        %v1178 = vpop.f32.mrf.mxu0
        %v1179 = vadd.f32 0.0, %v1178
        %1180 = vmatmul.bf16.gmra.mxu0 %v1117
        %v1181 = vpop.f32.mrf.mxu0
        %v1182 = vadd.f32 0.0, %v1181
        %v1183 = vpop.f32.mrf.mxu0
        %v1184 = vadd.f32 0.0, %v1183
        %1185 = vmatmul.bf16.gmra.mxu0 %v1120
        %v1186 = vpop.f32.mrf.mxu0
        %v1187 = vadd.f32 0.0, %v1186
        %v1188 = vpop.f32.mrf.mxu0
        %v1189 = vadd.f32 0.0, %v1188
        %1190 = vmatmul.bf16.gmra.mxu0 %v1123
        %v1191 = vpop.f32.mrf.mxu0
        %v1192 = vadd.f32 0.0, %v1191
        %v1193 = vpop.f32.mrf.mxu0
        %v1194 = vadd.f32 0.0, %v1193
        %1195 = vmatmul.bf16.gmra.mxu0 %v1126
        %v1196 = vpop.f32.mrf.mxu0
        %v1197 = vadd.f32 0.0, %v1196
        %v1198 = vpop.f32.mrf.mxu0
        %v1199 = vadd.f32 0.0, %v1198
        %1200 = vmatmul.bf16.gmra.mxu0 %v1129
        %v1201 = vpop.f32.mrf.mxu0
        %v1202 = vadd.f32 0.0, %v1201
        %v1203 = vpop.f32.mrf.mxu0
        %v1204 = vadd.f32 0.0, %v1203
        %1205 = vmatmul.bf16.gmra.mxu0 %v1132
        %v1206 = vpop.f32.mrf.mxu0
        %v1207 = vadd.f32 0.0, %v1206
        %v1208 = vpop.f32.mrf.mxu0
        %v1209 = vadd.f32 0.0, %v1208
        %1210 = vmatmul.bf16.gmra.mxu0 %v1135
        %v1211 = vpop.f32.mrf.mxu0
        %v1212 = vadd.f32 0.0, %v1211
        %v1213 = vpop.f32.mrf.mxu0
        %v1214 = vadd.f32 0.0, %v1213
        %1215 = vmatmul.bf16.gmra.mxu0 %v1138
        %v1216 = vpop.f32.mrf.mxu0
        %v1217 = vadd.f32 0.0, %v1216
        %v1218 = vpop.f32.mrf.mxu0
        %v1219 = vadd.f32 0.0, %v1218
        %1220 = vmatmul.bf16.gmra.mxu0 %v1141
        %v1221 = vpop.f32.mrf.mxu0
        %v1222 = vadd.f32 0.0, %v1221
        %v1223 = vpop.f32.mrf.mxu0
        %v1224 = vadd.f32 0.0, %v1223
        %1225 = vmatmul.bf16.gmra.mxu0 %v1144
        %v1226 = vpop.f32.mrf.mxu0
        %v1227 = vadd.f32 0.0, %v1226
        %v1228 = vpop.f32.mrf.mxu0
        %v1229 = vadd.f32 0.0, %v1228
        %1230 = vmatmul.bf16.gmra.mxu0 %v1147
        %v1231 = vpop.f32.mrf.mxu0
        %v1232 = vadd.f32 0.0, %v1231
        %v1233 = vpop.f32.mrf.mxu0
        %v1234 = vadd.f32 0.0, %v1233
        %1235 = vmatmul.bf16.gmra.mxu0 %v1150
        %v1236 = vpop.f32.mrf.mxu0
        %v1237 = vadd.f32 0.0, %v1236
        %v1238 = vpop.f32.mrf.mxu0
        %v1239 = vadd.f32 0.0, %v1238
        %1240 = vdwg.mxu0
        %v1241 = vadd.f32 %v1007, %v1162
        %v1242 = vadd.f32 %v1008, %v1164
        %v1243 = vadd.f32 %v1009, %v1167
        %v1244 = vadd.f32 %v1010, %v1169
        %v1245 = vadd.f32 %v1011, %v1172
        %v1246 = vadd.f32 %v1012, %v1174
        %v1247 = vadd.f32 %v1013, %v1177
        %v1248 = vadd.f32 %v1014, %v1179
        %v1249 = vadd.f32 %v1015, %v1182
        %v1250 = vadd.f32 %v1016, %v1184
        %v1251 = vadd.f32 %v1017, %v1187
        %v1252 = vadd.f32 %v1018, %v1189
        %v1253 = vadd.f32 %v1019, %v1192
        %v1254 = vadd.f32 %v1020, %v1194
        %v1255 = vadd.f32 %v1021, %v1197
        %v1256 = vadd.f32 %v1022, %v1199
        %v1257 = vadd.f32 %v1023, %v1202
        %v1258 = vadd.f32 %v1024, %v1204
        %v1259 = vadd.f32 %v1025, %v1207
        %v1260 = vadd.f32 %v1026, %v1209
        %v1261 = vadd.f32 %v1027, %v1212
        %v1262 = vadd.f32 %v1028, %v1214
        %v1263 = vadd.f32 %v1029, %v1217
        %v1264 = vadd.f32 %v1030, %v1219
        %v1265 = vadd.f32 %v1031, %v1222
        %v1266 = vadd.f32 %v1032, %v1224
        %v1267 = vadd.f32 %v1033, %v1227
        %v1268 = vadd.f32 %v1034, %v1229
        %v1269 = vadd.f32 %v1035, %v1232
        %v1270 = vadd.f32 %v1036, %v1234
        %v1271 = vadd.f32 %v1037, %v1237
        %v1272 = vadd.f32 %v1038, %v1239
        %v1273 = vld [vmem:[%s369 + $0x1] sm:$0xff]
        %v1274 = vld [vmem:[%s369 + $0x9] sm:$0xff]
        %v1275 = vld [vmem:[%s369 + $0x19] sm:$0xff]
        %v1276 = vld [vmem:[%s369 + $0x21] sm:$0xff]
        %v1277 = vld [vmem:[%s369 + $0x31] sm:$0xff]
        %v1278 = vld [vmem:[%s369 + $0x39] sm:$0xff]
        %v1279 = vld [vmem:[%s369 + $0x49] sm:$0xff]
        %v1280 = vld [vmem:[%s369 + $0x51] sm:$0xff]
        %v1281 = vld [vmem:[%s369 + $0x61] sm:$0xff]
        %v1282 = vld [vmem:[%s369 + $0x69] sm:$0xff]
        %v1283 = vld [vmem:[%s369 + $0x79] sm:$0xff]
        %v1284 = vld [vmem:[%s369 + $0x81] sm:$0xff]
        %v1285 = vld [vmem:[%s369 + $0x91] sm:$0xff]
        %v1286 = vld [vmem:[%s369 + $0x99] sm:$0xff]
        %v1287 = vld [vmem:[%s369 + $0xa9] sm:$0xff]
        %v1288 = vld [vmem:[%s369 + $0xb1] sm:$0xff]
        %v1289 = vld [vmem:[%s369 + $0xc1] sm:$0xff]
        %v1290 = vld [vmem:[%s369 + $0xc9] sm:$0xff]
        %v1291 = vld [vmem:[%s369 + $0xd9] sm:$0xff]
        %v1292 = vld [vmem:[%s369 + $0xe1] sm:$0xff]
        %v1293 = vld [vmem:[%s369 + $0xf1] sm:$0xff]
        %v1294 = vld [vmem:[%s369 + $0xf9] sm:$0xff]
        %v1295 = vld [vmem:[%s369 + $0x109] sm:$0xff]
        %v1296 = vld [vmem:[%s369 + $0x111] sm:$0xff]
        %v1297 = vld [vmem:[%s369 + $0x121] sm:$0xff]
        %v1298 = vld [vmem:[%s369 + $0x129] sm:$0xff]
        %v1299 = vld [vmem:[%s369 + $0x139] sm:$0xff]
        %v1300 = vld [vmem:[%s369 + $0x141] sm:$0xff]
        %v1301 = vld [vmem:[%s369 + $0x151] sm:$0xff]
        %v1302 = vld [vmem:[%s369 + $0x159] sm:$0xff]
        %v1303 = vld [vmem:[%s369 + $0x169] sm:$0xff]
        %v1304 = vld [vmem:[%s369 + $0x171] sm:$0xff]
        %v1305 = vpack.c.bf16 %v1274, %v1273
        %v1306 = vpack.c.bf16 %v1276, %v1275
        %v1307 = vpack.c.bf16 %v1278, %v1277
        %v1308 = vpack.c.bf16 %v1280, %v1279
        %v1309 = vpack.c.bf16 %v1282, %v1281
        %v1310 = vpack.c.bf16 %v1284, %v1283
        %v1311 = vpack.c.bf16 %v1286, %v1285
        %v1312 = vpack.c.bf16 %v1288, %v1287
        %v1313 = vpack.c.bf16 %v1290, %v1289
        %v1314 = vpack.c.bf16 %v1292, %v1291
        %v1315 = vpack.c.bf16 %v1294, %v1293
        %v1316 = vpack.c.bf16 %v1296, %v1295
        %v1317 = vpack.c.bf16 %v1298, %v1297
        %v1318 = vpack.c.bf16 %v1300, %v1299
        %v1319 = vpack.c.bf16 %v1302, %v1301
        %v1320 = vpack.c.bf16 %v1304, %v1303
        %s1321 = scalar_lea.vmem [#allocation6], 64
        %v1322 = vld [vmem:[%s1321] sm:$0xf]
        %v1323 = vld [vmem:[%s1321 + $0x4] sm:$0xf]
        %v1324 = vld [vmem:[%s1321 + $0x8] sm:$0xf]
        %v1325 = vld [vmem:[%s1321 + $0xc] sm:$0xf]
        %v1330 = vunpack.c.l.b16 %v1322
        %v1331 = vunpack.c.l.b16 %v1323
        %v1332 = vunpack.c.l.b16 %v1324
        %v1333 = vunpack.c.l.b16 %v1325
        %v1334 = vpack.c.b16 %v1331, %v1330
        %v1335 = vpack.c.b16 %v1333, %v1332
        %v1339 = vsel %vm313, %v1305, 0
        %v1342 = vsel %vm313, %v1306, 0
        %v1345 = vsel %vm313, %v1307, 0
        %v1348 = vsel %vm313, %v1308, 0
        %v1351 = vsel %vm313, %v1309, 0
        %v1354 = vsel %vm313, %v1310, 0
        %v1357 = vsel %vm313, %v1311, 0
        %v1360 = vsel %vm313, %v1312, 0
        %v1363 = vsel %vm313, %v1313, 0
        %v1366 = vsel %vm313, %v1314, 0
        %v1369 = vsel %vm313, %v1315, 0
        %v1372 = vsel %vm313, %v1316, 0
        %v1375 = vsel %vm313, %v1317, 0
        %v1378 = vsel %vm313, %v1318, 0
        %v1381 = vsel %vm313, %v1319, 0
        %v1384 = vsel %vm313, %v1320, 0
        %1386 = vmatpush.bf16.msra.mxu0 0
        %1387 = vmatpush.bf16.msra.mxu0 0
        %1388 = vmatpush.bf16.msra.mxu0 0
        %1389 = vmatpush.bf16.msra.mxu0 0
        %1390 = vmatpush.bf16.msra.mxu0 0
        %1391 = vmatpush.bf16.msra.mxu0 0
        %1392 = vmatpush.bf16.msra.mxu0 %v1335
        %1393 = vmatpush.bf16.msra.mxu0 %v1334
        %1394 = vmatmul.bf16.gmra.mxu0 %v1339
        %v1395 = vpop.f32.mrf.mxu0
        %v1396 = vadd.f32 0.0, %v1395
        %v1397 = vpop.f32.mrf.mxu0
        %v1398 = vadd.f32 0.0, %v1397
        %1399 = vmatmul.bf16.gmra.mxu0 %v1342
        %v1400 = vpop.f32.mrf.mxu0
        %v1401 = vadd.f32 0.0, %v1400
        %v1402 = vpop.f32.mrf.mxu0
        %v1403 = vadd.f32 0.0, %v1402
        %1404 = vmatmul.bf16.gmra.mxu0 %v1345
        %v1405 = vpop.f32.mrf.mxu0
        %v1406 = vadd.f32 0.0, %v1405
        %v1407 = vpop.f32.mrf.mxu0
        %v1408 = vadd.f32 0.0, %v1407
        %1409 = vmatmul.bf16.gmra.mxu0 %v1348
        %v1410 = vpop.f32.mrf.mxu0
        %v1411 = vadd.f32 0.0, %v1410
        %v1412 = vpop.f32.mrf.mxu0
        %v1413 = vadd.f32 0.0, %v1412
        %1414 = vmatmul.bf16.gmra.mxu0 %v1351
        %v1415 = vpop.f32.mrf.mxu0
        %v1416 = vadd.f32 0.0, %v1415
        %v1417 = vpop.f32.mrf.mxu0
        %v1418 = vadd.f32 0.0, %v1417
        %1419 = vmatmul.bf16.gmra.mxu0 %v1354
        %v1420 = vpop.f32.mrf.mxu0
        %v1421 = vadd.f32 0.0, %v1420
        %v1422 = vpop.f32.mrf.mxu0
        %v1423 = vadd.f32 0.0, %v1422
        %1424 = vmatmul.bf16.gmra.mxu0 %v1357
        %v1425 = vpop.f32.mrf.mxu0
        %v1426 = vadd.f32 0.0, %v1425
        %v1427 = vpop.f32.mrf.mxu0
        %v1428 = vadd.f32 0.0, %v1427
        %1429 = vmatmul.bf16.gmra.mxu0 %v1360
        %v1430 = vpop.f32.mrf.mxu0
        %v1431 = vadd.f32 0.0, %v1430
        %v1432 = vpop.f32.mrf.mxu0
        %v1433 = vadd.f32 0.0, %v1432
        %1434 = vmatmul.bf16.gmra.mxu0 %v1363
        %v1435 = vpop.f32.mrf.mxu0
        %v1436 = vadd.f32 0.0, %v1435
        %v1437 = vpop.f32.mrf.mxu0
        %v1438 = vadd.f32 0.0, %v1437
        %1439 = vmatmul.bf16.gmra.mxu0 %v1366
        %v1440 = vpop.f32.mrf.mxu0
        %v1441 = vadd.f32 0.0, %v1440
        %v1442 = vpop.f32.mrf.mxu0
        %v1443 = vadd.f32 0.0, %v1442
        %1444 = vmatmul.bf16.gmra.mxu0 %v1369
        %v1445 = vpop.f32.mrf.mxu0
        %v1446 = vadd.f32 0.0, %v1445
        %v1447 = vpop.f32.mrf.mxu0
        %v1448 = vadd.f32 0.0, %v1447
        %1449 = vmatmul.bf16.gmra.mxu0 %v1372
        %v1450 = vpop.f32.mrf.mxu0
        %v1451 = vadd.f32 0.0, %v1450
        %v1452 = vpop.f32.mrf.mxu0
        %v1453 = vadd.f32 0.0, %v1452
        %1454 = vmatmul.bf16.gmra.mxu0 %v1375
        %v1455 = vpop.f32.mrf.mxu0
        %v1456 = vadd.f32 0.0, %v1455
        %v1457 = vpop.f32.mrf.mxu0
        %v1458 = vadd.f32 0.0, %v1457
        %1459 = vmatmul.bf16.gmra.mxu0 %v1378
        %v1460 = vpop.f32.mrf.mxu0
        %v1461 = vadd.f32 0.0, %v1460
        %v1462 = vpop.f32.mrf.mxu0
        %v1463 = vadd.f32 0.0, %v1462
        %1464 = vmatmul.bf16.gmra.mxu0 %v1381
        %v1465 = vpop.f32.mrf.mxu0
        %v1466 = vadd.f32 0.0, %v1465
        %v1467 = vpop.f32.mrf.mxu0
        %v1468 = vadd.f32 0.0, %v1467
        %1469 = vmatmul.bf16.gmra.mxu0 %v1384
        %v1470 = vpop.f32.mrf.mxu0
        %v1471 = vadd.f32 0.0, %v1470
        %v1472 = vpop.f32.mrf.mxu0
        %v1473 = vadd.f32 0.0, %v1472
        %1474 = vdwg.mxu0
        %v1475 = vadd.f32 %v1241, %v1396
        %v1476 = vadd.f32 %v1242, %v1398
        %v1477 = vadd.f32 %v1243, %v1401
        %v1478 = vadd.f32 %v1244, %v1403
        %v1479 = vadd.f32 %v1245, %v1406
        %v1480 = vadd.f32 %v1246, %v1408
        %v1481 = vadd.f32 %v1247, %v1411
        %v1482 = vadd.f32 %v1248, %v1413
        %v1483 = vadd.f32 %v1249, %v1416
        %v1484 = vadd.f32 %v1250, %v1418
        %v1485 = vadd.f32 %v1251, %v1421
        %v1486 = vadd.f32 %v1252, %v1423
        %v1487 = vadd.f32 %v1253, %v1426
        %v1488 = vadd.f32 %v1254, %v1428
        %v1489 = vadd.f32 %v1255, %v1431
        %v1490 = vadd.f32 %v1256, %v1433
        %v1491 = vadd.f32 %v1257, %v1436
        %v1492 = vadd.f32 %v1258, %v1438
        %v1493 = vadd.f32 %v1259, %v1441
        %v1494 = vadd.f32 %v1260, %v1443
        %v1495 = vadd.f32 %v1261, %v1446
        %v1496 = vadd.f32 %v1262, %v1448
        %v1497 = vadd.f32 %v1263, %v1451
        %v1498 = vadd.f32 %v1264, %v1453
        %v1499 = vadd.f32 %v1265, %v1456
        %v1500 = vadd.f32 %v1266, %v1458
        %v1501 = vadd.f32 %v1267, %v1461
        %v1502 = vadd.f32 %v1268, %v1463
        %v1503 = vadd.f32 %v1269, %v1466
        %v1504 = vadd.f32 %v1270, %v1468
        %v1505 = vadd.f32 %v1271, %v1471
        %v1506 = vadd.f32 %v1272, %v1473
        %v1507 = vld [vmem:[%s369 + $0x2] sm:$0xff]
        %v1508 = vld [vmem:[%s369 + $0xa] sm:$0xff]
        %v1509 = vld [vmem:[%s369 + $0x1a] sm:$0xff]
        %v1510 = vld [vmem:[%s369 + $0x22] sm:$0xff]
        %v1511 = vld [vmem:[%s369 + $0x32] sm:$0xff]
        %v1512 = vld [vmem:[%s369 + $0x3a] sm:$0xff]
        %v1513 = vld [vmem:[%s369 + $0x4a] sm:$0xff]
        %v1514 = vld [vmem:[%s369 + $0x52] sm:$0xff]
        %v1515 = vld [vmem:[%s369 + $0x62] sm:$0xff]
        %v1516 = vld [vmem:[%s369 + $0x6a] sm:$0xff]
        %v1517 = vld [vmem:[%s369 + $0x7a] sm:$0xff]
        %v1518 = vld [vmem:[%s369 + $0x82] sm:$0xff]
        %v1519 = vld [vmem:[%s369 + $0x92] sm:$0xff]
        %v1520 = vld [vmem:[%s369 + $0x9a] sm:$0xff]
        %v1521 = vld [vmem:[%s369 + $0xaa] sm:$0xff]
        %v1522 = vld [vmem:[%s369 + $0xb2] sm:$0xff]
        %v1523 = vld [vmem:[%s369 + $0xc2] sm:$0xff]
        %v1524 = vld [vmem:[%s369 + $0xca] sm:$0xff]
        %v1525 = vld [vmem:[%s369 + $0xda] sm:$0xff]
        %v1526 = vld [vmem:[%s369 + $0xe2] sm:$0xff]
        %v1527 = vld [vmem:[%s369 + $0xf2] sm:$0xff]
        %v1528 = vld [vmem:[%s369 + $0xfa] sm:$0xff]
        %v1529 = vld [vmem:[%s369 + $0x10a] sm:$0xff]
        %v1530 = vld [vmem:[%s369 + $0x112] sm:$0xff]
        %v1531 = vld [vmem:[%s369 + $0x122] sm:$0xff]
        %v1532 = vld [vmem:[%s369 + $0x12a] sm:$0xff]
        %v1533 = vld [vmem:[%s369 + $0x13a] sm:$0xff]
        %v1534 = vld [vmem:[%s369 + $0x142] sm:$0xff]
        %v1535 = vld [vmem:[%s369 + $0x152] sm:$0xff]
        %v1536 = vld [vmem:[%s369 + $0x15a] sm:$0xff]
        %v1537 = vld [vmem:[%s369 + $0x16a] sm:$0xff]
        %v1538 = vld [vmem:[%s369 + $0x172] sm:$0xff]
        %v1539 = vpack.c.bf16 %v1508, %v1507
        %v1540 = vpack.c.bf16 %v1510, %v1509
        %v1541 = vpack.c.bf16 %v1512, %v1511
        %v1542 = vpack.c.bf16 %v1514, %v1513
        %v1543 = vpack.c.bf16 %v1516, %v1515
        %v1544 = vpack.c.bf16 %v1518, %v1517
        %v1545 = vpack.c.bf16 %v1520, %v1519
        %v1546 = vpack.c.bf16 %v1522, %v1521
        %v1547 = vpack.c.bf16 %v1524, %v1523
        %v1548 = vpack.c.bf16 %v1526, %v1525
        %v1549 = vpack.c.bf16 %v1528, %v1527
        %v1550 = vpack.c.bf16 %v1530, %v1529
        %v1551 = vpack.c.bf16 %v1532, %v1531
        %v1552 = vpack.c.bf16 %v1534, %v1533
        %v1553 = vpack.c.bf16 %v1536, %v1535
        %v1554 = vpack.c.bf16 %v1538, %v1537
        %s1555 = scalar_lea.vmem [#allocation6], 80
        %v1556 = vld [vmem:[%s1555] sm:$0xf]
        %v1557 = vld [vmem:[%s1555 + $0x4] sm:$0xf]
        %v1558 = vld [vmem:[%s1555 + $0x8] sm:$0xf]
        %v1559 = vld [vmem:[%s1555 + $0xc] sm:$0xf]
        %v1564 = vunpack.c.l.b16 %v1556
        %v1565 = vunpack.c.l.b16 %v1557
        %v1566 = vunpack.c.l.b16 %v1558
        %v1567 = vunpack.c.l.b16 %v1559
        %v1568 = vpack.c.b16 %v1565, %v1564
        %v1569 = vpack.c.b16 %v1567, %v1566
        %v1573 = vsel %vm313, %v1539, 0
        %v1576 = vsel %vm313, %v1540, 0
        %v1579 = vsel %vm313, %v1541, 0
        %v1582 = vsel %vm313, %v1542, 0
        %v1585 = vsel %vm313, %v1543, 0
        %v1588 = vsel %vm313, %v1544, 0
        %v1591 = vsel %vm313, %v1545, 0
        %v1594 = vsel %vm313, %v1546, 0
        %v1597 = vsel %vm313, %v1547, 0
        %v1600 = vsel %vm313, %v1548, 0
        %v1603 = vsel %vm313, %v1549, 0
        %v1606 = vsel %vm313, %v1550, 0
        %v1609 = vsel %vm313, %v1551, 0
        %v1612 = vsel %vm313, %v1552, 0
        %v1615 = vsel %vm313, %v1553, 0
        %v1618 = vsel %vm313, %v1554, 0
        %1620 = vmatpush.bf16.msra.mxu0 0
        %1621 = vmatpush.bf16.msra.mxu0 0
        %1622 = vmatpush.bf16.msra.mxu0 0
        %1623 = vmatpush.bf16.msra.mxu0 0
        %1624 = vmatpush.bf16.msra.mxu0 0
        %1625 = vmatpush.bf16.msra.mxu0 0
        %1626 = vmatpush.bf16.msra.mxu0 %v1569
        %1627 = vmatpush.bf16.msra.mxu0 %v1568
        %1628 = vmatmul.bf16.gmra.mxu0 %v1573
        %v1629 = vpop.f32.mrf.mxu0
        %v1630 = vadd.f32 0.0, %v1629
        %v1631 = vpop.f32.mrf.mxu0
        %v1632 = vadd.f32 0.0, %v1631
        %1633 = vmatmul.bf16.gmra.mxu0 %v1576
        %v1634 = vpop.f32.mrf.mxu0
        %v1635 = vadd.f32 0.0, %v1634
        %v1636 = vpop.f32.mrf.mxu0
        %v1637 = vadd.f32 0.0, %v1636
        %1638 = vmatmul.bf16.gmra.mxu0 %v1579
        %v1639 = vpop.f32.mrf.mxu0
        %v1640 = vadd.f32 0.0, %v1639
        %v1641 = vpop.f32.mrf.mxu0
        %v1642 = vadd.f32 0.0, %v1641
        %1643 = vmatmul.bf16.gmra.mxu0 %v1582
        %v1644 = vpop.f32.mrf.mxu0
        %v1645 = vadd.f32 0.0, %v1644
        %v1646 = vpop.f32.mrf.mxu0
        %v1647 = vadd.f32 0.0, %v1646
        %1648 = vmatmul.bf16.gmra.mxu0 %v1585
        %v1649 = vpop.f32.mrf.mxu0
        %v1650 = vadd.f32 0.0, %v1649
        %v1651 = vpop.f32.mrf.mxu0
        %v1652 = vadd.f32 0.0, %v1651
        %1653 = vmatmul.bf16.gmra.mxu0 %v1588
        %v1654 = vpop.f32.mrf.mxu0
        %v1655 = vadd.f32 0.0, %v1654
        %v1656 = vpop.f32.mrf.mxu0
        %v1657 = vadd.f32 0.0, %v1656
        %1658 = vmatmul.bf16.gmra.mxu0 %v1591
        %v1659 = vpop.f32.mrf.mxu0
        %v1660 = vadd.f32 0.0, %v1659
        %v1661 = vpop.f32.mrf.mxu0
        %v1662 = vadd.f32 0.0, %v1661
        %1663 = vmatmul.bf16.gmra.mxu0 %v1594
        %v1664 = vpop.f32.mrf.mxu0
        %v1665 = vadd.f32 0.0, %v1664
        %v1666 = vpop.f32.mrf.mxu0
        %v1667 = vadd.f32 0.0, %v1666
        %1668 = vmatmul.bf16.gmra.mxu0 %v1597
        %v1669 = vpop.f32.mrf.mxu0
        %v1670 = vadd.f32 0.0, %v1669
        %v1671 = vpop.f32.mrf.mxu0
        %v1672 = vadd.f32 0.0, %v1671
        %1673 = vmatmul.bf16.gmra.mxu0 %v1600
        %v1674 = vpop.f32.mrf.mxu0
        %v1675 = vadd.f32 0.0, %v1674
        %v1676 = vpop.f32.mrf.mxu0
        %v1677 = vadd.f32 0.0, %v1676
        %1678 = vmatmul.bf16.gmra.mxu0 %v1603
        %v1679 = vpop.f32.mrf.mxu0
        %v1680 = vadd.f32 0.0, %v1679
        %v1681 = vpop.f32.mrf.mxu0
        %v1682 = vadd.f32 0.0, %v1681
        %1683 = vmatmul.bf16.gmra.mxu0 %v1606
        %v1684 = vpop.f32.mrf.mxu0
        %v1685 = vadd.f32 0.0, %v1684
        %v1686 = vpop.f32.mrf.mxu0
        %v1687 = vadd.f32 0.0, %v1686
        %1688 = vmatmul.bf16.gmra.mxu0 %v1609
        %v1689 = vpop.f32.mrf.mxu0
        %v1690 = vadd.f32 0.0, %v1689
        %v1691 = vpop.f32.mrf.mxu0
        %v1692 = vadd.f32 0.0, %v1691
        %1693 = vmatmul.bf16.gmra.mxu0 %v1612
        %v1694 = vpop.f32.mrf.mxu0
        %v1695 = vadd.f32 0.0, %v1694
        %v1696 = vpop.f32.mrf.mxu0
        %v1697 = vadd.f32 0.0, %v1696
        %1698 = vmatmul.bf16.gmra.mxu0 %v1615
        %v1699 = vpop.f32.mrf.mxu0
        %v1700 = vadd.f32 0.0, %v1699
        %v1701 = vpop.f32.mrf.mxu0
        %v1702 = vadd.f32 0.0, %v1701
        %1703 = vmatmul.bf16.gmra.mxu0 %v1618
        %v1704 = vpop.f32.mrf.mxu0
        %v1705 = vadd.f32 0.0, %v1704
        %v1706 = vpop.f32.mrf.mxu0
        %v1707 = vadd.f32 0.0, %v1706
        %1708 = vdwg.mxu0
        %v1709 = vadd.f32 %v1475, %v1630
        %v1710 = vadd.f32 %v1476, %v1632
        %v1711 = vadd.f32 %v1477, %v1635
        %v1712 = vadd.f32 %v1478, %v1637
        %v1713 = vadd.f32 %v1479, %v1640
        %v1714 = vadd.f32 %v1480, %v1642
        %v1715 = vadd.f32 %v1481, %v1645
        %v1716 = vadd.f32 %v1482, %v1647
        %v1717 = vadd.f32 %v1483, %v1650
        %v1718 = vadd.f32 %v1484, %v1652
        %v1719 = vadd.f32 %v1485, %v1655
        %v1720 = vadd.f32 %v1486, %v1657
        %v1721 = vadd.f32 %v1487, %v1660
        %v1722 = vadd.f32 %v1488, %v1662
        %v1723 = vadd.f32 %v1489, %v1665
        %v1724 = vadd.f32 %v1490, %v1667
        %v1725 = vadd.f32 %v1491, %v1670
        %v1726 = vadd.f32 %v1492, %v1672
        %v1727 = vadd.f32 %v1493, %v1675
        %v1728 = vadd.f32 %v1494, %v1677
        %v1729 = vadd.f32 %v1495, %v1680
        %v1730 = vadd.f32 %v1496, %v1682
        %v1731 = vadd.f32 %v1497, %v1685
        %v1732 = vadd.f32 %v1498, %v1687
        %v1733 = vadd.f32 %v1499, %v1690
        %v1734 = vadd.f32 %v1500, %v1692
        %v1735 = vadd.f32 %v1501, %v1695
        %v1736 = vadd.f32 %v1502, %v1697
        %v1737 = vadd.f32 %v1503, %v1700
        %v1738 = vadd.f32 %v1504, %v1702
        %v1739 = vadd.f32 %v1505, %v1705
        %v1740 = vadd.f32 %v1506, %v1707
        %s1741 = scalar_lea.vmem [#allocation2], 48
        %v1742 = vld [vmem:[%s1741] sm:$0xff]
        %v1743 = vld [vmem:[%s1741 + $0x8] sm:$0xff]
        %v1744 = vld [vmem:[%s1741 + $0x18] sm:$0xff]
        %v1745 = vld [vmem:[%s1741 + $0x20] sm:$0xff]
        %v1746 = vld [vmem:[%s1741 + $0x30] sm:$0xff]
        %v1747 = vld [vmem:[%s1741 + $0x38] sm:$0xff]
        %v1748 = vld [vmem:[%s1741 + $0x48] sm:$0xff]
        %v1749 = vld [vmem:[%s1741 + $0x50] sm:$0xff]
        %v1750 = vld [vmem:[%s1741 + $0x60] sm:$0xff]
        %v1751 = vld [vmem:[%s1741 + $0x68] sm:$0xff]
        %v1752 = vld [vmem:[%s1741 + $0x78] sm:$0xff]
        %v1753 = vld [vmem:[%s1741 + $0x80] sm:$0xff]
        %v1754 = vld [vmem:[%s1741 + $0x90] sm:$0xff]
        %v1755 = vld [vmem:[%s1741 + $0x98] sm:$0xff]
        %v1756 = vld [vmem:[%s1741 + $0xa8] sm:$0xff]
        %v1757 = vld [vmem:[%s1741 + $0xb0] sm:$0xff]
        %v1758 = vld [vmem:[%s1741 + $0xc0] sm:$0xff]
        %v1759 = vld [vmem:[%s1741 + $0xc8] sm:$0xff]
        %v1760 = vld [vmem:[%s1741 + $0xd8] sm:$0xff]
        %v1761 = vld [vmem:[%s1741 + $0xe0] sm:$0xff]
        %v1762 = vld [vmem:[%s1741 + $0xf0] sm:$0xff]
        %v1763 = vld [vmem:[%s1741 + $0xf8] sm:$0xff]
        %v1764 = vld [vmem:[%s1741 + $0x108] sm:$0xff]
        %v1765 = vld [vmem:[%s1741 + $0x110] sm:$0xff]
        %v1766 = vld [vmem:[%s1741 + $0x120] sm:$0xff]
        %v1767 = vld [vmem:[%s1741 + $0x128] sm:$0xff]
        %v1768 = vld [vmem:[%s1741 + $0x138] sm:$0xff]
        %v1769 = vld [vmem:[%s1741 + $0x140] sm:$0xff]
        %v1770 = vld [vmem:[%s1741 + $0x150] sm:$0xff]
        %v1771 = vld [vmem:[%s1741 + $0x158] sm:$0xff]
        %v1772 = vld [vmem:[%s1741 + $0x168] sm:$0xff]
        %v1773 = vld [vmem:[%s1741 + $0x170] sm:$0xff]
        %v1774 = vpack.c.bf16 %v1743, %v1742
        %v1775 = vpack.c.bf16 %v1745, %v1744
        %v1776 = vpack.c.bf16 %v1747, %v1746
        %v1777 = vpack.c.bf16 %v1749, %v1748
        %v1778 = vpack.c.bf16 %v1751, %v1750
        %v1779 = vpack.c.bf16 %v1753, %v1752
        %v1780 = vpack.c.bf16 %v1755, %v1754
        %v1781 = vpack.c.bf16 %v1757, %v1756
        %v1782 = vpack.c.bf16 %v1759, %v1758
        %v1783 = vpack.c.bf16 %v1761, %v1760
        %v1784 = vpack.c.bf16 %v1763, %v1762
        %v1785 = vpack.c.bf16 %v1765, %v1764
        %v1786 = vpack.c.bf16 %v1767, %v1766
        %v1787 = vpack.c.bf16 %v1769, %v1768
        %v1788 = vpack.c.bf16 %v1771, %v1770
        %v1789 = vpack.c.bf16 %v1773, %v1772
        %s1790 = scalar_lea.vmem [#allocation6], 96
        %v1791 = vld [vmem:[%s1790] sm:$0xf]
        %v1792 = vld [vmem:[%s1790 + $0x4] sm:$0xf]
        %v1793 = vld [vmem:[%s1790 + $0x8] sm:$0xf]
        %v1794 = vld [vmem:[%s1790 + $0xc] sm:$0xf]
        %v1799 = vunpack.c.l.b16 %v1791
        %v1800 = vunpack.c.l.b16 %v1792
        %v1801 = vunpack.c.l.b16 %v1793
        %v1802 = vunpack.c.l.b16 %v1794
        %v1803 = vpack.c.b16 %v1800, %v1799
        %v1804 = vpack.c.b16 %v1802, %v1801
        %v1808 = vsel %vm313, %v1774, 0
        %v1811 = vsel %vm313, %v1775, 0
        %v1814 = vsel %vm313, %v1776, 0
        %v1817 = vsel %vm313, %v1777, 0
        %v1820 = vsel %vm313, %v1778, 0
        %v1823 = vsel %vm313, %v1779, 0
        %v1826 = vsel %vm313, %v1780, 0
        %v1829 = vsel %vm313, %v1781, 0
        %v1832 = vsel %vm313, %v1782, 0
        %v1835 = vsel %vm313, %v1783, 0
        %v1838 = vsel %vm313, %v1784, 0
        %v1841 = vsel %vm313, %v1785, 0
        %v1844 = vsel %vm313, %v1786, 0
        %v1847 = vsel %vm313, %v1787, 0
        %v1850 = vsel %vm313, %v1788, 0
        %v1853 = vsel %vm313, %v1789, 0
        %1855 = vmatpush.bf16.msra.mxu0 0
        %1856 = vmatpush.bf16.msra.mxu0 0
        %1857 = vmatpush.bf16.msra.mxu0 0
        %1858 = vmatpush.bf16.msra.mxu0 0
        %1859 = vmatpush.bf16.msra.mxu0 0
        %1860 = vmatpush.bf16.msra.mxu0 0
        %1861 = vmatpush.bf16.msra.mxu0 %v1804
        %1862 = vmatpush.bf16.msra.mxu0 %v1803
        %1863 = vmatmul.bf16.gmra.mxu0 %v1808
        %v1864 = vpop.f32.mrf.mxu0
        %v1865 = vadd.f32 0.0, %v1864
        %v1866 = vpop.f32.mrf.mxu0
        %v1867 = vadd.f32 0.0, %v1866
        %1868 = vmatmul.bf16.gmra.mxu0 %v1811
        %v1869 = vpop.f32.mrf.mxu0
        %v1870 = vadd.f32 0.0, %v1869
        %v1871 = vpop.f32.mrf.mxu0
        %v1872 = vadd.f32 0.0, %v1871
        %1873 = vmatmul.bf16.gmra.mxu0 %v1814
        %v1874 = vpop.f32.mrf.mxu0
        %v1875 = vadd.f32 0.0, %v1874
        %v1876 = vpop.f32.mrf.mxu0
        %v1877 = vadd.f32 0.0, %v1876
        %1878 = vmatmul.bf16.gmra.mxu0 %v1817
        %v1879 = vpop.f32.mrf.mxu0
        %v1880 = vadd.f32 0.0, %v1879
        %v1881 = vpop.f32.mrf.mxu0
        %v1882 = vadd.f32 0.0, %v1881
        %1883 = vmatmul.bf16.gmra.mxu0 %v1820
        %v1884 = vpop.f32.mrf.mxu0
        %v1885 = vadd.f32 0.0, %v1884
        %v1886 = vpop.f32.mrf.mxu0
        %v1887 = vadd.f32 0.0, %v1886
        %1888 = vmatmul.bf16.gmra.mxu0 %v1823
        %v1889 = vpop.f32.mrf.mxu0
        %v1890 = vadd.f32 0.0, %v1889
        %v1891 = vpop.f32.mrf.mxu0
        %v1892 = vadd.f32 0.0, %v1891
        %1893 = vmatmul.bf16.gmra.mxu0 %v1826
        %v1894 = vpop.f32.mrf.mxu0
        %v1895 = vadd.f32 0.0, %v1894
        %v1896 = vpop.f32.mrf.mxu0
        %v1897 = vadd.f32 0.0, %v1896
        %1898 = vmatmul.bf16.gmra.mxu0 %v1829
        %v1899 = vpop.f32.mrf.mxu0
        %v1900 = vadd.f32 0.0, %v1899
        %v1901 = vpop.f32.mrf.mxu0
        %v1902 = vadd.f32 0.0, %v1901
        %1903 = vmatmul.bf16.gmra.mxu0 %v1832
        %v1904 = vpop.f32.mrf.mxu0
        %v1905 = vadd.f32 0.0, %v1904
        %v1906 = vpop.f32.mrf.mxu0
        %v1907 = vadd.f32 0.0, %v1906
        %1908 = vmatmul.bf16.gmra.mxu0 %v1835
        %v1909 = vpop.f32.mrf.mxu0
        %v1910 = vadd.f32 0.0, %v1909
        %v1911 = vpop.f32.mrf.mxu0
        %v1912 = vadd.f32 0.0, %v1911
        %1913 = vmatmul.bf16.gmra.mxu0 %v1838
        %v1914 = vpop.f32.mrf.mxu0
        %v1915 = vadd.f32 0.0, %v1914
        %v1916 = vpop.f32.mrf.mxu0
        %v1917 = vadd.f32 0.0, %v1916
        %1918 = vmatmul.bf16.gmra.mxu0 %v1841
        %v1919 = vpop.f32.mrf.mxu0
        %v1920 = vadd.f32 0.0, %v1919
        %v1921 = vpop.f32.mrf.mxu0
        %v1922 = vadd.f32 0.0, %v1921
        %1923 = vmatmul.bf16.gmra.mxu0 %v1844
        %v1924 = vpop.f32.mrf.mxu0
        %v1925 = vadd.f32 0.0, %v1924
        %v1926 = vpop.f32.mrf.mxu0
        %v1927 = vadd.f32 0.0, %v1926
        %1928 = vmatmul.bf16.gmra.mxu0 %v1847
        %v1929 = vpop.f32.mrf.mxu0
        %v1930 = vadd.f32 0.0, %v1929
        %v1931 = vpop.f32.mrf.mxu0
        %v1932 = vadd.f32 0.0, %v1931
        %1933 = vmatmul.bf16.gmra.mxu0 %v1850
        %v1934 = vpop.f32.mrf.mxu0
        %v1935 = vadd.f32 0.0, %v1934
        %v1936 = vpop.f32.mrf.mxu0
        %v1937 = vadd.f32 0.0, %v1936
        %1938 = vmatmul.bf16.gmra.mxu0 %v1853
        %v1939 = vpop.f32.mrf.mxu0
        %v1940 = vadd.f32 0.0, %v1939
        %v1941 = vpop.f32.mrf.mxu0
        %v1942 = vadd.f32 0.0, %v1941
        %1943 = vdwg.mxu0
        %v1944 = vadd.f32 %v1709, %v1865
        %v1945 = vadd.f32 %v1710, %v1867
        %v1946 = vadd.f32 %v1711, %v1870
        %v1947 = vadd.f32 %v1712, %v1872
        %v1948 = vadd.f32 %v1713, %v1875
        %v1949 = vadd.f32 %v1714, %v1877
        %v1950 = vadd.f32 %v1715, %v1880
        %v1951 = vadd.f32 %v1716, %v1882
        %v1952 = vadd.f32 %v1717, %v1885
        %v1953 = vadd.f32 %v1718, %v1887
        %v1954 = vadd.f32 %v1719, %v1890
        %v1955 = vadd.f32 %v1720, %v1892
        %v1956 = vadd.f32 %v1721, %v1895
        %v1957 = vadd.f32 %v1722, %v1897
        %v1958 = vadd.f32 %v1723, %v1900
        %v1959 = vadd.f32 %v1724, %v1902
        %v1960 = vadd.f32 %v1725, %v1905
        %v1961 = vadd.f32 %v1726, %v1907
        %v1962 = vadd.f32 %v1727, %v1910
        %v1963 = vadd.f32 %v1728, %v1912
        %v1964 = vadd.f32 %v1729, %v1915
        %v1965 = vadd.f32 %v1730, %v1917
        %v1966 = vadd.f32 %v1731, %v1920
        %v1967 = vadd.f32 %v1732, %v1922
        %v1968 = vadd.f32 %v1733, %v1925
        %v1969 = vadd.f32 %v1734, %v1927
        %v1970 = vadd.f32 %v1735, %v1930
        %v1971 = vadd.f32 %v1736, %v1932
        %v1972 = vadd.f32 %v1737, %v1935
        %v1973 = vadd.f32 %v1738, %v1937
        %v1974 = vadd.f32 %v1739, %v1940
        %v1975 = vadd.f32 %v1740, %v1942
        %v1976 = vld [vmem:[%s1741 + $0x1] sm:$0xff]
        %v1977 = vld [vmem:[%s1741 + $0x9] sm:$0xff]
        %v1978 = vld [vmem:[%s1741 + $0x19] sm:$0xff]
        %v1979 = vld [vmem:[%s1741 + $0x21] sm:$0xff]
        %v1980 = vld [vmem:[%s1741 + $0x31] sm:$0xff]
        %v1981 = vld [vmem:[%s1741 + $0x39] sm:$0xff]
        %v1982 = vld [vmem:[%s1741 + $0x49] sm:$0xff]
        %v1983 = vld [vmem:[%s1741 + $0x51] sm:$0xff]
        %v1984 = vld [vmem:[%s1741 + $0x61] sm:$0xff]
        %v1985 = vld [vmem:[%s1741 + $0x69] sm:$0xff]
        %v1986 = vld [vmem:[%s1741 + $0x79] sm:$0xff]
        %v1987 = vld [vmem:[%s1741 + $0x81] sm:$0xff]
        %v1988 = vld [vmem:[%s1741 + $0x91] sm:$0xff]
        %v1989 = vld [vmem:[%s1741 + $0x99] sm:$0xff]
        %v1990 = vld [vmem:[%s1741 + $0xa9] sm:$0xff]
        %v1991 = vld [vmem:[%s1741 + $0xb1] sm:$0xff]
        %v1992 = vld [vmem:[%s1741 + $0xc1] sm:$0xff]
        %v1993 = vld [vmem:[%s1741 + $0xc9] sm:$0xff]
        %v1994 = vld [vmem:[%s1741 + $0xd9] sm:$0xff]
        %v1995 = vld [vmem:[%s1741 + $0xe1] sm:$0xff]
        %v1996 = vld [vmem:[%s1741 + $0xf1] sm:$0xff]
        %v1997 = vld [vmem:[%s1741 + $0xf9] sm:$0xff]
        %v1998 = vld [vmem:[%s1741 + $0x109] sm:$0xff]
        %v1999 = vld [vmem:[%s1741 + $0x111] sm:$0xff]
        %v2000 = vld [vmem:[%s1741 + $0x121] sm:$0xff]
        %v2001 = vld [vmem:[%s1741 + $0x129] sm:$0xff]
        %v2002 = vld [vmem:[%s1741 + $0x139] sm:$0xff]
        %v2003 = vld [vmem:[%s1741 + $0x141] sm:$0xff]
        %v2004 = vld [vmem:[%s1741 + $0x151] sm:$0xff]
        %v2005 = vld [vmem:[%s1741 + $0x159] sm:$0xff]
        %v2006 = vld [vmem:[%s1741 + $0x169] sm:$0xff]
        %v2007 = vld [vmem:[%s1741 + $0x171] sm:$0xff]
        %v2008 = vpack.c.bf16 %v1977, %v1976
        %v2009 = vpack.c.bf16 %v1979, %v1978
        %v2010 = vpack.c.bf16 %v1981, %v1980
        %v2011 = vpack.c.bf16 %v1983, %v1982
        %v2012 = vpack.c.bf16 %v1985, %v1984
        %v2013 = vpack.c.bf16 %v1987, %v1986
        %v2014 = vpack.c.bf16 %v1989, %v1988
        %v2015 = vpack.c.bf16 %v1991, %v1990
        %v2016 = vpack.c.bf16 %v1993, %v1992
        %v2017 = vpack.c.bf16 %v1995, %v1994
        %v2018 = vpack.c.bf16 %v1997, %v1996
        %v2019 = vpack.c.bf16 %v1999, %v1998
        %v2020 = vpack.c.bf16 %v2001, %v2000
        %v2021 = vpack.c.bf16 %v2003, %v2002
        %v2022 = vpack.c.bf16 %v2005, %v2004
        %v2023 = vpack.c.bf16 %v2007, %v2006
        %s2024 = scalar_lea.vmem [#allocation6], 112
        %v2025 = vld [vmem:[%s2024] sm:$0xf]
        %v2026 = vld [vmem:[%s2024 + $0x4] sm:$0xf]
        %v2027 = vld [vmem:[%s2024 + $0x8] sm:$0xf]
        %v2028 = vld [vmem:[%s2024 + $0xc] sm:$0xf]
        %v2033 = vunpack.c.l.b16 %v2025
        %v2034 = vunpack.c.l.b16 %v2026
        %v2035 = vunpack.c.l.b16 %v2027
        %v2036 = vunpack.c.l.b16 %v2028
        %v2037 = vpack.c.b16 %v2034, %v2033
        %v2038 = vpack.c.b16 %v2036, %v2035
        %v2042 = vsel %vm313, %v2008, 0
        %v2045 = vsel %vm313, %v2009, 0
        %v2048 = vsel %vm313, %v2010, 0
        %v2051 = vsel %vm313, %v2011, 0
        %v2054 = vsel %vm313, %v2012, 0
        %v2057 = vsel %vm313, %v2013, 0
        %v2060 = vsel %vm313, %v2014, 0
        %v2063 = vsel %vm313, %v2015, 0
        %v2066 = vsel %vm313, %v2016, 0
        %v2069 = vsel %vm313, %v2017, 0
        %v2072 = vsel %vm313, %v2018, 0
        %v2075 = vsel %vm313, %v2019, 0
        %v2078 = vsel %vm313, %v2020, 0
        %v2081 = vsel %vm313, %v2021, 0
        %v2084 = vsel %vm313, %v2022, 0
        %v2087 = vsel %vm313, %v2023, 0
        %2089 = vmatpush.bf16.msra.mxu0 0
        %2090 = vmatpush.bf16.msra.mxu0 0
        %2091 = vmatpush.bf16.msra.mxu0 0
        %2092 = vmatpush.bf16.msra.mxu0 0
        %2093 = vmatpush.bf16.msra.mxu0 0
        %2094 = vmatpush.bf16.msra.mxu0 0
        %2095 = vmatpush.bf16.msra.mxu0 %v2038
        %2096 = vmatpush.bf16.msra.mxu0 %v2037
        %2097 = vmatmul.bf16.gmra.mxu0 %v2042
        %v2098 = vpop.f32.mrf.mxu0
        %v2099 = vadd.f32 0.0, %v2098
        %v2100 = vpop.f32.mrf.mxu0
        %v2101 = vadd.f32 0.0, %v2100
        %2102 = vmatmul.bf16.gmra.mxu0 %v2045
        %v2103 = vpop.f32.mrf.mxu0
        %v2104 = vadd.f32 0.0, %v2103
        %v2105 = vpop.f32.mrf.mxu0
        %v2106 = vadd.f32 0.0, %v2105
        %2107 = vmatmul.bf16.gmra.mxu0 %v2048
        %v2108 = vpop.f32.mrf.mxu0
        %v2109 = vadd.f32 0.0, %v2108
        %v2110 = vpop.f32.mrf.mxu0
        %v2111 = vadd.f32 0.0, %v2110
        %2112 = vmatmul.bf16.gmra.mxu0 %v2051
        %v2113 = vpop.f32.mrf.mxu0
        %v2114 = vadd.f32 0.0, %v2113
        %v2115 = vpop.f32.mrf.mxu0
        %v2116 = vadd.f32 0.0, %v2115
        %2117 = vmatmul.bf16.gmra.mxu0 %v2054
        %v2118 = vpop.f32.mrf.mxu0
        %v2119 = vadd.f32 0.0, %v2118
        %v2120 = vpop.f32.mrf.mxu0
        %v2121 = vadd.f32 0.0, %v2120
        %2122 = vmatmul.bf16.gmra.mxu0 %v2057
        %v2123 = vpop.f32.mrf.mxu0
        %v2124 = vadd.f32 0.0, %v2123
        %v2125 = vpop.f32.mrf.mxu0
        %v2126 = vadd.f32 0.0, %v2125
        %2127 = vmatmul.bf16.gmra.mxu0 %v2060
        %v2128 = vpop.f32.mrf.mxu0
        %v2129 = vadd.f32 0.0, %v2128
        %v2130 = vpop.f32.mrf.mxu0
        %v2131 = vadd.f32 0.0, %v2130
        %2132 = vmatmul.bf16.gmra.mxu0 %v2063
        %v2133 = vpop.f32.mrf.mxu0
        %v2134 = vadd.f32 0.0, %v2133
        %v2135 = vpop.f32.mrf.mxu0
        %v2136 = vadd.f32 0.0, %v2135
        %2137 = vmatmul.bf16.gmra.mxu0 %v2066
        %v2138 = vpop.f32.mrf.mxu0
        %v2139 = vadd.f32 0.0, %v2138
        %v2140 = vpop.f32.mrf.mxu0
        %v2141 = vadd.f32 0.0, %v2140
        %2142 = vmatmul.bf16.gmra.mxu0 %v2069
        %v2143 = vpop.f32.mrf.mxu0
        %v2144 = vadd.f32 0.0, %v2143
        %v2145 = vpop.f32.mrf.mxu0
        %v2146 = vadd.f32 0.0, %v2145
        %2147 = vmatmul.bf16.gmra.mxu0 %v2072
        %v2148 = vpop.f32.mrf.mxu0
        %v2149 = vadd.f32 0.0, %v2148
        %v2150 = vpop.f32.mrf.mxu0
        %v2151 = vadd.f32 0.0, %v2150
        %2152 = vmatmul.bf16.gmra.mxu0 %v2075
        %v2153 = vpop.f32.mrf.mxu0
        %v2154 = vadd.f32 0.0, %v2153
        %v2155 = vpop.f32.mrf.mxu0
        %v2156 = vadd.f32 0.0, %v2155
        %2157 = vmatmul.bf16.gmra.mxu0 %v2078
        %v2158 = vpop.f32.mrf.mxu0
        %v2159 = vadd.f32 0.0, %v2158
        %v2160 = vpop.f32.mrf.mxu0
        %v2161 = vadd.f32 0.0, %v2160
        %2162 = vmatmul.bf16.gmra.mxu0 %v2081
        %v2163 = vpop.f32.mrf.mxu0
        %v2164 = vadd.f32 0.0, %v2163
        %v2165 = vpop.f32.mrf.mxu0
        %v2166 = vadd.f32 0.0, %v2165
        %2167 = vmatmul.bf16.gmra.mxu0 %v2084
        %v2168 = vpop.f32.mrf.mxu0
        %v2169 = vadd.f32 0.0, %v2168
        %v2170 = vpop.f32.mrf.mxu0
        %v2171 = vadd.f32 0.0, %v2170
        %2172 = vmatmul.bf16.gmra.mxu0 %v2087
        %v2173 = vpop.f32.mrf.mxu0
        %v2174 = vadd.f32 0.0, %v2173
        %v2175 = vpop.f32.mrf.mxu0
        %v2176 = vadd.f32 0.0, %v2175
        %2177 = vdwg.mxu0
        %v2178 = vadd.f32 %v1944, %v2099
        %v2179 = vadd.f32 %v1945, %v2101
        %v2180 = vadd.f32 %v1946, %v2104
        %v2181 = vadd.f32 %v1947, %v2106
        %v2182 = vadd.f32 %v1948, %v2109
        %v2183 = vadd.f32 %v1949, %v2111
        %v2184 = vadd.f32 %v1950, %v2114
        %v2185 = vadd.f32 %v1951, %v2116
        %v2186 = vadd.f32 %v1952, %v2119
        %v2187 = vadd.f32 %v1953, %v2121
        %v2188 = vadd.f32 %v1954, %v2124
        %v2189 = vadd.f32 %v1955, %v2126
        %v2190 = vadd.f32 %v1956, %v2129
        %v2191 = vadd.f32 %v1957, %v2131
        %v2192 = vadd.f32 %v1958, %v2134
        %v2193 = vadd.f32 %v1959, %v2136
        %v2194 = vadd.f32 %v1960, %v2139
        %v2195 = vadd.f32 %v1961, %v2141
        %v2196 = vadd.f32 %v1962, %v2144
        %v2197 = vadd.f32 %v1963, %v2146
        %v2198 = vadd.f32 %v1964, %v2149
        %v2199 = vadd.f32 %v1965, %v2151
        %v2200 = vadd.f32 %v1966, %v2154
        %v2201 = vadd.f32 %v1967, %v2156
        %v2202 = vadd.f32 %v1968, %v2159
        %v2203 = vadd.f32 %v1969, %v2161
        %v2204 = vadd.f32 %v1970, %v2164
        %v2205 = vadd.f32 %v1971, %v2166
        %v2206 = vadd.f32 %v1972, %v2169
        %v2207 = vadd.f32 %v1973, %v2171
        %v2208 = vadd.f32 %v1974, %v2174
        %v2209 = vadd.f32 %v1975, %v2176
        %v2210 = vld [vmem:[%s1741 + $0x2] sm:$0xff]
        %v2211 = vld [vmem:[%s1741 + $0xa] sm:$0xff]
        %v2212 = vld [vmem:[%s1741 + $0x1a] sm:$0xff]
        %v2213 = vld [vmem:[%s1741 + $0x22] sm:$0xff]
        %v2214 = vld [vmem:[%s1741 + $0x32] sm:$0xff]
        %v2215 = vld [vmem:[%s1741 + $0x3a] sm:$0xff]
        %v2216 = vld [vmem:[%s1741 + $0x4a] sm:$0xff]
        %v2217 = vld [vmem:[%s1741 + $0x52] sm:$0xff]
        %v2218 = vld [vmem:[%s1741 + $0x62] sm:$0xff]
        %v2219 = vld [vmem:[%s1741 + $0x6a] sm:$0xff]
        %v2220 = vld [vmem:[%s1741 + $0x7a] sm:$0xff]
        %v2221 = vld [vmem:[%s1741 + $0x82] sm:$0xff]
        %v2222 = vld [vmem:[%s1741 + $0x92] sm:$0xff]
        %v2223 = vld [vmem:[%s1741 + $0x9a] sm:$0xff]
        %v2224 = vld [vmem:[%s1741 + $0xaa] sm:$0xff]
        %v2225 = vld [vmem:[%s1741 + $0xb2] sm:$0xff]
        %v2226 = vld [vmem:[%s1741 + $0xc2] sm:$0xff]
        %v2227 = vld [vmem:[%s1741 + $0xca] sm:$0xff]
        %v2228 = vld [vmem:[%s1741 + $0xda] sm:$0xff]
        %v2229 = vld [vmem:[%s1741 + $0xe2] sm:$0xff]
        %v2230 = vld [vmem:[%s1741 + $0xf2] sm:$0xff]
        %v2231 = vld [vmem:[%s1741 + $0xfa] sm:$0xff]
        %v2232 = vld [vmem:[%s1741 + $0x10a] sm:$0xff]
        %v2233 = vld [vmem:[%s1741 + $0x112] sm:$0xff]
        %v2234 = vld [vmem:[%s1741 + $0x122] sm:$0xff]
        %v2235 = vld [vmem:[%s1741 + $0x12a] sm:$0xff]
        %v2236 = vld [vmem:[%s1741 + $0x13a] sm:$0xff]
        %v2237 = vld [vmem:[%s1741 + $0x142] sm:$0xff]
        %v2238 = vld [vmem:[%s1741 + $0x152] sm:$0xff]
        %v2239 = vld [vmem:[%s1741 + $0x15a] sm:$0xff]
        %v2240 = vld [vmem:[%s1741 + $0x16a] sm:$0xff]
        %v2241 = vld [vmem:[%s1741 + $0x172] sm:$0xff]
        %v2242 = vpack.c.bf16 %v2211, %v2210
        %v2243 = vpack.c.bf16 %v2213, %v2212
        %v2244 = vpack.c.bf16 %v2215, %v2214
        %v2245 = vpack.c.bf16 %v2217, %v2216
        %v2246 = vpack.c.bf16 %v2219, %v2218
        %v2247 = vpack.c.bf16 %v2221, %v2220
        %v2248 = vpack.c.bf16 %v2223, %v2222
        %v2249 = vpack.c.bf16 %v2225, %v2224
        %v2250 = vpack.c.bf16 %v2227, %v2226
        %v2251 = vpack.c.bf16 %v2229, %v2228
        %v2252 = vpack.c.bf16 %v2231, %v2230
        %v2253 = vpack.c.bf16 %v2233, %v2232
        %v2254 = vpack.c.bf16 %v2235, %v2234
        %v2255 = vpack.c.bf16 %v2237, %v2236
        %v2256 = vpack.c.bf16 %v2239, %v2238
        %v2257 = vpack.c.bf16 %v2241, %v2240
        %s2258 = scalar_lea.vmem [#allocation6], 128
        %v2259 = vld [vmem:[%s2258] sm:$0xf]
        %v2260 = vld [vmem:[%s2258 + $0x4] sm:$0xf]
        %v2261 = vld [vmem:[%s2258 + $0x8] sm:$0xf]
        %v2262 = vld [vmem:[%s2258 + $0xc] sm:$0xf]
        %v2267 = vunpack.c.l.b16 %v2259
        %v2268 = vunpack.c.l.b16 %v2260
        %v2269 = vunpack.c.l.b16 %v2261
        %v2270 = vunpack.c.l.b16 %v2262
        %v2271 = vpack.c.b16 %v2268, %v2267
        %v2272 = vpack.c.b16 %v2270, %v2269
        %v2276 = vsel %vm313, %v2242, 0
        %v2279 = vsel %vm313, %v2243, 0
        %v2282 = vsel %vm313, %v2244, 0
        %v2285 = vsel %vm313, %v2245, 0
        %v2288 = vsel %vm313, %v2246, 0
        %v2291 = vsel %vm313, %v2247, 0
        %v2294 = vsel %vm313, %v2248, 0
        %v2297 = vsel %vm313, %v2249, 0
        %v2300 = vsel %vm313, %v2250, 0
        %v2303 = vsel %vm313, %v2251, 0
        %v2306 = vsel %vm313, %v2252, 0
        %v2309 = vsel %vm313, %v2253, 0
        %v2312 = vsel %vm313, %v2254, 0
        %v2315 = vsel %vm313, %v2255, 0
        %v2318 = vsel %vm313, %v2256, 0
        %v2321 = vsel %vm313, %v2257, 0
        %2323 = vmatpush.bf16.msra.mxu0 0
        %2324 = vmatpush.bf16.msra.mxu0 0
        %2325 = vmatpush.bf16.msra.mxu0 0
        %2326 = vmatpush.bf16.msra.mxu0 0
        %2327 = vmatpush.bf16.msra.mxu0 0
        %2328 = vmatpush.bf16.msra.mxu0 0
        %2329 = vmatpush.bf16.msra.mxu0 %v2272
        %2330 = vmatpush.bf16.msra.mxu0 %v2271
        %2331 = vmatmul.bf16.gmra.mxu0 %v2276
        %v2332 = vpop.f32.mrf.mxu0
        %v2333 = vadd.f32 0.0, %v2332
        %v2334 = vpop.f32.mrf.mxu0
        %v2335 = vadd.f32 0.0, %v2334
        %2336 = vmatmul.bf16.gmra.mxu0 %v2279
        %v2337 = vpop.f32.mrf.mxu0
        %v2338 = vadd.f32 0.0, %v2337
        %v2339 = vpop.f32.mrf.mxu0
        %v2340 = vadd.f32 0.0, %v2339
        %2341 = vmatmul.bf16.gmra.mxu0 %v2282
        %v2342 = vpop.f32.mrf.mxu0
        %v2343 = vadd.f32 0.0, %v2342
        %v2344 = vpop.f32.mrf.mxu0
        %v2345 = vadd.f32 0.0, %v2344
        %2346 = vmatmul.bf16.gmra.mxu0 %v2285
        %v2347 = vpop.f32.mrf.mxu0
        %v2348 = vadd.f32 0.0, %v2347
        %v2349 = vpop.f32.mrf.mxu0
        %v2350 = vadd.f32 0.0, %v2349
        %2351 = vmatmul.bf16.gmra.mxu0 %v2288
        %v2352 = vpop.f32.mrf.mxu0
        %v2353 = vadd.f32 0.0, %v2352
        %v2354 = vpop.f32.mrf.mxu0
        %v2355 = vadd.f32 0.0, %v2354
        %2356 = vmatmul.bf16.gmra.mxu0 %v2291
        %v2357 = vpop.f32.mrf.mxu0
        %v2358 = vadd.f32 0.0, %v2357
        %v2359 = vpop.f32.mrf.mxu0
        %v2360 = vadd.f32 0.0, %v2359
        %2361 = vmatmul.bf16.gmra.mxu0 %v2294
        %v2362 = vpop.f32.mrf.mxu0
        %v2363 = vadd.f32 0.0, %v2362
        %v2364 = vpop.f32.mrf.mxu0
        %v2365 = vadd.f32 0.0, %v2364
        %2366 = vmatmul.bf16.gmra.mxu0 %v2297
        %v2367 = vpop.f32.mrf.mxu0
        %v2368 = vadd.f32 0.0, %v2367
        %v2369 = vpop.f32.mrf.mxu0
        %v2370 = vadd.f32 0.0, %v2369
        %2371 = vmatmul.bf16.gmra.mxu0 %v2300
        %v2372 = vpop.f32.mrf.mxu0
        %v2373 = vadd.f32 0.0, %v2372
        %v2374 = vpop.f32.mrf.mxu0
        %v2375 = vadd.f32 0.0, %v2374
        %2376 = vmatmul.bf16.gmra.mxu0 %v2303
        %v2377 = vpop.f32.mrf.mxu0
        %v2378 = vadd.f32 0.0, %v2377
        %v2379 = vpop.f32.mrf.mxu0
        %v2380 = vadd.f32 0.0, %v2379
        %2381 = vmatmul.bf16.gmra.mxu0 %v2306
        %v2382 = vpop.f32.mrf.mxu0
        %v2383 = vadd.f32 0.0, %v2382
        %v2384 = vpop.f32.mrf.mxu0
        %v2385 = vadd.f32 0.0, %v2384
        %2386 = vmatmul.bf16.gmra.mxu0 %v2309
        %v2387 = vpop.f32.mrf.mxu0
        %v2388 = vadd.f32 0.0, %v2387
        %v2389 = vpop.f32.mrf.mxu0
        %v2390 = vadd.f32 0.0, %v2389
        %2391 = vmatmul.bf16.gmra.mxu0 %v2312
        %v2392 = vpop.f32.mrf.mxu0
        %v2393 = vadd.f32 0.0, %v2392
        %v2394 = vpop.f32.mrf.mxu0
        %v2395 = vadd.f32 0.0, %v2394
        %2396 = vmatmul.bf16.gmra.mxu0 %v2315
        %v2397 = vpop.f32.mrf.mxu0
        %v2398 = vadd.f32 0.0, %v2397
        %v2399 = vpop.f32.mrf.mxu0
        %v2400 = vadd.f32 0.0, %v2399
        %2401 = vmatmul.bf16.gmra.mxu0 %v2318
        %v2402 = vpop.f32.mrf.mxu0
        %v2403 = vadd.f32 0.0, %v2402
        %v2404 = vpop.f32.mrf.mxu0
        %v2405 = vadd.f32 0.0, %v2404
        %2406 = vmatmul.bf16.gmra.mxu0 %v2321
        %v2407 = vpop.f32.mrf.mxu0
        %v2408 = vadd.f32 0.0, %v2407
        %v2409 = vpop.f32.mrf.mxu0
        %v2410 = vadd.f32 0.0, %v2409
        %2411 = vdwg.mxu0
        %v2412 = vadd.f32 %v2178, %v2333
        %v2413 = vadd.f32 %v2179, %v2335
        %v2414 = vadd.f32 %v2180, %v2338
        %v2415 = vadd.f32 %v2181, %v2340
        %v2416 = vadd.f32 %v2182, %v2343
        %v2417 = vadd.f32 %v2183, %v2345
        %v2418 = vadd.f32 %v2184, %v2348
        %v2419 = vadd.f32 %v2185, %v2350
        %v2420 = vadd.f32 %v2186, %v2353
        %v2421 = vadd.f32 %v2187, %v2355
        %v2422 = vadd.f32 %v2188, %v2358
        %v2423 = vadd.f32 %v2189, %v2360
        %v2424 = vadd.f32 %v2190, %v2363
        %v2425 = vadd.f32 %v2191, %v2365
        %v2426 = vadd.f32 %v2192, %v2368
        %v2427 = vadd.f32 %v2193, %v2370
        %v2428 = vadd.f32 %v2194, %v2373
        %v2429 = vadd.f32 %v2195, %v2375
        %v2430 = vadd.f32 %v2196, %v2378
        %v2431 = vadd.f32 %v2197, %v2380
        %v2432 = vadd.f32 %v2198, %v2383
        %v2433 = vadd.f32 %v2199, %v2385
        %v2434 = vadd.f32 %v2200, %v2388
        %v2435 = vadd.f32 %v2201, %v2390
        %v2436 = vadd.f32 %v2202, %v2393
        %v2437 = vadd.f32 %v2203, %v2395
        %v2438 = vadd.f32 %v2204, %v2398
        %v2439 = vadd.f32 %v2205, %v2400
        %v2440 = vadd.f32 %v2206, %v2403
        %v2441 = vadd.f32 %v2207, %v2405
        %v2442 = vadd.f32 %v2208, %v2408
        %v2443 = vadd.f32 %v2209, %v2410
        %v2444 = vld [vmem:[%s2] sm:$0x1]
        %v2446 = vperm.slane %v2444, 0
        %v2448 = vadd.f32 %v2412, %v2446
        %v2449 = vadd.f32 %v2413, %v2446
        %v2450 = vadd.f32 %v2414, %v2446
        %v2451 = vadd.f32 %v2415, %v2446
        %v2452 = vadd.f32 %v2416, %v2446
        %v2453 = vadd.f32 %v2417, %v2446
        %v2454 = vadd.f32 %v2418, %v2446
        %v2455 = vadd.f32 %v2419, %v2446
        %v2456 = vadd.f32 %v2420, %v2446
        %v2457 = vadd.f32 %v2421, %v2446
        %v2458 = vadd.f32 %v2422, %v2446
        %v2459 = vadd.f32 %v2423, %v2446
        %v2460 = vadd.f32 %v2424, %v2446
        %v2461 = vadd.f32 %v2425, %v2446
        %v2462 = vadd.f32 %v2426, %v2446
        %v2463 = vadd.f32 %v2427, %v2446
        %v2464 = vadd.f32 %v2428, %v2446
        %v2465 = vadd.f32 %v2429, %v2446
        %v2466 = vadd.f32 %v2430, %v2446
        %v2467 = vadd.f32 %v2431, %v2446
        %v2468 = vadd.f32 %v2432, %v2446
        %v2469 = vadd.f32 %v2433, %v2446
        %v2470 = vadd.f32 %v2434, %v2446
        %v2471 = vadd.f32 %v2435, %v2446
        %v2472 = vadd.f32 %v2436, %v2446
        %v2473 = vadd.f32 %v2437, %v2446
        %v2474 = vadd.f32 %v2438, %v2446
        %v2475 = vadd.f32 %v2439, %v2446
        %v2476 = vadd.f32 %v2440, %v2446
        %v2477 = vadd.f32 %v2441, %v2446
        %v2478 = vadd.f32 %v2442, %v2446
        %v2479 = vadd.f32 %v2443, %v2446
        %v2480 = vmax.f32 %v2448, 0.0
        %v2481 = vmax.f32 %v2449, 0.0
        %v2482 = vmax.f32 %v2450, 0.0
        %v2483 = vmax.f32 %v2451, 0.0
        %v2484 = vmax.f32 %v2452, 0.0
        %v2485 = vmax.f32 %v2453, 0.0
        %v2486 = vmax.f32 %v2454, 0.0
        %v2487 = vmax.f32 %v2455, 0.0
        %v2488 = vmax.f32 %v2456, 0.0
        %v2489 = vmax.f32 %v2457, 0.0
        %v2490 = vmax.f32 %v2458, 0.0
        %v2491 = vmax.f32 %v2459, 0.0
        %v2492 = vmax.f32 %v2460, 0.0
        %v2493 = vmax.f32 %v2461, 0.0
        %v2494 = vmax.f32 %v2462, 0.0
        %v2495 = vmax.f32 %v2463, 0.0
        %v2496 = vmax.f32 %v2464, 0.0
        %v2497 = vmax.f32 %v2465, 0.0
        %v2498 = vmax.f32 %v2466, 0.0
        %v2499 = vmax.f32 %v2467, 0.0
        %v2500 = vmax.f32 %v2468, 0.0
        %v2501 = vmax.f32 %v2469, 0.0
        %v2502 = vmax.f32 %v2470, 0.0
        %v2503 = vmax.f32 %v2471, 0.0
        %v2504 = vmax.f32 %v2472, 0.0
        %v2505 = vmax.f32 %v2473, 0.0
        %v2506 = vmax.f32 %v2474, 0.0
        %v2507 = vmax.f32 %v2475, 0.0
        %v2508 = vmax.f32 %v2476, 0.0
        %v2509 = vmax.f32 %v2477, 0.0
        %v2510 = vmax.f32 %v2478, 0.0
        %v2511 = vmax.f32 %v2479, 0.0
        %2512 = vst.msk [vmem:[#allocation3] sm:$0xff] %vm313, 0.0
        %2513 = vst.msk [vmem:[#allocation3 + $0x8] sm:$0xff] %vm313, 0.0
        %2514 = vst.msk [vmem:[#allocation3 + $0x10] sm:$0x3] %vm316, 0.0
        %2515 = vst.msk [vmem:[#allocation3 + $0x18] sm:$0xff] %vm313, 0.0
        %2516 = vst.msk [vmem:[#allocation3 + $0x20] sm:$0xff] %vm313, 0.0
        %2517 = vst.msk [vmem:[#allocation3 + $0x28] sm:$0x3] %vm316, 0.0
        %2518 = vst.msk [vmem:[#allocation3 + $0x30] sm:$0xff] %vm313, 0.0
        %2519 = vst.msk [vmem:[#allocation3 + $0x38] sm:$0xff] %vm313, 0.0
        %2520 = vst.msk [vmem:[#allocation3 + $0x40] sm:$0x3] %vm316, 0.0
        %2521 = vst.msk [vmem:[#allocation3 + $0x48] sm:$0xff] %vm313, 0.0
        %2522 = vst.msk [vmem:[#allocation3 + $0x50] sm:$0xff] %vm313, 0.0
        %2523 = vst.msk [vmem:[#allocation3 + $0x58] sm:$0x3] %vm316, 0.0
        %2524 = vst.msk [vmem:[#allocation3 + $0x60] sm:$0xff] %vm313, 0.0
        %2525 = vst.msk [vmem:[#allocation3 + $0x68] sm:$0xff] %vm313, 0.0
        %2526 = vst.msk [vmem:[#allocation3 + $0x70] sm:$0x3] %vm316, 0.0
        %2527 = vst.msk [vmem:[#allocation3 + $0x78] sm:$0xff] %vm313, 0.0
        %2528 = vst.msk [vmem:[#allocation3 + $0x80] sm:$0xff] %vm313, 0.0
        %2529 = vst.msk [vmem:[#allocation3 + $0x88] sm:$0x3] %vm316, 0.0
        %2530 = vst.msk [vmem:[#allocation3 + $0x90] sm:$0xff] %vm313, 0.0
        %2531 = vst.msk [vmem:[#allocation3 + $0x98] sm:$0xff] %vm313, 0.0
        %2532 = vst.msk [vmem:[#allocation3 + $0xa0] sm:$0x3] %vm316, 0.0
        %2533 = vst.msk [vmem:[#allocation3 + $0xa8] sm:$0xff] %vm313, 0.0
        %2534 = vst.msk [vmem:[#allocation3 + $0xb0] sm:$0xff] %vm313, 0.0
        %2535 = vst.msk [vmem:[#allocation3 + $0xb8] sm:$0x3] %vm316, 0.0
        %2536 = vst.msk [vmem:[#allocation3 + $0xc0] sm:$0xff] %vm313, 0.0
        %2537 = vst.msk [vmem:[#allocation3 + $0xc8] sm:$0xff] %vm313, 0.0
        %2538 = vst.msk [vmem:[#allocation3 + $0xd0] sm:$0x3] %vm316, 0.0
        %2539 = vst.msk [vmem:[#allocation3 + $0xd8] sm:$0xff] %vm313, 0.0
        %2540 = vst.msk [vmem:[#allocation3 + $0xe0] sm:$0xff] %vm313, 0.0
        %2541 = vst.msk [vmem:[#allocation3 + $0xe8] sm:$0x3] %vm316, 0.0
        %2542 = vst.msk [vmem:[#allocation3 + $0xf0] sm:$0xff] %vm313, 0.0
        %2543 = vst.msk [vmem:[#allocation3 + $0xf8] sm:$0xff] %vm313, 0.0
        %2544 = vst.msk [vmem:[#allocation3 + $0x100] sm:$0x3] %vm316, 0.0
        %2545 = vst.msk [vmem:[#allocation3 + $0x108] sm:$0xff] %vm313, 0.0
        %2546 = vst.msk [vmem:[#allocation3 + $0x110] sm:$0xff] %vm313, 0.0
        %2547 = vst.msk [vmem:[#allocation3 + $0x118] sm:$0x3] %vm316, 0.0
        %2548 = vst.msk [vmem:[#allocation3 + $0x120] sm:$0xff] %vm313, 0.0
        %2549 = vst.msk [vmem:[#allocation3 + $0x128] sm:$0xff] %vm313, 0.0
        %2550 = vst.msk [vmem:[#allocation3 + $0x130] sm:$0x3] %vm316, 0.0
        %2551 = vst.msk [vmem:[#allocation3 + $0x138] sm:$0xff] %vm313, 0.0
        %2552 = vst.msk [vmem:[#allocation3 + $0x140] sm:$0xff] %vm313, 0.0
        %2553 = vst.msk [vmem:[#allocation3 + $0x148] sm:$0x3] %vm316, 0.0
        %2554 = vst.msk [vmem:[#allocation3 + $0x150] sm:$0xff] %vm313, 0.0
        %2555 = vst.msk [vmem:[#allocation3 + $0x158] sm:$0xff] %vm313, 0.0
        %2556 = vst.msk [vmem:[#allocation3 + $0x160] sm:$0x3] %vm316, 0.0
        %2557 = vst.msk [vmem:[#allocation3 + $0x168] sm:$0xff] %vm313, 0.0
        %2558 = vst.msk [vmem:[#allocation3 + $0x170] sm:$0xff] %vm313, 0.0
        %2559 = vst.msk [vmem:[#allocation3 + $0x178] sm:$0x3] %vm316, 0.0
        %2560 = vst.msk [vmem:[#allocation3 + $0x180] sm:$0xff] %vm313, 0.0
        %2561 = vst.msk [vmem:[#allocation3 + $0x188] sm:$0xff] %vm313, 0.0
        %2562 = vst.msk [vmem:[#allocation3 + $0x190] sm:$0x3] %vm316, 0.0
        %2563 = vst.msk [vmem:[#allocation3 + $0x198] sm:$0xff] %vm313, 0.0
        %2564 = vst.msk [vmem:[#allocation3 + $0x1a0] sm:$0xff] %vm313, 0.0
        %2565 = vst.msk [vmem:[#allocation3 + $0x1a8] sm:$0x3] %vm316, 0.0
        %s2566 = scalar_lea.vmem [#allocation3], 24
        %2567 = vst.msk [vmem:[%s2566 + $0x1] sm:$0xff] %vm313, %v2480
        %2568 = vst.msk [vmem:[%s2566 + $0x9] sm:$0xff] %vm313, %v2481
        %2569 = vst.msk [vmem:[%s2566 + $0x19] sm:$0xff] %vm313, %v2482
        %2570 = vst.msk [vmem:[%s2566 + $0x21] sm:$0xff] %vm313, %v2483
        %2571 = vst.msk [vmem:[%s2566 + $0x31] sm:$0xff] %vm313, %v2484
        %2572 = vst.msk [vmem:[%s2566 + $0x39] sm:$0xff] %vm313, %v2485
        %2573 = vst.msk [vmem:[%s2566 + $0x49] sm:$0xff] %vm313, %v2486
        %2574 = vst.msk [vmem:[%s2566 + $0x51] sm:$0xff] %vm313, %v2487
        %2575 = vst.msk [vmem:[%s2566 + $0x61] sm:$0xff] %vm313, %v2488
        %2576 = vst.msk [vmem:[%s2566 + $0x69] sm:$0xff] %vm313, %v2489
        %2577 = vst.msk [vmem:[%s2566 + $0x79] sm:$0xff] %vm313, %v2490
        %2578 = vst.msk [vmem:[%s2566 + $0x81] sm:$0xff] %vm313, %v2491
        %2579 = vst.msk [vmem:[%s2566 + $0x91] sm:$0xff] %vm313, %v2492
        %2580 = vst.msk [vmem:[%s2566 + $0x99] sm:$0xff] %vm313, %v2493
        %2581 = vst.msk [vmem:[%s2566 + $0xa9] sm:$0xff] %vm313, %v2494
        %2582 = vst.msk [vmem:[%s2566 + $0xb1] sm:$0xff] %vm313, %v2495
        %2583 = vst.msk [vmem:[%s2566 + $0xc1] sm:$0xff] %vm313, %v2496
        %2584 = vst.msk [vmem:[%s2566 + $0xc9] sm:$0xff] %vm313, %v2497
        %2585 = vst.msk [vmem:[%s2566 + $0xd9] sm:$0xff] %vm313, %v2498
        %2586 = vst.msk [vmem:[%s2566 + $0xe1] sm:$0xff] %vm313, %v2499
        %2587 = vst.msk [vmem:[%s2566 + $0xf1] sm:$0xff] %vm313, %v2500
        %2588 = vst.msk [vmem:[%s2566 + $0xf9] sm:$0xff] %vm313, %v2501
        %2589 = vst.msk [vmem:[%s2566 + $0x109] sm:$0xff] %vm313, %v2502
        %2590 = vst.msk [vmem:[%s2566 + $0x111] sm:$0xff] %vm313, %v2503
        %2591 = vst.msk [vmem:[%s2566 + $0x121] sm:$0xff] %vm313, %v2504
        %2592 = vst.msk [vmem:[%s2566 + $0x129] sm:$0xff] %vm313, %v2505
        %2593 = vst.msk [vmem:[%s2566 + $0x139] sm:$0xff] %vm313, %v2506
        %2594 = vst.msk [vmem:[%s2566 + $0x141] sm:$0xff] %vm313, %v2507
        %2595 = vst.msk [vmem:[%s2566 + $0x151] sm:$0xff] %vm313, %v2508
        %2596 = vst.msk [vmem:[%s2566 + $0x159] sm:$0xff] %vm313, %v2509
        %2597 = vst.msk [vmem:[%s2566 + $0x169] sm:$0xff] %vm313, %v2510
        %2598 = vst.msk [vmem:[%s2566 + $0x171] sm:$0xff] %vm313, %v2511
        %v2599 = vld [vmem:[#allocation3] sm:$0xff]
        %v2600 = vld [vmem:[#allocation3 + $0x8] sm:$0xff]
        %v2601 = vld [vmem:[#allocation3 + $0x18] sm:$0xff]
        %v2602 = vld [vmem:[#allocation3 + $0x20] sm:$0xff]
        %v2603 = vld [vmem:[#allocation3 + $0x30] sm:$0xff]
        %v2604 = vld [vmem:[#allocation3 + $0x38] sm:$0xff]
        %v2605 = vld [vmem:[#allocation3 + $0x48] sm:$0xff]
        %v2606 = vld [vmem:[#allocation3 + $0x50] sm:$0xff]
        %v2607 = vld [vmem:[#allocation3 + $0x60] sm:$0xff]
        %v2608 = vld [vmem:[#allocation3 + $0x68] sm:$0xff]
        %v2609 = vld [vmem:[#allocation3 + $0x78] sm:$0xff]
        %v2610 = vld [vmem:[#allocation3 + $0x80] sm:$0xff]
        %v2611 = vld [vmem:[#allocation3 + $0x90] sm:$0xff]
        %v2612 = vld [vmem:[#allocation3 + $0x98] sm:$0xff]
        %v2613 = vld [vmem:[#allocation3 + $0xa8] sm:$0xff]
        %v2614 = vld [vmem:[#allocation3 + $0xb0] sm:$0xff]
        %v2615 = vld [vmem:[#allocation3 + $0xc0] sm:$0xff]
        %v2616 = vld [vmem:[#allocation3 + $0xc8] sm:$0xff]
        %v2617 = vld [vmem:[#allocation3 + $0xd8] sm:$0xff]
        %v2618 = vld [vmem:[#allocation3 + $0xe0] sm:$0xff]
        %v2619 = vld [vmem:[#allocation3 + $0xf0] sm:$0xff]
        %v2620 = vld [vmem:[#allocation3 + $0xf8] sm:$0xff]
        %v2621 = vld [vmem:[#allocation3 + $0x108] sm:$0xff]
        %v2622 = vld [vmem:[#allocation3 + $0x110] sm:$0xff]
        %v2623 = vld [vmem:[#allocation3 + $0x120] sm:$0xff]
        %v2624 = vld [vmem:[#allocation3 + $0x128] sm:$0xff]
        %v2625 = vld [vmem:[#allocation3 + $0x138] sm:$0xff]
        %v2626 = vld [vmem:[#allocation3 + $0x140] sm:$0xff]
        %v2627 = vld [vmem:[#allocation3 + $0x150] sm:$0xff]
        %v2628 = vld [vmem:[#allocation3 + $0x158] sm:$0xff]
        %v2629 = vld [vmem:[#allocation3 + $0x168] sm:$0xff]
        %v2630 = vld [vmem:[#allocation3 + $0x170] sm:$0xff]
        %v2631 = vpack.c.bf16 %v2600, %v2599
        %v2632 = vpack.c.bf16 %v2602, %v2601
        %v2633 = vpack.c.bf16 %v2604, %v2603
        %v2634 = vpack.c.bf16 %v2606, %v2605
        %v2635 = vpack.c.bf16 %v2608, %v2607
        %v2636 = vpack.c.bf16 %v2610, %v2609
        %v2637 = vpack.c.bf16 %v2612, %v2611
        %v2638 = vpack.c.bf16 %v2614, %v2613
        %v2639 = vpack.c.bf16 %v2616, %v2615
        %v2640 = vpack.c.bf16 %v2618, %v2617
        %v2641 = vpack.c.bf16 %v2620, %v2619
        %v2642 = vpack.c.bf16 %v2622, %v2621
        %v2643 = vpack.c.bf16 %v2624, %v2623
        %v2644 = vpack.c.bf16 %v2626, %v2625
        %v2645 = vpack.c.bf16 %v2628, %v2627
        %v2646 = vpack.c.bf16 %v2630, %v2629
        %v2647 = vld [vmem:[#allocation8] sm:$0xf]
        %v2648 = vld [vmem:[#allocation8 + $0x4] sm:$0xf]
        %v2649 = vld [vmem:[#allocation8 + $0x8] sm:$0xf]
        %v2650 = vld [vmem:[#allocation8 + $0xc] sm:$0xf]
        %v2651 = vld [vmem:[#allocation3 + $0x1] sm:$0xff]
        %v2652 = vld [vmem:[#allocation3 + $0x9] sm:$0xff]
        %v2653 = vld [vmem:[#allocation3 + $0x19] sm:$0xff]
        %v2654 = vld [vmem:[#allocation3 + $0x21] sm:$0xff]
        %v2655 = vld [vmem:[#allocation3 + $0x31] sm:$0xff]
        %v2656 = vld [vmem:[#allocation3 + $0x39] sm:$0xff]
        %v2657 = vld [vmem:[#allocation3 + $0x49] sm:$0xff]
        %v2658 = vld [vmem:[#allocation3 + $0x51] sm:$0xff]
        %v2659 = vld [vmem:[#allocation3 + $0x61] sm:$0xff]
        %v2660 = vld [vmem:[#allocation3 + $0x69] sm:$0xff]
        %v2661 = vld [vmem:[#allocation3 + $0x79] sm:$0xff]
        %v2662 = vld [vmem:[#allocation3 + $0x81] sm:$0xff]
        %v2663 = vld [vmem:[#allocation3 + $0x91] sm:$0xff]
        %v2664 = vld [vmem:[#allocation3 + $0x99] sm:$0xff]
        %v2665 = vld [vmem:[#allocation3 + $0xa9] sm:$0xff]
        %v2666 = vld [vmem:[#allocation3 + $0xb1] sm:$0xff]
        %v2667 = vld [vmem:[#allocation3 + $0xc1] sm:$0xff]
        %v2668 = vld [vmem:[#allocation3 + $0xc9] sm:$0xff]
        %v2669 = vld [vmem:[#allocation3 + $0xd9] sm:$0xff]
        %v2670 = vld [vmem:[#allocation3 + $0xe1] sm:$0xff]
        %v2671 = vld [vmem:[#allocation3 + $0xf1] sm:$0xff]
        %v2672 = vld [vmem:[#allocation3 + $0xf9] sm:$0xff]
        %v2673 = vld [vmem:[#allocation3 + $0x109] sm:$0xff]
        %v2674 = vld [vmem:[#allocation3 + $0x111] sm:$0xff]
        %v2675 = vld [vmem:[#allocation3 + $0x121] sm:$0xff]
        %v2676 = vld [vmem:[#allocation3 + $0x129] sm:$0xff]
        %v2677 = vld [vmem:[#allocation3 + $0x139] sm:$0xff]
        %v2678 = vld [vmem:[#allocation3 + $0x141] sm:$0xff]
        %v2679 = vld [vmem:[#allocation3 + $0x151] sm:$0xff]
        %v2680 = vld [vmem:[#allocation3 + $0x159] sm:$0xff]
        %v2681 = vld [vmem:[#allocation3 + $0x169] sm:$0xff]
        %v2682 = vld [vmem:[#allocation3 + $0x171] sm:$0xff]
        %v2683 = vpack.c.bf16 %v2652, %v2651
        %v2684 = vpack.c.bf16 %v2654, %v2653
        %v2685 = vpack.c.bf16 %v2656, %v2655
        %v2686 = vpack.c.bf16 %v2658, %v2657
        %v2687 = vpack.c.bf16 %v2660, %v2659
        %v2688 = vpack.c.bf16 %v2662, %v2661
        %v2689 = vpack.c.bf16 %v2664, %v2663
        %v2690 = vpack.c.bf16 %v2666, %v2665
        %v2691 = vpack.c.bf16 %v2668, %v2667
        %v2692 = vpack.c.bf16 %v2670, %v2669
        %v2693 = vpack.c.bf16 %v2672, %v2671
        %v2694 = vpack.c.bf16 %v2674, %v2673
        %v2695 = vpack.c.bf16 %v2676, %v2675
        %v2696 = vpack.c.bf16 %v2678, %v2677
        %v2697 = vpack.c.bf16 %v2680, %v2679
        %v2698 = vpack.c.bf16 %v2682, %v2681
        %s2699 = scalar_lea.vmem [#allocation8], 16
        %v2700 = vld [vmem:[%s2699] sm:$0xf]
        %v2701 = vld [vmem:[%s2699 + $0x4] sm:$0xf]
        %v2702 = vld [vmem:[%s2699 + $0x8] sm:$0xf]
        %v2703 = vld [vmem:[%s2699 + $0xc] sm:$0xf]
        %v2708 = vunpack.c.l.b16 %v2700
        %v2709 = vunpack.c.l.b16 %v2701
        %v2710 = vunpack.c.l.b16 %v2702
        %v2711 = vunpack.c.l.b16 %v2703
        %v2712 = vpack.c.b16 %v2709, %v2708
        %v2713 = vpack.c.b16 %v2711, %v2710
        %v2717 = vsel %vm313, %v2683, 0
        %v2720 = vsel %vm313, %v2684, 0
        %v2723 = vsel %vm313, %v2685, 0
        %v2726 = vsel %vm313, %v2686, 0
        %v2729 = vsel %vm313, %v2687, 0
        %v2732 = vsel %vm313, %v2688, 0
        %v2735 = vsel %vm313, %v2689, 0
        %v2738 = vsel %vm313, %v2690, 0
        %v2741 = vsel %vm313, %v2691, 0
        %v2744 = vsel %vm313, %v2692, 0
        %v2747 = vsel %vm313, %v2693, 0
        %v2750 = vsel %vm313, %v2694, 0
        %v2753 = vsel %vm313, %v2695, 0
        %v2756 = vsel %vm313, %v2696, 0
        %v2759 = vsel %vm313, %v2697, 0
        %v2762 = vsel %vm313, %v2698, 0
        %2764 = vmatpush.bf16.msra.mxu0 0
        %2765 = vmatpush.bf16.msra.mxu0 0
        %2766 = vmatpush.bf16.msra.mxu0 0
        %2767 = vmatpush.bf16.msra.mxu0 0
        %2768 = vmatpush.bf16.msra.mxu0 0
        %2769 = vmatpush.bf16.msra.mxu0 0
        %2770 = vmatpush.bf16.msra.mxu0 %v2713
        %2771 = vmatpush.bf16.msra.mxu0 %v2712
        %2772 = vmatmul.bf16.gmra.mxu0 %v2717
        %v2773 = vpop.f32.mrf.mxu0
        %v2774 = vadd.f32 0.0, %v2773
        %v2775 = vpop.f32.mrf.mxu0
        %v2776 = vadd.f32 0.0, %v2775
        %2777 = vmatmul.bf16.gmra.mxu0 %v2720
        %v2778 = vpop.f32.mrf.mxu0
        %v2779 = vadd.f32 0.0, %v2778
        %v2780 = vpop.f32.mrf.mxu0
        %v2781 = vadd.f32 0.0, %v2780
        %2782 = vmatmul.bf16.gmra.mxu0 %v2723
        %v2783 = vpop.f32.mrf.mxu0
        %v2784 = vadd.f32 0.0, %v2783
        %v2785 = vpop.f32.mrf.mxu0
        %v2786 = vadd.f32 0.0, %v2785
        %2787 = vmatmul.bf16.gmra.mxu0 %v2726
        %v2788 = vpop.f32.mrf.mxu0
        %v2789 = vadd.f32 0.0, %v2788
        %v2790 = vpop.f32.mrf.mxu0
        %v2791 = vadd.f32 0.0, %v2790
        %2792 = vmatmul.bf16.gmra.mxu0 %v2729
        %v2793 = vpop.f32.mrf.mxu0
        %v2794 = vadd.f32 0.0, %v2793
        %v2795 = vpop.f32.mrf.mxu0
        %v2796 = vadd.f32 0.0, %v2795
        %2797 = vmatmul.bf16.gmra.mxu0 %v2732
        %v2798 = vpop.f32.mrf.mxu0
        %v2799 = vadd.f32 0.0, %v2798
        %v2800 = vpop.f32.mrf.mxu0
        %v2801 = vadd.f32 0.0, %v2800
        %2802 = vmatmul.bf16.gmra.mxu0 %v2735
        %v2803 = vpop.f32.mrf.mxu0
        %v2804 = vadd.f32 0.0, %v2803
        %v2805 = vpop.f32.mrf.mxu0
        %v2806 = vadd.f32 0.0, %v2805
        %2807 = vmatmul.bf16.gmra.mxu0 %v2738
        %v2808 = vpop.f32.mrf.mxu0
        %v2809 = vadd.f32 0.0, %v2808
        %v2810 = vpop.f32.mrf.mxu0
        %v2811 = vadd.f32 0.0, %v2810
        %2812 = vmatmul.bf16.gmra.mxu0 %v2741
        %v2813 = vpop.f32.mrf.mxu0
        %v2814 = vadd.f32 0.0, %v2813
        %v2815 = vpop.f32.mrf.mxu0
        %v2816 = vadd.f32 0.0, %v2815
        %2817 = vmatmul.bf16.gmra.mxu0 %v2744
        %v2818 = vpop.f32.mrf.mxu0
        %v2819 = vadd.f32 0.0, %v2818
        %v2820 = vpop.f32.mrf.mxu0
        %v2821 = vadd.f32 0.0, %v2820
        %2822 = vmatmul.bf16.gmra.mxu0 %v2747
        %v2823 = vpop.f32.mrf.mxu0
        %v2824 = vadd.f32 0.0, %v2823
        %v2825 = vpop.f32.mrf.mxu0
        %v2826 = vadd.f32 0.0, %v2825
        %2827 = vmatmul.bf16.gmra.mxu0 %v2750
        %v2828 = vpop.f32.mrf.mxu0
        %v2829 = vadd.f32 0.0, %v2828
        %v2830 = vpop.f32.mrf.mxu0
        %v2831 = vadd.f32 0.0, %v2830
        %2832 = vmatmul.bf16.gmra.mxu0 %v2753
        %v2833 = vpop.f32.mrf.mxu0
        %v2834 = vadd.f32 0.0, %v2833
        %v2835 = vpop.f32.mrf.mxu0
        %v2836 = vadd.f32 0.0, %v2835
        %2837 = vmatmul.bf16.gmra.mxu0 %v2756
        %v2838 = vpop.f32.mrf.mxu0
        %v2839 = vadd.f32 0.0, %v2838
        %v2840 = vpop.f32.mrf.mxu0
        %v2841 = vadd.f32 0.0, %v2840
        %2842 = vmatmul.bf16.gmra.mxu0 %v2759
        %v2843 = vpop.f32.mrf.mxu0
        %v2844 = vadd.f32 0.0, %v2843
        %v2845 = vpop.f32.mrf.mxu0
        %v2846 = vadd.f32 0.0, %v2845
        %2847 = vmatmul.bf16.gmra.mxu0 %v2762
        %v2848 = vpop.f32.mrf.mxu0
        %v2849 = vadd.f32 0.0, %v2848
        %v2850 = vpop.f32.mrf.mxu0
        %v2851 = vadd.f32 0.0, %v2850
        %2852 = vdwg.mxu0
        %v2857 = vunpack.c.l.b16 %v2647
        %v2858 = vunpack.c.l.b16 %v2648
        %v2859 = vunpack.c.l.b16 %v2649
        %v2860 = vunpack.c.l.b16 %v2650
        %v2861 = vpack.c.b16 %v2858, %v2857
        %v2862 = vpack.c.b16 %v2860, %v2859
        %v2866 = vsel %vm313, %v2631, 0
        %v2869 = vsel %vm313, %v2632, 0
        %v2872 = vsel %vm313, %v2633, 0
        %v2875 = vsel %vm313, %v2634, 0
        %v2878 = vsel %vm313, %v2635, 0
        %v2881 = vsel %vm313, %v2636, 0
        %v2884 = vsel %vm313, %v2637, 0
        %v2887 = vsel %vm313, %v2638, 0
        %v2890 = vsel %vm313, %v2639, 0
        %v2893 = vsel %vm313, %v2640, 0
        %v2896 = vsel %vm313, %v2641, 0
        %v2899 = vsel %vm313, %v2642, 0
        %v2902 = vsel %vm313, %v2643, 0
        %v2905 = vsel %vm313, %v2644, 0
        %v2908 = vsel %vm313, %v2645, 0
        %v2911 = vsel %vm313, %v2646, 0
        %2913 = vmatpush.bf16.msra.mxu0 0
        %2914 = vmatpush.bf16.msra.mxu0 0
        %2915 = vmatpush.bf16.msra.mxu0 0
        %2916 = vmatpush.bf16.msra.mxu0 0
        %2917 = vmatpush.bf16.msra.mxu0 0
        %2918 = vmatpush.bf16.msra.mxu0 0
        %2919 = vmatpush.bf16.msra.mxu0 %v2862
        %2920 = vmatpush.bf16.msra.mxu0 %v2861
        %2921 = vmatmul.bf16.gmra.mxu0 %v2866
        %v2922 = vpop.f32.mrf.mxu0
        %v2923 = vadd.f32 %v2774, %v2922
        %v2924 = vpop.f32.mrf.mxu0
        %v2925 = vadd.f32 %v2776, %v2924
        %2926 = vmatmul.bf16.gmra.mxu0 %v2869
        %v2927 = vpop.f32.mrf.mxu0
        %v2928 = vadd.f32 %v2779, %v2927
        %v2929 = vpop.f32.mrf.mxu0
        %v2930 = vadd.f32 %v2781, %v2929
        %2931 = vmatmul.bf16.gmra.mxu0 %v2872
        %v2932 = vpop.f32.mrf.mxu0
        %v2933 = vadd.f32 %v2784, %v2932
        %v2934 = vpop.f32.mrf.mxu0
        %v2935 = vadd.f32 %v2786, %v2934
        %2936 = vmatmul.bf16.gmra.mxu0 %v2875
        %v2937 = vpop.f32.mrf.mxu0
        %v2938 = vadd.f32 %v2789, %v2937
        %v2939 = vpop.f32.mrf.mxu0
        %v2940 = vadd.f32 %v2791, %v2939
        %2941 = vmatmul.bf16.gmra.mxu0 %v2878
        %v2942 = vpop.f32.mrf.mxu0
        %v2943 = vadd.f32 %v2794, %v2942
        %v2944 = vpop.f32.mrf.mxu0
        %v2945 = vadd.f32 %v2796, %v2944
        %2946 = vmatmul.bf16.gmra.mxu0 %v2881
        %v2947 = vpop.f32.mrf.mxu0
        %v2948 = vadd.f32 %v2799, %v2947
        %v2949 = vpop.f32.mrf.mxu0
        %v2950 = vadd.f32 %v2801, %v2949
        %2951 = vmatmul.bf16.gmra.mxu0 %v2884
        %v2952 = vpop.f32.mrf.mxu0
        %v2953 = vadd.f32 %v2804, %v2952
        %v2954 = vpop.f32.mrf.mxu0
        %v2955 = vadd.f32 %v2806, %v2954
        %2956 = vmatmul.bf16.gmra.mxu0 %v2887
        %v2957 = vpop.f32.mrf.mxu0
        %v2958 = vadd.f32 %v2809, %v2957
        %v2959 = vpop.f32.mrf.mxu0
        %v2960 = vadd.f32 %v2811, %v2959
        %2961 = vmatmul.bf16.gmra.mxu0 %v2890
        %v2962 = vpop.f32.mrf.mxu0
        %v2963 = vadd.f32 %v2814, %v2962
        %v2964 = vpop.f32.mrf.mxu0
        %v2965 = vadd.f32 %v2816, %v2964
        %2966 = vmatmul.bf16.gmra.mxu0 %v2893
        %v2967 = vpop.f32.mrf.mxu0
        %v2968 = vadd.f32 %v2819, %v2967
        %v2969 = vpop.f32.mrf.mxu0
        %v2970 = vadd.f32 %v2821, %v2969
        %2971 = vmatmul.bf16.gmra.mxu0 %v2896
        %v2972 = vpop.f32.mrf.mxu0
        %v2973 = vadd.f32 %v2824, %v2972
        %v2974 = vpop.f32.mrf.mxu0
        %v2975 = vadd.f32 %v2826, %v2974
        %2976 = vmatmul.bf16.gmra.mxu0 %v2899
        %v2977 = vpop.f32.mrf.mxu0
        %v2978 = vadd.f32 %v2829, %v2977
        %v2979 = vpop.f32.mrf.mxu0
        %v2980 = vadd.f32 %v2831, %v2979
        %2981 = vmatmul.bf16.gmra.mxu0 %v2902
        %v2982 = vpop.f32.mrf.mxu0
        %v2983 = vadd.f32 %v2834, %v2982
        %v2984 = vpop.f32.mrf.mxu0
        %v2985 = vadd.f32 %v2836, %v2984
        %2986 = vmatmul.bf16.gmra.mxu0 %v2905
        %v2987 = vpop.f32.mrf.mxu0
        %v2988 = vadd.f32 %v2839, %v2987
        %v2989 = vpop.f32.mrf.mxu0
        %v2990 = vadd.f32 %v2841, %v2989
        %2991 = vmatmul.bf16.gmra.mxu0 %v2908
        %v2992 = vpop.f32.mrf.mxu0
        %v2993 = vadd.f32 %v2844, %v2992
        %v2994 = vpop.f32.mrf.mxu0
        %v2995 = vadd.f32 %v2846, %v2994
        %2996 = vmatmul.bf16.gmra.mxu0 %v2911
        %v2997 = vpop.f32.mrf.mxu0
        %v2998 = vadd.f32 %v2849, %v2997
        %v2999 = vpop.f32.mrf.mxu0
        %v3000 = vadd.f32 %v2851, %v2999
        %3001 = vdwg.mxu0
        %v3002 = vld [vmem:[#allocation3 + $0x2] sm:$0xff]
        %v3003 = vld [vmem:[#allocation3 + $0xa] sm:$0xff]
        %v3004 = vld [vmem:[#allocation3 + $0x1a] sm:$0xff]
        %v3005 = vld [vmem:[#allocation3 + $0x22] sm:$0xff]
        %v3006 = vld [vmem:[#allocation3 + $0x32] sm:$0xff]
        %v3007 = vld [vmem:[#allocation3 + $0x3a] sm:$0xff]
        %v3008 = vld [vmem:[#allocation3 + $0x4a] sm:$0xff]
        %v3009 = vld [vmem:[#allocation3 + $0x52] sm:$0xff]
        %v3010 = vld [vmem:[#allocation3 + $0x62] sm:$0xff]
        %v3011 = vld [vmem:[#allocation3 + $0x6a] sm:$0xff]
        %v3012 = vld [vmem:[#allocation3 + $0x7a] sm:$0xff]
        %v3013 = vld [vmem:[#allocation3 + $0x82] sm:$0xff]
        %v3014 = vld [vmem:[#allocation3 + $0x92] sm:$0xff]
        %v3015 = vld [vmem:[#allocation3 + $0x9a] sm:$0xff]
        %v3016 = vld [vmem:[#allocation3 + $0xaa] sm:$0xff]
        %v3017 = vld [vmem:[#allocation3 + $0xb2] sm:$0xff]
        %v3018 = vld [vmem:[#allocation3 + $0xc2] sm:$0xff]
        %v3019 = vld [vmem:[#allocation3 + $0xca] sm:$0xff]
        %v3020 = vld [vmem:[#allocation3 + $0xda] sm:$0xff]
        %v3021 = vld [vmem:[#allocation3 + $0xe2] sm:$0xff]
        %v3022 = vld [vmem:[#allocation3 + $0xf2] sm:$0xff]
        %v3023 = vld [vmem:[#allocation3 + $0xfa] sm:$0xff]
        %v3024 = vld [vmem:[#allocation3 + $0x10a] sm:$0xff]
        %v3025 = vld [vmem:[#allocation3 + $0x112] sm:$0xff]
        %v3026 = vld [vmem:[#allocation3 + $0x122] sm:$0xff]
        %v3027 = vld [vmem:[#allocation3 + $0x12a] sm:$0xff]
        %v3028 = vld [vmem:[#allocation3 + $0x13a] sm:$0xff]
        %v3029 = vld [vmem:[#allocation3 + $0x142] sm:$0xff]
        %v3030 = vld [vmem:[#allocation3 + $0x152] sm:$0xff]
        %v3031 = vld [vmem:[#allocation3 + $0x15a] sm:$0xff]
        %v3032 = vld [vmem:[#allocation3 + $0x16a] sm:$0xff]
        %v3033 = vld [vmem:[#allocation3 + $0x172] sm:$0xff]
        %v3034 = vpack.c.bf16 %v3003, %v3002
        %v3035 = vpack.c.bf16 %v3005, %v3004
        %v3036 = vpack.c.bf16 %v3007, %v3006
        %v3037 = vpack.c.bf16 %v3009, %v3008
        %v3038 = vpack.c.bf16 %v3011, %v3010
        %v3039 = vpack.c.bf16 %v3013, %v3012
        %v3040 = vpack.c.bf16 %v3015, %v3014
        %v3041 = vpack.c.bf16 %v3017, %v3016
        %v3042 = vpack.c.bf16 %v3019, %v3018
        %v3043 = vpack.c.bf16 %v3021, %v3020
        %v3044 = vpack.c.bf16 %v3023, %v3022
        %v3045 = vpack.c.bf16 %v3025, %v3024
        %v3046 = vpack.c.bf16 %v3027, %v3026
        %v3047 = vpack.c.bf16 %v3029, %v3028
        %v3048 = vpack.c.bf16 %v3031, %v3030
        %v3049 = vpack.c.bf16 %v3033, %v3032
        %s3050 = scalar_lea.vmem [#allocation8], 32
        %v3051 = vld [vmem:[%s3050] sm:$0xf]
        %v3052 = vld [vmem:[%s3050 + $0x4] sm:$0xf]
        %v3053 = vld [vmem:[%s3050 + $0x8] sm:$0xf]
        %v3054 = vld [vmem:[%s3050 + $0xc] sm:$0xf]
        %v3059 = vunpack.c.l.b16 %v3051
        %v3060 = vunpack.c.l.b16 %v3052
        %v3061 = vunpack.c.l.b16 %v3053
        %v3062 = vunpack.c.l.b16 %v3054
        %v3063 = vpack.c.b16 %v3060, %v3059
        %v3064 = vpack.c.b16 %v3062, %v3061
        %v3068 = vsel %vm313, %v3034, 0
        %v3071 = vsel %vm313, %v3035, 0
        %v3074 = vsel %vm313, %v3036, 0
        %v3077 = vsel %vm313, %v3037, 0
        %v3080 = vsel %vm313, %v3038, 0
        %v3083 = vsel %vm313, %v3039, 0
        %v3086 = vsel %vm313, %v3040, 0
        %v3089 = vsel %vm313, %v3041, 0
        %v3092 = vsel %vm313, %v3042, 0
        %v3095 = vsel %vm313, %v3043, 0
        %v3098 = vsel %vm313, %v3044, 0
        %v3101 = vsel %vm313, %v3045, 0
        %v3104 = vsel %vm313, %v3046, 0
        %v3107 = vsel %vm313, %v3047, 0
        %v3110 = vsel %vm313, %v3048, 0
        %v3113 = vsel %vm313, %v3049, 0
        %3115 = vmatpush.bf16.msra.mxu0 0
        %3116 = vmatpush.bf16.msra.mxu0 0
        %3117 = vmatpush.bf16.msra.mxu0 0
        %3118 = vmatpush.bf16.msra.mxu0 0
        %3119 = vmatpush.bf16.msra.mxu0 0
        %3120 = vmatpush.bf16.msra.mxu0 0
        %3121 = vmatpush.bf16.msra.mxu0 %v3064
        %3122 = vmatpush.bf16.msra.mxu0 %v3063
        %3123 = vmatmul.bf16.gmra.mxu0 %v3068
        %v3124 = vpop.f32.mrf.mxu0
        %v3125 = vadd.f32 0.0, %v3124
        %v3126 = vpop.f32.mrf.mxu0
        %v3127 = vadd.f32 0.0, %v3126
        %3128 = vmatmul.bf16.gmra.mxu0 %v3071
        %v3129 = vpop.f32.mrf.mxu0
        %v3130 = vadd.f32 0.0, %v3129
        %v3131 = vpop.f32.mrf.mxu0
        %v3132 = vadd.f32 0.0, %v3131
        %3133 = vmatmul.bf16.gmra.mxu0 %v3074
        %v3134 = vpop.f32.mrf.mxu0
        %v3135 = vadd.f32 0.0, %v3134
        %v3136 = vpop.f32.mrf.mxu0
        %v3137 = vadd.f32 0.0, %v3136
        %3138 = vmatmul.bf16.gmra.mxu0 %v3077
        %v3139 = vpop.f32.mrf.mxu0
        %v3140 = vadd.f32 0.0, %v3139
        %v3141 = vpop.f32.mrf.mxu0
        %v3142 = vadd.f32 0.0, %v3141
        %3143 = vmatmul.bf16.gmra.mxu0 %v3080
        %v3144 = vpop.f32.mrf.mxu0
        %v3145 = vadd.f32 0.0, %v3144
        %v3146 = vpop.f32.mrf.mxu0
        %v3147 = vadd.f32 0.0, %v3146
        %3148 = vmatmul.bf16.gmra.mxu0 %v3083
        %v3149 = vpop.f32.mrf.mxu0
        %v3150 = vadd.f32 0.0, %v3149
        %v3151 = vpop.f32.mrf.mxu0
        %v3152 = vadd.f32 0.0, %v3151
        %3153 = vmatmul.bf16.gmra.mxu0 %v3086
        %v3154 = vpop.f32.mrf.mxu0
        %v3155 = vadd.f32 0.0, %v3154
        %v3156 = vpop.f32.mrf.mxu0
        %v3157 = vadd.f32 0.0, %v3156
        %3158 = vmatmul.bf16.gmra.mxu0 %v3089
        %v3159 = vpop.f32.mrf.mxu0
        %v3160 = vadd.f32 0.0, %v3159
        %v3161 = vpop.f32.mrf.mxu0
        %v3162 = vadd.f32 0.0, %v3161
        %3163 = vmatmul.bf16.gmra.mxu0 %v3092
        %v3164 = vpop.f32.mrf.mxu0
        %v3165 = vadd.f32 0.0, %v3164
        %v3166 = vpop.f32.mrf.mxu0
        %v3167 = vadd.f32 0.0, %v3166
        %3168 = vmatmul.bf16.gmra.mxu0 %v3095
        %v3169 = vpop.f32.mrf.mxu0
        %v3170 = vadd.f32 0.0, %v3169
        %v3171 = vpop.f32.mrf.mxu0
        %v3172 = vadd.f32 0.0, %v3171
        %3173 = vmatmul.bf16.gmra.mxu0 %v3098
        %v3174 = vpop.f32.mrf.mxu0
        %v3175 = vadd.f32 0.0, %v3174
        %v3176 = vpop.f32.mrf.mxu0
        %v3177 = vadd.f32 0.0, %v3176
        %3178 = vmatmul.bf16.gmra.mxu0 %v3101
        %v3179 = vpop.f32.mrf.mxu0
        %v3180 = vadd.f32 0.0, %v3179
        %v3181 = vpop.f32.mrf.mxu0
        %v3182 = vadd.f32 0.0, %v3181
        %3183 = vmatmul.bf16.gmra.mxu0 %v3104
        %v3184 = vpop.f32.mrf.mxu0
        %v3185 = vadd.f32 0.0, %v3184
        %v3186 = vpop.f32.mrf.mxu0
        %v3187 = vadd.f32 0.0, %v3186
        %3188 = vmatmul.bf16.gmra.mxu0 %v3107
        %v3189 = vpop.f32.mrf.mxu0
        %v3190 = vadd.f32 0.0, %v3189
        %v3191 = vpop.f32.mrf.mxu0
        %v3192 = vadd.f32 0.0, %v3191
        %3193 = vmatmul.bf16.gmra.mxu0 %v3110
        %v3194 = vpop.f32.mrf.mxu0
        %v3195 = vadd.f32 0.0, %v3194
        %v3196 = vpop.f32.mrf.mxu0
        %v3197 = vadd.f32 0.0, %v3196
        %3198 = vmatmul.bf16.gmra.mxu0 %v3113
        %v3199 = vpop.f32.mrf.mxu0
        %v3200 = vadd.f32 0.0, %v3199
        %v3201 = vpop.f32.mrf.mxu0
        %v3202 = vadd.f32 0.0, %v3201
        %3203 = vdwg.mxu0
        %v3204 = vadd.f32 %v2923, %v3125
        %v3205 = vadd.f32 %v2925, %v3127
        %v3206 = vadd.f32 %v2928, %v3130
        %v3207 = vadd.f32 %v2930, %v3132
        %v3208 = vadd.f32 %v2933, %v3135
        %v3209 = vadd.f32 %v2935, %v3137
        %v3210 = vadd.f32 %v2938, %v3140
        %v3211 = vadd.f32 %v2940, %v3142
        %v3212 = vadd.f32 %v2943, %v3145
        %v3213 = vadd.f32 %v2945, %v3147
        %v3214 = vadd.f32 %v2948, %v3150
        %v3215 = vadd.f32 %v2950, %v3152
        %v3216 = vadd.f32 %v2953, %v3155
        %v3217 = vadd.f32 %v2955, %v3157
        %v3218 = vadd.f32 %v2958, %v3160
        %v3219 = vadd.f32 %v2960, %v3162
        %v3220 = vadd.f32 %v2963, %v3165
        %v3221 = vadd.f32 %v2965, %v3167
        %v3222 = vadd.f32 %v2968, %v3170
        %v3223 = vadd.f32 %v2970, %v3172
        %v3224 = vadd.f32 %v2973, %v3175
        %v3225 = vadd.f32 %v2975, %v3177
        %v3226 = vadd.f32 %v2978, %v3180
        %v3227 = vadd.f32 %v2980, %v3182
        %v3228 = vadd.f32 %v2983, %v3185
        %v3229 = vadd.f32 %v2985, %v3187
        %v3230 = vadd.f32 %v2988, %v3190
        %v3231 = vadd.f32 %v2990, %v3192
        %v3232 = vadd.f32 %v2993, %v3195
        %v3233 = vadd.f32 %v2995, %v3197
        %v3234 = vadd.f32 %v2998, %v3200
        %v3235 = vadd.f32 %v3000, %v3202
        %v3236 = vld [vmem:[%s2566] sm:$0xff]
        %v3237 = vld [vmem:[%s2566 + $0x8] sm:$0xff]
        %v3238 = vld [vmem:[%s2566 + $0x18] sm:$0xff]
        %v3239 = vld [vmem:[%s2566 + $0x20] sm:$0xff]
        %v3240 = vld [vmem:[%s2566 + $0x30] sm:$0xff]
        %v3241 = vld [vmem:[%s2566 + $0x38] sm:$0xff]
        %v3242 = vld [vmem:[%s2566 + $0x48] sm:$0xff]
        %v3243 = vld [vmem:[%s2566 + $0x50] sm:$0xff]
        %v3244 = vld [vmem:[%s2566 + $0x60] sm:$0xff]
        %v3245 = vld [vmem:[%s2566 + $0x68] sm:$0xff]
        %v3246 = vld [vmem:[%s2566 + $0x78] sm:$0xff]
        %v3247 = vld [vmem:[%s2566 + $0x80] sm:$0xff]
        %v3248 = vld [vmem:[%s2566 + $0x90] sm:$0xff]
        %v3249 = vld [vmem:[%s2566 + $0x98] sm:$0xff]
        %v3250 = vld [vmem:[%s2566 + $0xa8] sm:$0xff]
        %v3251 = vld [vmem:[%s2566 + $0xb0] sm:$0xff]
        %v3252 = vld [vmem:[%s2566 + $0xc0] sm:$0xff]
        %v3253 = vld [vmem:[%s2566 + $0xc8] sm:$0xff]
        %v3254 = vld [vmem:[%s2566 + $0xd8] sm:$0xff]
        %v3255 = vld [vmem:[%s2566 + $0xe0] sm:$0xff]
        %v3256 = vld [vmem:[%s2566 + $0xf0] sm:$0xff]
        %v3257 = vld [vmem:[%s2566 + $0xf8] sm:$0xff]
        %v3258 = vld [vmem:[%s2566 + $0x108] sm:$0xff]
        %v3259 = vld [vmem:[%s2566 + $0x110] sm:$0xff]
        %v3260 = vld [vmem:[%s2566 + $0x120] sm:$0xff]
        %v3261 = vld [vmem:[%s2566 + $0x128] sm:$0xff]
        %v3262 = vld [vmem:[%s2566 + $0x138] sm:$0xff]
        %v3263 = vld [vmem:[%s2566 + $0x140] sm:$0xff]
        %v3264 = vld [vmem:[%s2566 + $0x150] sm:$0xff]
        %v3265 = vld [vmem:[%s2566 + $0x158] sm:$0xff]
        %v3266 = vld [vmem:[%s2566 + $0x168] sm:$0xff]
        %v3267 = vld [vmem:[%s2566 + $0x170] sm:$0xff]
        %v3268 = vpack.c.bf16 %v3237, %v3236
        %v3269 = vpack.c.bf16 %v3239, %v3238
        %v3270 = vpack.c.bf16 %v3241, %v3240
        %v3271 = vpack.c.bf16 %v3243, %v3242
        %v3272 = vpack.c.bf16 %v3245, %v3244
        %v3273 = vpack.c.bf16 %v3247, %v3246
        %v3274 = vpack.c.bf16 %v3249, %v3248
        %v3275 = vpack.c.bf16 %v3251, %v3250
        %v3276 = vpack.c.bf16 %v3253, %v3252
        %v3277 = vpack.c.bf16 %v3255, %v3254
        %v3278 = vpack.c.bf16 %v3257, %v3256
        %v3279 = vpack.c.bf16 %v3259, %v3258
        %v3280 = vpack.c.bf16 %v3261, %v3260
        %v3281 = vpack.c.bf16 %v3263, %v3262
        %v3282 = vpack.c.bf16 %v3265, %v3264
        %v3283 = vpack.c.bf16 %v3267, %v3266
        %s3284 = scalar_lea.vmem [#allocation8], 48
        %v3285 = vld [vmem:[%s3284] sm:$0xf]
        %v3286 = vld [vmem:[%s3284 + $0x4] sm:$0xf]
        %v3287 = vld [vmem:[%s3284 + $0x8] sm:$0xf]
        %v3288 = vld [vmem:[%s3284 + $0xc] sm:$0xf]
        %v3293 = vunpack.c.l.b16 %v3285
        %v3294 = vunpack.c.l.b16 %v3286
        %v3295 = vunpack.c.l.b16 %v3287
        %v3296 = vunpack.c.l.b16 %v3288
        %v3297 = vpack.c.b16 %v3294, %v3293
        %v3298 = vpack.c.b16 %v3296, %v3295
        %v3302 = vsel %vm313, %v3268, 0
        %v3305 = vsel %vm313, %v3269, 0
        %v3308 = vsel %vm313, %v3270, 0
        %v3311 = vsel %vm313, %v3271, 0
        %v3314 = vsel %vm313, %v3272, 0
        %v3317 = vsel %vm313, %v3273, 0
        %v3320 = vsel %vm313, %v3274, 0
        %v3323 = vsel %vm313, %v3275, 0
        %v3326 = vsel %vm313, %v3276, 0
        %v3329 = vsel %vm313, %v3277, 0
        %v3332 = vsel %vm313, %v3278, 0
        %v3335 = vsel %vm313, %v3279, 0
        %v3338 = vsel %vm313, %v3280, 0
        %v3341 = vsel %vm313, %v3281, 0
        %v3344 = vsel %vm313, %v3282, 0
        %v3347 = vsel %vm313, %v3283, 0
        %3349 = vmatpush.bf16.msra.mxu0 0
        %3350 = vmatpush.bf16.msra.mxu0 0
        %3351 = vmatpush.bf16.msra.mxu0 0
        %3352 = vmatpush.bf16.msra.mxu0 0
        %3353 = vmatpush.bf16.msra.mxu0 0
        %3354 = vmatpush.bf16.msra.mxu0 0
        %3355 = vmatpush.bf16.msra.mxu0 %v3298
        %3356 = vmatpush.bf16.msra.mxu0 %v3297
        %3357 = vmatmul.bf16.gmra.mxu0 %v3302
        %v3358 = vpop.f32.mrf.mxu0
        %v3359 = vadd.f32 0.0, %v3358
        %v3360 = vpop.f32.mrf.mxu0
        %v3361 = vadd.f32 0.0, %v3360
        %3362 = vmatmul.bf16.gmra.mxu0 %v3305
        %v3363 = vpop.f32.mrf.mxu0
        %v3364 = vadd.f32 0.0, %v3363
        %v3365 = vpop.f32.mrf.mxu0
        %v3366 = vadd.f32 0.0, %v3365
        %3367 = vmatmul.bf16.gmra.mxu0 %v3308
        %v3368 = vpop.f32.mrf.mxu0
        %v3369 = vadd.f32 0.0, %v3368
        %v3370 = vpop.f32.mrf.mxu0
        %v3371 = vadd.f32 0.0, %v3370
        %3372 = vmatmul.bf16.gmra.mxu0 %v3311
        %v3373 = vpop.f32.mrf.mxu0
        %v3374 = vadd.f32 0.0, %v3373
        %v3375 = vpop.f32.mrf.mxu0
        %v3376 = vadd.f32 0.0, %v3375
        %3377 = vmatmul.bf16.gmra.mxu0 %v3314
        %v3378 = vpop.f32.mrf.mxu0
        %v3379 = vadd.f32 0.0, %v3378
        %v3380 = vpop.f32.mrf.mxu0
        %v3381 = vadd.f32 0.0, %v3380
        %3382 = vmatmul.bf16.gmra.mxu0 %v3317
        %v3383 = vpop.f32.mrf.mxu0
        %v3384 = vadd.f32 0.0, %v3383
        %v3385 = vpop.f32.mrf.mxu0
        %v3386 = vadd.f32 0.0, %v3385
        %3387 = vmatmul.bf16.gmra.mxu0 %v3320
        %v3388 = vpop.f32.mrf.mxu0
        %v3389 = vadd.f32 0.0, %v3388
        %v3390 = vpop.f32.mrf.mxu0
        %v3391 = vadd.f32 0.0, %v3390
        %3392 = vmatmul.bf16.gmra.mxu0 %v3323
        %v3393 = vpop.f32.mrf.mxu0
        %v3394 = vadd.f32 0.0, %v3393
        %v3395 = vpop.f32.mrf.mxu0
        %v3396 = vadd.f32 0.0, %v3395
        %3397 = vmatmul.bf16.gmra.mxu0 %v3326
        %v3398 = vpop.f32.mrf.mxu0
        %v3399 = vadd.f32 0.0, %v3398
        %v3400 = vpop.f32.mrf.mxu0
        %v3401 = vadd.f32 0.0, %v3400
        %3402 = vmatmul.bf16.gmra.mxu0 %v3329
        %v3403 = vpop.f32.mrf.mxu0
        %v3404 = vadd.f32 0.0, %v3403
        %v3405 = vpop.f32.mrf.mxu0
        %v3406 = vadd.f32 0.0, %v3405
        %3407 = vmatmul.bf16.gmra.mxu0 %v3332
        %v3408 = vpop.f32.mrf.mxu0
        %v3409 = vadd.f32 0.0, %v3408
        %v3410 = vpop.f32.mrf.mxu0
        %v3411 = vadd.f32 0.0, %v3410
        %3412 = vmatmul.bf16.gmra.mxu0 %v3335
        %v3413 = vpop.f32.mrf.mxu0
        %v3414 = vadd.f32 0.0, %v3413
        %v3415 = vpop.f32.mrf.mxu0
        %v3416 = vadd.f32 0.0, %v3415
        %3417 = vmatmul.bf16.gmra.mxu0 %v3338
        %v3418 = vpop.f32.mrf.mxu0
        %v3419 = vadd.f32 0.0, %v3418
        %v3420 = vpop.f32.mrf.mxu0
        %v3421 = vadd.f32 0.0, %v3420
        %3422 = vmatmul.bf16.gmra.mxu0 %v3341
        %v3423 = vpop.f32.mrf.mxu0
        %v3424 = vadd.f32 0.0, %v3423
        %v3425 = vpop.f32.mrf.mxu0
        %v3426 = vadd.f32 0.0, %v3425
        %3427 = vmatmul.bf16.gmra.mxu0 %v3344
        %v3428 = vpop.f32.mrf.mxu0
        %v3429 = vadd.f32 0.0, %v3428
        %v3430 = vpop.f32.mrf.mxu0
        %v3431 = vadd.f32 0.0, %v3430
        %3432 = vmatmul.bf16.gmra.mxu0 %v3347
        %v3433 = vpop.f32.mrf.mxu0
        %v3434 = vadd.f32 0.0, %v3433
        %v3435 = vpop.f32.mrf.mxu0
        %v3436 = vadd.f32 0.0, %v3435
        %3437 = vdwg.mxu0
        %v3438 = vadd.f32 %v3204, %v3359
        %v3439 = vadd.f32 %v3205, %v3361
        %v3440 = vadd.f32 %v3206, %v3364
        %v3441 = vadd.f32 %v3207, %v3366
        %v3442 = vadd.f32 %v3208, %v3369
        %v3443 = vadd.f32 %v3209, %v3371
        %v3444 = vadd.f32 %v3210, %v3374
        %v3445 = vadd.f32 %v3211, %v3376
        %v3446 = vadd.f32 %v3212, %v3379
        %v3447 = vadd.f32 %v3213, %v3381
        %v3448 = vadd.f32 %v3214, %v3384
        %v3449 = vadd.f32 %v3215, %v3386
        %v3450 = vadd.f32 %v3216, %v3389
        %v3451 = vadd.f32 %v3217, %v3391
        %v3452 = vadd.f32 %v3218, %v3394
        %v3453 = vadd.f32 %v3219, %v3396
        %v3454 = vadd.f32 %v3220, %v3399
        %v3455 = vadd.f32 %v3221, %v3401
        %v3456 = vadd.f32 %v3222, %v3404
        %v3457 = vadd.f32 %v3223, %v3406
        %v3458 = vadd.f32 %v3224, %v3409
        %v3459 = vadd.f32 %v3225, %v3411
        %v3460 = vadd.f32 %v3226, %v3414
        %v3461 = vadd.f32 %v3227, %v3416
        %v3462 = vadd.f32 %v3228, %v3419
        %v3463 = vadd.f32 %v3229, %v3421
        %v3464 = vadd.f32 %v3230, %v3424
        %v3465 = vadd.f32 %v3231, %v3426
        %v3466 = vadd.f32 %v3232, %v3429
        %v3467 = vadd.f32 %v3233, %v3431
        %v3468 = vadd.f32 %v3234, %v3434
        %v3469 = vadd.f32 %v3235, %v3436
        %v3470 = vld [vmem:[%s2566 + $0x1] sm:$0xff]
        %v3471 = vld [vmem:[%s2566 + $0x9] sm:$0xff]
        %v3472 = vld [vmem:[%s2566 + $0x19] sm:$0xff]
        %v3473 = vld [vmem:[%s2566 + $0x21] sm:$0xff]
        %v3474 = vld [vmem:[%s2566 + $0x31] sm:$0xff]
        %v3475 = vld [vmem:[%s2566 + $0x39] sm:$0xff]
        %v3476 = vld [vmem:[%s2566 + $0x49] sm:$0xff]
        %v3477 = vld [vmem:[%s2566 + $0x51] sm:$0xff]
        %v3478 = vld [vmem:[%s2566 + $0x61] sm:$0xff]
        %v3479 = vld [vmem:[%s2566 + $0x69] sm:$0xff]
        %v3480 = vld [vmem:[%s2566 + $0x79] sm:$0xff]
        %v3481 = vld [vmem:[%s2566 + $0x81] sm:$0xff]
        %v3482 = vld [vmem:[%s2566 + $0x91] sm:$0xff]
        %v3483 = vld [vmem:[%s2566 + $0x99] sm:$0xff]
        %v3484 = vld [vmem:[%s2566 + $0xa9] sm:$0xff]
        %v3485 = vld [vmem:[%s2566 + $0xb1] sm:$0xff]
        %v3486 = vld [vmem:[%s2566 + $0xc1] sm:$0xff]
        %v3487 = vld [vmem:[%s2566 + $0xc9] sm:$0xff]
        %v3488 = vld [vmem:[%s2566 + $0xd9] sm:$0xff]
        %v3489 = vld [vmem:[%s2566 + $0xe1] sm:$0xff]
        %v3490 = vld [vmem:[%s2566 + $0xf1] sm:$0xff]
        %v3491 = vld [vmem:[%s2566 + $0xf9] sm:$0xff]
        %v3492 = vld [vmem:[%s2566 + $0x109] sm:$0xff]
        %v3493 = vld [vmem:[%s2566 + $0x111] sm:$0xff]
        %v3494 = vld [vmem:[%s2566 + $0x121] sm:$0xff]
        %v3495 = vld [vmem:[%s2566 + $0x129] sm:$0xff]
        %v3496 = vld [vmem:[%s2566 + $0x139] sm:$0xff]
        %v3497 = vld [vmem:[%s2566 + $0x141] sm:$0xff]
        %v3498 = vld [vmem:[%s2566 + $0x151] sm:$0xff]
        %v3499 = vld [vmem:[%s2566 + $0x159] sm:$0xff]
        %v3500 = vld [vmem:[%s2566 + $0x169] sm:$0xff]
        %v3501 = vld [vmem:[%s2566 + $0x171] sm:$0xff]
        %v3502 = vpack.c.bf16 %v3471, %v3470
        %v3503 = vpack.c.bf16 %v3473, %v3472
        %v3504 = vpack.c.bf16 %v3475, %v3474
        %v3505 = vpack.c.bf16 %v3477, %v3476
        %v3506 = vpack.c.bf16 %v3479, %v3478
        %v3507 = vpack.c.bf16 %v3481, %v3480
        %v3508 = vpack.c.bf16 %v3483, %v3482
        %v3509 = vpack.c.bf16 %v3485, %v3484
        %v3510 = vpack.c.bf16 %v3487, %v3486
        %v3511 = vpack.c.bf16 %v3489, %v3488
        %v3512 = vpack.c.bf16 %v3491, %v3490
        %v3513 = vpack.c.bf16 %v3493, %v3492
        %v3514 = vpack.c.bf16 %v3495, %v3494
        %v3515 = vpack.c.bf16 %v3497, %v3496
        %v3516 = vpack.c.bf16 %v3499, %v3498
        %v3517 = vpack.c.bf16 %v3501, %v3500
        %s3518 = scalar_lea.vmem [#allocation8], 64
        %v3519 = vld [vmem:[%s3518] sm:$0xf]
        %v3520 = vld [vmem:[%s3518 + $0x4] sm:$0xf]
        %v3521 = vld [vmem:[%s3518 + $0x8] sm:$0xf]
        %v3522 = vld [vmem:[%s3518 + $0xc] sm:$0xf]
        %v3527 = vunpack.c.l.b16 %v3519
        %v3528 = vunpack.c.l.b16 %v3520
        %v3529 = vunpack.c.l.b16 %v3521
        %v3530 = vunpack.c.l.b16 %v3522
        %v3531 = vpack.c.b16 %v3528, %v3527
        %v3532 = vpack.c.b16 %v3530, %v3529
        %v3536 = vsel %vm313, %v3502, 0
        %v3539 = vsel %vm313, %v3503, 0
        %v3542 = vsel %vm313, %v3504, 0
        %v3545 = vsel %vm313, %v3505, 0
        %v3548 = vsel %vm313, %v3506, 0
        %v3551 = vsel %vm313, %v3507, 0
        %v3554 = vsel %vm313, %v3508, 0
        %v3557 = vsel %vm313, %v3509, 0
        %v3560 = vsel %vm313, %v3510, 0
        %v3563 = vsel %vm313, %v3511, 0
        %v3566 = vsel %vm313, %v3512, 0
        %v3569 = vsel %vm313, %v3513, 0
        %v3572 = vsel %vm313, %v3514, 0
        %v3575 = vsel %vm313, %v3515, 0
        %v3578 = vsel %vm313, %v3516, 0
        %v3581 = vsel %vm313, %v3517, 0
        %3583 = vmatpush.bf16.msra.mxu0 0
        %3584 = vmatpush.bf16.msra.mxu0 0
        %3585 = vmatpush.bf16.msra.mxu0 0
        %3586 = vmatpush.bf16.msra.mxu0 0
        %3587 = vmatpush.bf16.msra.mxu0 0
        %3588 = vmatpush.bf16.msra.mxu0 0
        %3589 = vmatpush.bf16.msra.mxu0 %v3532
        %3590 = vmatpush.bf16.msra.mxu0 %v3531
        %3591 = vmatmul.bf16.gmra.mxu0 %v3536
        %v3592 = vpop.f32.mrf.mxu0
        %v3593 = vadd.f32 0.0, %v3592
        %v3594 = vpop.f32.mrf.mxu0
        %v3595 = vadd.f32 0.0, %v3594
        %3596 = vmatmul.bf16.gmra.mxu0 %v3539
        %v3597 = vpop.f32.mrf.mxu0
        %v3598 = vadd.f32 0.0, %v3597
        %v3599 = vpop.f32.mrf.mxu0
        %v3600 = vadd.f32 0.0, %v3599
        %3601 = vmatmul.bf16.gmra.mxu0 %v3542
        %v3602 = vpop.f32.mrf.mxu0
        %v3603 = vadd.f32 0.0, %v3602
        %v3604 = vpop.f32.mrf.mxu0
        %v3605 = vadd.f32 0.0, %v3604
        %3606 = vmatmul.bf16.gmra.mxu0 %v3545
        %v3607 = vpop.f32.mrf.mxu0
        %v3608 = vadd.f32 0.0, %v3607
        %v3609 = vpop.f32.mrf.mxu0
        %v3610 = vadd.f32 0.0, %v3609
        %3611 = vmatmul.bf16.gmra.mxu0 %v3548
        %v3612 = vpop.f32.mrf.mxu0
        %v3613 = vadd.f32 0.0, %v3612
        %v3614 = vpop.f32.mrf.mxu0
        %v3615 = vadd.f32 0.0, %v3614
        %3616 = vmatmul.bf16.gmra.mxu0 %v3551
        %v3617 = vpop.f32.mrf.mxu0
        %v3618 = vadd.f32 0.0, %v3617
        %v3619 = vpop.f32.mrf.mxu0
        %v3620 = vadd.f32 0.0, %v3619
        %3621 = vmatmul.bf16.gmra.mxu0 %v3554
        %v3622 = vpop.f32.mrf.mxu0
        %v3623 = vadd.f32 0.0, %v3622
        %v3624 = vpop.f32.mrf.mxu0
        %v3625 = vadd.f32 0.0, %v3624
        %3626 = vmatmul.bf16.gmra.mxu0 %v3557
        %v3627 = vpop.f32.mrf.mxu0
        %v3628 = vadd.f32 0.0, %v3627
        %v3629 = vpop.f32.mrf.mxu0
        %v3630 = vadd.f32 0.0, %v3629
        %3631 = vmatmul.bf16.gmra.mxu0 %v3560
        %v3632 = vpop.f32.mrf.mxu0
        %v3633 = vadd.f32 0.0, %v3632
        %v3634 = vpop.f32.mrf.mxu0
        %v3635 = vadd.f32 0.0, %v3634
        %3636 = vmatmul.bf16.gmra.mxu0 %v3563
        %v3637 = vpop.f32.mrf.mxu0
        %v3638 = vadd.f32 0.0, %v3637
        %v3639 = vpop.f32.mrf.mxu0
        %v3640 = vadd.f32 0.0, %v3639
        %3641 = vmatmul.bf16.gmra.mxu0 %v3566
        %v3642 = vpop.f32.mrf.mxu0
        %v3643 = vadd.f32 0.0, %v3642
        %v3644 = vpop.f32.mrf.mxu0
        %v3645 = vadd.f32 0.0, %v3644
        %3646 = vmatmul.bf16.gmra.mxu0 %v3569
        %v3647 = vpop.f32.mrf.mxu0
        %v3648 = vadd.f32 0.0, %v3647
        %v3649 = vpop.f32.mrf.mxu0
        %v3650 = vadd.f32 0.0, %v3649
        %3651 = vmatmul.bf16.gmra.mxu0 %v3572
        %v3652 = vpop.f32.mrf.mxu0
        %v3653 = vadd.f32 0.0, %v3652
        %v3654 = vpop.f32.mrf.mxu0
        %v3655 = vadd.f32 0.0, %v3654
        %3656 = vmatmul.bf16.gmra.mxu0 %v3575
        %v3657 = vpop.f32.mrf.mxu0
        %v3658 = vadd.f32 0.0, %v3657
        %v3659 = vpop.f32.mrf.mxu0
        %v3660 = vadd.f32 0.0, %v3659
        %3661 = vmatmul.bf16.gmra.mxu0 %v3578
        %v3662 = vpop.f32.mrf.mxu0
        %v3663 = vadd.f32 0.0, %v3662
        %v3664 = vpop.f32.mrf.mxu0
        %v3665 = vadd.f32 0.0, %v3664
        %3666 = vmatmul.bf16.gmra.mxu0 %v3581
        %v3667 = vpop.f32.mrf.mxu0
        %v3668 = vadd.f32 0.0, %v3667
        %v3669 = vpop.f32.mrf.mxu0
        %v3670 = vadd.f32 0.0, %v3669
        %3671 = vdwg.mxu0
        %v3672 = vadd.f32 %v3438, %v3593
        %v3673 = vadd.f32 %v3439, %v3595
        %v3674 = vadd.f32 %v3440, %v3598
        %v3675 = vadd.f32 %v3441, %v3600
        %v3676 = vadd.f32 %v3442, %v3603
        %v3677 = vadd.f32 %v3443, %v3605
        %v3678 = vadd.f32 %v3444, %v3608
        %v3679 = vadd.f32 %v3445, %v3610
        %v3680 = vadd.f32 %v3446, %v3613
        %v3681 = vadd.f32 %v3447, %v3615
        %v3682 = vadd.f32 %v3448, %v3618
        %v3683 = vadd.f32 %v3449, %v3620
        %v3684 = vadd.f32 %v3450, %v3623
        %v3685 = vadd.f32 %v3451, %v3625
        %v3686 = vadd.f32 %v3452, %v3628
        %v3687 = vadd.f32 %v3453, %v3630
        %v3688 = vadd.f32 %v3454, %v3633
        %v3689 = vadd.f32 %v3455, %v3635
        %v3690 = vadd.f32 %v3456, %v3638
        %v3691 = vadd.f32 %v3457, %v3640
        %v3692 = vadd.f32 %v3458, %v3643
        %v3693 = vadd.f32 %v3459, %v3645
        %v3694 = vadd.f32 %v3460, %v3648
        %v3695 = vadd.f32 %v3461, %v3650
        %v3696 = vadd.f32 %v3462, %v3653
        %v3697 = vadd.f32 %v3463, %v3655
        %v3698 = vadd.f32 %v3464, %v3658
        %v3699 = vadd.f32 %v3465, %v3660
        %v3700 = vadd.f32 %v3466, %v3663
        %v3701 = vadd.f32 %v3467, %v3665
        %v3702 = vadd.f32 %v3468, %v3668
        %v3703 = vadd.f32 %v3469, %v3670
        %v3704 = vld [vmem:[%s2566 + $0x2] sm:$0xff]
        %v3705 = vld [vmem:[%s2566 + $0xa] sm:$0xff]
        %v3706 = vld [vmem:[%s2566 + $0x1a] sm:$0xff]
        %v3707 = vld [vmem:[%s2566 + $0x22] sm:$0xff]
        %v3708 = vld [vmem:[%s2566 + $0x32] sm:$0xff]
        %v3709 = vld [vmem:[%s2566 + $0x3a] sm:$0xff]
        %v3710 = vld [vmem:[%s2566 + $0x4a] sm:$0xff]
        %v3711 = vld [vmem:[%s2566 + $0x52] sm:$0xff]
        %v3712 = vld [vmem:[%s2566 + $0x62] sm:$0xff]
        %v3713 = vld [vmem:[%s2566 + $0x6a] sm:$0xff]
        %v3714 = vld [vmem:[%s2566 + $0x7a] sm:$0xff]
        %v3715 = vld [vmem:[%s2566 + $0x82] sm:$0xff]
        %v3716 = vld [vmem:[%s2566 + $0x92] sm:$0xff]
        %v3717 = vld [vmem:[%s2566 + $0x9a] sm:$0xff]
        %v3718 = vld [vmem:[%s2566 + $0xaa] sm:$0xff]
        %v3719 = vld [vmem:[%s2566 + $0xb2] sm:$0xff]
        %v3720 = vld [vmem:[%s2566 + $0xc2] sm:$0xff]
        %v3721 = vld [vmem:[%s2566 + $0xca] sm:$0xff]
        %v3722 = vld [vmem:[%s2566 + $0xda] sm:$0xff]
        %v3723 = vld [vmem:[%s2566 + $0xe2] sm:$0xff]
        %v3724 = vld [vmem:[%s2566 + $0xf2] sm:$0xff]
        %v3725 = vld [vmem:[%s2566 + $0xfa] sm:$0xff]
        %v3726 = vld [vmem:[%s2566 + $0x10a] sm:$0xff]
        %v3727 = vld [vmem:[%s2566 + $0x112] sm:$0xff]
        %v3728 = vld [vmem:[%s2566 + $0x122] sm:$0xff]
        %v3729 = vld [vmem:[%s2566 + $0x12a] sm:$0xff]
        %v3730 = vld [vmem:[%s2566 + $0x13a] sm:$0xff]
        %v3731 = vld [vmem:[%s2566 + $0x142] sm:$0xff]
        %v3732 = vld [vmem:[%s2566 + $0x152] sm:$0xff]
        %v3733 = vld [vmem:[%s2566 + $0x15a] sm:$0xff]
        %v3734 = vld [vmem:[%s2566 + $0x16a] sm:$0xff]
        %v3735 = vld [vmem:[%s2566 + $0x172] sm:$0xff]
        %v3736 = vpack.c.bf16 %v3705, %v3704
        %v3737 = vpack.c.bf16 %v3707, %v3706
        %v3738 = vpack.c.bf16 %v3709, %v3708
        %v3739 = vpack.c.bf16 %v3711, %v3710
        %v3740 = vpack.c.bf16 %v3713, %v3712
        %v3741 = vpack.c.bf16 %v3715, %v3714
        %v3742 = vpack.c.bf16 %v3717, %v3716
        %v3743 = vpack.c.bf16 %v3719, %v3718
        %v3744 = vpack.c.bf16 %v3721, %v3720
        %v3745 = vpack.c.bf16 %v3723, %v3722
        %v3746 = vpack.c.bf16 %v3725, %v3724
        %v3747 = vpack.c.bf16 %v3727, %v3726
        %v3748 = vpack.c.bf16 %v3729, %v3728
        %v3749 = vpack.c.bf16 %v3731, %v3730
        %v3750 = vpack.c.bf16 %v3733, %v3732
        %v3751 = vpack.c.bf16 %v3735, %v3734
        %s3752 = scalar_lea.vmem [#allocation8], 80
        %v3753 = vld [vmem:[%s3752] sm:$0xf]
        %v3754 = vld [vmem:[%s3752 + $0x4] sm:$0xf]
        %v3755 = vld [vmem:[%s3752 + $0x8] sm:$0xf]
        %v3756 = vld [vmem:[%s3752 + $0xc] sm:$0xf]
        %v3761 = vunpack.c.l.b16 %v3753
        %v3762 = vunpack.c.l.b16 %v3754
        %v3763 = vunpack.c.l.b16 %v3755
        %v3764 = vunpack.c.l.b16 %v3756
        %v3765 = vpack.c.b16 %v3762, %v3761
        %v3766 = vpack.c.b16 %v3764, %v3763
        %v3770 = vsel %vm313, %v3736, 0
        %v3773 = vsel %vm313, %v3737, 0
        %v3776 = vsel %vm313, %v3738, 0
        %v3779 = vsel %vm313, %v3739, 0
        %v3782 = vsel %vm313, %v3740, 0
        %v3785 = vsel %vm313, %v3741, 0
        %v3788 = vsel %vm313, %v3742, 0
        %v3791 = vsel %vm313, %v3743, 0
        %v3794 = vsel %vm313, %v3744, 0
        %v3797 = vsel %vm313, %v3745, 0
        %v3800 = vsel %vm313, %v3746, 0
        %v3803 = vsel %vm313, %v3747, 0
        %v3806 = vsel %vm313, %v3748, 0
        %v3809 = vsel %vm313, %v3749, 0
        %v3812 = vsel %vm313, %v3750, 0
        %v3815 = vsel %vm313, %v3751, 0
        %3817 = vmatpush.bf16.msra.mxu0 0
        %3818 = vmatpush.bf16.msra.mxu0 0
        %3819 = vmatpush.bf16.msra.mxu0 0
        %3820 = vmatpush.bf16.msra.mxu0 0
        %3821 = vmatpush.bf16.msra.mxu0 0
        %3822 = vmatpush.bf16.msra.mxu0 0
        %3823 = vmatpush.bf16.msra.mxu0 %v3766
        %3824 = vmatpush.bf16.msra.mxu0 %v3765
        %3825 = vmatmul.bf16.gmra.mxu0 %v3770
        %v3826 = vpop.f32.mrf.mxu0
        %v3827 = vadd.f32 0.0, %v3826
        %v3828 = vpop.f32.mrf.mxu0
        %v3829 = vadd.f32 0.0, %v3828
        %3830 = vmatmul.bf16.gmra.mxu0 %v3773
        %v3831 = vpop.f32.mrf.mxu0
        %v3832 = vadd.f32 0.0, %v3831
        %v3833 = vpop.f32.mrf.mxu0
        %v3834 = vadd.f32 0.0, %v3833
        %3835 = vmatmul.bf16.gmra.mxu0 %v3776
        %v3836 = vpop.f32.mrf.mxu0
        %v3837 = vadd.f32 0.0, %v3836
        %v3838 = vpop.f32.mrf.mxu0
        %v3839 = vadd.f32 0.0, %v3838
        %3840 = vmatmul.bf16.gmra.mxu0 %v3779
        %v3841 = vpop.f32.mrf.mxu0
        %v3842 = vadd.f32 0.0, %v3841
        %v3843 = vpop.f32.mrf.mxu0
        %v3844 = vadd.f32 0.0, %v3843
        %3845 = vmatmul.bf16.gmra.mxu0 %v3782
        %v3846 = vpop.f32.mrf.mxu0
        %v3847 = vadd.f32 0.0, %v3846
        %v3848 = vpop.f32.mrf.mxu0
        %v3849 = vadd.f32 0.0, %v3848
        %3850 = vmatmul.bf16.gmra.mxu0 %v3785
        %v3851 = vpop.f32.mrf.mxu0
        %v3852 = vadd.f32 0.0, %v3851
        %v3853 = vpop.f32.mrf.mxu0
        %v3854 = vadd.f32 0.0, %v3853
        %3855 = vmatmul.bf16.gmra.mxu0 %v3788
        %v3856 = vpop.f32.mrf.mxu0
        %v3857 = vadd.f32 0.0, %v3856
        %v3858 = vpop.f32.mrf.mxu0
        %v3859 = vadd.f32 0.0, %v3858
        %3860 = vmatmul.bf16.gmra.mxu0 %v3791
        %v3861 = vpop.f32.mrf.mxu0
        %v3862 = vadd.f32 0.0, %v3861
        %v3863 = vpop.f32.mrf.mxu0
        %v3864 = vadd.f32 0.0, %v3863
        %3865 = vmatmul.bf16.gmra.mxu0 %v3794
        %v3866 = vpop.f32.mrf.mxu0
        %v3867 = vadd.f32 0.0, %v3866
        %v3868 = vpop.f32.mrf.mxu0
        %v3869 = vadd.f32 0.0, %v3868
        %3870 = vmatmul.bf16.gmra.mxu0 %v3797
        %v3871 = vpop.f32.mrf.mxu0
        %v3872 = vadd.f32 0.0, %v3871
        %v3873 = vpop.f32.mrf.mxu0
        %v3874 = vadd.f32 0.0, %v3873
        %3875 = vmatmul.bf16.gmra.mxu0 %v3800
        %v3876 = vpop.f32.mrf.mxu0
        %v3877 = vadd.f32 0.0, %v3876
        %v3878 = vpop.f32.mrf.mxu0
        %v3879 = vadd.f32 0.0, %v3878
        %3880 = vmatmul.bf16.gmra.mxu0 %v3803
        %v3881 = vpop.f32.mrf.mxu0
        %v3882 = vadd.f32 0.0, %v3881
        %v3883 = vpop.f32.mrf.mxu0
        %v3884 = vadd.f32 0.0, %v3883
        %3885 = vmatmul.bf16.gmra.mxu0 %v3806
        %v3886 = vpop.f32.mrf.mxu0
        %v3887 = vadd.f32 0.0, %v3886
        %v3888 = vpop.f32.mrf.mxu0
        %v3889 = vadd.f32 0.0, %v3888
        %3890 = vmatmul.bf16.gmra.mxu0 %v3809
        %v3891 = vpop.f32.mrf.mxu0
        %v3892 = vadd.f32 0.0, %v3891
        %v3893 = vpop.f32.mrf.mxu0
        %v3894 = vadd.f32 0.0, %v3893
        %3895 = vmatmul.bf16.gmra.mxu0 %v3812
        %v3896 = vpop.f32.mrf.mxu0
        %v3897 = vadd.f32 0.0, %v3896
        %v3898 = vpop.f32.mrf.mxu0
        %v3899 = vadd.f32 0.0, %v3898
        %3900 = vmatmul.bf16.gmra.mxu0 %v3815
        %v3901 = vpop.f32.mrf.mxu0
        %v3902 = vadd.f32 0.0, %v3901
        %v3903 = vpop.f32.mrf.mxu0
        %v3904 = vadd.f32 0.0, %v3903
        %3905 = vdwg.mxu0
        %v3906 = vadd.f32 %v3672, %v3827
        %v3907 = vadd.f32 %v3673, %v3829
        %v3908 = vadd.f32 %v3674, %v3832
        %v3909 = vadd.f32 %v3675, %v3834
        %v3910 = vadd.f32 %v3676, %v3837
        %v3911 = vadd.f32 %v3677, %v3839
        %v3912 = vadd.f32 %v3678, %v3842
        %v3913 = vadd.f32 %v3679, %v3844
        %v3914 = vadd.f32 %v3680, %v3847
        %v3915 = vadd.f32 %v3681, %v3849
        %v3916 = vadd.f32 %v3682, %v3852
        %v3917 = vadd.f32 %v3683, %v3854
        %v3918 = vadd.f32 %v3684, %v3857
        %v3919 = vadd.f32 %v3685, %v3859
        %v3920 = vadd.f32 %v3686, %v3862
        %v3921 = vadd.f32 %v3687, %v3864
        %v3922 = vadd.f32 %v3688, %v3867
        %v3923 = vadd.f32 %v3689, %v3869
        %v3924 = vadd.f32 %v3690, %v3872
        %v3925 = vadd.f32 %v3691, %v3874
        %v3926 = vadd.f32 %v3692, %v3877
        %v3927 = vadd.f32 %v3693, %v3879
        %v3928 = vadd.f32 %v3694, %v3882
        %v3929 = vadd.f32 %v3695, %v3884
        %v3930 = vadd.f32 %v3696, %v3887
        %v3931 = vadd.f32 %v3697, %v3889
        %v3932 = vadd.f32 %v3698, %v3892
        %v3933 = vadd.f32 %v3699, %v3894
        %v3934 = vadd.f32 %v3700, %v3897
        %v3935 = vadd.f32 %v3701, %v3899
        %v3936 = vadd.f32 %v3702, %v3902
        %v3937 = vadd.f32 %v3703, %v3904
        %s3938 = scalar_lea.vmem [#allocation3], 48
        %v3939 = vld [vmem:[%s3938] sm:$0xff]
        %v3940 = vld [vmem:[%s3938 + $0x8] sm:$0xff]
        %v3941 = vld [vmem:[%s3938 + $0x18] sm:$0xff]
        %v3942 = vld [vmem:[%s3938 + $0x20] sm:$0xff]
        %v3943 = vld [vmem:[%s3938 + $0x30] sm:$0xff]
        %v3944 = vld [vmem:[%s3938 + $0x38] sm:$0xff]
        %v3945 = vld [vmem:[%s3938 + $0x48] sm:$0xff]
        %v3946 = vld [vmem:[%s3938 + $0x50] sm:$0xff]
        %v3947 = vld [vmem:[%s3938 + $0x60] sm:$0xff]
        %v3948 = vld [vmem:[%s3938 + $0x68] sm:$0xff]
        %v3949 = vld [vmem:[%s3938 + $0x78] sm:$0xff]
        %v3950 = vld [vmem:[%s3938 + $0x80] sm:$0xff]
        %v3951 = vld [vmem:[%s3938 + $0x90] sm:$0xff]
        %v3952 = vld [vmem:[%s3938 + $0x98] sm:$0xff]
        %v3953 = vld [vmem:[%s3938 + $0xa8] sm:$0xff]
        %v3954 = vld [vmem:[%s3938 + $0xb0] sm:$0xff]
        %v3955 = vld [vmem:[%s3938 + $0xc0] sm:$0xff]
        %v3956 = vld [vmem:[%s3938 + $0xc8] sm:$0xff]
        %v3957 = vld [vmem:[%s3938 + $0xd8] sm:$0xff]
        %v3958 = vld [vmem:[%s3938 + $0xe0] sm:$0xff]
        %v3959 = vld [vmem:[%s3938 + $0xf0] sm:$0xff]
        %v3960 = vld [vmem:[%s3938 + $0xf8] sm:$0xff]
        %v3961 = vld [vmem:[%s3938 + $0x108] sm:$0xff]
        %v3962 = vld [vmem:[%s3938 + $0x110] sm:$0xff]
        %v3963 = vld [vmem:[%s3938 + $0x120] sm:$0xff]
        %v3964 = vld [vmem:[%s3938 + $0x128] sm:$0xff]
        %v3965 = vld [vmem:[%s3938 + $0x138] sm:$0xff]
        %v3966 = vld [vmem:[%s3938 + $0x140] sm:$0xff]
        %v3967 = vld [vmem:[%s3938 + $0x150] sm:$0xff]
        %v3968 = vld [vmem:[%s3938 + $0x158] sm:$0xff]
        %v3969 = vld [vmem:[%s3938 + $0x168] sm:$0xff]
        %v3970 = vld [vmem:[%s3938 + $0x170] sm:$0xff]
        %v3971 = vpack.c.bf16 %v3940, %v3939
        %v3972 = vpack.c.bf16 %v3942, %v3941
        %v3973 = vpack.c.bf16 %v3944, %v3943
        %v3974 = vpack.c.bf16 %v3946, %v3945
        %v3975 = vpack.c.bf16 %v3948, %v3947
        %v3976 = vpack.c.bf16 %v3950, %v3949
        %v3977 = vpack.c.bf16 %v3952, %v3951
        %v3978 = vpack.c.bf16 %v3954, %v3953
        %v3979 = vpack.c.bf16 %v3956, %v3955
        %v3980 = vpack.c.bf16 %v3958, %v3957
        %v3981 = vpack.c.bf16 %v3960, %v3959
        %v3982 = vpack.c.bf16 %v3962, %v3961
        %v3983 = vpack.c.bf16 %v3964, %v3963
        %v3984 = vpack.c.bf16 %v3966, %v3965
        %v3985 = vpack.c.bf16 %v3968, %v3967
        %v3986 = vpack.c.bf16 %v3970, %v3969
        %s3987 = scalar_lea.vmem [#allocation8], 96
        %v3988 = vld [vmem:[%s3987] sm:$0xf]
        %v3989 = vld [vmem:[%s3987 + $0x4] sm:$0xf]
        %v3990 = vld [vmem:[%s3987 + $0x8] sm:$0xf]
        %v3991 = vld [vmem:[%s3987 + $0xc] sm:$0xf]
        %v3996 = vunpack.c.l.b16 %v3988
        %v3997 = vunpack.c.l.b16 %v3989
        %v3998 = vunpack.c.l.b16 %v3990
        %v3999 = vunpack.c.l.b16 %v3991
        %v4000 = vpack.c.b16 %v3997, %v3996
        %v4001 = vpack.c.b16 %v3999, %v3998
        %v4005 = vsel %vm313, %v3971, 0
        %v4008 = vsel %vm313, %v3972, 0
        %v4011 = vsel %vm313, %v3973, 0
        %v4014 = vsel %vm313, %v3974, 0
        %v4017 = vsel %vm313, %v3975, 0
        %v4020 = vsel %vm313, %v3976, 0
        %v4023 = vsel %vm313, %v3977, 0
        %v4026 = vsel %vm313, %v3978, 0
        %v4029 = vsel %vm313, %v3979, 0
        %v4032 = vsel %vm313, %v3980, 0
        %v4035 = vsel %vm313, %v3981, 0
        %v4038 = vsel %vm313, %v3982, 0
        %v4041 = vsel %vm313, %v3983, 0
        %v4044 = vsel %vm313, %v3984, 0
        %v4047 = vsel %vm313, %v3985, 0
        %v4050 = vsel %vm313, %v3986, 0
        %4052 = vmatpush.bf16.msra.mxu0 0
        %4053 = vmatpush.bf16.msra.mxu0 0
        %4054 = vmatpush.bf16.msra.mxu0 0
        %4055 = vmatpush.bf16.msra.mxu0 0
        %4056 = vmatpush.bf16.msra.mxu0 0
        %4057 = vmatpush.bf16.msra.mxu0 0
        %4058 = vmatpush.bf16.msra.mxu0 %v4001
        %4059 = vmatpush.bf16.msra.mxu0 %v4000
        %4060 = vmatmul.bf16.gmra.mxu0 %v4005
        %v4061 = vpop.f32.mrf.mxu0
        %v4062 = vadd.f32 0.0, %v4061
        %v4063 = vpop.f32.mrf.mxu0
        %v4064 = vadd.f32 0.0, %v4063
        %4065 = vmatmul.bf16.gmra.mxu0 %v4008
        %v4066 = vpop.f32.mrf.mxu0
        %v4067 = vadd.f32 0.0, %v4066
        %v4068 = vpop.f32.mrf.mxu0
        %v4069 = vadd.f32 0.0, %v4068
        %4070 = vmatmul.bf16.gmra.mxu0 %v4011
        %v4071 = vpop.f32.mrf.mxu0
        %v4072 = vadd.f32 0.0, %v4071
        %v4073 = vpop.f32.mrf.mxu0
        %v4074 = vadd.f32 0.0, %v4073
        %4075 = vmatmul.bf16.gmra.mxu0 %v4014
        %v4076 = vpop.f32.mrf.mxu0
        %v4077 = vadd.f32 0.0, %v4076
        %v4078 = vpop.f32.mrf.mxu0
        %v4079 = vadd.f32 0.0, %v4078
        %4080 = vmatmul.bf16.gmra.mxu0 %v4017
        %v4081 = vpop.f32.mrf.mxu0
        %v4082 = vadd.f32 0.0, %v4081
        %v4083 = vpop.f32.mrf.mxu0
        %v4084 = vadd.f32 0.0, %v4083
        %4085 = vmatmul.bf16.gmra.mxu0 %v4020
        %v4086 = vpop.f32.mrf.mxu0
        %v4087 = vadd.f32 0.0, %v4086
        %v4088 = vpop.f32.mrf.mxu0
        %v4089 = vadd.f32 0.0, %v4088
        %4090 = vmatmul.bf16.gmra.mxu0 %v4023
        %v4091 = vpop.f32.mrf.mxu0
        %v4092 = vadd.f32 0.0, %v4091
        %v4093 = vpop.f32.mrf.mxu0
        %v4094 = vadd.f32 0.0, %v4093
        %4095 = vmatmul.bf16.gmra.mxu0 %v4026
        %v4096 = vpop.f32.mrf.mxu0
        %v4097 = vadd.f32 0.0, %v4096
        %v4098 = vpop.f32.mrf.mxu0
        %v4099 = vadd.f32 0.0, %v4098
        %4100 = vmatmul.bf16.gmra.mxu0 %v4029
        %v4101 = vpop.f32.mrf.mxu0
        %v4102 = vadd.f32 0.0, %v4101
        %v4103 = vpop.f32.mrf.mxu0
        %v4104 = vadd.f32 0.0, %v4103
        %4105 = vmatmul.bf16.gmra.mxu0 %v4032
        %v4106 = vpop.f32.mrf.mxu0
        %v4107 = vadd.f32 0.0, %v4106
        %v4108 = vpop.f32.mrf.mxu0
        %v4109 = vadd.f32 0.0, %v4108
        %4110 = vmatmul.bf16.gmra.mxu0 %v4035
        %v4111 = vpop.f32.mrf.mxu0
        %v4112 = vadd.f32 0.0, %v4111
        %v4113 = vpop.f32.mrf.mxu0
        %v4114 = vadd.f32 0.0, %v4113
        %4115 = vmatmul.bf16.gmra.mxu0 %v4038
        %v4116 = vpop.f32.mrf.mxu0
        %v4117 = vadd.f32 0.0, %v4116
        %v4118 = vpop.f32.mrf.mxu0
        %v4119 = vadd.f32 0.0, %v4118
        %4120 = vmatmul.bf16.gmra.mxu0 %v4041
        %v4121 = vpop.f32.mrf.mxu0
        %v4122 = vadd.f32 0.0, %v4121
        %v4123 = vpop.f32.mrf.mxu0
        %v4124 = vadd.f32 0.0, %v4123
        %4125 = vmatmul.bf16.gmra.mxu0 %v4044
        %v4126 = vpop.f32.mrf.mxu0
        %v4127 = vadd.f32 0.0, %v4126
        %v4128 = vpop.f32.mrf.mxu0
        %v4129 = vadd.f32 0.0, %v4128
        %4130 = vmatmul.bf16.gmra.mxu0 %v4047
        %v4131 = vpop.f32.mrf.mxu0
        %v4132 = vadd.f32 0.0, %v4131
        %v4133 = vpop.f32.mrf.mxu0
        %v4134 = vadd.f32 0.0, %v4133
        %4135 = vmatmul.bf16.gmra.mxu0 %v4050
        %v4136 = vpop.f32.mrf.mxu0
        %v4137 = vadd.f32 0.0, %v4136
        %v4138 = vpop.f32.mrf.mxu0
        %v4139 = vadd.f32 0.0, %v4138
        %4140 = vdwg.mxu0
        %v4141 = vadd.f32 %v3906, %v4062
        %v4142 = vadd.f32 %v3907, %v4064
        %v4143 = vadd.f32 %v3908, %v4067
        %v4144 = vadd.f32 %v3909, %v4069
        %v4145 = vadd.f32 %v3910, %v4072
        %v4146 = vadd.f32 %v3911, %v4074
        %v4147 = vadd.f32 %v3912, %v4077
        %v4148 = vadd.f32 %v3913, %v4079
        %v4149 = vadd.f32 %v3914, %v4082
        %v4150 = vadd.f32 %v3915, %v4084
        %v4151 = vadd.f32 %v3916, %v4087
        %v4152 = vadd.f32 %v3917, %v4089
        %v4153 = vadd.f32 %v3918, %v4092
        %v4154 = vadd.f32 %v3919, %v4094
        %v4155 = vadd.f32 %v3920, %v4097
        %v4156 = vadd.f32 %v3921, %v4099
        %v4157 = vadd.f32 %v3922, %v4102
        %v4158 = vadd.f32 %v3923, %v4104
        %v4159 = vadd.f32 %v3924, %v4107
        %v4160 = vadd.f32 %v3925, %v4109
        %v4161 = vadd.f32 %v3926, %v4112
        %v4162 = vadd.f32 %v3927, %v4114
        %v4163 = vadd.f32 %v3928, %v4117
        %v4164 = vadd.f32 %v3929, %v4119
        %v4165 = vadd.f32 %v3930, %v4122
        %v4166 = vadd.f32 %v3931, %v4124
        %v4167 = vadd.f32 %v3932, %v4127
        %v4168 = vadd.f32 %v3933, %v4129
        %v4169 = vadd.f32 %v3934, %v4132
        %v4170 = vadd.f32 %v3935, %v4134
        %v4171 = vadd.f32 %v3936, %v4137
        %v4172 = vadd.f32 %v3937, %v4139
        %v4173 = vld [vmem:[%s3938 + $0x1] sm:$0xff]
        %v4174 = vld [vmem:[%s3938 + $0x9] sm:$0xff]
        %v4175 = vld [vmem:[%s3938 + $0x19] sm:$0xff]
        %v4176 = vld [vmem:[%s3938 + $0x21] sm:$0xff]
        %v4177 = vld [vmem:[%s3938 + $0x31] sm:$0xff]
        %v4178 = vld [vmem:[%s3938 + $0x39] sm:$0xff]
        %v4179 = vld [vmem:[%s3938 + $0x49] sm:$0xff]
        %v4180 = vld [vmem:[%s3938 + $0x51] sm:$0xff]
        %v4181 = vld [vmem:[%s3938 + $0x61] sm:$0xff]
        %v4182 = vld [vmem:[%s3938 + $0x69] sm:$0xff]
        %v4183 = vld [vmem:[%s3938 + $0x79] sm:$0xff]
        %v4184 = vld [vmem:[%s3938 + $0x81] sm:$0xff]
        %v4185 = vld [vmem:[%s3938 + $0x91] sm:$0xff]
        %v4186 = vld [vmem:[%s3938 + $0x99] sm:$0xff]
        %v4187 = vld [vmem:[%s3938 + $0xa9] sm:$0xff]
        %v4188 = vld [vmem:[%s3938 + $0xb1] sm:$0xff]
        %v4189 = vld [vmem:[%s3938 + $0xc1] sm:$0xff]
        %v4190 = vld [vmem:[%s3938 + $0xc9] sm:$0xff]
        %v4191 = vld [vmem:[%s3938 + $0xd9] sm:$0xff]
        %v4192 = vld [vmem:[%s3938 + $0xe1] sm:$0xff]
        %v4193 = vld [vmem:[%s3938 + $0xf1] sm:$0xff]
        %v4194 = vld [vmem:[%s3938 + $0xf9] sm:$0xff]
        %v4195 = vld [vmem:[%s3938 + $0x109] sm:$0xff]
        %v4196 = vld [vmem:[%s3938 + $0x111] sm:$0xff]
        %v4197 = vld [vmem:[%s3938 + $0x121] sm:$0xff]
        %v4198 = vld [vmem:[%s3938 + $0x129] sm:$0xff]
        %v4199 = vld [vmem:[%s3938 + $0x139] sm:$0xff]
        %v4200 = vld [vmem:[%s3938 + $0x141] sm:$0xff]
        %v4201 = vld [vmem:[%s3938 + $0x151] sm:$0xff]
        %v4202 = vld [vmem:[%s3938 + $0x159] sm:$0xff]
        %v4203 = vld [vmem:[%s3938 + $0x169] sm:$0xff]
        %v4204 = vld [vmem:[%s3938 + $0x171] sm:$0xff]
        %v4205 = vpack.c.bf16 %v4174, %v4173
        %v4206 = vpack.c.bf16 %v4176, %v4175
        %v4207 = vpack.c.bf16 %v4178, %v4177
        %v4208 = vpack.c.bf16 %v4180, %v4179
        %v4209 = vpack.c.bf16 %v4182, %v4181
        %v4210 = vpack.c.bf16 %v4184, %v4183
        %v4211 = vpack.c.bf16 %v4186, %v4185
        %v4212 = vpack.c.bf16 %v4188, %v4187
        %v4213 = vpack.c.bf16 %v4190, %v4189
        %v4214 = vpack.c.bf16 %v4192, %v4191
        %v4215 = vpack.c.bf16 %v4194, %v4193
        %v4216 = vpack.c.bf16 %v4196, %v4195
        %v4217 = vpack.c.bf16 %v4198, %v4197
        %v4218 = vpack.c.bf16 %v4200, %v4199
        %v4219 = vpack.c.bf16 %v4202, %v4201
        %v4220 = vpack.c.bf16 %v4204, %v4203
        %s4221 = scalar_lea.vmem [#allocation8], 112
        %v4222 = vld [vmem:[%s4221] sm:$0xf]
        %v4223 = vld [vmem:[%s4221 + $0x4] sm:$0xf]
        %v4224 = vld [vmem:[%s4221 + $0x8] sm:$0xf]
        %v4225 = vld [vmem:[%s4221 + $0xc] sm:$0xf]
        %v4230 = vunpack.c.l.b16 %v4222
        %v4231 = vunpack.c.l.b16 %v4223
        %v4232 = vunpack.c.l.b16 %v4224
        %v4233 = vunpack.c.l.b16 %v4225
        %v4234 = vpack.c.b16 %v4231, %v4230
        %v4235 = vpack.c.b16 %v4233, %v4232
        %v4239 = vsel %vm313, %v4205, 0
        %v4242 = vsel %vm313, %v4206, 0
        %v4245 = vsel %vm313, %v4207, 0
        %v4248 = vsel %vm313, %v4208, 0
        %v4251 = vsel %vm313, %v4209, 0
        %v4254 = vsel %vm313, %v4210, 0
        %v4257 = vsel %vm313, %v4211, 0
        %v4260 = vsel %vm313, %v4212, 0
        %v4263 = vsel %vm313, %v4213, 0
        %v4266 = vsel %vm313, %v4214, 0
        %v4269 = vsel %vm313, %v4215, 0
        %v4272 = vsel %vm313, %v4216, 0
        %v4275 = vsel %vm313, %v4217, 0
        %v4278 = vsel %vm313, %v4218, 0
        %v4281 = vsel %vm313, %v4219, 0
        %v4284 = vsel %vm313, %v4220, 0
        %4286 = vmatpush.bf16.msra.mxu0 0
        %4287 = vmatpush.bf16.msra.mxu0 0
        %4288 = vmatpush.bf16.msra.mxu0 0
        %4289 = vmatpush.bf16.msra.mxu0 0
        %4290 = vmatpush.bf16.msra.mxu0 0
        %4291 = vmatpush.bf16.msra.mxu0 0
        %4292 = vmatpush.bf16.msra.mxu0 %v4235
        %4293 = vmatpush.bf16.msra.mxu0 %v4234
        %4294 = vmatmul.bf16.gmra.mxu0 %v4239
        %v4295 = vpop.f32.mrf.mxu0
        %v4296 = vadd.f32 0.0, %v4295
        %v4297 = vpop.f32.mrf.mxu0
        %v4298 = vadd.f32 0.0, %v4297
        %4299 = vmatmul.bf16.gmra.mxu0 %v4242
        %v4300 = vpop.f32.mrf.mxu0
        %v4301 = vadd.f32 0.0, %v4300
        %v4302 = vpop.f32.mrf.mxu0
        %v4303 = vadd.f32 0.0, %v4302
        %4304 = vmatmul.bf16.gmra.mxu0 %v4245
        %v4305 = vpop.f32.mrf.mxu0
        %v4306 = vadd.f32 0.0, %v4305
        %v4307 = vpop.f32.mrf.mxu0
        %v4308 = vadd.f32 0.0, %v4307
        %4309 = vmatmul.bf16.gmra.mxu0 %v4248
        %v4310 = vpop.f32.mrf.mxu0
        %v4311 = vadd.f32 0.0, %v4310
        %v4312 = vpop.f32.mrf.mxu0
        %v4313 = vadd.f32 0.0, %v4312
        %4314 = vmatmul.bf16.gmra.mxu0 %v4251
        %v4315 = vpop.f32.mrf.mxu0
        %v4316 = vadd.f32 0.0, %v4315
        %v4317 = vpop.f32.mrf.mxu0
        %v4318 = vadd.f32 0.0, %v4317
        %4319 = vmatmul.bf16.gmra.mxu0 %v4254
        %v4320 = vpop.f32.mrf.mxu0
        %v4321 = vadd.f32 0.0, %v4320
        %v4322 = vpop.f32.mrf.mxu0
        %v4323 = vadd.f32 0.0, %v4322
        %4324 = vmatmul.bf16.gmra.mxu0 %v4257
        %v4325 = vpop.f32.mrf.mxu0
        %v4326 = vadd.f32 0.0, %v4325
        %v4327 = vpop.f32.mrf.mxu0
        %v4328 = vadd.f32 0.0, %v4327
        %4329 = vmatmul.bf16.gmra.mxu0 %v4260
        %v4330 = vpop.f32.mrf.mxu0
        %v4331 = vadd.f32 0.0, %v4330
        %v4332 = vpop.f32.mrf.mxu0
        %v4333 = vadd.f32 0.0, %v4332
        %4334 = vmatmul.bf16.gmra.mxu0 %v4263
        %v4335 = vpop.f32.mrf.mxu0
        %v4336 = vadd.f32 0.0, %v4335
        %v4337 = vpop.f32.mrf.mxu0
        %v4338 = vadd.f32 0.0, %v4337
        %4339 = vmatmul.bf16.gmra.mxu0 %v4266
        %v4340 = vpop.f32.mrf.mxu0
        %v4341 = vadd.f32 0.0, %v4340
        %v4342 = vpop.f32.mrf.mxu0
        %v4343 = vadd.f32 0.0, %v4342
        %4344 = vmatmul.bf16.gmra.mxu0 %v4269
        %v4345 = vpop.f32.mrf.mxu0
        %v4346 = vadd.f32 0.0, %v4345
        %v4347 = vpop.f32.mrf.mxu0
        %v4348 = vadd.f32 0.0, %v4347
        %4349 = vmatmul.bf16.gmra.mxu0 %v4272
        %v4350 = vpop.f32.mrf.mxu0
        %v4351 = vadd.f32 0.0, %v4350
        %v4352 = vpop.f32.mrf.mxu0
        %v4353 = vadd.f32 0.0, %v4352
        %4354 = vmatmul.bf16.gmra.mxu0 %v4275
        %v4355 = vpop.f32.mrf.mxu0
        %v4356 = vadd.f32 0.0, %v4355
        %v4357 = vpop.f32.mrf.mxu0
        %v4358 = vadd.f32 0.0, %v4357
        %4359 = vmatmul.bf16.gmra.mxu0 %v4278
        %v4360 = vpop.f32.mrf.mxu0
        %v4361 = vadd.f32 0.0, %v4360
        %v4362 = vpop.f32.mrf.mxu0
        %v4363 = vadd.f32 0.0, %v4362
        %4364 = vmatmul.bf16.gmra.mxu0 %v4281
        %v4365 = vpop.f32.mrf.mxu0
        %v4366 = vadd.f32 0.0, %v4365
        %v4367 = vpop.f32.mrf.mxu0
        %v4368 = vadd.f32 0.0, %v4367
        %4369 = vmatmul.bf16.gmra.mxu0 %v4284
        %v4370 = vpop.f32.mrf.mxu0
        %v4371 = vadd.f32 0.0, %v4370
        %v4372 = vpop.f32.mrf.mxu0
        %v4373 = vadd.f32 0.0, %v4372
        %4374 = vdwg.mxu0
        %v4375 = vadd.f32 %v4141, %v4296
        %v4376 = vadd.f32 %v4142, %v4298
        %v4377 = vadd.f32 %v4143, %v4301
        %v4378 = vadd.f32 %v4144, %v4303
        %v4379 = vadd.f32 %v4145, %v4306
        %v4380 = vadd.f32 %v4146, %v4308
        %v4381 = vadd.f32 %v4147, %v4311
        %v4382 = vadd.f32 %v4148, %v4313
        %v4383 = vadd.f32 %v4149, %v4316
        %v4384 = vadd.f32 %v4150, %v4318
        %v4385 = vadd.f32 %v4151, %v4321
        %v4386 = vadd.f32 %v4152, %v4323
        %v4387 = vadd.f32 %v4153, %v4326
        %v4388 = vadd.f32 %v4154, %v4328
        %v4389 = vadd.f32 %v4155, %v4331
        %v4390 = vadd.f32 %v4156, %v4333
        %v4391 = vadd.f32 %v4157, %v4336
        %v4392 = vadd.f32 %v4158, %v4338
        %v4393 = vadd.f32 %v4159, %v4341
        %v4394 = vadd.f32 %v4160, %v4343
        %v4395 = vadd.f32 %v4161, %v4346
        %v4396 = vadd.f32 %v4162, %v4348
        %v4397 = vadd.f32 %v4163, %v4351
        %v4398 = vadd.f32 %v4164, %v4353
        %v4399 = vadd.f32 %v4165, %v4356
        %v4400 = vadd.f32 %v4166, %v4358
        %v4401 = vadd.f32 %v4167, %v4361
        %v4402 = vadd.f32 %v4168, %v4363
        %v4403 = vadd.f32 %v4169, %v4366
        %v4404 = vadd.f32 %v4170, %v4368
        %v4405 = vadd.f32 %v4171, %v4371
        %v4406 = vadd.f32 %v4172, %v4373
        %v4407 = vld [vmem:[%s3938 + $0x2] sm:$0xff]
        %v4408 = vld [vmem:[%s3938 + $0xa] sm:$0xff]
        %v4409 = vld [vmem:[%s3938 + $0x1a] sm:$0xff]
        %v4410 = vld [vmem:[%s3938 + $0x22] sm:$0xff]
        %v4411 = vld [vmem:[%s3938 + $0x32] sm:$0xff]
        %v4412 = vld [vmem:[%s3938 + $0x3a] sm:$0xff]
        %v4413 = vld [vmem:[%s3938 + $0x4a] sm:$0xff]
        %v4414 = vld [vmem:[%s3938 + $0x52] sm:$0xff]
        %v4415 = vld [vmem:[%s3938 + $0x62] sm:$0xff]
        %v4416 = vld [vmem:[%s3938 + $0x6a] sm:$0xff]
        %v4417 = vld [vmem:[%s3938 + $0x7a] sm:$0xff]
        %v4418 = vld [vmem:[%s3938 + $0x82] sm:$0xff]
        %v4419 = vld [vmem:[%s3938 + $0x92] sm:$0xff]
        %v4420 = vld [vmem:[%s3938 + $0x9a] sm:$0xff]
        %v4421 = vld [vmem:[%s3938 + $0xaa] sm:$0xff]
        %v4422 = vld [vmem:[%s3938 + $0xb2] sm:$0xff]
        %v4423 = vld [vmem:[%s3938 + $0xc2] sm:$0xff]
        %v4424 = vld [vmem:[%s3938 + $0xca] sm:$0xff]
        %v4425 = vld [vmem:[%s3938 + $0xda] sm:$0xff]
        %v4426 = vld [vmem:[%s3938 + $0xe2] sm:$0xff]
        %v4427 = vld [vmem:[%s3938 + $0xf2] sm:$0xff]
        %v4428 = vld [vmem:[%s3938 + $0xfa] sm:$0xff]
        %v4429 = vld [vmem:[%s3938 + $0x10a] sm:$0xff]
        %v4430 = vld [vmem:[%s3938 + $0x112] sm:$0xff]
        %v4431 = vld [vmem:[%s3938 + $0x122] sm:$0xff]
        %v4432 = vld [vmem:[%s3938 + $0x12a] sm:$0xff]
        %v4433 = vld [vmem:[%s3938 + $0x13a] sm:$0xff]
        %v4434 = vld [vmem:[%s3938 + $0x142] sm:$0xff]
        %v4435 = vld [vmem:[%s3938 + $0x152] sm:$0xff]
        %v4436 = vld [vmem:[%s3938 + $0x15a] sm:$0xff]
        %v4437 = vld [vmem:[%s3938 + $0x16a] sm:$0xff]
        %v4438 = vld [vmem:[%s3938 + $0x172] sm:$0xff]
        %v4439 = vpack.c.bf16 %v4408, %v4407
        %v4440 = vpack.c.bf16 %v4410, %v4409
        %v4441 = vpack.c.bf16 %v4412, %v4411
        %v4442 = vpack.c.bf16 %v4414, %v4413
        %v4443 = vpack.c.bf16 %v4416, %v4415
        %v4444 = vpack.c.bf16 %v4418, %v4417
        %v4445 = vpack.c.bf16 %v4420, %v4419
        %v4446 = vpack.c.bf16 %v4422, %v4421
        %v4447 = vpack.c.bf16 %v4424, %v4423
        %v4448 = vpack.c.bf16 %v4426, %v4425
        %v4449 = vpack.c.bf16 %v4428, %v4427
        %v4450 = vpack.c.bf16 %v4430, %v4429
        %v4451 = vpack.c.bf16 %v4432, %v4431
        %v4452 = vpack.c.bf16 %v4434, %v4433
        %v4453 = vpack.c.bf16 %v4436, %v4435
        %v4454 = vpack.c.bf16 %v4438, %v4437
        %s4455 = scalar_lea.vmem [#allocation8], 128
        %v4456 = vld [vmem:[%s4455] sm:$0xf]
        %v4457 = vld [vmem:[%s4455 + $0x4] sm:$0xf]
        %v4458 = vld [vmem:[%s4455 + $0x8] sm:$0xf]
        %v4459 = vld [vmem:[%s4455 + $0xc] sm:$0xf]
        %v4464 = vunpack.c.l.b16 %v4456
        %v4465 = vunpack.c.l.b16 %v4457
        %v4466 = vunpack.c.l.b16 %v4458
        %v4467 = vunpack.c.l.b16 %v4459
        %v4468 = vpack.c.b16 %v4465, %v4464
        %v4469 = vpack.c.b16 %v4467, %v4466
        %v4473 = vsel %vm313, %v4439, 0
        %v4476 = vsel %vm313, %v4440, 0
        %v4479 = vsel %vm313, %v4441, 0
        %v4482 = vsel %vm313, %v4442, 0
        %v4485 = vsel %vm313, %v4443, 0
        %v4488 = vsel %vm313, %v4444, 0
        %v4491 = vsel %vm313, %v4445, 0
        %v4494 = vsel %vm313, %v4446, 0
        %v4497 = vsel %vm313, %v4447, 0
        %v4500 = vsel %vm313, %v4448, 0
        %v4503 = vsel %vm313, %v4449, 0
        %v4506 = vsel %vm313, %v4450, 0
        %v4509 = vsel %vm313, %v4451, 0
        %v4512 = vsel %vm313, %v4452, 0
        %v4515 = vsel %vm313, %v4453, 0
        %v4518 = vsel %vm313, %v4454, 0
        %4520 = vmatpush.bf16.msra.mxu0 0
        %4521 = vmatpush.bf16.msra.mxu0 0
        %4522 = vmatpush.bf16.msra.mxu0 0
        %4523 = vmatpush.bf16.msra.mxu0 0
        %4524 = vmatpush.bf16.msra.mxu0 0
        %4525 = vmatpush.bf16.msra.mxu0 0
        %4526 = vmatpush.bf16.msra.mxu0 %v4469
        %4527 = vmatpush.bf16.msra.mxu0 %v4468
        %4528 = vmatmul.bf16.gmra.mxu0 %v4473
        %v4529 = vpop.f32.mrf.mxu0
        %v4530 = vadd.f32 0.0, %v4529
        %v4531 = vpop.f32.mrf.mxu0
        %v4532 = vadd.f32 0.0, %v4531
        %4533 = vmatmul.bf16.gmra.mxu0 %v4476
        %v4534 = vpop.f32.mrf.mxu0
        %v4535 = vadd.f32 0.0, %v4534
        %v4536 = vpop.f32.mrf.mxu0
        %v4537 = vadd.f32 0.0, %v4536
        %4538 = vmatmul.bf16.gmra.mxu0 %v4479
        %v4539 = vpop.f32.mrf.mxu0
        %v4540 = vadd.f32 0.0, %v4539
        %v4541 = vpop.f32.mrf.mxu0
        %v4542 = vadd.f32 0.0, %v4541
        %4543 = vmatmul.bf16.gmra.mxu0 %v4482
        %v4544 = vpop.f32.mrf.mxu0
        %v4545 = vadd.f32 0.0, %v4544
        %v4546 = vpop.f32.mrf.mxu0
        %v4547 = vadd.f32 0.0, %v4546
        %4548 = vmatmul.bf16.gmra.mxu0 %v4485
        %v4549 = vpop.f32.mrf.mxu0
        %v4550 = vadd.f32 0.0, %v4549
        %v4551 = vpop.f32.mrf.mxu0
        %v4552 = vadd.f32 0.0, %v4551
        %4553 = vmatmul.bf16.gmra.mxu0 %v4488
        %v4554 = vpop.f32.mrf.mxu0
        %v4555 = vadd.f32 0.0, %v4554
        %v4556 = vpop.f32.mrf.mxu0
        %v4557 = vadd.f32 0.0, %v4556
        %4558 = vmatmul.bf16.gmra.mxu0 %v4491
        %v4559 = vpop.f32.mrf.mxu0
        %v4560 = vadd.f32 0.0, %v4559
        %v4561 = vpop.f32.mrf.mxu0
        %v4562 = vadd.f32 0.0, %v4561
        %4563 = vmatmul.bf16.gmra.mxu0 %v4494
        %v4564 = vpop.f32.mrf.mxu0
        %v4565 = vadd.f32 0.0, %v4564
        %v4566 = vpop.f32.mrf.mxu0
        %v4567 = vadd.f32 0.0, %v4566
        %4568 = vmatmul.bf16.gmra.mxu0 %v4497
        %v4569 = vpop.f32.mrf.mxu0
        %v4570 = vadd.f32 0.0, %v4569
        %v4571 = vpop.f32.mrf.mxu0
        %v4572 = vadd.f32 0.0, %v4571
        %4573 = vmatmul.bf16.gmra.mxu0 %v4500
        %v4574 = vpop.f32.mrf.mxu0
        %v4575 = vadd.f32 0.0, %v4574
        %v4576 = vpop.f32.mrf.mxu0
        %v4577 = vadd.f32 0.0, %v4576
        %4578 = vmatmul.bf16.gmra.mxu0 %v4503
        %v4579 = vpop.f32.mrf.mxu0
        %v4580 = vadd.f32 0.0, %v4579
        %v4581 = vpop.f32.mrf.mxu0
        %v4582 = vadd.f32 0.0, %v4581
        %4583 = vmatmul.bf16.gmra.mxu0 %v4506
        %v4584 = vpop.f32.mrf.mxu0
        %v4585 = vadd.f32 0.0, %v4584
        %v4586 = vpop.f32.mrf.mxu0
        %v4587 = vadd.f32 0.0, %v4586
        %4588 = vmatmul.bf16.gmra.mxu0 %v4509
        %v4589 = vpop.f32.mrf.mxu0
        %v4590 = vadd.f32 0.0, %v4589
        %v4591 = vpop.f32.mrf.mxu0
        %v4592 = vadd.f32 0.0, %v4591
        %4593 = vmatmul.bf16.gmra.mxu0 %v4512
        %v4594 = vpop.f32.mrf.mxu0
        %v4595 = vadd.f32 0.0, %v4594
        %v4596 = vpop.f32.mrf.mxu0
        %v4597 = vadd.f32 0.0, %v4596
        %4598 = vmatmul.bf16.gmra.mxu0 %v4515
        %v4599 = vpop.f32.mrf.mxu0
        %v4600 = vadd.f32 0.0, %v4599
        %v4601 = vpop.f32.mrf.mxu0
        %v4602 = vadd.f32 0.0, %v4601
        %4603 = vmatmul.bf16.gmra.mxu0 %v4518
        %v4604 = vpop.f32.mrf.mxu0
        %v4605 = vadd.f32 0.0, %v4604
        %v4606 = vpop.f32.mrf.mxu0
        %v4607 = vadd.f32 0.0, %v4606
        %4608 = vdwg.mxu0
        %v4609 = vadd.f32 %v4375, %v4530
        %v4610 = vadd.f32 %v4376, %v4532
        %v4611 = vadd.f32 %v4377, %v4535
        %v4612 = vadd.f32 %v4378, %v4537
        %v4613 = vadd.f32 %v4379, %v4540
        %v4614 = vadd.f32 %v4380, %v4542
        %v4615 = vadd.f32 %v4381, %v4545
        %v4616 = vadd.f32 %v4382, %v4547
        %v4617 = vadd.f32 %v4383, %v4550
        %v4618 = vadd.f32 %v4384, %v4552
        %v4619 = vadd.f32 %v4385, %v4555
        %v4620 = vadd.f32 %v4386, %v4557
        %v4621 = vadd.f32 %v4387, %v4560
        %v4622 = vadd.f32 %v4388, %v4562
        %v4623 = vadd.f32 %v4389, %v4565
        %v4624 = vadd.f32 %v4390, %v4567
        %v4625 = vadd.f32 %v4391, %v4570
        %v4626 = vadd.f32 %v4392, %v4572
        %v4627 = vadd.f32 %v4393, %v4575
        %v4628 = vadd.f32 %v4394, %v4577
        %v4629 = vadd.f32 %v4395, %v4580
        %v4630 = vadd.f32 %v4396, %v4582
        %v4631 = vadd.f32 %v4397, %v4585
        %v4632 = vadd.f32 %v4398, %v4587
        %v4633 = vadd.f32 %v4399, %v4590
        %v4634 = vadd.f32 %v4400, %v4592
        %v4635 = vadd.f32 %v4401, %v4595
        %v4636 = vadd.f32 %v4402, %v4597
        %v4637 = vadd.f32 %v4403, %v4600
        %v4638 = vadd.f32 %v4404, %v4602
        %v4639 = vadd.f32 %v4405, %v4605
        %v4640 = vadd.f32 %v4406, %v4607
        %v4641 = vld [vmem:[%s4] sm:$0x1]
        %v4643 = vperm.slane %v4641, 0
        %v4645 = vadd.f32 %v4609, %v4643
        %v4646 = vadd.f32 %v4610, %v4643
        %v4647 = vadd.f32 %v4611, %v4643
        %v4648 = vadd.f32 %v4612, %v4643
        %v4649 = vadd.f32 %v4613, %v4643
        %v4650 = vadd.f32 %v4614, %v4643
        %v4651 = vadd.f32 %v4615, %v4643
        %v4652 = vadd.f32 %v4616, %v4643
        %v4653 = vadd.f32 %v4617, %v4643
        %v4654 = vadd.f32 %v4618, %v4643
        %v4655 = vadd.f32 %v4619, %v4643
        %v4656 = vadd.f32 %v4620, %v4643
        %v4657 = vadd.f32 %v4621, %v4643
        %v4658 = vadd.f32 %v4622, %v4643
        %v4659 = vadd.f32 %v4623, %v4643
        %v4660 = vadd.f32 %v4624, %v4643
        %v4661 = vadd.f32 %v4625, %v4643
        %v4662 = vadd.f32 %v4626, %v4643
        %v4663 = vadd.f32 %v4627, %v4643
        %v4664 = vadd.f32 %v4628, %v4643
        %v4665 = vadd.f32 %v4629, %v4643
        %v4666 = vadd.f32 %v4630, %v4643
        %v4667 = vadd.f32 %v4631, %v4643
        %v4668 = vadd.f32 %v4632, %v4643
        %v4669 = vadd.f32 %v4633, %v4643
        %v4670 = vadd.f32 %v4634, %v4643
        %v4671 = vadd.f32 %v4635, %v4643
        %v4672 = vadd.f32 %v4636, %v4643
        %v4673 = vadd.f32 %v4637, %v4643
        %v4674 = vadd.f32 %v4638, %v4643
        %v4675 = vadd.f32 %v4639, %v4643
        %v4676 = vadd.f32 %v4640, %v4643
        %v4677 = vadd.f32 %v4645, %v281
        %v4678 = vadd.f32 %v4646, %v282
        %v4679 = vadd.f32 %v4647, %v283
        %v4680 = vadd.f32 %v4648, %v284
        %v4681 = vadd.f32 %v4649, %v285
        %v4682 = vadd.f32 %v4650, %v286
        %v4683 = vadd.f32 %v4651, %v287
        %v4684 = vadd.f32 %v4652, %v288
        %v4685 = vadd.f32 %v4653, %v289
        %v4686 = vadd.f32 %v4654, %v290
        %v4687 = vadd.f32 %v4655, %v291
        %v4688 = vadd.f32 %v4656, %v292
        %v4689 = vadd.f32 %v4657, %v293
        %v4690 = vadd.f32 %v4658, %v294
        %v4691 = vadd.f32 %v4659, %v295
        %v4692 = vadd.f32 %v4660, %v296
        %v4693 = vadd.f32 %v4661, %v297
        %v4694 = vadd.f32 %v4662, %v298
        %v4695 = vadd.f32 %v4663, %v299
        %v4696 = vadd.f32 %v4664, %v300
        %v4697 = vadd.f32 %v4665, %v301
        %v4698 = vadd.f32 %v4666, %v302
        %v4699 = vadd.f32 %v4667, %v303
        %v4700 = vadd.f32 %v4668, %v304
        %v4701 = vadd.f32 %v4669, %v305
        %v4702 = vadd.f32 %v4670, %v306
        %v4703 = vadd.f32 %v4671, %v307
        %v4704 = vadd.f32 %v4672, %v308
        %v4705 = vadd.f32 %v4673, %v309
        %v4706 = vadd.f32 %v4674, %v310
        %v4707 = vadd.f32 %v4675, %v311
        %v4708 = vadd.f32 %v4676, %v312
        %v4709 = vmax.f32 %v4677, 0.0
        %v4710 = vmax.f32 %v4678, 0.0
        %v4711 = vmax.f32 %v4679, 0.0
        %v4712 = vmax.f32 %v4680, 0.0
        %v4713 = vmax.f32 %v4681, 0.0
        %v4714 = vmax.f32 %v4682, 0.0
        %v4715 = vmax.f32 %v4683, 0.0
        %v4716 = vmax.f32 %v4684, 0.0
        %v4717 = vmax.f32 %v4685, 0.0
        %v4718 = vmax.f32 %v4686, 0.0
        %v4719 = vmax.f32 %v4687, 0.0
        %v4720 = vmax.f32 %v4688, 0.0
        %v4721 = vmax.f32 %v4689, 0.0
        %v4722 = vmax.f32 %v4690, 0.0
        %v4723 = vmax.f32 %v4691, 0.0
        %v4724 = vmax.f32 %v4692, 0.0
        %v4725 = vmax.f32 %v4693, 0.0
        %v4726 = vmax.f32 %v4694, 0.0
        %v4727 = vmax.f32 %v4695, 0.0
        %v4728 = vmax.f32 %v4696, 0.0
        %v4729 = vmax.f32 %v4697, 0.0
        %v4730 = vmax.f32 %v4698, 0.0
        %v4731 = vmax.f32 %v4699, 0.0
        %v4732 = vmax.f32 %v4700, 0.0
        %v4733 = vmax.f32 %v4701, 0.0
        %v4734 = vmax.f32 %v4702, 0.0
        %v4735 = vmax.f32 %v4703, 0.0
        %v4736 = vmax.f32 %v4704, 0.0
        %v4737 = vmax.f32 %v4705, 0.0
        %v4738 = vmax.f32 %v4706, 0.0
        %v4739 = vmax.f32 %v4707, 0.0
        %v4740 = vmax.f32 %v4708, 0.0
        %4741 = vst.msk [vmem:[%s279] sm:$0xff] %vm313, %v4709
        %4742 = vst.msk [vmem:[%s279 + $0x8] sm:$0xff] %vm313, %v4710
        %4743 = vst.msk [vmem:[%s279 + $0x10] sm:$0xff] %vm313, %v4711
        %4744 = vst.msk [vmem:[%s279 + $0x18] sm:$0xff] %vm313, %v4712
        %4745 = vst.msk [vmem:[%s279 + $0x20] sm:$0xff] %vm313, %v4713
        %4746 = vst.msk [vmem:[%s279 + $0x28] sm:$0xff] %vm313, %v4714
        %4747 = vst.msk [vmem:[%s279 + $0x30] sm:$0xff] %vm313, %v4715
        %4748 = vst.msk [vmem:[%s279 + $0x38] sm:$0xff] %vm313, %v4716
        %4749 = vst.msk [vmem:[%s279 + $0x40] sm:$0xff] %vm313, %v4717
        %4750 = vst.msk [vmem:[%s279 + $0x48] sm:$0xff] %vm313, %v4718
        %4751 = vst.msk [vmem:[%s279 + $0x50] sm:$0xff] %vm313, %v4719
        %4752 = vst.msk [vmem:[%s279 + $0x58] sm:$0xff] %vm313, %v4720
        %4753 = vst.msk [vmem:[%s279 + $0x60] sm:$0xff] %vm313, %v4721
        %4754 = vst.msk [vmem:[%s279 + $0x68] sm:$0xff] %vm313, %v4722
        %4755 = vst.msk [vmem:[%s279 + $0x70] sm:$0xff] %vm313, %v4723
        %4756 = vst.msk [vmem:[%s279 + $0x78] sm:$0xff] %vm313, %v4724
        %4757 = vst.msk [vmem:[%s279 + $0x80] sm:$0xff] %vm313, %v4725
        %4758 = vst.msk [vmem:[%s279 + $0x88] sm:$0xff] %vm313, %v4726
        %4759 = vst.msk [vmem:[%s279 + $0x90] sm:$0xff] %vm313, %v4727
        %4760 = vst.msk [vmem:[%s279 + $0x98] sm:$0xff] %vm313, %v4728
        %4761 = vst.msk [vmem:[%s279 + $0xa0] sm:$0xff] %vm313, %v4729
        %4762 = vst.msk [vmem:[%s279 + $0xa8] sm:$0xff] %vm313, %v4730
        %4763 = vst.msk [vmem:[%s279 + $0xb0] sm:$0xff] %vm313, %v4731
        %4764 = vst.msk [vmem:[%s279 + $0xb8] sm:$0xff] %vm313, %v4732
        %4765 = vst.msk [vmem:[%s279 + $0xc0] sm:$0xff] %vm313, %v4733
        %4766 = vst.msk [vmem:[%s279 + $0xc8] sm:$0xff] %vm313, %v4734
        %4767 = vst.msk [vmem:[%s279 + $0xd0] sm:$0xff] %vm313, %v4735
        %4768 = vst.msk [vmem:[%s279 + $0xd8] sm:$0xff] %vm313, %v4736
        %4769 = vst.msk [vmem:[%s279 + $0xe0] sm:$0xff] %vm313, %v4737
        %4770 = vst.msk [vmem:[%s279 + $0xe8] sm:$0xff] %vm313, %v4738
        %4771 = vst.msk [vmem:[%s279 + $0xf0] sm:$0xff] %vm313, %v4739
        %4772 = vst.msk [vmem:[%s279 + $0xf8] sm:$0xff] %vm313, %v4740
        %p4773 = scmp.lt.s32.totalorder %s20, 1
        %s4774 = scalar_select %p4773, %s20, 1
        %s4775 = smul.addr %s4774, 32
        %s4776 = smul.addr %s4775, 8
        %s4777 = scalar_lea.vmem %s5, %s4776
        // Predicated region
        $region53: #{_lambda_.2} parent=39 // pred_check
          %p4778 = pneg %p148
        $region54: #{_lambda_.2} parent=39 // pred_check_branch
          %4780 = sbr.rel (%p4778) target = $region56
        $region55: #{_lambda_.2} parent=39 // pred_region
          _
        $region56: #{_lambda_.2} parent=39 // pred_fallthru
          _
      $region40: #{_lambda_.2} parent=5 // pred_fallthru
        _
      %p4781 = scmp.le.s32.totalorder 2, %s15
      // Predicated region
      $region57: #{_lambda_.2} parent=5 // pred_check
        %p4782 = pneg %p4781
      $region58: #{_lambda_.2} parent=5 // pred_check_branch
        %4784 = sbr.rel (%p4782) target = $region60
      $region59: #{_lambda_.2} parent=5 // pred_region
        %s4785 = ssub.s32 %s15, 2
        // Predicated region
        $region61: #{_lambda_.2} parent=59 // pred_check
          %p4786 = pneg %p154
        $region62: #{_lambda_.2} parent=59 // pred_check_branch
          %4788 = sbr.rel (%p4786) target = $region64
        $region63: #{_lambda_.2} parent=59 // pred_region
          %p4789 = scmp.lt.s32.totalorder %s21, 1
          %s4790 = scalar_select %p4789, %s21, 1
          %s4791 = smul.addr %s4790, 32
          %s4792 = smul.addr %s4791, 8
          %s4793 = scalar_lea.vmem %s5, %s4792
        $region64: #{_lambda_.2} parent=59 // pred_fallthru
          _
      $region60: #{_lambda_.2} parent=5 // pred_fallthru
        _
    $region6: #{_lambda_.2} parent=1 // loop_footer
      %s19 = sadd.s32 1, %s15
    $region7: #{_lambda_.2} parent=1 // loop_footer_branch
      %14 = sbr.rel target = $region3
    $region8: #{_lambda_.2} parent=1 // loop_exit
      _
    %4794 = vsyncpa [#allocation5], 1
    %s4795 = scalar_lea.sflag [#allocation5], 1
    %4796 = vsyncpa %s4795, 1
    %4797 = vsyncpa [#allocation7], 1

// kernel: _lambda_.3
$region0: #{_lambda_.3}
  #allocation0 [shape = 'u32[]', space=smem, size = 0x4, offset = 0x4, fixed_abs, tag = 'smem constant byte address 0x4 - core index']
  #allocation1 [shape = 'u32[72,128]{1,0:T(1,128)}', space=vmem, size = 0x9000, scoped, tag = 'internal scratch']
  #allocation2 [shape = 'f32[18,18,32]{2,1,0:T(8,128)}', space=vmem, size = 0x36000, scoped, tag = 'scratch operand']
  #allocation3 [shape = 'f32[18,18,64]{2,1,0:T(8,128)}', space=vmem, size = 0x36000, scoped, tag = 'scratch operand']
  %s0 = inlined_call_operand.vmem [shape: f32[2,16,16,32], index: 0, kind: input, shape index: {}]
  %s1 = inlined_call_operand.hbm [shape: bf16[9,32,64], index: 1, kind: input, shape index: {}]
  %s2 = inlined_call_operand.hbm [shape: f32[1,64], index: 2, kind: input, shape index: {}]
  %s3 = inlined_call_operand.hbm [shape: bf16[9,64,64], index: 3, kind: input, shape index: {}]
  %s4 = inlined_call_operand.vmem [shape: f32[1,64], index: 4, kind: input, shape index: {}]
  %s5 = inlined_call_operand.hbm [shape: bf16[32,64], index: 5, kind: input, shape index: {}]
  %s6 = inlined_call_operand.vmem [shape: f32[1,64], index: 6, kind: input, shape index: {}]
  %s7 = inlined_call_operand.hbm [shape: f32[2,16,16,64], index: 7, kind: output, shape index: {}]
  %s8 = sld [smem:[#allocation0]]
  $region77: #{_lambda_.3} parent=0
    _
  %s10 = ssub.s32 1, %s8
  %s11 = scalar_select 0, %s10, %s8
  $region1: #{_lambda_.3} parent=0
    #allocation4 [shape = 'u8[73728]{0}', space=vmem, size = 0x12000, scoped, tag = 'input window, operand 1, single buffered']
    #allocation5 [shape = 's32[2]{0}', space=sflag, size = 0x8, scoped, tag = 'scoped memory for _lambda_.3']
    #allocation6 [shape = 's32[2]{0}', space=sflag, size = 0x8, scoped, tag = 'scoped memory for _lambda_.3']
    #allocation7 [shape = 'u8[512]{0}', space=vmem, size = 0x400, scoped, tag = 'input window, operand 2, single buffered']
    #allocation8 [shape = 's32[1]{0}', space=sflag, size = 0x4, scoped, tag = 'scoped memory for _lambda_.3']
    #allocation9 [shape = 'u8[147456]{0}', space=vmem, size = 0x24000, scoped, tag = 'input window, operand 3, single buffered']
    #allocation10 [shape = 'u8[8192]{0}', space=vmem, size = 0x2000, scoped, tag = 'input window, operand 5, single buffered']
    #allocation11 [shape = 's32[1]{0}', space=sflag, size = 0x4, scoped, tag = 'scoped memory for _lambda_.3']
    #allocation12 [shape = 'u8[262144]{0}', space=vmem, size = 0x40000, scoped, tag = 'output window, operand 0']
    %12 = vsyncpa [#allocation5], 0
    %13 = vsyncpa [#allocation8], 0
    %14 = vsyncpa [#allocation11], 0
    %15 = vsyncpa [#allocation6], 0
    %s16 = scalar_lea.sflag [#allocation6], 1
    %17 = vsyncpa %s16, 0
    loop: start=0, step=1, limit=4
    $region2: #{_lambda_.3} parent=1 // loop_pre_header
      _
    $region3: #{_lambda_.3} parent=1 // loop_header
      %s19 = sphi 0, %s23
      %p20 = scmp.ge.s32.totalorder %s19, 4
      %s29 = sphi 0, %s31
      %s32 = sphi 0, %s29
      %s33 = sphi 0, %s32
      %s49 = sphi 0, %s33
      %s53 = sphi 0, %s53
      %s55 = sphi 0, %s53
      %s56 = sphi 0, %s55
      %s70 = sphi 0, %s56
      %s74 = sphi 0, %s74
      %s76 = sphi 0, %s74
      %s77 = sphi 0, %s76
      %s91 = sphi 0, %s77
      %s95 = sphi 0, %s95
      %s97 = sphi 0, %s95
      %s98 = sphi 0, %s97
      %s112 = sphi 0, %s98
      %s116 = sphi 0, %s116
      %s118 = sphi 0, %s116
      %s119 = sphi 0, %s118
      %s133 = sphi 0, %s119
      %s137 = sphi 0, %s137
      %s139 = sphi 0, %s137
      %s140 = sphi 0, %s139
      %s154 = sphi 0, %s140
      %s158 = sphi 0, %s158
      %s160 = sphi 0, %s158
      %s161 = sphi 0, %s160
      %s175 = sphi 0, %s161
      %s181 = sphi 0, %s183
      %s184 = sphi 0, %s181
      %s185 = sphi 0, %s184
      %s201 = sphi 0, %s185
    $region4: #{_lambda_.3} parent=1 // loop_header_branch
      %22 = sbr.rel (%p20) target = $region8
    $region5: #{_lambda_.3} parent=1 // loop_body
      %s24 = ssub.s32 %s19, 1
      %s25 = ssub.s32 %s19, 2
      %s26 = sadd.s32 %s19, 1
      %s27 = ssub.s32 %s19, %s26
      %p28 = scmp.eq.s32.totalorder %s27, 0
      %s30 = sadd.s32 %s29, 1
      %s31 = scalar_select %p28, %s29, %s30
      %p34 = pneg %p28
      %p35 = scmp.eq.s32.totalorder %s19, 1
      %p36 = por %p34, %p35
      %p37 = scmp.ne.s32.totalorder %s29, %s32
      %p38 = scmp.eq.s32.totalorder %s19, 0
      %p39 = por %p37, %p38
      %p40 = scmp.ne.s32.totalorder %s29, %s32
      %p41 = scmp.eq.s32.totalorder %s24, 1
      %p42 = por %p40, %p41
      %p43 = scmp.ne.s32.totalorder %s32, %s33
      %p44 = scmp.eq.s32.totalorder %s24, 0
      %p45 = por %p43, %p44
      %p46 = scmp.ne.s32.totalorder %s32, %s33
      %p47 = scmp.eq.s32.totalorder %s25, 1
      %p48 = por %p46, %p47
      %p50 = scmp.ne.s32.totalorder %s33, %s49
      %p51 = scmp.eq.s32.totalorder %s25, 0
      %p52 = por %p50, %p51
      %s54 = sadd.s32 %s53, 1
      %p57 = scmp.eq.s32.totalorder %s19, 1
      %p58 = scmp.ne.s32.totalorder %s53, %s55
      %p59 = scmp.eq.s32.totalorder %s19, 0
      %p60 = por %p58, %p59
      %p61 = scmp.ne.s32.totalorder %s53, %s55
      %p62 = scmp.eq.s32.totalorder %s24, 1
      %p63 = por %p61, %p62
      %p64 = scmp.ne.s32.totalorder %s55, %s56
      %p65 = scmp.eq.s32.totalorder %s24, 0
      %p66 = por %p64, %p65
      %p67 = scmp.ne.s32.totalorder %s55, %s56
      %p68 = scmp.eq.s32.totalorder %s25, 1
      %p69 = por %p67, %p68
      %p71 = scmp.ne.s32.totalorder %s56, %s70
      %p72 = scmp.eq.s32.totalorder %s25, 0
      %p73 = por %p71, %p72
      %s75 = sadd.s32 %s74, 1
      %p78 = scmp.eq.s32.totalorder %s19, 1
      %p79 = scmp.ne.s32.totalorder %s74, %s76
      %p80 = scmp.eq.s32.totalorder %s19, 0
      %p81 = por %p79, %p80
      %p82 = scmp.ne.s32.totalorder %s74, %s76
      %p83 = scmp.eq.s32.totalorder %s24, 1
      %p84 = por %p82, %p83
      %p85 = scmp.ne.s32.totalorder %s76, %s77
      %p86 = scmp.eq.s32.totalorder %s24, 0
      %p87 = por %p85, %p86
      %p88 = scmp.ne.s32.totalorder %s76, %s77
      %p89 = scmp.eq.s32.totalorder %s25, 1
      %p90 = por %p88, %p89
      %p92 = scmp.ne.s32.totalorder %s77, %s91
      %p93 = scmp.eq.s32.totalorder %s25, 0
      %p94 = por %p92, %p93
      %s96 = sadd.s32 %s95, 1
      %p99 = scmp.eq.s32.totalorder %s19, 1
      %p100 = scmp.ne.s32.totalorder %s95, %s97
      %p101 = scmp.eq.s32.totalorder %s19, 0
      %p102 = por %p100, %p101
      %p103 = scmp.ne.s32.totalorder %s95, %s97
      %p104 = scmp.eq.s32.totalorder %s24, 1
      %p105 = por %p103, %p104
      %p106 = scmp.ne.s32.totalorder %s97, %s98
      %p107 = scmp.eq.s32.totalorder %s24, 0
      %p108 = por %p106, %p107
      %p109 = scmp.ne.s32.totalorder %s97, %s98
      %p110 = scmp.eq.s32.totalorder %s25, 1
      %p111 = por %p109, %p110
      %p113 = scmp.ne.s32.totalorder %s98, %s112
      %p114 = scmp.eq.s32.totalorder %s25, 0
      %p115 = por %p113, %p114
      %s117 = sadd.s32 %s116, 1
      %p120 = scmp.eq.s32.totalorder %s19, 1
      %p121 = scmp.ne.s32.totalorder %s116, %s118
      %p122 = scmp.eq.s32.totalorder %s19, 0
      %p123 = por %p121, %p122
      %p124 = scmp.ne.s32.totalorder %s116, %s118
      %p125 = scmp.eq.s32.totalorder %s24, 1
      %p126 = por %p124, %p125
      %p127 = scmp.ne.s32.totalorder %s118, %s119
      %p128 = scmp.eq.s32.totalorder %s24, 0
      %p129 = por %p127, %p128
      %p130 = scmp.ne.s32.totalorder %s118, %s119
      %p131 = scmp.eq.s32.totalorder %s25, 1
      %p132 = por %p130, %p131
      %p134 = scmp.ne.s32.totalorder %s119, %s133
      %p135 = scmp.eq.s32.totalorder %s25, 0
      %p136 = por %p134, %p135
      %s138 = sadd.s32 %s137, 1
      %p141 = scmp.eq.s32.totalorder %s19, 1
      %p142 = scmp.ne.s32.totalorder %s137, %s139
      %p143 = scmp.eq.s32.totalorder %s19, 0
      %p144 = por %p142, %p143
      %p145 = scmp.ne.s32.totalorder %s137, %s139
      %p146 = scmp.eq.s32.totalorder %s24, 1
      %p147 = por %p145, %p146
      %p148 = scmp.ne.s32.totalorder %s139, %s140
      %p149 = scmp.eq.s32.totalorder %s24, 0
      %p150 = por %p148, %p149
      %p151 = scmp.ne.s32.totalorder %s139, %s140
      %p152 = scmp.eq.s32.totalorder %s25, 1
      %p153 = por %p151, %p152
      %p155 = scmp.ne.s32.totalorder %s140, %s154
      %p156 = scmp.eq.s32.totalorder %s25, 0
      %p157 = por %p155, %p156
      %s159 = sadd.s32 %s158, 1
      %p162 = scmp.eq.s32.totalorder %s19, 1
      %p163 = scmp.ne.s32.totalorder %s158, %s160
      %p164 = scmp.eq.s32.totalorder %s19, 0
      %p165 = por %p163, %p164
      %p166 = scmp.ne.s32.totalorder %s158, %s160
      %p167 = scmp.eq.s32.totalorder %s24, 1
      %p168 = por %p166, %p167
      %p169 = scmp.ne.s32.totalorder %s160, %s161
      %p170 = scmp.eq.s32.totalorder %s24, 0
      %p171 = por %p169, %p170
      %p172 = scmp.ne.s32.totalorder %s160, %s161
      %p173 = scmp.eq.s32.totalorder %s25, 1
      %p174 = por %p172, %p173
      %p176 = scmp.ne.s32.totalorder %s161, %s175
      %p177 = scmp.eq.s32.totalorder %s25, 0
      %p178 = por %p176, %p177
      %s179 = ssub.s32 %s19, %s26
      %p180 = scmp.eq.s32.totalorder %s179, 0
      %s182 = sadd.s32 %s181, 1
      %s183 = scalar_select %p180, %s181, %s182
      %p186 = pneg %p180
      %p187 = scmp.eq.s32.totalorder %s19, 1
      %p188 = por %p186, %p187
      %p189 = scmp.ne.s32.totalorder %s181, %s184
      %p190 = scmp.eq.s32.totalorder %s19, 0
      %p191 = por %p189, %p190
      %p192 = scmp.ne.s32.totalorder %s181, %s184
      %p193 = scmp.eq.s32.totalorder %s24, 1
      %p194 = por %p192, %p193
      %p195 = scmp.ne.s32.totalorder %s184, %s185
      %p196 = scmp.eq.s32.totalorder %s24, 0
      %p197 = por %p195, %p196
      %p198 = scmp.ne.s32.totalorder %s184, %s185
      %p199 = scmp.eq.s32.totalorder %s25, 1
      %p200 = por %p198, %p199
      %p202 = scmp.ne.s32.totalorder %s185, %s201
      %p203 = scmp.eq.s32.totalorder %s25, 0
      %p204 = por %p202, %p203
      %p205 = scmp.le.s32.totalorder 1, %s19
      %p206 = scmp.lt.s32.totalorder %s19, 3
      %p207 = pnand %p205, %p206
      %p208 = pneg %p207
      // Predicated region
      $region9: #{_lambda_.3} parent=5 // pred_check
        _
      $region10: #{_lambda_.3} parent=5 // pred_check_branch
        %210 = sbr.rel (%p207) target = $region12
      $region11: #{_lambda_.3} parent=5 // pred_region
        %s211 = ssub.s32 %s19, 1
        // Predicated region
        $region13: #{_lambda_.3} parent=11 // pred_check
          %p212 = pneg %p66
        $region14: #{_lambda_.3} parent=11 // pred_check_branch
          %214 = sbr.rel (%p212) target = $region16
        $region15: #{_lambda_.3} parent=11 // pred_region
          %216 = vsyncadd [#allocation5], 0
          %s217 = sshll.u32 %s1, 4
          %s218 = int_to_ptr.hbm [resolvable:$true] %s217
          %s219 = sshll.u32 [#allocation4], 4
          %s220 = int_to_ptr.vmem [resolvable:$true] %s219
          %225 = dma.hbm_to_vmem [thread:$0]  %s218, 2304, %s220, [#allocation5], 64, 64, 4
        $region16: #{_lambda_.3} parent=11 // pred_fallthru
          _
        // Predicated region
        $region17: #{_lambda_.3} parent=11 // pred_check
          %p226 = pneg %p87
        $region18: #{_lambda_.3} parent=11 // pred_check_branch
          %228 = sbr.rel (%p226) target = $region20
        $region19: #{_lambda_.3} parent=11 // pred_region
          %230 = vsyncadd [#allocation8], 0
          %s232 = sshll.u32 %s2, 4
          %s233 = int_to_ptr.hbm [resolvable:$true] %s232
          %s234 = sshll.u32 [#allocation7], 4
          %s235 = int_to_ptr.vmem [resolvable:$true] %s234
          %237 = dma.hbm_to_vmem [thread:$0]  %s233, 16, %s235, [#allocation8]
        $region20: #{_lambda_.3} parent=11 // pred_fallthru
          _
        // Predicated region
        $region21: #{_lambda_.3} parent=11 // pred_check
          %p238 = pneg %p108
        $region22: #{_lambda_.3} parent=11 // pred_check_branch
          %240 = sbr.rel (%p238) target = $region24
        $region23: #{_lambda_.3} parent=11 // pred_region
          %242 = vsyncadd [#allocation8], 0
          %s243 = sshll.u32 %s3, 4
          %s244 = int_to_ptr.hbm [resolvable:$true] %s243
          %s245 = sshll.u32 [#allocation9], 4
          %s246 = int_to_ptr.vmem [resolvable:$true] %s245
          %251 = dma.hbm_to_vmem [thread:$0]  %s244, 4608, %s246, [#allocation8], 64, 64, 4
        $region24: #{_lambda_.3} parent=11 // pred_fallthru
          _
        // Predicated region
        $region25: #{_lambda_.3} parent=11 // pred_check
          %p252 = pneg %p129
        $region26: #{_lambda_.3} parent=11 // pred_check_branch
          %254 = sbr.rel (%p252) target = $region28
        $region27: #{_lambda_.3} parent=11 // pred_region
          _
        $region28: #{_lambda_.3} parent=11 // pred_fallthru
          _
        // Predicated region
        $region29: #{_lambda_.3} parent=11 // pred_check
          %p255 = pneg %p150
        $region30: #{_lambda_.3} parent=11 // pred_check_branch
          %257 = sbr.rel (%p255) target = $region32
        $region31: #{_lambda_.3} parent=11 // pred_region
          %259 = vsyncadd [#allocation11], 0
          %s260 = sshll.u32 %s5, 4
          %s261 = int_to_ptr.hbm [resolvable:$true] %s260
          %s262 = sshll.u32 [#allocation10], 4
          %s263 = int_to_ptr.vmem [resolvable:$true] %s262
          %268 = dma.hbm_to_vmem [thread:$0]  %s261, 256, %s263, [#allocation11], 64, 64, 4
        $region32: #{_lambda_.3} parent=11 // pred_fallthru
          _
        // Predicated region
        $region33: #{_lambda_.3} parent=11 // pred_check
          %p269 = pneg %p171
        $region34: #{_lambda_.3} parent=11 // pred_check_branch
          %271 = sbr.rel (%p269) target = $region36
        $region35: #{_lambda_.3} parent=11 // pred_region
          _
        $region36: #{_lambda_.3} parent=11 // pred_fallthru
          _
      $region12: #{_lambda_.3} parent=5 // pred_fallthru
        _
      %p272 = scmp.lt.s32.totalorder %s19, 2
      // Predicated region
      $region37: #{_lambda_.3} parent=5 // pred_check
        %p273 = pneg %p272
      $region38: #{_lambda_.3} parent=5 // pred_check_branch
        %275 = sbr.rel (%p273) target = $region40
      $region39: #{_lambda_.3} parent=5 // pred_region
        // Predicated region
        $region41: #{_lambda_.3} parent=39 // pred_check
          %p276 = pneg %p39
        $region42: #{_lambda_.3} parent=39 // pred_check_branch
          %278 = sbr.rel (%p276) target = $region44
        $region43: #{_lambda_.3} parent=39 // pred_region
          %p279 = scmp.lt.s32.totalorder %s19, 1
          %s280 = scalar_select %p279, %s19, 1
          %s281 = smul.addr %s280, 32
          %s282 = smul.addr %s281, 8
          %s283 = scalar_lea.vmem %s0, %s282
        $region44: #{_lambda_.3} parent=39 // pred_fallthru
          _
      $region40: #{_lambda_.3} parent=5 // pred_fallthru
        _
      %p284 = scmp.le.s32.totalorder 1, %s19
      %p285 = scmp.lt.s32.totalorder %s19, 3
      %p286 = pnand %p284, %p285
      %p287 = pneg %p286
      // Predicated region
      $region45: #{_lambda_.3} parent=5 // pred_check
        _
      $region46: #{_lambda_.3} parent=5 // pred_check_branch
        %289 = sbr.rel (%p286) target = $region48
      $region47: #{_lambda_.3} parent=5 // pred_region
        %s290 = ssub.s32 %s19, 1
        // Predicated region
        $region49: #{_lambda_.3} parent=47 // pred_check
          %p291 = pneg %p66
        $region50: #{_lambda_.3} parent=47 // pred_check_branch
          %293 = sbr.rel (%p291) target = $region52
        $region51: #{_lambda_.3} parent=47 // pred_region
          %295 = dma.done [#allocation5], 2304
        $region52: #{_lambda_.3} parent=47 // pred_fallthru
          _
        // Predicated region
        $region53: #{_lambda_.3} parent=47 // pred_check
          %p296 = pneg %p87
        $region54: #{_lambda_.3} parent=47 // pred_check_branch
          %298 = sbr.rel (%p296) target = $region56
        $region55: #{_lambda_.3} parent=47 // pred_region
          %300 = dma.done [#allocation8], 16
        $region56: #{_lambda_.3} parent=47 // pred_fallthru
          _
        // Predicated region
        $region57: #{_lambda_.3} parent=47 // pred_check
          %p301 = pneg %p108
        $region58: #{_lambda_.3} parent=47 // pred_check_branch
          %303 = sbr.rel (%p301) target = $region60
        $region59: #{_lambda_.3} parent=47 // pred_region
          %305 = dma.done [#allocation8], 4608
        $region60: #{_lambda_.3} parent=47 // pred_fallthru
          _
        // Predicated region
        $region61: #{_lambda_.3} parent=47 // pred_check
          %p306 = pneg %p150
        $region62: #{_lambda_.3} parent=47 // pred_check_branch
          %308 = sbr.rel (%p306) target = $region64
        $region63: #{_lambda_.3} parent=47 // pred_region
          %310 = dma.done [#allocation11], 256
        $region64: #{_lambda_.3} parent=47 // pred_fallthru
          _
        %p311 = scmp.lt.s32.totalorder %s24, 1
        %s312 = scalar_select %p311, %s24, 1
        %s313 = smul.addr %s312, 32
        %s314 = smul.addr %s313, 8
        %s315 = scalar_lea.vmem %s0, %s314
        %p316 = pneg %p45
        %p317 = pneg %p42
        %p318 = pneg %p66
        %p319 = pneg %p63
        %p320 = pneg %p87
        %p321 = pneg %p84
        %p322 = pneg %p108
        %p323 = pneg %p105
        %p324 = pneg %p129
        %p325 = pneg %p126
        %p326 = pneg %p150
        %p327 = pneg %p147
        %p328 = pneg %p171
        %p329 = pneg %p168
        %p330 = pneg %p197
        %p331 = pneg %p194
        %s332 = sand.u32 %s184, 1
        %s333 = scalar_lea.sflag [#allocation6], %s332
        %s334 = sand.u32 %s184, 1
        %s335 = smul.addr %s334, 256
        %s336 = scalar_lea.vmem [#allocation12], %s335
        %p337 = scmp.lt.s32.totalorder %s24, 1
        %s338 = scalar_select %p337, %s24, 1
        %s339 = smul.addr %s338, 32
        %s340 = smul.addr %s339, 8
        %s341 = scalar_lea.vmem %s0, %s340
        %v343 = vld [vmem:[%s341] sm:$0xff]
        %v344 = vld [vmem:[%s341 + $0x8] sm:$0xff]
        %v345 = vld [vmem:[%s341 + $0x10] sm:$0xff]
        %v346 = vld [vmem:[%s341 + $0x18] sm:$0xff]
        %v347 = vld [vmem:[%s341 + $0x20] sm:$0xff]
        %v348 = vld [vmem:[%s341 + $0x28] sm:$0xff]
        %v349 = vld [vmem:[%s341 + $0x30] sm:$0xff]
        %v350 = vld [vmem:[%s341 + $0x38] sm:$0xff]
        %v351 = vld [vmem:[%s341 + $0x40] sm:$0xff]
        %v352 = vld [vmem:[%s341 + $0x48] sm:$0xff]
        %v353 = vld [vmem:[%s341 + $0x50] sm:$0xff]
        %v354 = vld [vmem:[%s341 + $0x58] sm:$0xff]
        %v355 = vld [vmem:[%s341 + $0x60] sm:$0xff]
        %v356 = vld [vmem:[%s341 + $0x68] sm:$0xff]
        %v357 = vld [vmem:[%s341 + $0x70] sm:$0xff]
        %v358 = vld [vmem:[%s341 + $0x78] sm:$0xff]
        %v359 = vld [vmem:[%s341 + $0x80] sm:$0xff]
        %v360 = vld [vmem:[%s341 + $0x88] sm:$0xff]
        %v361 = vld [vmem:[%s341 + $0x90] sm:$0xff]
        %v362 = vld [vmem:[%s341 + $0x98] sm:$0xff]
        %v363 = vld [vmem:[%s341 + $0xa0] sm:$0xff]
        %v364 = vld [vmem:[%s341 + $0xa8] sm:$0xff]
        %v365 = vld [vmem:[%s341 + $0xb0] sm:$0xff]
        %v366 = vld [vmem:[%s341 + $0xb8] sm:$0xff]
        %v367 = vld [vmem:[%s341 + $0xc0] sm:$0xff]
        %v368 = vld [vmem:[%s341 + $0xc8] sm:$0xff]
        %v369 = vld [vmem:[%s341 + $0xd0] sm:$0xff]
        %v370 = vld [vmem:[%s341 + $0xd8] sm:$0xff]
        %v371 = vld [vmem:[%s341 + $0xe0] sm:$0xff]
        %v372 = vld [vmem:[%s341 + $0xe8] sm:$0xff]
        %v373 = vld [vmem:[%s341 + $0xf0] sm:$0xff]
        %v374 = vld [vmem:[%s341 + $0xf8] sm:$0xff]
        %vm375 = vcmask 261120
        %376 = vst.msk [vmem:[#allocation2] sm:$0xff] %vm375, 0.0
        %377 = vst.msk [vmem:[#allocation2 + $0x8] sm:$0xff] %vm375, 0.0
        %vm378 = vcmask 254976
        %379 = vst.msk [vmem:[#allocation2 + $0x10] sm:$0x3] %vm378, 0.0
        %380 = vst.msk [vmem:[#allocation2 + $0x18] sm:$0xff] %vm375, 0.0
        %381 = vst.msk [vmem:[#allocation2 + $0x20] sm:$0xff] %vm375, 0.0
        %382 = vst.msk [vmem:[#allocation2 + $0x28] sm:$0x3] %vm378, 0.0
        %383 = vst.msk [vmem:[#allocation2 + $0x30] sm:$0xff] %vm375, 0.0
        %384 = vst.msk [vmem:[#allocation2 + $0x38] sm:$0xff] %vm375, 0.0
        %385 = vst.msk [vmem:[#allocation2 + $0x40] sm:$0x3] %vm378, 0.0
        %386 = vst.msk [vmem:[#allocation2 + $0x48] sm:$0xff] %vm375, 0.0
        %387 = vst.msk [vmem:[#allocation2 + $0x50] sm:$0xff] %vm375, 0.0
        %388 = vst.msk [vmem:[#allocation2 + $0x58] sm:$0x3] %vm378, 0.0
        %389 = vst.msk [vmem:[#allocation2 + $0x60] sm:$0xff] %vm375, 0.0
        %390 = vst.msk [vmem:[#allocation2 + $0x68] sm:$0xff] %vm375, 0.0
        %391 = vst.msk [vmem:[#allocation2 + $0x70] sm:$0x3] %vm378, 0.0
        %392 = vst.msk [vmem:[#allocation2 + $0x78] sm:$0xff] %vm375, 0.0
        %393 = vst.msk [vmem:[#allocation2 + $0x80] sm:$0xff] %vm375, 0.0
        %394 = vst.msk [vmem:[#allocation2 + $0x88] sm:$0x3] %vm378, 0.0
        %395 = vst.msk [vmem:[#allocation2 + $0x90] sm:$0xff] %vm375, 0.0
        %396 = vst.msk [vmem:[#allocation2 + $0x98] sm:$0xff] %vm375, 0.0
        %397 = vst.msk [vmem:[#allocation2 + $0xa0] sm:$0x3] %vm378, 0.0
        %398 = vst.msk [vmem:[#allocation2 + $0xa8] sm:$0xff] %vm375, 0.0
        %399 = vst.msk [vmem:[#allocation2 + $0xb0] sm:$0xff] %vm375, 0.0
        %400 = vst.msk [vmem:[#allocation2 + $0xb8] sm:$0x3] %vm378, 0.0
        %401 = vst.msk [vmem:[#allocation2 + $0xc0] sm:$0xff] %vm375, 0.0
        %402 = vst.msk [vmem:[#allocation2 + $0xc8] sm:$0xff] %vm375, 0.0
        %403 = vst.msk [vmem:[#allocation2 + $0xd0] sm:$0x3] %vm378, 0.0
        %404 = vst.msk [vmem:[#allocation2 + $0xd8] sm:$0xff] %vm375, 0.0
        %405 = vst.msk [vmem:[#allocation2 + $0xe0] sm:$0xff] %vm375, 0.0
        %406 = vst.msk [vmem:[#allocation2 + $0xe8] sm:$0x3] %vm378, 0.0
        %407 = vst.msk [vmem:[#allocation2 + $0xf0] sm:$0xff] %vm375, 0.0
        %408 = vst.msk [vmem:[#allocation2 + $0xf8] sm:$0xff] %vm375, 0.0
        %409 = vst.msk [vmem:[#allocation2 + $0x100] sm:$0x3] %vm378, 0.0
        %410 = vst.msk [vmem:[#allocation2 + $0x108] sm:$0xff] %vm375, 0.0
        %411 = vst.msk [vmem:[#allocation2 + $0x110] sm:$0xff] %vm375, 0.0
        %412 = vst.msk [vmem:[#allocation2 + $0x118] sm:$0x3] %vm378, 0.0
        %413 = vst.msk [vmem:[#allocation2 + $0x120] sm:$0xff] %vm375, 0.0
        %414 = vst.msk [vmem:[#allocation2 + $0x128] sm:$0xff] %vm375, 0.0
        %415 = vst.msk [vmem:[#allocation2 + $0x130] sm:$0x3] %vm378, 0.0
        %416 = vst.msk [vmem:[#allocation2 + $0x138] sm:$0xff] %vm375, 0.0
        %417 = vst.msk [vmem:[#allocation2 + $0x140] sm:$0xff] %vm375, 0.0
        %418 = vst.msk [vmem:[#allocation2 + $0x148] sm:$0x3] %vm378, 0.0
        %419 = vst.msk [vmem:[#allocation2 + $0x150] sm:$0xff] %vm375, 0.0
        %420 = vst.msk [vmem:[#allocation2 + $0x158] sm:$0xff] %vm375, 0.0
        %421 = vst.msk [vmem:[#allocation2 + $0x160] sm:$0x3] %vm378, 0.0
        %422 = vst.msk [vmem:[#allocation2 + $0x168] sm:$0xff] %vm375, 0.0
        %423 = vst.msk [vmem:[#allocation2 + $0x170] sm:$0xff] %vm375, 0.0
        %424 = vst.msk [vmem:[#allocation2 + $0x178] sm:$0x3] %vm378, 0.0
        %425 = vst.msk [vmem:[#allocation2 + $0x180] sm:$0xff] %vm375, 0.0
        %426 = vst.msk [vmem:[#allocation2 + $0x188] sm:$0xff] %vm375, 0.0
        %427 = vst.msk [vmem:[#allocation2 + $0x190] sm:$0x3] %vm378, 0.0
        %428 = vst.msk [vmem:[#allocation2 + $0x198] sm:$0xff] %vm375, 0.0
        %429 = vst.msk [vmem:[#allocation2 + $0x1a0] sm:$0xff] %vm375, 0.0
        %430 = vst.msk [vmem:[#allocation2 + $0x1a8] sm:$0x3] %vm378, 0.0
        %s431 = scalar_lea.vmem [#allocation2], 24
        %432 = vst.msk [vmem:[%s431 + $0x1] sm:$0xff] %vm375, %v343
        %433 = vst.msk [vmem:[%s431 + $0x9] sm:$0xff] %vm375, %v344
        %434 = vst.msk [vmem:[%s431 + $0x19] sm:$0xff] %vm375, %v345
        %435 = vst.msk [vmem:[%s431 + $0x21] sm:$0xff] %vm375, %v346
        %436 = vst.msk [vmem:[%s431 + $0x31] sm:$0xff] %vm375, %v347
        %437 = vst.msk [vmem:[%s431 + $0x39] sm:$0xff] %vm375, %v348
        %438 = vst.msk [vmem:[%s431 + $0x49] sm:$0xff] %vm375, %v349
        %439 = vst.msk [vmem:[%s431 + $0x51] sm:$0xff] %vm375, %v350
        %440 = vst.msk [vmem:[%s431 + $0x61] sm:$0xff] %vm375, %v351
        %441 = vst.msk [vmem:[%s431 + $0x69] sm:$0xff] %vm375, %v352
        %442 = vst.msk [vmem:[%s431 + $0x79] sm:$0xff] %vm375, %v353
        %443 = vst.msk [vmem:[%s431 + $0x81] sm:$0xff] %vm375, %v354
        %444 = vst.msk [vmem:[%s431 + $0x91] sm:$0xff] %vm375, %v355
        %445 = vst.msk [vmem:[%s431 + $0x99] sm:$0xff] %vm375, %v356
        %446 = vst.msk [vmem:[%s431 + $0xa9] sm:$0xff] %vm375, %v357
        %447 = vst.msk [vmem:[%s431 + $0xb1] sm:$0xff] %vm375, %v358
        %448 = vst.msk [vmem:[%s431 + $0xc1] sm:$0xff] %vm375, %v359
        %449 = vst.msk [vmem:[%s431 + $0xc9] sm:$0xff] %vm375, %v360
        %450 = vst.msk [vmem:[%s431 + $0xd9] sm:$0xff] %vm375, %v361
        %451 = vst.msk [vmem:[%s431 + $0xe1] sm:$0xff] %vm375, %v362
        %452 = vst.msk [vmem:[%s431 + $0xf1] sm:$0xff] %vm375, %v363
        %453 = vst.msk [vmem:[%s431 + $0xf9] sm:$0xff] %vm375, %v364
        %454 = vst.msk [vmem:[%s431 + $0x109] sm:$0xff] %vm375, %v365
        %455 = vst.msk [vmem:[%s431 + $0x111] sm:$0xff] %vm375, %v366
        %456 = vst.msk [vmem:[%s431 + $0x121] sm:$0xff] %vm375, %v367
        %457 = vst.msk [vmem:[%s431 + $0x129] sm:$0xff] %vm375, %v368
        %458 = vst.msk [vmem:[%s431 + $0x139] sm:$0xff] %vm375, %v369
        %459 = vst.msk [vmem:[%s431 + $0x141] sm:$0xff] %vm375, %v370
        %460 = vst.msk [vmem:[%s431 + $0x151] sm:$0xff] %vm375, %v371
        %461 = vst.msk [vmem:[%s431 + $0x159] sm:$0xff] %vm375, %v372
        %462 = vst.msk [vmem:[%s431 + $0x169] sm:$0xff] %vm375, %v373
        %463 = vst.msk [vmem:[%s431 + $0x171] sm:$0xff] %vm375, %v374
        %v464 = vld [vmem:[#allocation2] sm:$0xff]
        %v465 = vld [vmem:[#allocation2 + $0x8] sm:$0xff]
        %v466 = vld [vmem:[#allocation2 + $0x18] sm:$0xff]
        %v467 = vld [vmem:[#allocation2 + $0x20] sm:$0xff]
        %v468 = vld [vmem:[#allocation2 + $0x30] sm:$0xff]
        %v469 = vld [vmem:[#allocation2 + $0x38] sm:$0xff]
        %v470 = vld [vmem:[#allocation2 + $0x48] sm:$0xff]
        %v471 = vld [vmem:[#allocation2 + $0x50] sm:$0xff]
        %v472 = vld [vmem:[#allocation2 + $0x60] sm:$0xff]
        %v473 = vld [vmem:[#allocation2 + $0x68] sm:$0xff]
        %v474 = vld [vmem:[#allocation2 + $0x78] sm:$0xff]
        %v475 = vld [vmem:[#allocation2 + $0x80] sm:$0xff]
        %v476 = vld [vmem:[#allocation2 + $0x90] sm:$0xff]
        %v477 = vld [vmem:[#allocation2 + $0x98] sm:$0xff]
        %v478 = vld [vmem:[#allocation2 + $0xa8] sm:$0xff]
        %v479 = vld [vmem:[#allocation2 + $0xb0] sm:$0xff]
        %v480 = vld [vmem:[#allocation2 + $0xc0] sm:$0xff]
        %v481 = vld [vmem:[#allocation2 + $0xc8] sm:$0xff]
        %v482 = vld [vmem:[#allocation2 + $0xd8] sm:$0xff]
        %v483 = vld [vmem:[#allocation2 + $0xe0] sm:$0xff]
        %v484 = vld [vmem:[#allocation2 + $0xf0] sm:$0xff]
        %v485 = vld [vmem:[#allocation2 + $0xf8] sm:$0xff]
        %v486 = vld [vmem:[#allocation2 + $0x108] sm:$0xff]
        %v487 = vld [vmem:[#allocation2 + $0x110] sm:$0xff]
        %v488 = vld [vmem:[#allocation2 + $0x120] sm:$0xff]
        %v489 = vld [vmem:[#allocation2 + $0x128] sm:$0xff]
        %v490 = vld [vmem:[#allocation2 + $0x138] sm:$0xff]
        %v491 = vld [vmem:[#allocation2 + $0x140] sm:$0xff]
        %v492 = vld [vmem:[#allocation2 + $0x150] sm:$0xff]
        %v493 = vld [vmem:[#allocation2 + $0x158] sm:$0xff]
        %v494 = vld [vmem:[#allocation2 + $0x168] sm:$0xff]
        %v495 = vld [vmem:[#allocation2 + $0x170] sm:$0xff]
        %v496 = vpack.c.bf16 %v465, %v464
        %v497 = vpack.c.bf16 %v467, %v466
        %v498 = vpack.c.bf16 %v469, %v468
        %v499 = vpack.c.bf16 %v471, %v470
        %v500 = vpack.c.bf16 %v473, %v472
        %v501 = vpack.c.bf16 %v475, %v474
        %v502 = vpack.c.bf16 %v477, %v476
        %v503 = vpack.c.bf16 %v479, %v478
        %v504 = vpack.c.bf16 %v481, %v480
        %v505 = vpack.c.bf16 %v483, %v482
        %v506 = vpack.c.bf16 %v485, %v484
        %v507 = vpack.c.bf16 %v487, %v486
        %v508 = vpack.c.bf16 %v489, %v488
        %v509 = vpack.c.bf16 %v491, %v490
        %v510 = vpack.c.bf16 %v493, %v492
        %v511 = vpack.c.bf16 %v495, %v494
        %v512 = vld [vmem:[#allocation4] sm:$0xf]
        %v513 = vld [vmem:[#allocation4 + $0x4] sm:$0xf]
        %v514 = vld [vmem:[#allocation4 + $0x8] sm:$0xf]
        %v515 = vld [vmem:[#allocation4 + $0xc] sm:$0xf]
        %v516 = vld [vmem:[#allocation2 + $0x1] sm:$0xff]
        %v517 = vld [vmem:[#allocation2 + $0x9] sm:$0xff]
        %v518 = vld [vmem:[#allocation2 + $0x19] sm:$0xff]
        %v519 = vld [vmem:[#allocation2 + $0x21] sm:$0xff]
        %v520 = vld [vmem:[#allocation2 + $0x31] sm:$0xff]
        %v521 = vld [vmem:[#allocation2 + $0x39] sm:$0xff]
        %v522 = vld [vmem:[#allocation2 + $0x49] sm:$0xff]
        %v523 = vld [vmem:[#allocation2 + $0x51] sm:$0xff]
        %v524 = vld [vmem:[#allocation2 + $0x61] sm:$0xff]
        %v525 = vld [vmem:[#allocation2 + $0x69] sm:$0xff]
        %v526 = vld [vmem:[#allocation2 + $0x79] sm:$0xff]
        %v527 = vld [vmem:[#allocation2 + $0x81] sm:$0xff]
        %v528 = vld [vmem:[#allocation2 + $0x91] sm:$0xff]
        %v529 = vld [vmem:[#allocation2 + $0x99] sm:$0xff]
        %v530 = vld [vmem:[#allocation2 + $0xa9] sm:$0xff]
        %v531 = vld [vmem:[#allocation2 + $0xb1] sm:$0xff]
        %v532 = vld [vmem:[#allocation2 + $0xc1] sm:$0xff]
        %v533 = vld [vmem:[#allocation2 + $0xc9] sm:$0xff]
        %v534 = vld [vmem:[#allocation2 + $0xd9] sm:$0xff]
        %v535 = vld [vmem:[#allocation2 + $0xe1] sm:$0xff]
        %v536 = vld [vmem:[#allocation2 + $0xf1] sm:$0xff]
        %v537 = vld [vmem:[#allocation2 + $0xf9] sm:$0xff]
        %v538 = vld [vmem:[#allocation2 + $0x109] sm:$0xff]
        %v539 = vld [vmem:[#allocation2 + $0x111] sm:$0xff]
        %v540 = vld [vmem:[#allocation2 + $0x121] sm:$0xff]
        %v541 = vld [vmem:[#allocation2 + $0x129] sm:$0xff]
        %v542 = vld [vmem:[#allocation2 + $0x139] sm:$0xff]
        %v543 = vld [vmem:[#allocation2 + $0x141] sm:$0xff]
        %v544 = vld [vmem:[#allocation2 + $0x151] sm:$0xff]
        %v545 = vld [vmem:[#allocation2 + $0x159] sm:$0xff]
        %v546 = vld [vmem:[#allocation2 + $0x169] sm:$0xff]
        %v547 = vld [vmem:[#allocation2 + $0x171] sm:$0xff]
        %v548 = vpack.c.bf16 %v517, %v516
        %v549 = vpack.c.bf16 %v519, %v518
        %v550 = vpack.c.bf16 %v521, %v520
        %v551 = vpack.c.bf16 %v523, %v522
        %v552 = vpack.c.bf16 %v525, %v524
        %v553 = vpack.c.bf16 %v527, %v526
        %v554 = vpack.c.bf16 %v529, %v528
        %v555 = vpack.c.bf16 %v531, %v530
        %v556 = vpack.c.bf16 %v533, %v532
        %v557 = vpack.c.bf16 %v535, %v534
        %v558 = vpack.c.bf16 %v537, %v536
        %v559 = vpack.c.bf16 %v539, %v538
        %v560 = vpack.c.bf16 %v541, %v540
        %v561 = vpack.c.bf16 %v543, %v542
        %v562 = vpack.c.bf16 %v545, %v544
        %v563 = vpack.c.bf16 %v547, %v546
        %s564 = scalar_lea.vmem [#allocation4], 16
        %v565 = vld [vmem:[%s564] sm:$0xf]
        %v566 = vld [vmem:[%s564 + $0x4] sm:$0xf]
        %v567 = vld [vmem:[%s564 + $0x8] sm:$0xf]
        %v568 = vld [vmem:[%s564 + $0xc] sm:$0xf]
        %v573 = vunpack.c.l.b16 %v565
        %v574 = vunpack.c.l.b16 %v566
        %v575 = vunpack.c.l.b16 %v567
        %v576 = vunpack.c.l.b16 %v568
        %v577 = vpack.c.b16 %v574, %v573
        %v578 = vpack.c.b16 %v576, %v575
        %v582 = vsel %vm375, %v548, 0
        %v585 = vsel %vm375, %v549, 0
        %v588 = vsel %vm375, %v550, 0
        %v591 = vsel %vm375, %v551, 0
        %v594 = vsel %vm375, %v552, 0
        %v597 = vsel %vm375, %v553, 0
        %v600 = vsel %vm375, %v554, 0
        %v603 = vsel %vm375, %v555, 0
        %v606 = vsel %vm375, %v556, 0
        %v609 = vsel %vm375, %v557, 0
        %v612 = vsel %vm375, %v558, 0
        %v615 = vsel %vm375, %v559, 0
        %v618 = vsel %vm375, %v560, 0
        %v621 = vsel %vm375, %v561, 0
        %v624 = vsel %vm375, %v562, 0
        %v627 = vsel %vm375, %v563, 0
        %629 = vmatpush.bf16.msra.mxu0 0
        %630 = vmatpush.bf16.msra.mxu0 0
        %631 = vmatpush.bf16.msra.mxu0 0
        %632 = vmatpush.bf16.msra.mxu0 0
        %633 = vmatpush.bf16.msra.mxu0 0
        %634 = vmatpush.bf16.msra.mxu0 0
        %635 = vmatpush.bf16.msra.mxu0 %v578
        %636 = vmatpush.bf16.msra.mxu0 %v577
        %637 = vmatmul.bf16.gmra.mxu0 %v582
        %v638 = vpop.f32.mrf.mxu0
        %v639 = vadd.f32 0.0, %v638
        %v640 = vpop.f32.mrf.mxu0
        %v641 = vadd.f32 0.0, %v640
        %642 = vmatmul.bf16.gmra.mxu0 %v585
        %v643 = vpop.f32.mrf.mxu0
        %v644 = vadd.f32 0.0, %v643
        %v645 = vpop.f32.mrf.mxu0
        %v646 = vadd.f32 0.0, %v645
        %647 = vmatmul.bf16.gmra.mxu0 %v588
        %v648 = vpop.f32.mrf.mxu0
        %v649 = vadd.f32 0.0, %v648
        %v650 = vpop.f32.mrf.mxu0
        %v651 = vadd.f32 0.0, %v650
        %652 = vmatmul.bf16.gmra.mxu0 %v591
        %v653 = vpop.f32.mrf.mxu0
        %v654 = vadd.f32 0.0, %v653
        %v655 = vpop.f32.mrf.mxu0
        %v656 = vadd.f32 0.0, %v655
        %657 = vmatmul.bf16.gmra.mxu0 %v594
        %v658 = vpop.f32.mrf.mxu0
        %v659 = vadd.f32 0.0, %v658
        %v660 = vpop.f32.mrf.mxu0
        %v661 = vadd.f32 0.0, %v660
        %662 = vmatmul.bf16.gmra.mxu0 %v597
        %v663 = vpop.f32.mrf.mxu0
        %v664 = vadd.f32 0.0, %v663
        %v665 = vpop.f32.mrf.mxu0
        %v666 = vadd.f32 0.0, %v665
        %667 = vmatmul.bf16.gmra.mxu0 %v600
        %v668 = vpop.f32.mrf.mxu0
        %v669 = vadd.f32 0.0, %v668
        %v670 = vpop.f32.mrf.mxu0
        %v671 = vadd.f32 0.0, %v670
        %672 = vmatmul.bf16.gmra.mxu0 %v603
        %v673 = vpop.f32.mrf.mxu0
        %v674 = vadd.f32 0.0, %v673
        %v675 = vpop.f32.mrf.mxu0
        %v676 = vadd.f32 0.0, %v675
        %677 = vmatmul.bf16.gmra.mxu0 %v606
        %v678 = vpop.f32.mrf.mxu0
        %v679 = vadd.f32 0.0, %v678
        %v680 = vpop.f32.mrf.mxu0
        %v681 = vadd.f32 0.0, %v680
        %682 = vmatmul.bf16.gmra.mxu0 %v609
        %v683 = vpop.f32.mrf.mxu0
        %v684 = vadd.f32 0.0, %v683
        %v685 = vpop.f32.mrf.mxu0
        %v686 = vadd.f32 0.0, %v685
        %687 = vmatmul.bf16.gmra.mxu0 %v612
        %v688 = vpop.f32.mrf.mxu0
        %v689 = vadd.f32 0.0, %v688
        %v690 = vpop.f32.mrf.mxu0
        %v691 = vadd.f32 0.0, %v690
        %692 = vmatmul.bf16.gmra.mxu0 %v615
        %v693 = vpop.f32.mrf.mxu0
        %v694 = vadd.f32 0.0, %v693
        %v695 = vpop.f32.mrf.mxu0
        %v696 = vadd.f32 0.0, %v695
        %697 = vmatmul.bf16.gmra.mxu0 %v618
        %v698 = vpop.f32.mrf.mxu0
        %v699 = vadd.f32 0.0, %v698
        %v700 = vpop.f32.mrf.mxu0
        %v701 = vadd.f32 0.0, %v700
        %702 = vmatmul.bf16.gmra.mxu0 %v621
        %v703 = vpop.f32.mrf.mxu0
        %v704 = vadd.f32 0.0, %v703
        %v705 = vpop.f32.mrf.mxu0
        %v706 = vadd.f32 0.0, %v705
        %707 = vmatmul.bf16.gmra.mxu0 %v624
        %v708 = vpop.f32.mrf.mxu0
        %v709 = vadd.f32 0.0, %v708
        %v710 = vpop.f32.mrf.mxu0
        %v711 = vadd.f32 0.0, %v710
        %712 = vmatmul.bf16.gmra.mxu0 %v627
        %v713 = vpop.f32.mrf.mxu0
        %v714 = vadd.f32 0.0, %v713
        %v715 = vpop.f32.mrf.mxu0
        %v716 = vadd.f32 0.0, %v715
        %717 = vdwg.mxu0
        %v722 = vunpack.c.l.b16 %v512
        %v723 = vunpack.c.l.b16 %v513
        %v724 = vunpack.c.l.b16 %v514
        %v725 = vunpack.c.l.b16 %v515
        %v726 = vpack.c.b16 %v723, %v722
        %v727 = vpack.c.b16 %v725, %v724
        %v731 = vsel %vm375, %v496, 0
        %v734 = vsel %vm375, %v497, 0
        %v737 = vsel %vm375, %v498, 0
        %v740 = vsel %vm375, %v499, 0
        %v743 = vsel %vm375, %v500, 0
        %v746 = vsel %vm375, %v501, 0
        %v749 = vsel %vm375, %v502, 0
        %v752 = vsel %vm375, %v503, 0
        %v755 = vsel %vm375, %v504, 0
        %v758 = vsel %vm375, %v505, 0
        %v761 = vsel %vm375, %v506, 0
        %v764 = vsel %vm375, %v507, 0
        %v767 = vsel %vm375, %v508, 0
        %v770 = vsel %vm375, %v509, 0
        %v773 = vsel %vm375, %v510, 0
        %v776 = vsel %vm375, %v511, 0
        %778 = vmatpush.bf16.msra.mxu0 0
        %779 = vmatpush.bf16.msra.mxu0 0
        %780 = vmatpush.bf16.msra.mxu0 0
        %781 = vmatpush.bf16.msra.mxu0 0
        %782 = vmatpush.bf16.msra.mxu0 0
        %783 = vmatpush.bf16.msra.mxu0 0
        %784 = vmatpush.bf16.msra.mxu0 %v727
        %785 = vmatpush.bf16.msra.mxu0 %v726
        %786 = vmatmul.bf16.gmra.mxu0 %v731
        %v787 = vpop.f32.mrf.mxu0
        %v788 = vadd.f32 %v639, %v787
        %v789 = vpop.f32.mrf.mxu0
        %v790 = vadd.f32 %v641, %v789
        %791 = vmatmul.bf16.gmra.mxu0 %v734
        %v792 = vpop.f32.mrf.mxu0
        %v793 = vadd.f32 %v644, %v792
        %v794 = vpop.f32.mrf.mxu0
        %v795 = vadd.f32 %v646, %v794
        %796 = vmatmul.bf16.gmra.mxu0 %v737
        %v797 = vpop.f32.mrf.mxu0
        %v798 = vadd.f32 %v649, %v797
        %v799 = vpop.f32.mrf.mxu0
        %v800 = vadd.f32 %v651, %v799
        %801 = vmatmul.bf16.gmra.mxu0 %v740
        %v802 = vpop.f32.mrf.mxu0
        %v803 = vadd.f32 %v654, %v802
        %v804 = vpop.f32.mrf.mxu0
        %v805 = vadd.f32 %v656, %v804
        %806 = vmatmul.bf16.gmra.mxu0 %v743
        %v807 = vpop.f32.mrf.mxu0
        %v808 = vadd.f32 %v659, %v807
        %v809 = vpop.f32.mrf.mxu0
        %v810 = vadd.f32 %v661, %v809
        %811 = vmatmul.bf16.gmra.mxu0 %v746
        %v812 = vpop.f32.mrf.mxu0
        %v813 = vadd.f32 %v664, %v812
        %v814 = vpop.f32.mrf.mxu0
        %v815 = vadd.f32 %v666, %v814
        %816 = vmatmul.bf16.gmra.mxu0 %v749
        %v817 = vpop.f32.mrf.mxu0
        %v818 = vadd.f32 %v669, %v817
        %v819 = vpop.f32.mrf.mxu0
        %v820 = vadd.f32 %v671, %v819
        %821 = vmatmul.bf16.gmra.mxu0 %v752
        %v822 = vpop.f32.mrf.mxu0
        %v823 = vadd.f32 %v674, %v822
        %v824 = vpop.f32.mrf.mxu0
        %v825 = vadd.f32 %v676, %v824
        %826 = vmatmul.bf16.gmra.mxu0 %v755
        %v827 = vpop.f32.mrf.mxu0
        %v828 = vadd.f32 %v679, %v827
        %v829 = vpop.f32.mrf.mxu0
        %v830 = vadd.f32 %v681, %v829
        %831 = vmatmul.bf16.gmra.mxu0 %v758
        %v832 = vpop.f32.mrf.mxu0
        %v833 = vadd.f32 %v684, %v832
        %v834 = vpop.f32.mrf.mxu0
        %v835 = vadd.f32 %v686, %v834
        %836 = vmatmul.bf16.gmra.mxu0 %v761
        %v837 = vpop.f32.mrf.mxu0
        %v838 = vadd.f32 %v689, %v837
        %v839 = vpop.f32.mrf.mxu0
        %v840 = vadd.f32 %v691, %v839
        %841 = vmatmul.bf16.gmra.mxu0 %v764
        %v842 = vpop.f32.mrf.mxu0
        %v843 = vadd.f32 %v694, %v842
        %v844 = vpop.f32.mrf.mxu0
        %v845 = vadd.f32 %v696, %v844
        %846 = vmatmul.bf16.gmra.mxu0 %v767
        %v847 = vpop.f32.mrf.mxu0
        %v848 = vadd.f32 %v699, %v847
        %v849 = vpop.f32.mrf.mxu0
        %v850 = vadd.f32 %v701, %v849
        %851 = vmatmul.bf16.gmra.mxu0 %v770
        %v852 = vpop.f32.mrf.mxu0
        %v853 = vadd.f32 %v704, %v852
        %v854 = vpop.f32.mrf.mxu0
        %v855 = vadd.f32 %v706, %v854
        %856 = vmatmul.bf16.gmra.mxu0 %v773
        %v857 = vpop.f32.mrf.mxu0
        %v858 = vadd.f32 %v709, %v857
        %v859 = vpop.f32.mrf.mxu0
        %v860 = vadd.f32 %v711, %v859
        %861 = vmatmul.bf16.gmra.mxu0 %v776
        %v862 = vpop.f32.mrf.mxu0
        %v863 = vadd.f32 %v714, %v862
        %v864 = vpop.f32.mrf.mxu0
        %v865 = vadd.f32 %v716, %v864
        %866 = vdwg.mxu0
        %v867 = vld [vmem:[#allocation2 + $0x2] sm:$0xff]
        %v868 = vld [vmem:[#allocation2 + $0xa] sm:$0xff]
        %v869 = vld [vmem:[#allocation2 + $0x1a] sm:$0xff]
        %v870 = vld [vmem:[#allocation2 + $0x22] sm:$0xff]
        %v871 = vld [vmem:[#allocation2 + $0x32] sm:$0xff]
        %v872 = vld [vmem:[#allocation2 + $0x3a] sm:$0xff]
        %v873 = vld [vmem:[#allocation2 + $0x4a] sm:$0xff]
        %v874 = vld [vmem:[#allocation2 + $0x52] sm:$0xff]
        %v875 = vld [vmem:[#allocation2 + $0x62] sm:$0xff]
        %v876 = vld [vmem:[#allocation2 + $0x6a] sm:$0xff]
        %v877 = vld [vmem:[#allocation2 + $0x7a] sm:$0xff]
        %v878 = vld [vmem:[#allocation2 + $0x82] sm:$0xff]
        %v879 = vld [vmem:[#allocation2 + $0x92] sm:$0xff]
        %v880 = vld [vmem:[#allocation2 + $0x9a] sm:$0xff]
        %v881 = vld [vmem:[#allocation2 + $0xaa] sm:$0xff]
        %v882 = vld [vmem:[#allocation2 + $0xb2] sm:$0xff]
        %v883 = vld [vmem:[#allocation2 + $0xc2] sm:$0xff]
        %v884 = vld [vmem:[#allocation2 + $0xca] sm:$0xff]
        %v885 = vld [vmem:[#allocation2 + $0xda] sm:$0xff]
        %v886 = vld [vmem:[#allocation2 + $0xe2] sm:$0xff]
        %v887 = vld [vmem:[#allocation2 + $0xf2] sm:$0xff]
        %v888 = vld [vmem:[#allocation2 + $0xfa] sm:$0xff]
        %v889 = vld [vmem:[#allocation2 + $0x10a] sm:$0xff]
        %v890 = vld [vmem:[#allocation2 + $0x112] sm:$0xff]
        %v891 = vld [vmem:[#allocation2 + $0x122] sm:$0xff]
        %v892 = vld [vmem:[#allocation2 + $0x12a] sm:$0xff]
        %v893 = vld [vmem:[#allocation2 + $0x13a] sm:$0xff]
        %v894 = vld [vmem:[#allocation2 + $0x142] sm:$0xff]
        %v895 = vld [vmem:[#allocation2 + $0x152] sm:$0xff]
        %v896 = vld [vmem:[#allocation2 + $0x15a] sm:$0xff]
        %v897 = vld [vmem:[#allocation2 + $0x16a] sm:$0xff]
        %v898 = vld [vmem:[#allocation2 + $0x172] sm:$0xff]
        %v899 = vpack.c.bf16 %v868, %v867
        %v900 = vpack.c.bf16 %v870, %v869
        %v901 = vpack.c.bf16 %v872, %v871
        %v902 = vpack.c.bf16 %v874, %v873
        %v903 = vpack.c.bf16 %v876, %v875
        %v904 = vpack.c.bf16 %v878, %v877
        %v905 = vpack.c.bf16 %v880, %v879
        %v906 = vpack.c.bf16 %v882, %v881
        %v907 = vpack.c.bf16 %v884, %v883
        %v908 = vpack.c.bf16 %v886, %v885
        %v909 = vpack.c.bf16 %v888, %v887
        %v910 = vpack.c.bf16 %v890, %v889
        %v911 = vpack.c.bf16 %v892, %v891
        %v912 = vpack.c.bf16 %v894, %v893
        %v913 = vpack.c.bf16 %v896, %v895
        %v914 = vpack.c.bf16 %v898, %v897
        %s915 = scalar_lea.vmem [#allocation4], 32
        %v916 = vld [vmem:[%s915] sm:$0xf]
        %v917 = vld [vmem:[%s915 + $0x4] sm:$0xf]
        %v918 = vld [vmem:[%s915 + $0x8] sm:$0xf]
        %v919 = vld [vmem:[%s915 + $0xc] sm:$0xf]
        %v924 = vunpack.c.l.b16 %v916
        %v925 = vunpack.c.l.b16 %v917
        %v926 = vunpack.c.l.b16 %v918
        %v927 = vunpack.c.l.b16 %v919
        %v928 = vpack.c.b16 %v925, %v924
        %v929 = vpack.c.b16 %v927, %v926
        %v933 = vsel %vm375, %v899, 0
        %v936 = vsel %vm375, %v900, 0
        %v939 = vsel %vm375, %v901, 0
        %v942 = vsel %vm375, %v902, 0
        %v945 = vsel %vm375, %v903, 0
        %v948 = vsel %vm375, %v904, 0
        %v951 = vsel %vm375, %v905, 0
        %v954 = vsel %vm375, %v906, 0
        %v957 = vsel %vm375, %v907, 0
        %v960 = vsel %vm375, %v908, 0
        %v963 = vsel %vm375, %v909, 0
        %v966 = vsel %vm375, %v910, 0
        %v969 = vsel %vm375, %v911, 0
        %v972 = vsel %vm375, %v912, 0
        %v975 = vsel %vm375, %v913, 0
        %v978 = vsel %vm375, %v914, 0
        %980 = vmatpush.bf16.msra.mxu0 0
        %981 = vmatpush.bf16.msra.mxu0 0
        %982 = vmatpush.bf16.msra.mxu0 0
        %983 = vmatpush.bf16.msra.mxu0 0
        %984 = vmatpush.bf16.msra.mxu0 0
        %985 = vmatpush.bf16.msra.mxu0 0
        %986 = vmatpush.bf16.msra.mxu0 %v929
        %987 = vmatpush.bf16.msra.mxu0 %v928
        %988 = vmatmul.bf16.gmra.mxu0 %v933
        %v989 = vpop.f32.mrf.mxu0
        %v990 = vadd.f32 0.0, %v989
        %v991 = vpop.f32.mrf.mxu0
        %v992 = vadd.f32 0.0, %v991
        %993 = vmatmul.bf16.gmra.mxu0 %v936
        %v994 = vpop.f32.mrf.mxu0
        %v995 = vadd.f32 0.0, %v994
        %v996 = vpop.f32.mrf.mxu0
        %v997 = vadd.f32 0.0, %v996
        %998 = vmatmul.bf16.gmra.mxu0 %v939
        %v999 = vpop.f32.mrf.mxu0
        %v1000 = vadd.f32 0.0, %v999
        %v1001 = vpop.f32.mrf.mxu0
        %v1002 = vadd.f32 0.0, %v1001
        %1003 = vmatmul.bf16.gmra.mxu0 %v942
        %v1004 = vpop.f32.mrf.mxu0
        %v1005 = vadd.f32 0.0, %v1004
        %v1006 = vpop.f32.mrf.mxu0
        %v1007 = vadd.f32 0.0, %v1006
        %1008 = vmatmul.bf16.gmra.mxu0 %v945
        %v1009 = vpop.f32.mrf.mxu0
        %v1010 = vadd.f32 0.0, %v1009
        %v1011 = vpop.f32.mrf.mxu0
        %v1012 = vadd.f32 0.0, %v1011
        %1013 = vmatmul.bf16.gmra.mxu0 %v948
        %v1014 = vpop.f32.mrf.mxu0
        %v1015 = vadd.f32 0.0, %v1014
        %v1016 = vpop.f32.mrf.mxu0
        %v1017 = vadd.f32 0.0, %v1016
        %1018 = vmatmul.bf16.gmra.mxu0 %v951
        %v1019 = vpop.f32.mrf.mxu0
        %v1020 = vadd.f32 0.0, %v1019
        %v1021 = vpop.f32.mrf.mxu0
        %v1022 = vadd.f32 0.0, %v1021
        %1023 = vmatmul.bf16.gmra.mxu0 %v954
        %v1024 = vpop.f32.mrf.mxu0
        %v1025 = vadd.f32 0.0, %v1024
        %v1026 = vpop.f32.mrf.mxu0
        %v1027 = vadd.f32 0.0, %v1026
        %1028 = vmatmul.bf16.gmra.mxu0 %v957
        %v1029 = vpop.f32.mrf.mxu0
        %v1030 = vadd.f32 0.0, %v1029
        %v1031 = vpop.f32.mrf.mxu0
        %v1032 = vadd.f32 0.0, %v1031
        %1033 = vmatmul.bf16.gmra.mxu0 %v960
        %v1034 = vpop.f32.mrf.mxu0
        %v1035 = vadd.f32 0.0, %v1034
        %v1036 = vpop.f32.mrf.mxu0
        %v1037 = vadd.f32 0.0, %v1036
        %1038 = vmatmul.bf16.gmra.mxu0 %v963
        %v1039 = vpop.f32.mrf.mxu0
        %v1040 = vadd.f32 0.0, %v1039
        %v1041 = vpop.f32.mrf.mxu0
        %v1042 = vadd.f32 0.0, %v1041
        %1043 = vmatmul.bf16.gmra.mxu0 %v966
        %v1044 = vpop.f32.mrf.mxu0
        %v1045 = vadd.f32 0.0, %v1044
        %v1046 = vpop.f32.mrf.mxu0
        %v1047 = vadd.f32 0.0, %v1046
        %1048 = vmatmul.bf16.gmra.mxu0 %v969
        %v1049 = vpop.f32.mrf.mxu0
        %v1050 = vadd.f32 0.0, %v1049
        %v1051 = vpop.f32.mrf.mxu0
        %v1052 = vadd.f32 0.0, %v1051
        %1053 = vmatmul.bf16.gmra.mxu0 %v972
        %v1054 = vpop.f32.mrf.mxu0
        %v1055 = vadd.f32 0.0, %v1054
        %v1056 = vpop.f32.mrf.mxu0
        %v1057 = vadd.f32 0.0, %v1056
        %1058 = vmatmul.bf16.gmra.mxu0 %v975
        %v1059 = vpop.f32.mrf.mxu0
        %v1060 = vadd.f32 0.0, %v1059
        %v1061 = vpop.f32.mrf.mxu0
        %v1062 = vadd.f32 0.0, %v1061
        %1063 = vmatmul.bf16.gmra.mxu0 %v978
        %v1064 = vpop.f32.mrf.mxu0
        %v1065 = vadd.f32 0.0, %v1064
        %v1066 = vpop.f32.mrf.mxu0
        %v1067 = vadd.f32 0.0, %v1066
        %1068 = vdwg.mxu0
        %v1069 = vadd.f32 %v788, %v990
        %v1070 = vadd.f32 %v790, %v992
        %v1071 = vadd.f32 %v793, %v995
        %v1072 = vadd.f32 %v795, %v997
        %v1073 = vadd.f32 %v798, %v1000
        %v1074 = vadd.f32 %v800, %v1002
        %v1075 = vadd.f32 %v803, %v1005
        %v1076 = vadd.f32 %v805, %v1007
        %v1077 = vadd.f32 %v808, %v1010
        %v1078 = vadd.f32 %v810, %v1012
        %v1079 = vadd.f32 %v813, %v1015
        %v1080 = vadd.f32 %v815, %v1017
        %v1081 = vadd.f32 %v818, %v1020
        %v1082 = vadd.f32 %v820, %v1022
        %v1083 = vadd.f32 %v823, %v1025
        %v1084 = vadd.f32 %v825, %v1027
        %v1085 = vadd.f32 %v828, %v1030
        %v1086 = vadd.f32 %v830, %v1032
        %v1087 = vadd.f32 %v833, %v1035
        %v1088 = vadd.f32 %v835, %v1037
        %v1089 = vadd.f32 %v838, %v1040
        %v1090 = vadd.f32 %v840, %v1042
        %v1091 = vadd.f32 %v843, %v1045
        %v1092 = vadd.f32 %v845, %v1047
        %v1093 = vadd.f32 %v848, %v1050
        %v1094 = vadd.f32 %v850, %v1052
        %v1095 = vadd.f32 %v853, %v1055
        %v1096 = vadd.f32 %v855, %v1057
        %v1097 = vadd.f32 %v858, %v1060
        %v1098 = vadd.f32 %v860, %v1062
        %v1099 = vadd.f32 %v863, %v1065
        %v1100 = vadd.f32 %v865, %v1067
        %v1101 = vld [vmem:[%s431] sm:$0xff]
        %v1102 = vld [vmem:[%s431 + $0x8] sm:$0xff]
        %v1103 = vld [vmem:[%s431 + $0x18] sm:$0xff]
        %v1104 = vld [vmem:[%s431 + $0x20] sm:$0xff]
        %v1105 = vld [vmem:[%s431 + $0x30] sm:$0xff]
        %v1106 = vld [vmem:[%s431 + $0x38] sm:$0xff]
        %v1107 = vld [vmem:[%s431 + $0x48] sm:$0xff]
        %v1108 = vld [vmem:[%s431 + $0x50] sm:$0xff]
        %v1109 = vld [vmem:[%s431 + $0x60] sm:$0xff]
        %v1110 = vld [vmem:[%s431 + $0x68] sm:$0xff]
        %v1111 = vld [vmem:[%s431 + $0x78] sm:$0xff]
        %v1112 = vld [vmem:[%s431 + $0x80] sm:$0xff]
        %v1113 = vld [vmem:[%s431 + $0x90] sm:$0xff]
        %v1114 = vld [vmem:[%s431 + $0x98] sm:$0xff]
        %v1115 = vld [vmem:[%s431 + $0xa8] sm:$0xff]
        %v1116 = vld [vmem:[%s431 + $0xb0] sm:$0xff]
        %v1117 = vld [vmem:[%s431 + $0xc0] sm:$0xff]
        %v1118 = vld [vmem:[%s431 + $0xc8] sm:$0xff]
        %v1119 = vld [vmem:[%s431 + $0xd8] sm:$0xff]
        %v1120 = vld [vmem:[%s431 + $0xe0] sm:$0xff]
        %v1121 = vld [vmem:[%s431 + $0xf0] sm:$0xff]
        %v1122 = vld [vmem:[%s431 + $0xf8] sm:$0xff]
        %v1123 = vld [vmem:[%s431 + $0x108] sm:$0xff]
        %v1124 = vld [vmem:[%s431 + $0x110] sm:$0xff]
        %v1125 = vld [vmem:[%s431 + $0x120] sm:$0xff]
        %v1126 = vld [vmem:[%s431 + $0x128] sm:$0xff]
        %v1127 = vld [vmem:[%s431 + $0x138] sm:$0xff]
        %v1128 = vld [vmem:[%s431 + $0x140] sm:$0xff]
        %v1129 = vld [vmem:[%s431 + $0x150] sm:$0xff]
        %v1130 = vld [vmem:[%s431 + $0x158] sm:$0xff]
        %v1131 = vld [vmem:[%s431 + $0x168] sm:$0xff]
        %v1132 = vld [vmem:[%s431 + $0x170] sm:$0xff]
        %v1133 = vpack.c.bf16 %v1102, %v1101
        %v1134 = vpack.c.bf16 %v1104, %v1103
        %v1135 = vpack.c.bf16 %v1106, %v1105
        %v1136 = vpack.c.bf16 %v1108, %v1107
        %v1137 = vpack.c.bf16 %v1110, %v1109
        %v1138 = vpack.c.bf16 %v1112, %v1111
        %v1139 = vpack.c.bf16 %v1114, %v1113
        %v1140 = vpack.c.bf16 %v1116, %v1115
        %v1141 = vpack.c.bf16 %v1118, %v1117
        %v1142 = vpack.c.bf16 %v1120, %v1119
        %v1143 = vpack.c.bf16 %v1122, %v1121
        %v1144 = vpack.c.bf16 %v1124, %v1123
        %v1145 = vpack.c.bf16 %v1126, %v1125
        %v1146 = vpack.c.bf16 %v1128, %v1127
        %v1147 = vpack.c.bf16 %v1130, %v1129
        %v1148 = vpack.c.bf16 %v1132, %v1131
        %s1149 = scalar_lea.vmem [#allocation4], 48
        %v1150 = vld [vmem:[%s1149] sm:$0xf]
        %v1151 = vld [vmem:[%s1149 + $0x4] sm:$0xf]
        %v1152 = vld [vmem:[%s1149 + $0x8] sm:$0xf]
        %v1153 = vld [vmem:[%s1149 + $0xc] sm:$0xf]
        %v1158 = vunpack.c.l.b16 %v1150
        %v1159 = vunpack.c.l.b16 %v1151
        %v1160 = vunpack.c.l.b16 %v1152
        %v1161 = vunpack.c.l.b16 %v1153
        %v1162 = vpack.c.b16 %v1159, %v1158
        %v1163 = vpack.c.b16 %v1161, %v1160
        %v1167 = vsel %vm375, %v1133, 0
        %v1170 = vsel %vm375, %v1134, 0
        %v1173 = vsel %vm375, %v1135, 0
        %v1176 = vsel %vm375, %v1136, 0
        %v1179 = vsel %vm375, %v1137, 0
        %v1182 = vsel %vm375, %v1138, 0
        %v1185 = vsel %vm375, %v1139, 0
        %v1188 = vsel %vm375, %v1140, 0
        %v1191 = vsel %vm375, %v1141, 0
        %v1194 = vsel %vm375, %v1142, 0
        %v1197 = vsel %vm375, %v1143, 0
        %v1200 = vsel %vm375, %v1144, 0
        %v1203 = vsel %vm375, %v1145, 0
        %v1206 = vsel %vm375, %v1146, 0
        %v1209 = vsel %vm375, %v1147, 0
        %v1212 = vsel %vm375, %v1148, 0
        %1214 = vmatpush.bf16.msra.mxu0 0
        %1215 = vmatpush.bf16.msra.mxu0 0
        %1216 = vmatpush.bf16.msra.mxu0 0
        %1217 = vmatpush.bf16.msra.mxu0 0
        %1218 = vmatpush.bf16.msra.mxu0 0
        %1219 = vmatpush.bf16.msra.mxu0 0
        %1220 = vmatpush.bf16.msra.mxu0 %v1163
        %1221 = vmatpush.bf16.msra.mxu0 %v1162
        %1222 = vmatmul.bf16.gmra.mxu0 %v1167
        %v1223 = vpop.f32.mrf.mxu0
        %v1224 = vadd.f32 0.0, %v1223
        %v1225 = vpop.f32.mrf.mxu0
        %v1226 = vadd.f32 0.0, %v1225
        %1227 = vmatmul.bf16.gmra.mxu0 %v1170
        %v1228 = vpop.f32.mrf.mxu0
        %v1229 = vadd.f32 0.0, %v1228
        %v1230 = vpop.f32.mrf.mxu0
        %v1231 = vadd.f32 0.0, %v1230
        %1232 = vmatmul.bf16.gmra.mxu0 %v1173
        %v1233 = vpop.f32.mrf.mxu0
        %v1234 = vadd.f32 0.0, %v1233
        %v1235 = vpop.f32.mrf.mxu0
        %v1236 = vadd.f32 0.0, %v1235
        %1237 = vmatmul.bf16.gmra.mxu0 %v1176
        %v1238 = vpop.f32.mrf.mxu0
        %v1239 = vadd.f32 0.0, %v1238
        %v1240 = vpop.f32.mrf.mxu0
        %v1241 = vadd.f32 0.0, %v1240
        %1242 = vmatmul.bf16.gmra.mxu0 %v1179
        %v1243 = vpop.f32.mrf.mxu0
        %v1244 = vadd.f32 0.0, %v1243
        %v1245 = vpop.f32.mrf.mxu0
        %v1246 = vadd.f32 0.0, %v1245
        %1247 = vmatmul.bf16.gmra.mxu0 %v1182
        %v1248 = vpop.f32.mrf.mxu0
        %v1249 = vadd.f32 0.0, %v1248
        %v1250 = vpop.f32.mrf.mxu0
        %v1251 = vadd.f32 0.0, %v1250
        %1252 = vmatmul.bf16.gmra.mxu0 %v1185
        %v1253 = vpop.f32.mrf.mxu0
        %v1254 = vadd.f32 0.0, %v1253
        %v1255 = vpop.f32.mrf.mxu0
        %v1256 = vadd.f32 0.0, %v1255
        %1257 = vmatmul.bf16.gmra.mxu0 %v1188
        %v1258 = vpop.f32.mrf.mxu0
        %v1259 = vadd.f32 0.0, %v1258
        %v1260 = vpop.f32.mrf.mxu0
        %v1261 = vadd.f32 0.0, %v1260
        %1262 = vmatmul.bf16.gmra.mxu0 %v1191
        %v1263 = vpop.f32.mrf.mxu0
        %v1264 = vadd.f32 0.0, %v1263
        %v1265 = vpop.f32.mrf.mxu0
        %v1266 = vadd.f32 0.0, %v1265
        %1267 = vmatmul.bf16.gmra.mxu0 %v1194
        %v1268 = vpop.f32.mrf.mxu0
        %v1269 = vadd.f32 0.0, %v1268
        %v1270 = vpop.f32.mrf.mxu0
        %v1271 = vadd.f32 0.0, %v1270
        %1272 = vmatmul.bf16.gmra.mxu0 %v1197
        %v1273 = vpop.f32.mrf.mxu0
        %v1274 = vadd.f32 0.0, %v1273
        %v1275 = vpop.f32.mrf.mxu0
        %v1276 = vadd.f32 0.0, %v1275
        %1277 = vmatmul.bf16.gmra.mxu0 %v1200
        %v1278 = vpop.f32.mrf.mxu0
        %v1279 = vadd.f32 0.0, %v1278
        %v1280 = vpop.f32.mrf.mxu0
        %v1281 = vadd.f32 0.0, %v1280
        %1282 = vmatmul.bf16.gmra.mxu0 %v1203
        %v1283 = vpop.f32.mrf.mxu0
        %v1284 = vadd.f32 0.0, %v1283
        %v1285 = vpop.f32.mrf.mxu0
        %v1286 = vadd.f32 0.0, %v1285
        %1287 = vmatmul.bf16.gmra.mxu0 %v1206
        %v1288 = vpop.f32.mrf.mxu0
        %v1289 = vadd.f32 0.0, %v1288
        %v1290 = vpop.f32.mrf.mxu0
        %v1291 = vadd.f32 0.0, %v1290
        %1292 = vmatmul.bf16.gmra.mxu0 %v1209
        %v1293 = vpop.f32.mrf.mxu0
        %v1294 = vadd.f32 0.0, %v1293
        %v1295 = vpop.f32.mrf.mxu0
        %v1296 = vadd.f32 0.0, %v1295
        %1297 = vmatmul.bf16.gmra.mxu0 %v1212
        %v1298 = vpop.f32.mrf.mxu0
        %v1299 = vadd.f32 0.0, %v1298
        %v1300 = vpop.f32.mrf.mxu0
        %v1301 = vadd.f32 0.0, %v1300
        %1302 = vdwg.mxu0
        %v1303 = vadd.f32 %v1069, %v1224
        %v1304 = vadd.f32 %v1070, %v1226
        %v1305 = vadd.f32 %v1071, %v1229
        %v1306 = vadd.f32 %v1072, %v1231
        %v1307 = vadd.f32 %v1073, %v1234
        %v1308 = vadd.f32 %v1074, %v1236
        %v1309 = vadd.f32 %v1075, %v1239
        %v1310 = vadd.f32 %v1076, %v1241
        %v1311 = vadd.f32 %v1077, %v1244
        %v1312 = vadd.f32 %v1078, %v1246
        %v1313 = vadd.f32 %v1079, %v1249
        %v1314 = vadd.f32 %v1080, %v1251
        %v1315 = vadd.f32 %v1081, %v1254
        %v1316 = vadd.f32 %v1082, %v1256
        %v1317 = vadd.f32 %v1083, %v1259
        %v1318 = vadd.f32 %v1084, %v1261
        %v1319 = vadd.f32 %v1085, %v1264
        %v1320 = vadd.f32 %v1086, %v1266
        %v1321 = vadd.f32 %v1087, %v1269
        %v1322 = vadd.f32 %v1088, %v1271
        %v1323 = vadd.f32 %v1089, %v1274
        %v1324 = vadd.f32 %v1090, %v1276
        %v1325 = vadd.f32 %v1091, %v1279
        %v1326 = vadd.f32 %v1092, %v1281
        %v1327 = vadd.f32 %v1093, %v1284
        %v1328 = vadd.f32 %v1094, %v1286
        %v1329 = vadd.f32 %v1095, %v1289
        %v1330 = vadd.f32 %v1096, %v1291
        %v1331 = vadd.f32 %v1097, %v1294
        %v1332 = vadd.f32 %v1098, %v1296
        %v1333 = vadd.f32 %v1099, %v1299
        %v1334 = vadd.f32 %v1100, %v1301
        %v1335 = vld [vmem:[%s431 + $0x1] sm:$0xff]
        %v1336 = vld [vmem:[%s431 + $0x9] sm:$0xff]
        %v1337 = vld [vmem:[%s431 + $0x19] sm:$0xff]
        %v1338 = vld [vmem:[%s431 + $0x21] sm:$0xff]
        %v1339 = vld [vmem:[%s431 + $0x31] sm:$0xff]
        %v1340 = vld [vmem:[%s431 + $0x39] sm:$0xff]
        %v1341 = vld [vmem:[%s431 + $0x49] sm:$0xff]
        %v1342 = vld [vmem:[%s431 + $0x51] sm:$0xff]
        %v1343 = vld [vmem:[%s431 + $0x61] sm:$0xff]
        %v1344 = vld [vmem:[%s431 + $0x69] sm:$0xff]
        %v1345 = vld [vmem:[%s431 + $0x79] sm:$0xff]
        %v1346 = vld [vmem:[%s431 + $0x81] sm:$0xff]
        %v1347 = vld [vmem:[%s431 + $0x91] sm:$0xff]
        %v1348 = vld [vmem:[%s431 + $0x99] sm:$0xff]
        %v1349 = vld [vmem:[%s431 + $0xa9] sm:$0xff]
        %v1350 = vld [vmem:[%s431 + $0xb1] sm:$0xff]
        %v1351 = vld [vmem:[%s431 + $0xc1] sm:$0xff]
        %v1352 = vld [vmem:[%s431 + $0xc9] sm:$0xff]
        %v1353 = vld [vmem:[%s431 + $0xd9] sm:$0xff]
        %v1354 = vld [vmem:[%s431 + $0xe1] sm:$0xff]
        %v1355 = vld [vmem:[%s431 + $0xf1] sm:$0xff]
        %v1356 = vld [vmem:[%s431 + $0xf9] sm:$0xff]
        %v1357 = vld [vmem:[%s431 + $0x109] sm:$0xff]
        %v1358 = vld [vmem:[%s431 + $0x111] sm:$0xff]
        %v1359 = vld [vmem:[%s431 + $0x121] sm:$0xff]
        %v1360 = vld [vmem:[%s431 + $0x129] sm:$0xff]
        %v1361 = vld [vmem:[%s431 + $0x139] sm:$0xff]
        %v1362 = vld [vmem:[%s431 + $0x141] sm:$0xff]
        %v1363 = vld [vmem:[%s431 + $0x151] sm:$0xff]
        %v1364 = vld [vmem:[%s431 + $0x159] sm:$0xff]
        %v1365 = vld [vmem:[%s431 + $0x169] sm:$0xff]
        %v1366 = vld [vmem:[%s431 + $0x171] sm:$0xff]
        %v1367 = vpack.c.bf16 %v1336, %v1335
        %v1368 = vpack.c.bf16 %v1338, %v1337
        %v1369 = vpack.c.bf16 %v1340, %v1339
        %v1370 = vpack.c.bf16 %v1342, %v1341
        %v1371 = vpack.c.bf16 %v1344, %v1343
        %v1372 = vpack.c.bf16 %v1346, %v1345
        %v1373 = vpack.c.bf16 %v1348, %v1347
        %v1374 = vpack.c.bf16 %v1350, %v1349
        %v1375 = vpack.c.bf16 %v1352, %v1351
        %v1376 = vpack.c.bf16 %v1354, %v1353
        %v1377 = vpack.c.bf16 %v1356, %v1355
        %v1378 = vpack.c.bf16 %v1358, %v1357
        %v1379 = vpack.c.bf16 %v1360, %v1359
        %v1380 = vpack.c.bf16 %v1362, %v1361
        %v1381 = vpack.c.bf16 %v1364, %v1363
        %v1382 = vpack.c.bf16 %v1366, %v1365
        %s1383 = scalar_lea.vmem [#allocation4], 64
        %v1384 = vld [vmem:[%s1383] sm:$0xf]
        %v1385 = vld [vmem:[%s1383 + $0x4] sm:$0xf]
        %v1386 = vld [vmem:[%s1383 + $0x8] sm:$0xf]
        %v1387 = vld [vmem:[%s1383 + $0xc] sm:$0xf]
        %v1392 = vunpack.c.l.b16 %v1384
        %v1393 = vunpack.c.l.b16 %v1385
        %v1394 = vunpack.c.l.b16 %v1386
        %v1395 = vunpack.c.l.b16 %v1387
        %v1396 = vpack.c.b16 %v1393, %v1392
        %v1397 = vpack.c.b16 %v1395, %v1394
        %v1401 = vsel %vm375, %v1367, 0
        %v1404 = vsel %vm375, %v1368, 0
        %v1407 = vsel %vm375, %v1369, 0
        %v1410 = vsel %vm375, %v1370, 0
        %v1413 = vsel %vm375, %v1371, 0
        %v1416 = vsel %vm375, %v1372, 0
        %v1419 = vsel %vm375, %v1373, 0
        %v1422 = vsel %vm375, %v1374, 0
        %v1425 = vsel %vm375, %v1375, 0
        %v1428 = vsel %vm375, %v1376, 0
        %v1431 = vsel %vm375, %v1377, 0
        %v1434 = vsel %vm375, %v1378, 0
        %v1437 = vsel %vm375, %v1379, 0
        %v1440 = vsel %vm375, %v1380, 0
        %v1443 = vsel %vm375, %v1381, 0
        %v1446 = vsel %vm375, %v1382, 0
        %1448 = vmatpush.bf16.msra.mxu0 0
        %1449 = vmatpush.bf16.msra.mxu0 0
        %1450 = vmatpush.bf16.msra.mxu0 0
        %1451 = vmatpush.bf16.msra.mxu0 0
        %1452 = vmatpush.bf16.msra.mxu0 0
        %1453 = vmatpush.bf16.msra.mxu0 0
        %1454 = vmatpush.bf16.msra.mxu0 %v1397
        %1455 = vmatpush.bf16.msra.mxu0 %v1396
        %1456 = vmatmul.bf16.gmra.mxu0 %v1401
        %v1457 = vpop.f32.mrf.mxu0
        %v1458 = vadd.f32 0.0, %v1457
        %v1459 = vpop.f32.mrf.mxu0
        %v1460 = vadd.f32 0.0, %v1459
        %1461 = vmatmul.bf16.gmra.mxu0 %v1404
        %v1462 = vpop.f32.mrf.mxu0
        %v1463 = vadd.f32 0.0, %v1462
        %v1464 = vpop.f32.mrf.mxu0
        %v1465 = vadd.f32 0.0, %v1464
        %1466 = vmatmul.bf16.gmra.mxu0 %v1407
        %v1467 = vpop.f32.mrf.mxu0
        %v1468 = vadd.f32 0.0, %v1467
        %v1469 = vpop.f32.mrf.mxu0
        %v1470 = vadd.f32 0.0, %v1469
        %1471 = vmatmul.bf16.gmra.mxu0 %v1410
        %v1472 = vpop.f32.mrf.mxu0
        %v1473 = vadd.f32 0.0, %v1472
        %v1474 = vpop.f32.mrf.mxu0
        %v1475 = vadd.f32 0.0, %v1474
        %1476 = vmatmul.bf16.gmra.mxu0 %v1413
        %v1477 = vpop.f32.mrf.mxu0
        %v1478 = vadd.f32 0.0, %v1477
        %v1479 = vpop.f32.mrf.mxu0
        %v1480 = vadd.f32 0.0, %v1479
        %1481 = vmatmul.bf16.gmra.mxu0 %v1416
        %v1482 = vpop.f32.mrf.mxu0
        %v1483 = vadd.f32 0.0, %v1482
        %v1484 = vpop.f32.mrf.mxu0
        %v1485 = vadd.f32 0.0, %v1484
        %1486 = vmatmul.bf16.gmra.mxu0 %v1419
        %v1487 = vpop.f32.mrf.mxu0
        %v1488 = vadd.f32 0.0, %v1487
        %v1489 = vpop.f32.mrf.mxu0
        %v1490 = vadd.f32 0.0, %v1489
        %1491 = vmatmul.bf16.gmra.mxu0 %v1422
        %v1492 = vpop.f32.mrf.mxu0
        %v1493 = vadd.f32 0.0, %v1492
        %v1494 = vpop.f32.mrf.mxu0
        %v1495 = vadd.f32 0.0, %v1494
        %1496 = vmatmul.bf16.gmra.mxu0 %v1425
        %v1497 = vpop.f32.mrf.mxu0
        %v1498 = vadd.f32 0.0, %v1497
        %v1499 = vpop.f32.mrf.mxu0
        %v1500 = vadd.f32 0.0, %v1499
        %1501 = vmatmul.bf16.gmra.mxu0 %v1428
        %v1502 = vpop.f32.mrf.mxu0
        %v1503 = vadd.f32 0.0, %v1502
        %v1504 = vpop.f32.mrf.mxu0
        %v1505 = vadd.f32 0.0, %v1504
        %1506 = vmatmul.bf16.gmra.mxu0 %v1431
        %v1507 = vpop.f32.mrf.mxu0
        %v1508 = vadd.f32 0.0, %v1507
        %v1509 = vpop.f32.mrf.mxu0
        %v1510 = vadd.f32 0.0, %v1509
        %1511 = vmatmul.bf16.gmra.mxu0 %v1434
        %v1512 = vpop.f32.mrf.mxu0
        %v1513 = vadd.f32 0.0, %v1512
        %v1514 = vpop.f32.mrf.mxu0
        %v1515 = vadd.f32 0.0, %v1514
        %1516 = vmatmul.bf16.gmra.mxu0 %v1437
        %v1517 = vpop.f32.mrf.mxu0
        %v1518 = vadd.f32 0.0, %v1517
        %v1519 = vpop.f32.mrf.mxu0
        %v1520 = vadd.f32 0.0, %v1519
        %1521 = vmatmul.bf16.gmra.mxu0 %v1440
        %v1522 = vpop.f32.mrf.mxu0
        %v1523 = vadd.f32 0.0, %v1522
        %v1524 = vpop.f32.mrf.mxu0
        %v1525 = vadd.f32 0.0, %v1524
        %1526 = vmatmul.bf16.gmra.mxu0 %v1443
        %v1527 = vpop.f32.mrf.mxu0
        %v1528 = vadd.f32 0.0, %v1527
        %v1529 = vpop.f32.mrf.mxu0
        %v1530 = vadd.f32 0.0, %v1529
        %1531 = vmatmul.bf16.gmra.mxu0 %v1446
        %v1532 = vpop.f32.mrf.mxu0
        %v1533 = vadd.f32 0.0, %v1532
        %v1534 = vpop.f32.mrf.mxu0
        %v1535 = vadd.f32 0.0, %v1534
        %1536 = vdwg.mxu0
        %v1537 = vadd.f32 %v1303, %v1458
        %v1538 = vadd.f32 %v1304, %v1460
        %v1539 = vadd.f32 %v1305, %v1463
        %v1540 = vadd.f32 %v1306, %v1465
        %v1541 = vadd.f32 %v1307, %v1468
        %v1542 = vadd.f32 %v1308, %v1470
        %v1543 = vadd.f32 %v1309, %v1473
        %v1544 = vadd.f32 %v1310, %v1475
        %v1545 = vadd.f32 %v1311, %v1478
        %v1546 = vadd.f32 %v1312, %v1480
        %v1547 = vadd.f32 %v1313, %v1483
        %v1548 = vadd.f32 %v1314, %v1485
        %v1549 = vadd.f32 %v1315, %v1488
        %v1550 = vadd.f32 %v1316, %v1490
        %v1551 = vadd.f32 %v1317, %v1493
        %v1552 = vadd.f32 %v1318, %v1495
        %v1553 = vadd.f32 %v1319, %v1498
        %v1554 = vadd.f32 %v1320, %v1500
        %v1555 = vadd.f32 %v1321, %v1503
        %v1556 = vadd.f32 %v1322, %v1505
        %v1557 = vadd.f32 %v1323, %v1508
        %v1558 = vadd.f32 %v1324, %v1510
        %v1559 = vadd.f32 %v1325, %v1513
        %v1560 = vadd.f32 %v1326, %v1515
        %v1561 = vadd.f32 %v1327, %v1518
        %v1562 = vadd.f32 %v1328, %v1520
        %v1563 = vadd.f32 %v1329, %v1523
        %v1564 = vadd.f32 %v1330, %v1525
        %v1565 = vadd.f32 %v1331, %v1528
        %v1566 = vadd.f32 %v1332, %v1530
        %v1567 = vadd.f32 %v1333, %v1533
        %v1568 = vadd.f32 %v1334, %v1535
        %v1569 = vld [vmem:[%s431 + $0x2] sm:$0xff]
        %v1570 = vld [vmem:[%s431 + $0xa] sm:$0xff]
        %v1571 = vld [vmem:[%s431 + $0x1a] sm:$0xff]
        %v1572 = vld [vmem:[%s431 + $0x22] sm:$0xff]
        %v1573 = vld [vmem:[%s431 + $0x32] sm:$0xff]
        %v1574 = vld [vmem:[%s431 + $0x3a] sm:$0xff]
        %v1575 = vld [vmem:[%s431 + $0x4a] sm:$0xff]
        %v1576 = vld [vmem:[%s431 + $0x52] sm:$0xff]
        %v1577 = vld [vmem:[%s431 + $0x62] sm:$0xff]
        %v1578 = vld [vmem:[%s431 + $0x6a] sm:$0xff]
        %v1579 = vld [vmem:[%s431 + $0x7a] sm:$0xff]
        %v1580 = vld [vmem:[%s431 + $0x82] sm:$0xff]
        %v1581 = vld [vmem:[%s431 + $0x92] sm:$0xff]
        %v1582 = vld [vmem:[%s431 + $0x9a] sm:$0xff]
        %v1583 = vld [vmem:[%s431 + $0xaa] sm:$0xff]
        %v1584 = vld [vmem:[%s431 + $0xb2] sm:$0xff]
        %v1585 = vld [vmem:[%s431 + $0xc2] sm:$0xff]
        %v1586 = vld [vmem:[%s431 + $0xca] sm:$0xff]
        %v1587 = vld [vmem:[%s431 + $0xda] sm:$0xff]
        %v1588 = vld [vmem:[%s431 + $0xe2] sm:$0xff]
        %v1589 = vld [vmem:[%s431 + $0xf2] sm:$0xff]
        %v1590 = vld [vmem:[%s431 + $0xfa] sm:$0xff]
        %v1591 = vld [vmem:[%s431 + $0x10a] sm:$0xff]
        %v1592 = vld [vmem:[%s431 + $0x112] sm:$0xff]
        %v1593 = vld [vmem:[%s431 + $0x122] sm:$0xff]
        %v1594 = vld [vmem:[%s431 + $0x12a] sm:$0xff]
        %v1595 = vld [vmem:[%s431 + $0x13a] sm:$0xff]
        %v1596 = vld [vmem:[%s431 + $0x142] sm:$0xff]
        %v1597 = vld [vmem:[%s431 + $0x152] sm:$0xff]
        %v1598 = vld [vmem:[%s431 + $0x15a] sm:$0xff]
        %v1599 = vld [vmem:[%s431 + $0x16a] sm:$0xff]
        %v1600 = vld [vmem:[%s431 + $0x172] sm:$0xff]
        %v1601 = vpack.c.bf16 %v1570, %v1569
        %v1602 = vpack.c.bf16 %v1572, %v1571
        %v1603 = vpack.c.bf16 %v1574, %v1573
        %v1604 = vpack.c.bf16 %v1576, %v1575
        %v1605 = vpack.c.bf16 %v1578, %v1577
        %v1606 = vpack.c.bf16 %v1580, %v1579
        %v1607 = vpack.c.bf16 %v1582, %v1581
        %v1608 = vpack.c.bf16 %v1584, %v1583
        %v1609 = vpack.c.bf16 %v1586, %v1585
        %v1610 = vpack.c.bf16 %v1588, %v1587
        %v1611 = vpack.c.bf16 %v1590, %v1589
        %v1612 = vpack.c.bf16 %v1592, %v1591
        %v1613 = vpack.c.bf16 %v1594, %v1593
        %v1614 = vpack.c.bf16 %v1596, %v1595
        %v1615 = vpack.c.bf16 %v1598, %v1597
        %v1616 = vpack.c.bf16 %v1600, %v1599
        %s1617 = scalar_lea.vmem [#allocation4], 80
        %v1618 = vld [vmem:[%s1617] sm:$0xf]
        %v1619 = vld [vmem:[%s1617 + $0x4] sm:$0xf]
        %v1620 = vld [vmem:[%s1617 + $0x8] sm:$0xf]
        %v1621 = vld [vmem:[%s1617 + $0xc] sm:$0xf]
        %v1626 = vunpack.c.l.b16 %v1618
        %v1627 = vunpack.c.l.b16 %v1619
        %v1628 = vunpack.c.l.b16 %v1620
        %v1629 = vunpack.c.l.b16 %v1621
        %v1630 = vpack.c.b16 %v1627, %v1626
        %v1631 = vpack.c.b16 %v1629, %v1628
        %v1635 = vsel %vm375, %v1601, 0
        %v1638 = vsel %vm375, %v1602, 0
        %v1641 = vsel %vm375, %v1603, 0
        %v1644 = vsel %vm375, %v1604, 0
        %v1647 = vsel %vm375, %v1605, 0
        %v1650 = vsel %vm375, %v1606, 0
        %v1653 = vsel %vm375, %v1607, 0
        %v1656 = vsel %vm375, %v1608, 0
        %v1659 = vsel %vm375, %v1609, 0
        %v1662 = vsel %vm375, %v1610, 0
        %v1665 = vsel %vm375, %v1611, 0
        %v1668 = vsel %vm375, %v1612, 0
        %v1671 = vsel %vm375, %v1613, 0
        %v1674 = vsel %vm375, %v1614, 0
        %v1677 = vsel %vm375, %v1615, 0
        %v1680 = vsel %vm375, %v1616, 0
        %1682 = vmatpush.bf16.msra.mxu0 0
        %1683 = vmatpush.bf16.msra.mxu0 0
        %1684 = vmatpush.bf16.msra.mxu0 0
        %1685 = vmatpush.bf16.msra.mxu0 0
        %1686 = vmatpush.bf16.msra.mxu0 0
        %1687 = vmatpush.bf16.msra.mxu0 0
        %1688 = vmatpush.bf16.msra.mxu0 %v1631
        %1689 = vmatpush.bf16.msra.mxu0 %v1630
        %1690 = vmatmul.bf16.gmra.mxu0 %v1635
        %v1691 = vpop.f32.mrf.mxu0
        %v1692 = vadd.f32 0.0, %v1691
        %v1693 = vpop.f32.mrf.mxu0
        %v1694 = vadd.f32 0.0, %v1693
        %1695 = vmatmul.bf16.gmra.mxu0 %v1638
        %v1696 = vpop.f32.mrf.mxu0
        %v1697 = vadd.f32 0.0, %v1696
        %v1698 = vpop.f32.mrf.mxu0
        %v1699 = vadd.f32 0.0, %v1698
        %1700 = vmatmul.bf16.gmra.mxu0 %v1641
        %v1701 = vpop.f32.mrf.mxu0
        %v1702 = vadd.f32 0.0, %v1701
        %v1703 = vpop.f32.mrf.mxu0
        %v1704 = vadd.f32 0.0, %v1703
        %1705 = vmatmul.bf16.gmra.mxu0 %v1644
        %v1706 = vpop.f32.mrf.mxu0
        %v1707 = vadd.f32 0.0, %v1706
        %v1708 = vpop.f32.mrf.mxu0
        %v1709 = vadd.f32 0.0, %v1708
        %1710 = vmatmul.bf16.gmra.mxu0 %v1647
        %v1711 = vpop.f32.mrf.mxu0
        %v1712 = vadd.f32 0.0, %v1711
        %v1713 = vpop.f32.mrf.mxu0
        %v1714 = vadd.f32 0.0, %v1713
        %1715 = vmatmul.bf16.gmra.mxu0 %v1650
        %v1716 = vpop.f32.mrf.mxu0
        %v1717 = vadd.f32 0.0, %v1716
        %v1718 = vpop.f32.mrf.mxu0
        %v1719 = vadd.f32 0.0, %v1718
        %1720 = vmatmul.bf16.gmra.mxu0 %v1653
        %v1721 = vpop.f32.mrf.mxu0
        %v1722 = vadd.f32 0.0, %v1721
        %v1723 = vpop.f32.mrf.mxu0
        %v1724 = vadd.f32 0.0, %v1723
        %1725 = vmatmul.bf16.gmra.mxu0 %v1656
        %v1726 = vpop.f32.mrf.mxu0
        %v1727 = vadd.f32 0.0, %v1726
        %v1728 = vpop.f32.mrf.mxu0
        %v1729 = vadd.f32 0.0, %v1728
        %1730 = vmatmul.bf16.gmra.mxu0 %v1659
        %v1731 = vpop.f32.mrf.mxu0
        %v1732 = vadd.f32 0.0, %v1731
        %v1733 = vpop.f32.mrf.mxu0
        %v1734 = vadd.f32 0.0, %v1733
        %1735 = vmatmul.bf16.gmra.mxu0 %v1662
        %v1736 = vpop.f32.mrf.mxu0
        %v1737 = vadd.f32 0.0, %v1736
        %v1738 = vpop.f32.mrf.mxu0
        %v1739 = vadd.f32 0.0, %v1738
        %1740 = vmatmul.bf16.gmra.mxu0 %v1665
        %v1741 = vpop.f32.mrf.mxu0
        %v1742 = vadd.f32 0.0, %v1741
        %v1743 = vpop.f32.mrf.mxu0
        %v1744 = vadd.f32 0.0, %v1743
        %1745 = vmatmul.bf16.gmra.mxu0 %v1668
        %v1746 = vpop.f32.mrf.mxu0
        %v1747 = vadd.f32 0.0, %v1746
        %v1748 = vpop.f32.mrf.mxu0
        %v1749 = vadd.f32 0.0, %v1748
        %1750 = vmatmul.bf16.gmra.mxu0 %v1671
        %v1751 = vpop.f32.mrf.mxu0
        %v1752 = vadd.f32 0.0, %v1751
        %v1753 = vpop.f32.mrf.mxu0
        %v1754 = vadd.f32 0.0, %v1753
        %1755 = vmatmul.bf16.gmra.mxu0 %v1674
        %v1756 = vpop.f32.mrf.mxu0
        %v1757 = vadd.f32 0.0, %v1756
        %v1758 = vpop.f32.mrf.mxu0
        %v1759 = vadd.f32 0.0, %v1758
        %1760 = vmatmul.bf16.gmra.mxu0 %v1677
        %v1761 = vpop.f32.mrf.mxu0
        %v1762 = vadd.f32 0.0, %v1761
        %v1763 = vpop.f32.mrf.mxu0
        %v1764 = vadd.f32 0.0, %v1763
        %1765 = vmatmul.bf16.gmra.mxu0 %v1680
        %v1766 = vpop.f32.mrf.mxu0
        %v1767 = vadd.f32 0.0, %v1766
        %v1768 = vpop.f32.mrf.mxu0
        %v1769 = vadd.f32 0.0, %v1768
        %1770 = vdwg.mxu0
        %v1771 = vadd.f32 %v1537, %v1692
        %v1772 = vadd.f32 %v1538, %v1694
        %v1773 = vadd.f32 %v1539, %v1697
        %v1774 = vadd.f32 %v1540, %v1699
        %v1775 = vadd.f32 %v1541, %v1702
        %v1776 = vadd.f32 %v1542, %v1704
        %v1777 = vadd.f32 %v1543, %v1707
        %v1778 = vadd.f32 %v1544, %v1709
        %v1779 = vadd.f32 %v1545, %v1712
        %v1780 = vadd.f32 %v1546, %v1714
        %v1781 = vadd.f32 %v1547, %v1717
        %v1782 = vadd.f32 %v1548, %v1719
        %v1783 = vadd.f32 %v1549, %v1722
        %v1784 = vadd.f32 %v1550, %v1724
        %v1785 = vadd.f32 %v1551, %v1727
        %v1786 = vadd.f32 %v1552, %v1729
        %v1787 = vadd.f32 %v1553, %v1732
        %v1788 = vadd.f32 %v1554, %v1734
        %v1789 = vadd.f32 %v1555, %v1737
        %v1790 = vadd.f32 %v1556, %v1739
        %v1791 = vadd.f32 %v1557, %v1742
        %v1792 = vadd.f32 %v1558, %v1744
        %v1793 = vadd.f32 %v1559, %v1747
        %v1794 = vadd.f32 %v1560, %v1749
        %v1795 = vadd.f32 %v1561, %v1752
        %v1796 = vadd.f32 %v1562, %v1754
        %v1797 = vadd.f32 %v1563, %v1757
        %v1798 = vadd.f32 %v1564, %v1759
        %v1799 = vadd.f32 %v1565, %v1762
        %v1800 = vadd.f32 %v1566, %v1764
        %v1801 = vadd.f32 %v1567, %v1767
        %v1802 = vadd.f32 %v1568, %v1769
        %s1803 = scalar_lea.vmem [#allocation2], 48
        %v1804 = vld [vmem:[%s1803] sm:$0xff]
        %v1805 = vld [vmem:[%s1803 + $0x8] sm:$0xff]
        %v1806 = vld [vmem:[%s1803 + $0x18] sm:$0xff]
        %v1807 = vld [vmem:[%s1803 + $0x20] sm:$0xff]
        %v1808 = vld [vmem:[%s1803 + $0x30] sm:$0xff]
        %v1809 = vld [vmem:[%s1803 + $0x38] sm:$0xff]
        %v1810 = vld [vmem:[%s1803 + $0x48] sm:$0xff]
        %v1811 = vld [vmem:[%s1803 + $0x50] sm:$0xff]
        %v1812 = vld [vmem:[%s1803 + $0x60] sm:$0xff]
        %v1813 = vld [vmem:[%s1803 + $0x68] sm:$0xff]
        %v1814 = vld [vmem:[%s1803 + $0x78] sm:$0xff]
        %v1815 = vld [vmem:[%s1803 + $0x80] sm:$0xff]
        %v1816 = vld [vmem:[%s1803 + $0x90] sm:$0xff]
        %v1817 = vld [vmem:[%s1803 + $0x98] sm:$0xff]
        %v1818 = vld [vmem:[%s1803 + $0xa8] sm:$0xff]
        %v1819 = vld [vmem:[%s1803 + $0xb0] sm:$0xff]
        %v1820 = vld [vmem:[%s1803 + $0xc0] sm:$0xff]
        %v1821 = vld [vmem:[%s1803 + $0xc8] sm:$0xff]
        %v1822 = vld [vmem:[%s1803 + $0xd8] sm:$0xff]
        %v1823 = vld [vmem:[%s1803 + $0xe0] sm:$0xff]
        %v1824 = vld [vmem:[%s1803 + $0xf0] sm:$0xff]
        %v1825 = vld [vmem:[%s1803 + $0xf8] sm:$0xff]
        %v1826 = vld [vmem:[%s1803 + $0x108] sm:$0xff]
        %v1827 = vld [vmem:[%s1803 + $0x110] sm:$0xff]
        %v1828 = vld [vmem:[%s1803 + $0x120] sm:$0xff]
        %v1829 = vld [vmem:[%s1803 + $0x128] sm:$0xff]
        %v1830 = vld [vmem:[%s1803 + $0x138] sm:$0xff]
        %v1831 = vld [vmem:[%s1803 + $0x140] sm:$0xff]
        %v1832 = vld [vmem:[%s1803 + $0x150] sm:$0xff]
        %v1833 = vld [vmem:[%s1803 + $0x158] sm:$0xff]
        %v1834 = vld [vmem:[%s1803 + $0x168] sm:$0xff]
        %v1835 = vld [vmem:[%s1803 + $0x170] sm:$0xff]
        %v1836 = vpack.c.bf16 %v1805, %v1804
        %v1837 = vpack.c.bf16 %v1807, %v1806
        %v1838 = vpack.c.bf16 %v1809, %v1808
        %v1839 = vpack.c.bf16 %v1811, %v1810
        %v1840 = vpack.c.bf16 %v1813, %v1812
        %v1841 = vpack.c.bf16 %v1815, %v1814
        %v1842 = vpack.c.bf16 %v1817, %v1816
        %v1843 = vpack.c.bf16 %v1819, %v1818
        %v1844 = vpack.c.bf16 %v1821, %v1820
        %v1845 = vpack.c.bf16 %v1823, %v1822
        %v1846 = vpack.c.bf16 %v1825, %v1824
        %v1847 = vpack.c.bf16 %v1827, %v1826
        %v1848 = vpack.c.bf16 %v1829, %v1828
        %v1849 = vpack.c.bf16 %v1831, %v1830
        %v1850 = vpack.c.bf16 %v1833, %v1832
        %v1851 = vpack.c.bf16 %v1835, %v1834
        %s1852 = scalar_lea.vmem [#allocation4], 96
        %v1853 = vld [vmem:[%s1852] sm:$0xf]
        %v1854 = vld [vmem:[%s1852 + $0x4] sm:$0xf]
        %v1855 = vld [vmem:[%s1852 + $0x8] sm:$0xf]
        %v1856 = vld [vmem:[%s1852 + $0xc] sm:$0xf]
        %v1861 = vunpack.c.l.b16 %v1853
        %v1862 = vunpack.c.l.b16 %v1854
        %v1863 = vunpack.c.l.b16 %v1855
        %v1864 = vunpack.c.l.b16 %v1856
        %v1865 = vpack.c.b16 %v1862, %v1861
        %v1866 = vpack.c.b16 %v1864, %v1863
        %v1870 = vsel %vm375, %v1836, 0
        %v1873 = vsel %vm375, %v1837, 0
        %v1876 = vsel %vm375, %v1838, 0
        %v1879 = vsel %vm375, %v1839, 0
        %v1882 = vsel %vm375, %v1840, 0
        %v1885 = vsel %vm375, %v1841, 0
        %v1888 = vsel %vm375, %v1842, 0
        %v1891 = vsel %vm375, %v1843, 0
        %v1894 = vsel %vm375, %v1844, 0
        %v1897 = vsel %vm375, %v1845, 0
        %v1900 = vsel %vm375, %v1846, 0
        %v1903 = vsel %vm375, %v1847, 0
        %v1906 = vsel %vm375, %v1848, 0
        %v1909 = vsel %vm375, %v1849, 0
        %v1912 = vsel %vm375, %v1850, 0
        %v1915 = vsel %vm375, %v1851, 0
        %1917 = vmatpush.bf16.msra.mxu0 0
        %1918 = vmatpush.bf16.msra.mxu0 0
        %1919 = vmatpush.bf16.msra.mxu0 0
        %1920 = vmatpush.bf16.msra.mxu0 0
        %1921 = vmatpush.bf16.msra.mxu0 0
        %1922 = vmatpush.bf16.msra.mxu0 0
        %1923 = vmatpush.bf16.msra.mxu0 %v1866
        %1924 = vmatpush.bf16.msra.mxu0 %v1865
        %1925 = vmatmul.bf16.gmra.mxu0 %v1870
        %v1926 = vpop.f32.mrf.mxu0
        %v1927 = vadd.f32 0.0, %v1926
        %v1928 = vpop.f32.mrf.mxu0
        %v1929 = vadd.f32 0.0, %v1928
        %1930 = vmatmul.bf16.gmra.mxu0 %v1873
        %v1931 = vpop.f32.mrf.mxu0
        %v1932 = vadd.f32 0.0, %v1931
        %v1933 = vpop.f32.mrf.mxu0
        %v1934 = vadd.f32 0.0, %v1933
        %1935 = vmatmul.bf16.gmra.mxu0 %v1876
        %v1936 = vpop.f32.mrf.mxu0
        %v1937 = vadd.f32 0.0, %v1936
        %v1938 = vpop.f32.mrf.mxu0
        %v1939 = vadd.f32 0.0, %v1938
        %1940 = vmatmul.bf16.gmra.mxu0 %v1879
        %v1941 = vpop.f32.mrf.mxu0
        %v1942 = vadd.f32 0.0, %v1941
        %v1943 = vpop.f32.mrf.mxu0
        %v1944 = vadd.f32 0.0, %v1943
        %1945 = vmatmul.bf16.gmra.mxu0 %v1882
        %v1946 = vpop.f32.mrf.mxu0
        %v1947 = vadd.f32 0.0, %v1946
        %v1948 = vpop.f32.mrf.mxu0
        %v1949 = vadd.f32 0.0, %v1948
        %1950 = vmatmul.bf16.gmra.mxu0 %v1885
        %v1951 = vpop.f32.mrf.mxu0
        %v1952 = vadd.f32 0.0, %v1951
        %v1953 = vpop.f32.mrf.mxu0
        %v1954 = vadd.f32 0.0, %v1953
        %1955 = vmatmul.bf16.gmra.mxu0 %v1888
        %v1956 = vpop.f32.mrf.mxu0
        %v1957 = vadd.f32 0.0, %v1956
        %v1958 = vpop.f32.mrf.mxu0
        %v1959 = vadd.f32 0.0, %v1958
        %1960 = vmatmul.bf16.gmra.mxu0 %v1891
        %v1961 = vpop.f32.mrf.mxu0
        %v1962 = vadd.f32 0.0, %v1961
        %v1963 = vpop.f32.mrf.mxu0
        %v1964 = vadd.f32 0.0, %v1963
        %1965 = vmatmul.bf16.gmra.mxu0 %v1894
        %v1966 = vpop.f32.mrf.mxu0
        %v1967 = vadd.f32 0.0, %v1966
        %v1968 = vpop.f32.mrf.mxu0
        %v1969 = vadd.f32 0.0, %v1968
        %1970 = vmatmul.bf16.gmra.mxu0 %v1897
        %v1971 = vpop.f32.mrf.mxu0
        %v1972 = vadd.f32 0.0, %v1971
        %v1973 = vpop.f32.mrf.mxu0
        %v1974 = vadd.f32 0.0, %v1973
        %1975 = vmatmul.bf16.gmra.mxu0 %v1900
        %v1976 = vpop.f32.mrf.mxu0
        %v1977 = vadd.f32 0.0, %v1976
        %v1978 = vpop.f32.mrf.mxu0
        %v1979 = vadd.f32 0.0, %v1978
        %1980 = vmatmul.bf16.gmra.mxu0 %v1903
        %v1981 = vpop.f32.mrf.mxu0
        %v1982 = vadd.f32 0.0, %v1981
        %v1983 = vpop.f32.mrf.mxu0
        %v1984 = vadd.f32 0.0, %v1983
        %1985 = vmatmul.bf16.gmra.mxu0 %v1906
        %v1986 = vpop.f32.mrf.mxu0
        %v1987 = vadd.f32 0.0, %v1986
        %v1988 = vpop.f32.mrf.mxu0
        %v1989 = vadd.f32 0.0, %v1988
        %1990 = vmatmul.bf16.gmra.mxu0 %v1909
        %v1991 = vpop.f32.mrf.mxu0
        %v1992 = vadd.f32 0.0, %v1991
        %v1993 = vpop.f32.mrf.mxu0
        %v1994 = vadd.f32 0.0, %v1993
        %1995 = vmatmul.bf16.gmra.mxu0 %v1912
        %v1996 = vpop.f32.mrf.mxu0
        %v1997 = vadd.f32 0.0, %v1996
        %v1998 = vpop.f32.mrf.mxu0
        %v1999 = vadd.f32 0.0, %v1998
        %2000 = vmatmul.bf16.gmra.mxu0 %v1915
        %v2001 = vpop.f32.mrf.mxu0
        %v2002 = vadd.f32 0.0, %v2001
        %v2003 = vpop.f32.mrf.mxu0
        %v2004 = vadd.f32 0.0, %v2003
        %2005 = vdwg.mxu0
        %v2006 = vadd.f32 %v1771, %v1927
        %v2007 = vadd.f32 %v1772, %v1929
        %v2008 = vadd.f32 %v1773, %v1932
        %v2009 = vadd.f32 %v1774, %v1934
        %v2010 = vadd.f32 %v1775, %v1937
        %v2011 = vadd.f32 %v1776, %v1939
        %v2012 = vadd.f32 %v1777, %v1942
        %v2013 = vadd.f32 %v1778, %v1944
        %v2014 = vadd.f32 %v1779, %v1947
        %v2015 = vadd.f32 %v1780, %v1949
        %v2016 = vadd.f32 %v1781, %v1952
        %v2017 = vadd.f32 %v1782, %v1954
        %v2018 = vadd.f32 %v1783, %v1957
        %v2019 = vadd.f32 %v1784, %v1959
        %v2020 = vadd.f32 %v1785, %v1962
        %v2021 = vadd.f32 %v1786, %v1964
        %v2022 = vadd.f32 %v1787, %v1967
        %v2023 = vadd.f32 %v1788, %v1969
        %v2024 = vadd.f32 %v1789, %v1972
        %v2025 = vadd.f32 %v1790, %v1974
        %v2026 = vadd.f32 %v1791, %v1977
        %v2027 = vadd.f32 %v1792, %v1979
        %v2028 = vadd.f32 %v1793, %v1982
        %v2029 = vadd.f32 %v1794, %v1984
        %v2030 = vadd.f32 %v1795, %v1987
        %v2031 = vadd.f32 %v1796, %v1989
        %v2032 = vadd.f32 %v1797, %v1992
        %v2033 = vadd.f32 %v1798, %v1994
        %v2034 = vadd.f32 %v1799, %v1997
        %v2035 = vadd.f32 %v1800, %v1999
        %v2036 = vadd.f32 %v1801, %v2002
        %v2037 = vadd.f32 %v1802, %v2004
        %v2038 = vld [vmem:[%s1803 + $0x1] sm:$0xff]
        %v2039 = vld [vmem:[%s1803 + $0x9] sm:$0xff]
        %v2040 = vld [vmem:[%s1803 + $0x19] sm:$0xff]
        %v2041 = vld [vmem:[%s1803 + $0x21] sm:$0xff]
        %v2042 = vld [vmem:[%s1803 + $0x31] sm:$0xff]
        %v2043 = vld [vmem:[%s1803 + $0x39] sm:$0xff]
        %v2044 = vld [vmem:[%s1803 + $0x49] sm:$0xff]
        %v2045 = vld [vmem:[%s1803 + $0x51] sm:$0xff]
        %v2046 = vld [vmem:[%s1803 + $0x61] sm:$0xff]
        %v2047 = vld [vmem:[%s1803 + $0x69] sm:$0xff]
        %v2048 = vld [vmem:[%s1803 + $0x79] sm:$0xff]
        %v2049 = vld [vmem:[%s1803 + $0x81] sm:$0xff]
        %v2050 = vld [vmem:[%s1803 + $0x91] sm:$0xff]
        %v2051 = vld [vmem:[%s1803 + $0x99] sm:$0xff]
        %v2052 = vld [vmem:[%s1803 + $0xa9] sm:$0xff]
        %v2053 = vld [vmem:[%s1803 + $0xb1] sm:$0xff]
        %v2054 = vld [vmem:[%s1803 + $0xc1] sm:$0xff]
        %v2055 = vld [vmem:[%s1803 + $0xc9] sm:$0xff]
        %v2056 = vld [vmem:[%s1803 + $0xd9] sm:$0xff]
        %v2057 = vld [vmem:[%s1803 + $0xe1] sm:$0xff]
        %v2058 = vld [vmem:[%s1803 + $0xf1] sm:$0xff]
        %v2059 = vld [vmem:[%s1803 + $0xf9] sm:$0xff]
        %v2060 = vld [vmem:[%s1803 + $0x109] sm:$0xff]
        %v2061 = vld [vmem:[%s1803 + $0x111] sm:$0xff]
        %v2062 = vld [vmem:[%s1803 + $0x121] sm:$0xff]
        %v2063 = vld [vmem:[%s1803 + $0x129] sm:$0xff]
        %v2064 = vld [vmem:[%s1803 + $0x139] sm:$0xff]
        %v2065 = vld [vmem:[%s1803 + $0x141] sm:$0xff]
        %v2066 = vld [vmem:[%s1803 + $0x151] sm:$0xff]
        %v2067 = vld [vmem:[%s1803 + $0x159] sm:$0xff]
        %v2068 = vld [vmem:[%s1803 + $0x169] sm:$0xff]
        %v2069 = vld [vmem:[%s1803 + $0x171] sm:$0xff]
        %v2070 = vpack.c.bf16 %v2039, %v2038
        %v2071 = vpack.c.bf16 %v2041, %v2040
        %v2072 = vpack.c.bf16 %v2043, %v2042
        %v2073 = vpack.c.bf16 %v2045, %v2044
        %v2074 = vpack.c.bf16 %v2047, %v2046
        %v2075 = vpack.c.bf16 %v2049, %v2048
        %v2076 = vpack.c.bf16 %v2051, %v2050
        %v2077 = vpack.c.bf16 %v2053, %v2052
        %v2078 = vpack.c.bf16 %v2055, %v2054
        %v2079 = vpack.c.bf16 %v2057, %v2056
        %v2080 = vpack.c.bf16 %v2059, %v2058
        %v2081 = vpack.c.bf16 %v2061, %v2060
        %v2082 = vpack.c.bf16 %v2063, %v2062
        %v2083 = vpack.c.bf16 %v2065, %v2064
        %v2084 = vpack.c.bf16 %v2067, %v2066
        %v2085 = vpack.c.bf16 %v2069, %v2068
        %s2086 = scalar_lea.vmem [#allocation4], 112
        %v2087 = vld [vmem:[%s2086] sm:$0xf]
        %v2088 = vld [vmem:[%s2086 + $0x4] sm:$0xf]
        %v2089 = vld [vmem:[%s2086 + $0x8] sm:$0xf]
        %v2090 = vld [vmem:[%s2086 + $0xc] sm:$0xf]
        %v2095 = vunpack.c.l.b16 %v2087
        %v2096 = vunpack.c.l.b16 %v2088
        %v2097 = vunpack.c.l.b16 %v2089
        %v2098 = vunpack.c.l.b16 %v2090
        %v2099 = vpack.c.b16 %v2096, %v2095
        %v2100 = vpack.c.b16 %v2098, %v2097
        %v2104 = vsel %vm375, %v2070, 0
        %v2107 = vsel %vm375, %v2071, 0
        %v2110 = vsel %vm375, %v2072, 0
        %v2113 = vsel %vm375, %v2073, 0
        %v2116 = vsel %vm375, %v2074, 0
        %v2119 = vsel %vm375, %v2075, 0
        %v2122 = vsel %vm375, %v2076, 0
        %v2125 = vsel %vm375, %v2077, 0
        %v2128 = vsel %vm375, %v2078, 0
        %v2131 = vsel %vm375, %v2079, 0
        %v2134 = vsel %vm375, %v2080, 0
        %v2137 = vsel %vm375, %v2081, 0
        %v2140 = vsel %vm375, %v2082, 0
        %v2143 = vsel %vm375, %v2083, 0
        %v2146 = vsel %vm375, %v2084, 0
        %v2149 = vsel %vm375, %v2085, 0
        %2151 = vmatpush.bf16.msra.mxu0 0
        %2152 = vmatpush.bf16.msra.mxu0 0
        %2153 = vmatpush.bf16.msra.mxu0 0
        %2154 = vmatpush.bf16.msra.mxu0 0
        %2155 = vmatpush.bf16.msra.mxu0 0
        %2156 = vmatpush.bf16.msra.mxu0 0
        %2157 = vmatpush.bf16.msra.mxu0 %v2100
        %2158 = vmatpush.bf16.msra.mxu0 %v2099
        %2159 = vmatmul.bf16.gmra.mxu0 %v2104
        %v2160 = vpop.f32.mrf.mxu0
        %v2161 = vadd.f32 0.0, %v2160
        %v2162 = vpop.f32.mrf.mxu0
        %v2163 = vadd.f32 0.0, %v2162
        %2164 = vmatmul.bf16.gmra.mxu0 %v2107
        %v2165 = vpop.f32.mrf.mxu0
        %v2166 = vadd.f32 0.0, %v2165
        %v2167 = vpop.f32.mrf.mxu0
        %v2168 = vadd.f32 0.0, %v2167
        %2169 = vmatmul.bf16.gmra.mxu0 %v2110
        %v2170 = vpop.f32.mrf.mxu0
        %v2171 = vadd.f32 0.0, %v2170
        %v2172 = vpop.f32.mrf.mxu0
        %v2173 = vadd.f32 0.0, %v2172
        %2174 = vmatmul.bf16.gmra.mxu0 %v2113
        %v2175 = vpop.f32.mrf.mxu0
        %v2176 = vadd.f32 0.0, %v2175
        %v2177 = vpop.f32.mrf.mxu0
        %v2178 = vadd.f32 0.0, %v2177
        %2179 = vmatmul.bf16.gmra.mxu0 %v2116
        %v2180 = vpop.f32.mrf.mxu0
        %v2181 = vadd.f32 0.0, %v2180
        %v2182 = vpop.f32.mrf.mxu0
        %v2183 = vadd.f32 0.0, %v2182
        %2184 = vmatmul.bf16.gmra.mxu0 %v2119
        %v2185 = vpop.f32.mrf.mxu0
        %v2186 = vadd.f32 0.0, %v2185
        %v2187 = vpop.f32.mrf.mxu0
        %v2188 = vadd.f32 0.0, %v2187
        %2189 = vmatmul.bf16.gmra.mxu0 %v2122
        %v2190 = vpop.f32.mrf.mxu0
        %v2191 = vadd.f32 0.0, %v2190
        %v2192 = vpop.f32.mrf.mxu0
        %v2193 = vadd.f32 0.0, %v2192
        %2194 = vmatmul.bf16.gmra.mxu0 %v2125
        %v2195 = vpop.f32.mrf.mxu0
        %v2196 = vadd.f32 0.0, %v2195
        %v2197 = vpop.f32.mrf.mxu0
        %v2198 = vadd.f32 0.0, %v2197
        %2199 = vmatmul.bf16.gmra.mxu0 %v2128
        %v2200 = vpop.f32.mrf.mxu0
        %v2201 = vadd.f32 0.0, %v2200
        %v2202 = vpop.f32.mrf.mxu0
        %v2203 = vadd.f32 0.0, %v2202
        %2204 = vmatmul.bf16.gmra.mxu0 %v2131
        %v2205 = vpop.f32.mrf.mxu0
        %v2206 = vadd.f32 0.0, %v2205
        %v2207 = vpop.f32.mrf.mxu0
        %v2208 = vadd.f32 0.0, %v2207
        %2209 = vmatmul.bf16.gmra.mxu0 %v2134
        %v2210 = vpop.f32.mrf.mxu0
        %v2211 = vadd.f32 0.0, %v2210
        %v2212 = vpop.f32.mrf.mxu0
        %v2213 = vadd.f32 0.0, %v2212
        %2214 = vmatmul.bf16.gmra.mxu0 %v2137
        %v2215 = vpop.f32.mrf.mxu0
        %v2216 = vadd.f32 0.0, %v2215
        %v2217 = vpop.f32.mrf.mxu0
        %v2218 = vadd.f32 0.0, %v2217
        %2219 = vmatmul.bf16.gmra.mxu0 %v2140
        %v2220 = vpop.f32.mrf.mxu0
        %v2221 = vadd.f32 0.0, %v2220
        %v2222 = vpop.f32.mrf.mxu0
        %v2223 = vadd.f32 0.0, %v2222
        %2224 = vmatmul.bf16.gmra.mxu0 %v2143
        %v2225 = vpop.f32.mrf.mxu0
        %v2226 = vadd.f32 0.0, %v2225
        %v2227 = vpop.f32.mrf.mxu0
        %v2228 = vadd.f32 0.0, %v2227
        %2229 = vmatmul.bf16.gmra.mxu0 %v2146
        %v2230 = vpop.f32.mrf.mxu0
        %v2231 = vadd.f32 0.0, %v2230
        %v2232 = vpop.f32.mrf.mxu0
        %v2233 = vadd.f32 0.0, %v2232
        %2234 = vmatmul.bf16.gmra.mxu0 %v2149
        %v2235 = vpop.f32.mrf.mxu0
        %v2236 = vadd.f32 0.0, %v2235
        %v2237 = vpop.f32.mrf.mxu0
        %v2238 = vadd.f32 0.0, %v2237
        %2239 = vdwg.mxu0
        %v2240 = vadd.f32 %v2006, %v2161
        %v2241 = vadd.f32 %v2007, %v2163
        %v2242 = vadd.f32 %v2008, %v2166
        %v2243 = vadd.f32 %v2009, %v2168
        %v2244 = vadd.f32 %v2010, %v2171
        %v2245 = vadd.f32 %v2011, %v2173
        %v2246 = vadd.f32 %v2012, %v2176
        %v2247 = vadd.f32 %v2013, %v2178
        %v2248 = vadd.f32 %v2014, %v2181
        %v2249 = vadd.f32 %v2015, %v2183
        %v2250 = vadd.f32 %v2016, %v2186
        %v2251 = vadd.f32 %v2017, %v2188
        %v2252 = vadd.f32 %v2018, %v2191
        %v2253 = vadd.f32 %v2019, %v2193
        %v2254 = vadd.f32 %v2020, %v2196
        %v2255 = vadd.f32 %v2021, %v2198
        %v2256 = vadd.f32 %v2022, %v2201
        %v2257 = vadd.f32 %v2023, %v2203
        %v2258 = vadd.f32 %v2024, %v2206
        %v2259 = vadd.f32 %v2025, %v2208
        %v2260 = vadd.f32 %v2026, %v2211
        %v2261 = vadd.f32 %v2027, %v2213
        %v2262 = vadd.f32 %v2028, %v2216
        %v2263 = vadd.f32 %v2029, %v2218
        %v2264 = vadd.f32 %v2030, %v2221
        %v2265 = vadd.f32 %v2031, %v2223
        %v2266 = vadd.f32 %v2032, %v2226
        %v2267 = vadd.f32 %v2033, %v2228
        %v2268 = vadd.f32 %v2034, %v2231
        %v2269 = vadd.f32 %v2035, %v2233
        %v2270 = vadd.f32 %v2036, %v2236
        %v2271 = vadd.f32 %v2037, %v2238
        %v2272 = vld [vmem:[%s1803 + $0x2] sm:$0xff]
        %v2273 = vld [vmem:[%s1803 + $0xa] sm:$0xff]
        %v2274 = vld [vmem:[%s1803 + $0x1a] sm:$0xff]
        %v2275 = vld [vmem:[%s1803 + $0x22] sm:$0xff]
        %v2276 = vld [vmem:[%s1803 + $0x32] sm:$0xff]
        %v2277 = vld [vmem:[%s1803 + $0x3a] sm:$0xff]
        %v2278 = vld [vmem:[%s1803 + $0x4a] sm:$0xff]
        %v2279 = vld [vmem:[%s1803 + $0x52] sm:$0xff]
        %v2280 = vld [vmem:[%s1803 + $0x62] sm:$0xff]
        %v2281 = vld [vmem:[%s1803 + $0x6a] sm:$0xff]
        %v2282 = vld [vmem:[%s1803 + $0x7a] sm:$0xff]
        %v2283 = vld [vmem:[%s1803 + $0x82] sm:$0xff]
        %v2284 = vld [vmem:[%s1803 + $0x92] sm:$0xff]
        %v2285 = vld [vmem:[%s1803 + $0x9a] sm:$0xff]
        %v2286 = vld [vmem:[%s1803 + $0xaa] sm:$0xff]
        %v2287 = vld [vmem:[%s1803 + $0xb2] sm:$0xff]
        %v2288 = vld [vmem:[%s1803 + $0xc2] sm:$0xff]
        %v2289 = vld [vmem:[%s1803 + $0xca] sm:$0xff]
        %v2290 = vld [vmem:[%s1803 + $0xda] sm:$0xff]
        %v2291 = vld [vmem:[%s1803 + $0xe2] sm:$0xff]
        %v2292 = vld [vmem:[%s1803 + $0xf2] sm:$0xff]
        %v2293 = vld [vmem:[%s1803 + $0xfa] sm:$0xff]
        %v2294 = vld [vmem:[%s1803 + $0x10a] sm:$0xff]
        %v2295 = vld [vmem:[%s1803 + $0x112] sm:$0xff]
        %v2296 = vld [vmem:[%s1803 + $0x122] sm:$0xff]
        %v2297 = vld [vmem:[%s1803 + $0x12a] sm:$0xff]
        %v2298 = vld [vmem:[%s1803 + $0x13a] sm:$0xff]
        %v2299 = vld [vmem:[%s1803 + $0x142] sm:$0xff]
        %v2300 = vld [vmem:[%s1803 + $0x152] sm:$0xff]
        %v2301 = vld [vmem:[%s1803 + $0x15a] sm:$0xff]
        %v2302 = vld [vmem:[%s1803 + $0x16a] sm:$0xff]
        %v2303 = vld [vmem:[%s1803 + $0x172] sm:$0xff]
        %v2304 = vpack.c.bf16 %v2273, %v2272
        %v2305 = vpack.c.bf16 %v2275, %v2274
        %v2306 = vpack.c.bf16 %v2277, %v2276
        %v2307 = vpack.c.bf16 %v2279, %v2278
        %v2308 = vpack.c.bf16 %v2281, %v2280
        %v2309 = vpack.c.bf16 %v2283, %v2282
        %v2310 = vpack.c.bf16 %v2285, %v2284
        %v2311 = vpack.c.bf16 %v2287, %v2286
        %v2312 = vpack.c.bf16 %v2289, %v2288
        %v2313 = vpack.c.bf16 %v2291, %v2290
        %v2314 = vpack.c.bf16 %v2293, %v2292
        %v2315 = vpack.c.bf16 %v2295, %v2294
        %v2316 = vpack.c.bf16 %v2297, %v2296
        %v2317 = vpack.c.bf16 %v2299, %v2298
        %v2318 = vpack.c.bf16 %v2301, %v2300
        %v2319 = vpack.c.bf16 %v2303, %v2302
        %s2320 = scalar_lea.vmem [#allocation4], 128
        %v2321 = vld [vmem:[%s2320] sm:$0xf]
        %v2322 = vld [vmem:[%s2320 + $0x4] sm:$0xf]
        %v2323 = vld [vmem:[%s2320 + $0x8] sm:$0xf]
        %v2324 = vld [vmem:[%s2320 + $0xc] sm:$0xf]
        %v2329 = vunpack.c.l.b16 %v2321
        %v2330 = vunpack.c.l.b16 %v2322
        %v2331 = vunpack.c.l.b16 %v2323
        %v2332 = vunpack.c.l.b16 %v2324
        %v2333 = vpack.c.b16 %v2330, %v2329
        %v2334 = vpack.c.b16 %v2332, %v2331
        %v2338 = vsel %vm375, %v2304, 0
        %v2341 = vsel %vm375, %v2305, 0
        %v2344 = vsel %vm375, %v2306, 0
        %v2347 = vsel %vm375, %v2307, 0
        %v2350 = vsel %vm375, %v2308, 0
        %v2353 = vsel %vm375, %v2309, 0
        %v2356 = vsel %vm375, %v2310, 0
        %v2359 = vsel %vm375, %v2311, 0
        %v2362 = vsel %vm375, %v2312, 0
        %v2365 = vsel %vm375, %v2313, 0
        %v2368 = vsel %vm375, %v2314, 0
        %v2371 = vsel %vm375, %v2315, 0
        %v2374 = vsel %vm375, %v2316, 0
        %v2377 = vsel %vm375, %v2317, 0
        %v2380 = vsel %vm375, %v2318, 0
        %v2383 = vsel %vm375, %v2319, 0
        %2385 = vmatpush.bf16.msra.mxu0 0
        %2386 = vmatpush.bf16.msra.mxu0 0
        %2387 = vmatpush.bf16.msra.mxu0 0
        %2388 = vmatpush.bf16.msra.mxu0 0
        %2389 = vmatpush.bf16.msra.mxu0 0
        %2390 = vmatpush.bf16.msra.mxu0 0
        %2391 = vmatpush.bf16.msra.mxu0 %v2334
        %2392 = vmatpush.bf16.msra.mxu0 %v2333
        %2393 = vmatmul.bf16.gmra.mxu0 %v2338
        %v2394 = vpop.f32.mrf.mxu0
        %v2395 = vadd.f32 0.0, %v2394
        %v2396 = vpop.f32.mrf.mxu0
        %v2397 = vadd.f32 0.0, %v2396
        %2398 = vmatmul.bf16.gmra.mxu0 %v2341
        %v2399 = vpop.f32.mrf.mxu0
        %v2400 = vadd.f32 0.0, %v2399
        %v2401 = vpop.f32.mrf.mxu0
        %v2402 = vadd.f32 0.0, %v2401
        %2403 = vmatmul.bf16.gmra.mxu0 %v2344
        %v2404 = vpop.f32.mrf.mxu0
        %v2405 = vadd.f32 0.0, %v2404
        %v2406 = vpop.f32.mrf.mxu0
        %v2407 = vadd.f32 0.0, %v2406
        %2408 = vmatmul.bf16.gmra.mxu0 %v2347
        %v2409 = vpop.f32.mrf.mxu0
        %v2410 = vadd.f32 0.0, %v2409
        %v2411 = vpop.f32.mrf.mxu0
        %v2412 = vadd.f32 0.0, %v2411
        %2413 = vmatmul.bf16.gmra.mxu0 %v2350
        %v2414 = vpop.f32.mrf.mxu0
        %v2415 = vadd.f32 0.0, %v2414
        %v2416 = vpop.f32.mrf.mxu0
        %v2417 = vadd.f32 0.0, %v2416
        %2418 = vmatmul.bf16.gmra.mxu0 %v2353
        %v2419 = vpop.f32.mrf.mxu0
        %v2420 = vadd.f32 0.0, %v2419
        %v2421 = vpop.f32.mrf.mxu0
        %v2422 = vadd.f32 0.0, %v2421
        %2423 = vmatmul.bf16.gmra.mxu0 %v2356
        %v2424 = vpop.f32.mrf.mxu0
        %v2425 = vadd.f32 0.0, %v2424
        %v2426 = vpop.f32.mrf.mxu0
        %v2427 = vadd.f32 0.0, %v2426
        %2428 = vmatmul.bf16.gmra.mxu0 %v2359
        %v2429 = vpop.f32.mrf.mxu0
        %v2430 = vadd.f32 0.0, %v2429
        %v2431 = vpop.f32.mrf.mxu0
        %v2432 = vadd.f32 0.0, %v2431
        %2433 = vmatmul.bf16.gmra.mxu0 %v2362
        %v2434 = vpop.f32.mrf.mxu0
        %v2435 = vadd.f32 0.0, %v2434
        %v2436 = vpop.f32.mrf.mxu0
        %v2437 = vadd.f32 0.0, %v2436
        %2438 = vmatmul.bf16.gmra.mxu0 %v2365
        %v2439 = vpop.f32.mrf.mxu0
        %v2440 = vadd.f32 0.0, %v2439
        %v2441 = vpop.f32.mrf.mxu0
        %v2442 = vadd.f32 0.0, %v2441
        %2443 = vmatmul.bf16.gmra.mxu0 %v2368
        %v2444 = vpop.f32.mrf.mxu0
        %v2445 = vadd.f32 0.0, %v2444
        %v2446 = vpop.f32.mrf.mxu0
        %v2447 = vadd.f32 0.0, %v2446
        %2448 = vmatmul.bf16.gmra.mxu0 %v2371
        %v2449 = vpop.f32.mrf.mxu0
        %v2450 = vadd.f32 0.0, %v2449
        %v2451 = vpop.f32.mrf.mxu0
        %v2452 = vadd.f32 0.0, %v2451
        %2453 = vmatmul.bf16.gmra.mxu0 %v2374
        %v2454 = vpop.f32.mrf.mxu0
        %v2455 = vadd.f32 0.0, %v2454
        %v2456 = vpop.f32.mrf.mxu0
        %v2457 = vadd.f32 0.0, %v2456
        %2458 = vmatmul.bf16.gmra.mxu0 %v2377
        %v2459 = vpop.f32.mrf.mxu0
        %v2460 = vadd.f32 0.0, %v2459
        %v2461 = vpop.f32.mrf.mxu0
        %v2462 = vadd.f32 0.0, %v2461
        %2463 = vmatmul.bf16.gmra.mxu0 %v2380
        %v2464 = vpop.f32.mrf.mxu0
        %v2465 = vadd.f32 0.0, %v2464
        %v2466 = vpop.f32.mrf.mxu0
        %v2467 = vadd.f32 0.0, %v2466
        %2468 = vmatmul.bf16.gmra.mxu0 %v2383
        %v2469 = vpop.f32.mrf.mxu0
        %v2470 = vadd.f32 0.0, %v2469
        %v2471 = vpop.f32.mrf.mxu0
        %v2472 = vadd.f32 0.0, %v2471
        %2473 = vdwg.mxu0
        %v2474 = vadd.f32 %v2240, %v2395
        %v2475 = vadd.f32 %v2241, %v2397
        %v2476 = vadd.f32 %v2242, %v2400
        %v2477 = vadd.f32 %v2243, %v2402
        %v2478 = vadd.f32 %v2244, %v2405
        %v2479 = vadd.f32 %v2245, %v2407
        %v2480 = vadd.f32 %v2246, %v2410
        %v2481 = vadd.f32 %v2247, %v2412
        %v2482 = vadd.f32 %v2248, %v2415
        %v2483 = vadd.f32 %v2249, %v2417
        %v2484 = vadd.f32 %v2250, %v2420
        %v2485 = vadd.f32 %v2251, %v2422
        %v2486 = vadd.f32 %v2252, %v2425
        %v2487 = vadd.f32 %v2253, %v2427
        %v2488 = vadd.f32 %v2254, %v2430
        %v2489 = vadd.f32 %v2255, %v2432
        %v2490 = vadd.f32 %v2256, %v2435
        %v2491 = vadd.f32 %v2257, %v2437
        %v2492 = vadd.f32 %v2258, %v2440
        %v2493 = vadd.f32 %v2259, %v2442
        %v2494 = vadd.f32 %v2260, %v2445
        %v2495 = vadd.f32 %v2261, %v2447
        %v2496 = vadd.f32 %v2262, %v2450
        %v2497 = vadd.f32 %v2263, %v2452
        %v2498 = vadd.f32 %v2264, %v2455
        %v2499 = vadd.f32 %v2265, %v2457
        %v2500 = vadd.f32 %v2266, %v2460
        %v2501 = vadd.f32 %v2267, %v2462
        %v2502 = vadd.f32 %v2268, %v2465
        %v2503 = vadd.f32 %v2269, %v2467
        %v2504 = vadd.f32 %v2270, %v2470
        %v2505 = vadd.f32 %v2271, %v2472
        %v2506 = vld [vmem:[#allocation7] sm:$0x1]
        %v2508 = vperm.slane %v2506, 0
        %v2510 = vadd.f32 %v2474, %v2508
        %v2511 = vadd.f32 %v2475, %v2508
        %v2512 = vadd.f32 %v2476, %v2508
        %v2513 = vadd.f32 %v2477, %v2508
        %v2514 = vadd.f32 %v2478, %v2508
        %v2515 = vadd.f32 %v2479, %v2508
        %v2516 = vadd.f32 %v2480, %v2508
        %v2517 = vadd.f32 %v2481, %v2508
        %v2518 = vadd.f32 %v2482, %v2508
        %v2519 = vadd.f32 %v2483, %v2508
        %v2520 = vadd.f32 %v2484, %v2508
        %v2521 = vadd.f32 %v2485, %v2508
        %v2522 = vadd.f32 %v2486, %v2508
        %v2523 = vadd.f32 %v2487, %v2508
        %v2524 = vadd.f32 %v2488, %v2508
        %v2525 = vadd.f32 %v2489, %v2508
        %v2526 = vadd.f32 %v2490, %v2508
        %v2527 = vadd.f32 %v2491, %v2508
        %v2528 = vadd.f32 %v2492, %v2508
        %v2529 = vadd.f32 %v2493, %v2508
        %v2530 = vadd.f32 %v2494, %v2508
        %v2531 = vadd.f32 %v2495, %v2508
        %v2532 = vadd.f32 %v2496, %v2508
        %v2533 = vadd.f32 %v2497, %v2508
        %v2534 = vadd.f32 %v2498, %v2508
        %v2535 = vadd.f32 %v2499, %v2508
        %v2536 = vadd.f32 %v2500, %v2508
        %v2537 = vadd.f32 %v2501, %v2508
        %v2538 = vadd.f32 %v2502, %v2508
        %v2539 = vadd.f32 %v2503, %v2508
        %v2540 = vadd.f32 %v2504, %v2508
        %v2541 = vadd.f32 %v2505, %v2508
        %v2542 = vmax.f32 %v2510, 0.0
        %v2543 = vmax.f32 %v2511, 0.0
        %v2544 = vmax.f32 %v2512, 0.0
        %v2545 = vmax.f32 %v2513, 0.0
        %v2546 = vmax.f32 %v2514, 0.0
        %v2547 = vmax.f32 %v2515, 0.0
        %v2548 = vmax.f32 %v2516, 0.0
        %v2549 = vmax.f32 %v2517, 0.0
        %v2550 = vmax.f32 %v2518, 0.0
        %v2551 = vmax.f32 %v2519, 0.0
        %v2552 = vmax.f32 %v2520, 0.0
        %v2553 = vmax.f32 %v2521, 0.0
        %v2554 = vmax.f32 %v2522, 0.0
        %v2555 = vmax.f32 %v2523, 0.0
        %v2556 = vmax.f32 %v2524, 0.0
        %v2557 = vmax.f32 %v2525, 0.0
        %v2558 = vmax.f32 %v2526, 0.0
        %v2559 = vmax.f32 %v2527, 0.0
        %v2560 = vmax.f32 %v2528, 0.0
        %v2561 = vmax.f32 %v2529, 0.0
        %v2562 = vmax.f32 %v2530, 0.0
        %v2563 = vmax.f32 %v2531, 0.0
        %v2564 = vmax.f32 %v2532, 0.0
        %v2565 = vmax.f32 %v2533, 0.0
        %v2566 = vmax.f32 %v2534, 0.0
        %v2567 = vmax.f32 %v2535, 0.0
        %v2568 = vmax.f32 %v2536, 0.0
        %v2569 = vmax.f32 %v2537, 0.0
        %v2570 = vmax.f32 %v2538, 0.0
        %v2571 = vmax.f32 %v2539, 0.0
        %v2572 = vmax.f32 %v2540, 0.0
        %v2573 = vmax.f32 %v2541, 0.0
        %vm2574 = vcmask 523264
        %2575 = vst.msk [vmem:[#allocation3] sm:$0xff] %vm2574, 0.0
        %2576 = vst.msk [vmem:[#allocation3 + $0x8] sm:$0xff] %vm2574, 0.0
        %vm2577 = vcmask 517120
        %2578 = vst.msk [vmem:[#allocation3 + $0x10] sm:$0x3] %vm2577, 0.0
        %2579 = vst.msk [vmem:[#allocation3 + $0x18] sm:$0xff] %vm2574, 0.0
        %2580 = vst.msk [vmem:[#allocation3 + $0x20] sm:$0xff] %vm2574, 0.0
        %2581 = vst.msk [vmem:[#allocation3 + $0x28] sm:$0x3] %vm2577, 0.0
        %2582 = vst.msk [vmem:[#allocation3 + $0x30] sm:$0xff] %vm2574, 0.0
        %2583 = vst.msk [vmem:[#allocation3 + $0x38] sm:$0xff] %vm2574, 0.0
        %2584 = vst.msk [vmem:[#allocation3 + $0x40] sm:$0x3] %vm2577, 0.0
        %2585 = vst.msk [vmem:[#allocation3 + $0x48] sm:$0xff] %vm2574, 0.0
        %2586 = vst.msk [vmem:[#allocation3 + $0x50] sm:$0xff] %vm2574, 0.0
        %2587 = vst.msk [vmem:[#allocation3 + $0x58] sm:$0x3] %vm2577, 0.0
        %2588 = vst.msk [vmem:[#allocation3 + $0x60] sm:$0xff] %vm2574, 0.0
        %2589 = vst.msk [vmem:[#allocation3 + $0x68] sm:$0xff] %vm2574, 0.0
        %2590 = vst.msk [vmem:[#allocation3 + $0x70] sm:$0x3] %vm2577, 0.0
        %2591 = vst.msk [vmem:[#allocation3 + $0x78] sm:$0xff] %vm2574, 0.0
        %2592 = vst.msk [vmem:[#allocation3 + $0x80] sm:$0xff] %vm2574, 0.0
        %2593 = vst.msk [vmem:[#allocation3 + $0x88] sm:$0x3] %vm2577, 0.0
        %2594 = vst.msk [vmem:[#allocation3 + $0x90] sm:$0xff] %vm2574, 0.0
        %2595 = vst.msk [vmem:[#allocation3 + $0x98] sm:$0xff] %vm2574, 0.0
        %2596 = vst.msk [vmem:[#allocation3 + $0xa0] sm:$0x3] %vm2577, 0.0
        %2597 = vst.msk [vmem:[#allocation3 + $0xa8] sm:$0xff] %vm2574, 0.0
        %2598 = vst.msk [vmem:[#allocation3 + $0xb0] sm:$0xff] %vm2574, 0.0
        %2599 = vst.msk [vmem:[#allocation3 + $0xb8] sm:$0x3] %vm2577, 0.0
        %2600 = vst.msk [vmem:[#allocation3 + $0xc0] sm:$0xff] %vm2574, 0.0
        %2601 = vst.msk [vmem:[#allocation3 + $0xc8] sm:$0xff] %vm2574, 0.0
        %2602 = vst.msk [vmem:[#allocation3 + $0xd0] sm:$0x3] %vm2577, 0.0
        %2603 = vst.msk [vmem:[#allocation3 + $0xd8] sm:$0xff] %vm2574, 0.0
        %2604 = vst.msk [vmem:[#allocation3 + $0xe0] sm:$0xff] %vm2574, 0.0
        %2605 = vst.msk [vmem:[#allocation3 + $0xe8] sm:$0x3] %vm2577, 0.0
        %2606 = vst.msk [vmem:[#allocation3 + $0xf0] sm:$0xff] %vm2574, 0.0
        %2607 = vst.msk [vmem:[#allocation3 + $0xf8] sm:$0xff] %vm2574, 0.0
        %2608 = vst.msk [vmem:[#allocation3 + $0x100] sm:$0x3] %vm2577, 0.0
        %2609 = vst.msk [vmem:[#allocation3 + $0x108] sm:$0xff] %vm2574, 0.0
        %2610 = vst.msk [vmem:[#allocation3 + $0x110] sm:$0xff] %vm2574, 0.0
        %2611 = vst.msk [vmem:[#allocation3 + $0x118] sm:$0x3] %vm2577, 0.0
        %2612 = vst.msk [vmem:[#allocation3 + $0x120] sm:$0xff] %vm2574, 0.0
        %2613 = vst.msk [vmem:[#allocation3 + $0x128] sm:$0xff] %vm2574, 0.0
        %2614 = vst.msk [vmem:[#allocation3 + $0x130] sm:$0x3] %vm2577, 0.0
        %2615 = vst.msk [vmem:[#allocation3 + $0x138] sm:$0xff] %vm2574, 0.0
        %2616 = vst.msk [vmem:[#allocation3 + $0x140] sm:$0xff] %vm2574, 0.0
        %2617 = vst.msk [vmem:[#allocation3 + $0x148] sm:$0x3] %vm2577, 0.0
        %2618 = vst.msk [vmem:[#allocation3 + $0x150] sm:$0xff] %vm2574, 0.0
        %2619 = vst.msk [vmem:[#allocation3 + $0x158] sm:$0xff] %vm2574, 0.0
        %2620 = vst.msk [vmem:[#allocation3 + $0x160] sm:$0x3] %vm2577, 0.0
        %2621 = vst.msk [vmem:[#allocation3 + $0x168] sm:$0xff] %vm2574, 0.0
        %2622 = vst.msk [vmem:[#allocation3 + $0x170] sm:$0xff] %vm2574, 0.0
        %2623 = vst.msk [vmem:[#allocation3 + $0x178] sm:$0x3] %vm2577, 0.0
        %2624 = vst.msk [vmem:[#allocation3 + $0x180] sm:$0xff] %vm2574, 0.0
        %2625 = vst.msk [vmem:[#allocation3 + $0x188] sm:$0xff] %vm2574, 0.0
        %2626 = vst.msk [vmem:[#allocation3 + $0x190] sm:$0x3] %vm2577, 0.0
        %2627 = vst.msk [vmem:[#allocation3 + $0x198] sm:$0xff] %vm2574, 0.0
        %2628 = vst.msk [vmem:[#allocation3 + $0x1a0] sm:$0xff] %vm2574, 0.0
        %2629 = vst.msk [vmem:[#allocation3 + $0x1a8] sm:$0x3] %vm2577, 0.0
        %s2630 = scalar_lea.vmem [#allocation3], 24
        %2631 = vst.msk [vmem:[%s2630 + $0x1] sm:$0xff] %vm2574, %v2542
        %2632 = vst.msk [vmem:[%s2630 + $0x9] sm:$0xff] %vm2574, %v2543
        %2633 = vst.msk [vmem:[%s2630 + $0x19] sm:$0xff] %vm2574, %v2544
        %2634 = vst.msk [vmem:[%s2630 + $0x21] sm:$0xff] %vm2574, %v2545
        %2635 = vst.msk [vmem:[%s2630 + $0x31] sm:$0xff] %vm2574, %v2546
        %2636 = vst.msk [vmem:[%s2630 + $0x39] sm:$0xff] %vm2574, %v2547
        %2637 = vst.msk [vmem:[%s2630 + $0x49] sm:$0xff] %vm2574, %v2548
        %2638 = vst.msk [vmem:[%s2630 + $0x51] sm:$0xff] %vm2574, %v2549
        %2639 = vst.msk [vmem:[%s2630 + $0x61] sm:$0xff] %vm2574, %v2550
        %2640 = vst.msk [vmem:[%s2630 + $0x69] sm:$0xff] %vm2574, %v2551
        %2641 = vst.msk [vmem:[%s2630 + $0x79] sm:$0xff] %vm2574, %v2552
        %2642 = vst.msk [vmem:[%s2630 + $0x81] sm:$0xff] %vm2574, %v2553
        %2643 = vst.msk [vmem:[%s2630 + $0x91] sm:$0xff] %vm2574, %v2554
        %2644 = vst.msk [vmem:[%s2630 + $0x99] sm:$0xff] %vm2574, %v2555
        %2645 = vst.msk [vmem:[%s2630 + $0xa9] sm:$0xff] %vm2574, %v2556
        %2646 = vst.msk [vmem:[%s2630 + $0xb1] sm:$0xff] %vm2574, %v2557
        %2647 = vst.msk [vmem:[%s2630 + $0xc1] sm:$0xff] %vm2574, %v2558
        %2648 = vst.msk [vmem:[%s2630 + $0xc9] sm:$0xff] %vm2574, %v2559
        %2649 = vst.msk [vmem:[%s2630 + $0xd9] sm:$0xff] %vm2574, %v2560
        %2650 = vst.msk [vmem:[%s2630 + $0xe1] sm:$0xff] %vm2574, %v2561
        %2651 = vst.msk [vmem:[%s2630 + $0xf1] sm:$0xff] %vm2574, %v2562
        %2652 = vst.msk [vmem:[%s2630 + $0xf9] sm:$0xff] %vm2574, %v2563
        %2653 = vst.msk [vmem:[%s2630 + $0x109] sm:$0xff] %vm2574, %v2564
        %2654 = vst.msk [vmem:[%s2630 + $0x111] sm:$0xff] %vm2574, %v2565
        %2655 = vst.msk [vmem:[%s2630 + $0x121] sm:$0xff] %vm2574, %v2566
        %2656 = vst.msk [vmem:[%s2630 + $0x129] sm:$0xff] %vm2574, %v2567
        %2657 = vst.msk [vmem:[%s2630 + $0x139] sm:$0xff] %vm2574, %v2568
        %2658 = vst.msk [vmem:[%s2630 + $0x141] sm:$0xff] %vm2574, %v2569
        %2659 = vst.msk [vmem:[%s2630 + $0x151] sm:$0xff] %vm2574, %v2570
        %2660 = vst.msk [vmem:[%s2630 + $0x159] sm:$0xff] %vm2574, %v2571
        %2661 = vst.msk [vmem:[%s2630 + $0x169] sm:$0xff] %vm2574, %v2572
        %2662 = vst.msk [vmem:[%s2630 + $0x171] sm:$0xff] %vm2574, %v2573
        %v2663 = vld [vmem:[#allocation3] sm:$0xff]
        %v2664 = vld [vmem:[#allocation3 + $0x8] sm:$0xff]
        %v2665 = vld [vmem:[#allocation3 + $0x18] sm:$0xff]
        %v2666 = vld [vmem:[#allocation3 + $0x20] sm:$0xff]
        %v2667 = vld [vmem:[#allocation3 + $0x30] sm:$0xff]
        %v2668 = vld [vmem:[#allocation3 + $0x38] sm:$0xff]
        %v2669 = vld [vmem:[#allocation3 + $0x48] sm:$0xff]
        %v2670 = vld [vmem:[#allocation3 + $0x50] sm:$0xff]
        %v2671 = vld [vmem:[#allocation3 + $0x60] sm:$0xff]
        %v2672 = vld [vmem:[#allocation3 + $0x68] sm:$0xff]
        %v2673 = vld [vmem:[#allocation3 + $0x78] sm:$0xff]
        %v2674 = vld [vmem:[#allocation3 + $0x80] sm:$0xff]
        %v2675 = vld [vmem:[#allocation3 + $0x90] sm:$0xff]
        %v2676 = vld [vmem:[#allocation3 + $0x98] sm:$0xff]
        %v2677 = vld [vmem:[#allocation3 + $0xa8] sm:$0xff]
        %v2678 = vld [vmem:[#allocation3 + $0xb0] sm:$0xff]
        %v2679 = vld [vmem:[#allocation3 + $0xc0] sm:$0xff]
        %v2680 = vld [vmem:[#allocation3 + $0xc8] sm:$0xff]
        %v2681 = vld [vmem:[#allocation3 + $0xd8] sm:$0xff]
        %v2682 = vld [vmem:[#allocation3 + $0xe0] sm:$0xff]
        %v2683 = vld [vmem:[#allocation3 + $0xf0] sm:$0xff]
        %v2684 = vld [vmem:[#allocation3 + $0xf8] sm:$0xff]
        %v2685 = vld [vmem:[#allocation3 + $0x108] sm:$0xff]
        %v2686 = vld [vmem:[#allocation3 + $0x110] sm:$0xff]
        %v2687 = vld [vmem:[#allocation3 + $0x120] sm:$0xff]
        %v2688 = vld [vmem:[#allocation3 + $0x128] sm:$0xff]
        %v2689 = vld [vmem:[#allocation3 + $0x138] sm:$0xff]
        %v2690 = vld [vmem:[#allocation3 + $0x140] sm:$0xff]
        %v2691 = vld [vmem:[#allocation3 + $0x150] sm:$0xff]
        %v2692 = vld [vmem:[#allocation3 + $0x158] sm:$0xff]
        %v2693 = vld [vmem:[#allocation3 + $0x168] sm:$0xff]
        %v2694 = vld [vmem:[#allocation3 + $0x170] sm:$0xff]
        %v2695 = vpack.c.bf16 %v2664, %v2663
        %v2696 = vpack.c.bf16 %v2666, %v2665
        %v2697 = vpack.c.bf16 %v2668, %v2667
        %v2698 = vpack.c.bf16 %v2670, %v2669
        %v2699 = vpack.c.bf16 %v2672, %v2671
        %v2700 = vpack.c.bf16 %v2674, %v2673
        %v2701 = vpack.c.bf16 %v2676, %v2675
        %v2702 = vpack.c.bf16 %v2678, %v2677
        %v2703 = vpack.c.bf16 %v2680, %v2679
        %v2704 = vpack.c.bf16 %v2682, %v2681
        %v2705 = vpack.c.bf16 %v2684, %v2683
        %v2706 = vpack.c.bf16 %v2686, %v2685
        %v2707 = vpack.c.bf16 %v2688, %v2687
        %v2708 = vpack.c.bf16 %v2690, %v2689
        %v2709 = vpack.c.bf16 %v2692, %v2691
        %v2710 = vpack.c.bf16 %v2694, %v2693
        %v2711 = vld [vmem:[#allocation9] sm:$0xf]
        %v2712 = vld [vmem:[#allocation9 + $0x4] sm:$0xf]
        %v2713 = vld [vmem:[#allocation9 + $0x8] sm:$0xf]
        %v2714 = vld [vmem:[#allocation9 + $0xc] sm:$0xf]
        %v2715 = vld [vmem:[#allocation9 + $0x10] sm:$0xf]
        %v2716 = vld [vmem:[#allocation9 + $0x14] sm:$0xf]
        %v2717 = vld [vmem:[#allocation9 + $0x18] sm:$0xf]
        %v2718 = vld [vmem:[#allocation9 + $0x1c] sm:$0xf]
        %v2719 = vld [vmem:[#allocation3 + $0x1] sm:$0xff]
        %v2720 = vld [vmem:[#allocation3 + $0x9] sm:$0xff]
        %v2721 = vld [vmem:[#allocation3 + $0x19] sm:$0xff]
        %v2722 = vld [vmem:[#allocation3 + $0x21] sm:$0xff]
        %v2723 = vld [vmem:[#allocation3 + $0x31] sm:$0xff]
        %v2724 = vld [vmem:[#allocation3 + $0x39] sm:$0xff]
        %v2725 = vld [vmem:[#allocation3 + $0x49] sm:$0xff]
        %v2726 = vld [vmem:[#allocation3 + $0x51] sm:$0xff]
        %v2727 = vld [vmem:[#allocation3 + $0x61] sm:$0xff]
        %v2728 = vld [vmem:[#allocation3 + $0x69] sm:$0xff]
        %v2729 = vld [vmem:[#allocation3 + $0x79] sm:$0xff]
        %v2730 = vld [vmem:[#allocation3 + $0x81] sm:$0xff]
        %v2731 = vld [vmem:[#allocation3 + $0x91] sm:$0xff]
        %v2732 = vld [vmem:[#allocation3 + $0x99] sm:$0xff]
        %v2733 = vld [vmem:[#allocation3 + $0xa9] sm:$0xff]
        %v2734 = vld [vmem:[#allocation3 + $0xb1] sm:$0xff]
        %v2735 = vld [vmem:[#allocation3 + $0xc1] sm:$0xff]
        %v2736 = vld [vmem:[#allocation3 + $0xc9] sm:$0xff]
        %v2737 = vld [vmem:[#allocation3 + $0xd9] sm:$0xff]
        %v2738 = vld [vmem:[#allocation3 + $0xe1] sm:$0xff]
        %v2739 = vld [vmem:[#allocation3 + $0xf1] sm:$0xff]
        %v2740 = vld [vmem:[#allocation3 + $0xf9] sm:$0xff]
        %v2741 = vld [vmem:[#allocation3 + $0x109] sm:$0xff]
        %v2742 = vld [vmem:[#allocation3 + $0x111] sm:$0xff]
        %v2743 = vld [vmem:[#allocation3 + $0x121] sm:$0xff]
        %v2744 = vld [vmem:[#allocation3 + $0x129] sm:$0xff]
        %v2745 = vld [vmem:[#allocation3 + $0x139] sm:$0xff]
        %v2746 = vld [vmem:[#allocation3 + $0x141] sm:$0xff]
        %v2747 = vld [vmem:[#allocation3 + $0x151] sm:$0xff]
        %v2748 = vld [vmem:[#allocation3 + $0x159] sm:$0xff]
        %v2749 = vld [vmem:[#allocation3 + $0x169] sm:$0xff]
        %v2750 = vld [vmem:[#allocation3 + $0x171] sm:$0xff]
        %v2751 = vpack.c.bf16 %v2720, %v2719
        %v2752 = vpack.c.bf16 %v2722, %v2721
        %v2753 = vpack.c.bf16 %v2724, %v2723
        %v2754 = vpack.c.bf16 %v2726, %v2725
        %v2755 = vpack.c.bf16 %v2728, %v2727
        %v2756 = vpack.c.bf16 %v2730, %v2729
        %v2757 = vpack.c.bf16 %v2732, %v2731
        %v2758 = vpack.c.bf16 %v2734, %v2733
        %v2759 = vpack.c.bf16 %v2736, %v2735
        %v2760 = vpack.c.bf16 %v2738, %v2737
        %v2761 = vpack.c.bf16 %v2740, %v2739
        %v2762 = vpack.c.bf16 %v2742, %v2741
        %v2763 = vpack.c.bf16 %v2744, %v2743
        %v2764 = vpack.c.bf16 %v2746, %v2745
        %v2765 = vpack.c.bf16 %v2748, %v2747
        %v2766 = vpack.c.bf16 %v2750, %v2749
        %s2767 = scalar_lea.vmem [#allocation9], 32
        %v2768 = vld [vmem:[%s2767] sm:$0xf]
        %v2769 = vld [vmem:[%s2767 + $0x4] sm:$0xf]
        %v2770 = vld [vmem:[%s2767 + $0x8] sm:$0xf]
        %v2771 = vld [vmem:[%s2767 + $0xc] sm:$0xf]
        %v2772 = vld [vmem:[%s2767 + $0x10] sm:$0xf]
        %v2773 = vld [vmem:[%s2767 + $0x14] sm:$0xf]
        %v2774 = vld [vmem:[%s2767 + $0x18] sm:$0xf]
        %v2775 = vld [vmem:[%s2767 + $0x1c] sm:$0xf]
        %v2784 = vunpack.c.l.b16 %v2768
        %v2785 = vunpack.c.l.b16 %v2769
        %v2786 = vunpack.c.l.b16 %v2770
        %v2787 = vunpack.c.l.b16 %v2771
        %v2788 = vunpack.c.l.b16 %v2772
        %v2789 = vunpack.c.l.b16 %v2773
        %v2790 = vunpack.c.l.b16 %v2774
        %v2791 = vunpack.c.l.b16 %v2775
        %v2792 = vpack.c.b16 %v2785, %v2784
        %v2793 = vpack.c.b16 %v2787, %v2786
        %v2794 = vpack.c.b16 %v2789, %v2788
        %v2795 = vpack.c.b16 %v2791, %v2790
        %v2801 = vsel %vm2574, %v2751, 0
        %v2804 = vsel %vm2574, %v2752, 0
        %v2807 = vsel %vm2574, %v2753, 0
        %v2810 = vsel %vm2574, %v2754, 0
        %v2813 = vsel %vm2574, %v2755, 0
        %v2816 = vsel %vm2574, %v2756, 0
        %v2819 = vsel %vm2574, %v2757, 0
        %v2822 = vsel %vm2574, %v2758, 0
        %v2825 = vsel %vm2574, %v2759, 0
        %v2828 = vsel %vm2574, %v2760, 0
        %v2831 = vsel %vm2574, %v2761, 0
        %v2834 = vsel %vm2574, %v2762, 0
        %v2837 = vsel %vm2574, %v2763, 0
        %v2840 = vsel %vm2574, %v2764, 0
        %v2843 = vsel %vm2574, %v2765, 0
        %v2846 = vsel %vm2574, %v2766, 0
        %2848 = vmatpush.bf16.msra.mxu0 0
        %2849 = vmatpush.bf16.msra.mxu0 0
        %2850 = vmatpush.bf16.msra.mxu0 0
        %2851 = vmatpush.bf16.msra.mxu0 0
        %2852 = vmatpush.bf16.msra.mxu0 %v2795
        %2853 = vmatpush.bf16.msra.mxu0 %v2794
        %2854 = vmatpush.bf16.msra.mxu0 %v2793
        %2855 = vmatpush.bf16.msra.mxu0 %v2792
        %2856 = vmatmul.bf16.gmra.mxu0 %v2801
        %v2857 = vpop.f32.mrf.mxu0
        %v2858 = vadd.f32 0.0, %v2857
        %v2859 = vpop.f32.mrf.mxu0
        %v2860 = vadd.f32 0.0, %v2859
        %2861 = vmatmul.bf16.gmra.mxu0 %v2804
        %v2862 = vpop.f32.mrf.mxu0
        %v2863 = vadd.f32 0.0, %v2862
        %v2864 = vpop.f32.mrf.mxu0
        %v2865 = vadd.f32 0.0, %v2864
        %2866 = vmatmul.bf16.gmra.mxu0 %v2807
        %v2867 = vpop.f32.mrf.mxu0
        %v2868 = vadd.f32 0.0, %v2867
        %v2869 = vpop.f32.mrf.mxu0
        %v2870 = vadd.f32 0.0, %v2869
        %2871 = vmatmul.bf16.gmra.mxu0 %v2810
        %v2872 = vpop.f32.mrf.mxu0
        %v2873 = vadd.f32 0.0, %v2872
        %v2874 = vpop.f32.mrf.mxu0
        %v2875 = vadd.f32 0.0, %v2874
        %2876 = vmatmul.bf16.gmra.mxu0 %v2813
        %v2877 = vpop.f32.mrf.mxu0
        %v2878 = vadd.f32 0.0, %v2877
        %v2879 = vpop.f32.mrf.mxu0
        %v2880 = vadd.f32 0.0, %v2879
        %2881 = vmatmul.bf16.gmra.mxu0 %v2816
        %v2882 = vpop.f32.mrf.mxu0
        %v2883 = vadd.f32 0.0, %v2882
        %v2884 = vpop.f32.mrf.mxu0
        %v2885 = vadd.f32 0.0, %v2884
        %2886 = vmatmul.bf16.gmra.mxu0 %v2819
        %v2887 = vpop.f32.mrf.mxu0
        %v2888 = vadd.f32 0.0, %v2887
        %v2889 = vpop.f32.mrf.mxu0
        %v2890 = vadd.f32 0.0, %v2889
        %2891 = vmatmul.bf16.gmra.mxu0 %v2822
        %v2892 = vpop.f32.mrf.mxu0
        %v2893 = vadd.f32 0.0, %v2892
        %v2894 = vpop.f32.mrf.mxu0
        %v2895 = vadd.f32 0.0, %v2894
        %2896 = vmatmul.bf16.gmra.mxu0 %v2825
        %v2897 = vpop.f32.mrf.mxu0
        %v2898 = vadd.f32 0.0, %v2897
        %v2899 = vpop.f32.mrf.mxu0
        %v2900 = vadd.f32 0.0, %v2899
        %2901 = vmatmul.bf16.gmra.mxu0 %v2828
        %v2902 = vpop.f32.mrf.mxu0
        %v2903 = vadd.f32 0.0, %v2902
        %v2904 = vpop.f32.mrf.mxu0
        %v2905 = vadd.f32 0.0, %v2904
        %2906 = vmatmul.bf16.gmra.mxu0 %v2831
        %v2907 = vpop.f32.mrf.mxu0
        %v2908 = vadd.f32 0.0, %v2907
        %v2909 = vpop.f32.mrf.mxu0
        %v2910 = vadd.f32 0.0, %v2909
        %2911 = vmatmul.bf16.gmra.mxu0 %v2834
        %v2912 = vpop.f32.mrf.mxu0
        %v2913 = vadd.f32 0.0, %v2912
        %v2914 = vpop.f32.mrf.mxu0
        %v2915 = vadd.f32 0.0, %v2914
        %2916 = vmatmul.bf16.gmra.mxu0 %v2837
        %v2917 = vpop.f32.mrf.mxu0
        %v2918 = vadd.f32 0.0, %v2917
        %v2919 = vpop.f32.mrf.mxu0
        %v2920 = vadd.f32 0.0, %v2919
        %2921 = vmatmul.bf16.gmra.mxu0 %v2840
        %v2922 = vpop.f32.mrf.mxu0
        %v2923 = vadd.f32 0.0, %v2922
        %v2924 = vpop.f32.mrf.mxu0
        %v2925 = vadd.f32 0.0, %v2924
        %2926 = vmatmul.bf16.gmra.mxu0 %v2843
        %v2927 = vpop.f32.mrf.mxu0
        %v2928 = vadd.f32 0.0, %v2927
        %v2929 = vpop.f32.mrf.mxu0
        %v2930 = vadd.f32 0.0, %v2929
        %2931 = vmatmul.bf16.gmra.mxu0 %v2846
        %v2932 = vpop.f32.mrf.mxu0
        %v2933 = vadd.f32 0.0, %v2932
        %v2934 = vpop.f32.mrf.mxu0
        %v2935 = vadd.f32 0.0, %v2934
        %2936 = vdwg.mxu0
        %v2945 = vunpack.c.l.b16 %v2711
        %v2946 = vunpack.c.l.b16 %v2712
        %v2947 = vunpack.c.l.b16 %v2713
        %v2948 = vunpack.c.l.b16 %v2714
        %v2949 = vunpack.c.l.b16 %v2715
        %v2950 = vunpack.c.l.b16 %v2716
        %v2951 = vunpack.c.l.b16 %v2717
        %v2952 = vunpack.c.l.b16 %v2718
        %v2953 = vpack.c.b16 %v2946, %v2945
        %v2954 = vpack.c.b16 %v2948, %v2947
        %v2955 = vpack.c.b16 %v2950, %v2949
        %v2956 = vpack.c.b16 %v2952, %v2951
        %v2962 = vsel %vm2574, %v2695, 0
        %v2965 = vsel %vm2574, %v2696, 0
        %v2968 = vsel %vm2574, %v2697, 0
        %v2971 = vsel %vm2574, %v2698, 0
        %v2974 = vsel %vm2574, %v2699, 0
        %v2977 = vsel %vm2574, %v2700, 0
        %v2980 = vsel %vm2574, %v2701, 0
        %v2983 = vsel %vm2574, %v2702, 0
        %v2986 = vsel %vm2574, %v2703, 0
        %v2989 = vsel %vm2574, %v2704, 0
        %v2992 = vsel %vm2574, %v2705, 0
        %v2995 = vsel %vm2574, %v2706, 0
        %v2998 = vsel %vm2574, %v2707, 0
        %v3001 = vsel %vm2574, %v2708, 0
        %v3004 = vsel %vm2574, %v2709, 0
        %v3007 = vsel %vm2574, %v2710, 0
        %3009 = vmatpush.bf16.msra.mxu0 0
        %3010 = vmatpush.bf16.msra.mxu0 0
        %3011 = vmatpush.bf16.msra.mxu0 0
        %3012 = vmatpush.bf16.msra.mxu0 0
        %3013 = vmatpush.bf16.msra.mxu0 %v2956
        %3014 = vmatpush.bf16.msra.mxu0 %v2955
        %3015 = vmatpush.bf16.msra.mxu0 %v2954
        %3016 = vmatpush.bf16.msra.mxu0 %v2953
        %3017 = vmatmul.bf16.gmra.mxu0 %v2962
        %v3018 = vpop.f32.mrf.mxu0
        %v3019 = vadd.f32 %v2858, %v3018
        %v3020 = vpop.f32.mrf.mxu0
        %v3021 = vadd.f32 %v2860, %v3020
        %3022 = vmatmul.bf16.gmra.mxu0 %v2965
        %v3023 = vpop.f32.mrf.mxu0
        %v3024 = vadd.f32 %v2863, %v3023
        %v3025 = vpop.f32.mrf.mxu0
        %v3026 = vadd.f32 %v2865, %v3025
        %3027 = vmatmul.bf16.gmra.mxu0 %v2968
        %v3028 = vpop.f32.mrf.mxu0
        %v3029 = vadd.f32 %v2868, %v3028
        %v3030 = vpop.f32.mrf.mxu0
        %v3031 = vadd.f32 %v2870, %v3030
        %3032 = vmatmul.bf16.gmra.mxu0 %v2971
        %v3033 = vpop.f32.mrf.mxu0
        %v3034 = vadd.f32 %v2873, %v3033
        %v3035 = vpop.f32.mrf.mxu0
        %v3036 = vadd.f32 %v2875, %v3035
        %3037 = vmatmul.bf16.gmra.mxu0 %v2974
        %v3038 = vpop.f32.mrf.mxu0
        %v3039 = vadd.f32 %v2878, %v3038
        %v3040 = vpop.f32.mrf.mxu0
        %v3041 = vadd.f32 %v2880, %v3040
        %3042 = vmatmul.bf16.gmra.mxu0 %v2977
        %v3043 = vpop.f32.mrf.mxu0
        %v3044 = vadd.f32 %v2883, %v3043
        %v3045 = vpop.f32.mrf.mxu0
        %v3046 = vadd.f32 %v2885, %v3045
        %3047 = vmatmul.bf16.gmra.mxu0 %v2980
        %v3048 = vpop.f32.mrf.mxu0
        %v3049 = vadd.f32 %v2888, %v3048
        %v3050 = vpop.f32.mrf.mxu0
        %v3051 = vadd.f32 %v2890, %v3050
        %3052 = vmatmul.bf16.gmra.mxu0 %v2983
        %v3053 = vpop.f32.mrf.mxu0
        %v3054 = vadd.f32 %v2893, %v3053
        %v3055 = vpop.f32.mrf.mxu0
        %v3056 = vadd.f32 %v2895, %v3055
        %3057 = vmatmul.bf16.gmra.mxu0 %v2986
        %v3058 = vpop.f32.mrf.mxu0
        %v3059 = vadd.f32 %v2898, %v3058
        %v3060 = vpop.f32.mrf.mxu0
        %v3061 = vadd.f32 %v2900, %v3060
        %3062 = vmatmul.bf16.gmra.mxu0 %v2989
        %v3063 = vpop.f32.mrf.mxu0
        %v3064 = vadd.f32 %v2903, %v3063
        %v3065 = vpop.f32.mrf.mxu0
        %v3066 = vadd.f32 %v2905, %v3065
        %3067 = vmatmul.bf16.gmra.mxu0 %v2992
        %v3068 = vpop.f32.mrf.mxu0
        %v3069 = vadd.f32 %v2908, %v3068
        %v3070 = vpop.f32.mrf.mxu0
        %v3071 = vadd.f32 %v2910, %v3070
        %3072 = vmatmul.bf16.gmra.mxu0 %v2995
        %v3073 = vpop.f32.mrf.mxu0
        %v3074 = vadd.f32 %v2913, %v3073
        %v3075 = vpop.f32.mrf.mxu0
        %v3076 = vadd.f32 %v2915, %v3075
        %3077 = vmatmul.bf16.gmra.mxu0 %v2998
        %v3078 = vpop.f32.mrf.mxu0
        %v3079 = vadd.f32 %v2918, %v3078
        %v3080 = vpop.f32.mrf.mxu0
        %v3081 = vadd.f32 %v2920, %v3080
        %3082 = vmatmul.bf16.gmra.mxu0 %v3001
        %v3083 = vpop.f32.mrf.mxu0
        %v3084 = vadd.f32 %v2923, %v3083
        %v3085 = vpop.f32.mrf.mxu0
        %v3086 = vadd.f32 %v2925, %v3085
        %3087 = vmatmul.bf16.gmra.mxu0 %v3004
        %v3088 = vpop.f32.mrf.mxu0
        %v3089 = vadd.f32 %v2928, %v3088
        %v3090 = vpop.f32.mrf.mxu0
        %v3091 = vadd.f32 %v2930, %v3090
        %3092 = vmatmul.bf16.gmra.mxu0 %v3007
        %v3093 = vpop.f32.mrf.mxu0
        %v3094 = vadd.f32 %v2933, %v3093
        %v3095 = vpop.f32.mrf.mxu0
        %v3096 = vadd.f32 %v2935, %v3095
        %3097 = vdwg.mxu0
        %v3098 = vld [vmem:[#allocation3 + $0x2] sm:$0xff]
        %v3099 = vld [vmem:[#allocation3 + $0xa] sm:$0xff]
        %v3100 = vld [vmem:[#allocation3 + $0x1a] sm:$0xff]
        %v3101 = vld [vmem:[#allocation3 + $0x22] sm:$0xff]
        %v3102 = vld [vmem:[#allocation3 + $0x32] sm:$0xff]
        %v3103 = vld [vmem:[#allocation3 + $0x3a] sm:$0xff]
        %v3104 = vld [vmem:[#allocation3 + $0x4a] sm:$0xff]
        %v3105 = vld [vmem:[#allocation3 + $0x52] sm:$0xff]
        %v3106 = vld [vmem:[#allocation3 + $0x62] sm:$0xff]
        %v3107 = vld [vmem:[#allocation3 + $0x6a] sm:$0xff]
        %v3108 = vld [vmem:[#allocation3 + $0x7a] sm:$0xff]
        %v3109 = vld [vmem:[#allocation3 + $0x82] sm:$0xff]
        %v3110 = vld [vmem:[#allocation3 + $0x92] sm:$0xff]
        %v3111 = vld [vmem:[#allocation3 + $0x9a] sm:$0xff]
        %v3112 = vld [vmem:[#allocation3 + $0xaa] sm:$0xff]
        %v3113 = vld [vmem:[#allocation3 + $0xb2] sm:$0xff]
        %v3114 = vld [vmem:[#allocation3 + $0xc2] sm:$0xff]
        %v3115 = vld [vmem:[#allocation3 + $0xca] sm:$0xff]
        %v3116 = vld [vmem:[#allocation3 + $0xda] sm:$0xff]
        %v3117 = vld [vmem:[#allocation3 + $0xe2] sm:$0xff]
        %v3118 = vld [vmem:[#allocation3 + $0xf2] sm:$0xff]
        %v3119 = vld [vmem:[#allocation3 + $0xfa] sm:$0xff]
        %v3120 = vld [vmem:[#allocation3 + $0x10a] sm:$0xff]
        %v3121 = vld [vmem:[#allocation3 + $0x112] sm:$0xff]
        %v3122 = vld [vmem:[#allocation3 + $0x122] sm:$0xff]
        %v3123 = vld [vmem:[#allocation3 + $0x12a] sm:$0xff]
        %v3124 = vld [vmem:[#allocation3 + $0x13a] sm:$0xff]
        %v3125 = vld [vmem:[#allocation3 + $0x142] sm:$0xff]
        %v3126 = vld [vmem:[#allocation3 + $0x152] sm:$0xff]
        %v3127 = vld [vmem:[#allocation3 + $0x15a] sm:$0xff]
        %v3128 = vld [vmem:[#allocation3 + $0x16a] sm:$0xff]
        %v3129 = vld [vmem:[#allocation3 + $0x172] sm:$0xff]
        %v3130 = vpack.c.bf16 %v3099, %v3098
        %v3131 = vpack.c.bf16 %v3101, %v3100
        %v3132 = vpack.c.bf16 %v3103, %v3102
        %v3133 = vpack.c.bf16 %v3105, %v3104
        %v3134 = vpack.c.bf16 %v3107, %v3106
        %v3135 = vpack.c.bf16 %v3109, %v3108
        %v3136 = vpack.c.bf16 %v3111, %v3110
        %v3137 = vpack.c.bf16 %v3113, %v3112
        %v3138 = vpack.c.bf16 %v3115, %v3114
        %v3139 = vpack.c.bf16 %v3117, %v3116
        %v3140 = vpack.c.bf16 %v3119, %v3118
        %v3141 = vpack.c.bf16 %v3121, %v3120
        %v3142 = vpack.c.bf16 %v3123, %v3122
        %v3143 = vpack.c.bf16 %v3125, %v3124
        %v3144 = vpack.c.bf16 %v3127, %v3126
        %v3145 = vpack.c.bf16 %v3129, %v3128
        %s3146 = scalar_lea.vmem [#allocation9], 64
        %v3147 = vld [vmem:[%s3146] sm:$0xf]
        %v3148 = vld [vmem:[%s3146 + $0x4] sm:$0xf]
        %v3149 = vld [vmem:[%s3146 + $0x8] sm:$0xf]
        %v3150 = vld [vmem:[%s3146 + $0xc] sm:$0xf]
        %v3151 = vld [vmem:[%s3146 + $0x10] sm:$0xf]
        %v3152 = vld [vmem:[%s3146 + $0x14] sm:$0xf]
        %v3153 = vld [vmem:[%s3146 + $0x18] sm:$0xf]
        %v3154 = vld [vmem:[%s3146 + $0x1c] sm:$0xf]
        %v3163 = vunpack.c.l.b16 %v3147
        %v3164 = vunpack.c.l.b16 %v3148
        %v3165 = vunpack.c.l.b16 %v3149
        %v3166 = vunpack.c.l.b16 %v3150
        %v3167 = vunpack.c.l.b16 %v3151
        %v3168 = vunpack.c.l.b16 %v3152
        %v3169 = vunpack.c.l.b16 %v3153
        %v3170 = vunpack.c.l.b16 %v3154
        %v3171 = vpack.c.b16 %v3164, %v3163
        %v3172 = vpack.c.b16 %v3166, %v3165
        %v3173 = vpack.c.b16 %v3168, %v3167
        %v3174 = vpack.c.b16 %v3170, %v3169
        %v3180 = vsel %vm2574, %v3130, 0
        %v3183 = vsel %vm2574, %v3131, 0
        %v3186 = vsel %vm2574, %v3132, 0
        %v3189 = vsel %vm2574, %v3133, 0
        %v3192 = vsel %vm2574, %v3134, 0
        %v3195 = vsel %vm2574, %v3135, 0
        %v3198 = vsel %vm2574, %v3136, 0
        %v3201 = vsel %vm2574, %v3137, 0
        %v3204 = vsel %vm2574, %v3138, 0
        %v3207 = vsel %vm2574, %v3139, 0
        %v3210 = vsel %vm2574, %v3140, 0
        %v3213 = vsel %vm2574, %v3141, 0
        %v3216 = vsel %vm2574, %v3142, 0
        %v3219 = vsel %vm2574, %v3143, 0
        %v3222 = vsel %vm2574, %v3144, 0
        %v3225 = vsel %vm2574, %v3145, 0
        %3227 = vmatpush.bf16.msra.mxu0 0
        %3228 = vmatpush.bf16.msra.mxu0 0
        %3229 = vmatpush.bf16.msra.mxu0 0
        %3230 = vmatpush.bf16.msra.mxu0 0
        %3231 = vmatpush.bf16.msra.mxu0 %v3174
        %3232 = vmatpush.bf16.msra.mxu0 %v3173
        %3233 = vmatpush.bf16.msra.mxu0 %v3172
        %3234 = vmatpush.bf16.msra.mxu0 %v3171
        %3235 = vmatmul.bf16.gmra.mxu0 %v3180
        %v3236 = vpop.f32.mrf.mxu0
        %v3237 = vadd.f32 0.0, %v3236
        %v3238 = vpop.f32.mrf.mxu0
        %v3239 = vadd.f32 0.0, %v3238
        %3240 = vmatmul.bf16.gmra.mxu0 %v3183
        %v3241 = vpop.f32.mrf.mxu0
        %v3242 = vadd.f32 0.0, %v3241
        %v3243 = vpop.f32.mrf.mxu0
        %v3244 = vadd.f32 0.0, %v3243
        %3245 = vmatmul.bf16.gmra.mxu0 %v3186
        %v3246 = vpop.f32.mrf.mxu0
        %v3247 = vadd.f32 0.0, %v3246
        %v3248 = vpop.f32.mrf.mxu0
        %v3249 = vadd.f32 0.0, %v3248
        %3250 = vmatmul.bf16.gmra.mxu0 %v3189
        %v3251 = vpop.f32.mrf.mxu0
        %v3252 = vadd.f32 0.0, %v3251
        %v3253 = vpop.f32.mrf.mxu0
        %v3254 = vadd.f32 0.0, %v3253
        %3255 = vmatmul.bf16.gmra.mxu0 %v3192
        %v3256 = vpop.f32.mrf.mxu0
        %v3257 = vadd.f32 0.0, %v3256
        %v3258 = vpop.f32.mrf.mxu0
        %v3259 = vadd.f32 0.0, %v3258
        %3260 = vmatmul.bf16.gmra.mxu0 %v3195
        %v3261 = vpop.f32.mrf.mxu0
        %v3262 = vadd.f32 0.0, %v3261
        %v3263 = vpop.f32.mrf.mxu0
        %v3264 = vadd.f32 0.0, %v3263
        %3265 = vmatmul.bf16.gmra.mxu0 %v3198
        %v3266 = vpop.f32.mrf.mxu0
        %v3267 = vadd.f32 0.0, %v3266
        %v3268 = vpop.f32.mrf.mxu0
        %v3269 = vadd.f32 0.0, %v3268
        %3270 = vmatmul.bf16.gmra.mxu0 %v3201
        %v3271 = vpop.f32.mrf.mxu0
        %v3272 = vadd.f32 0.0, %v3271
        %v3273 = vpop.f32.mrf.mxu0
        %v3274 = vadd.f32 0.0, %v3273
        %3275 = vmatmul.bf16.gmra.mxu0 %v3204
        %v3276 = vpop.f32.mrf.mxu0
        %v3277 = vadd.f32 0.0, %v3276
        %v3278 = vpop.f32.mrf.mxu0
        %v3279 = vadd.f32 0.0, %v3278
        %3280 = vmatmul.bf16.gmra.mxu0 %v3207
        %v3281 = vpop.f32.mrf.mxu0
        %v3282 = vadd.f32 0.0, %v3281
        %v3283 = vpop.f32.mrf.mxu0
        %v3284 = vadd.f32 0.0, %v3283
        %3285 = vmatmul.bf16.gmra.mxu0 %v3210
        %v3286 = vpop.f32.mrf.mxu0
        %v3287 = vadd.f32 0.0, %v3286
        %v3288 = vpop.f32.mrf.mxu0
        %v3289 = vadd.f32 0.0, %v3288
        %3290 = vmatmul.bf16.gmra.mxu0 %v3213
        %v3291 = vpop.f32.mrf.mxu0
        %v3292 = vadd.f32 0.0, %v3291
        %v3293 = vpop.f32.mrf.mxu0
        %v3294 = vadd.f32 0.0, %v3293
        %3295 = vmatmul.bf16.gmra.mxu0 %v3216
        %v3296 = vpop.f32.mrf.mxu0
        %v3297 = vadd.f32 0.0, %v3296
        %v3298 = vpop.f32.mrf.mxu0
        %v3299 = vadd.f32 0.0, %v3298
        %3300 = vmatmul.bf16.gmra.mxu0 %v3219
        %v3301 = vpop.f32.mrf.mxu0
        %v3302 = vadd.f32 0.0, %v3301
        %v3303 = vpop.f32.mrf.mxu0
        %v3304 = vadd.f32 0.0, %v3303
        %3305 = vmatmul.bf16.gmra.mxu0 %v3222
        %v3306 = vpop.f32.mrf.mxu0
        %v3307 = vadd.f32 0.0, %v3306
        %v3308 = vpop.f32.mrf.mxu0
        %v3309 = vadd.f32 0.0, %v3308
        %3310 = vmatmul.bf16.gmra.mxu0 %v3225
        %v3311 = vpop.f32.mrf.mxu0
        %v3312 = vadd.f32 0.0, %v3311
        %v3313 = vpop.f32.mrf.mxu0
        %v3314 = vadd.f32 0.0, %v3313
        %3315 = vdwg.mxu0
        %v3316 = vadd.f32 %v3019, %v3237
        %v3317 = vadd.f32 %v3021, %v3239
        %v3318 = vadd.f32 %v3024, %v3242
        %v3319 = vadd.f32 %v3026, %v3244
        %v3320 = vadd.f32 %v3029, %v3247
        %v3321 = vadd.f32 %v3031, %v3249
        %v3322 = vadd.f32 %v3034, %v3252
        %v3323 = vadd.f32 %v3036, %v3254
        %v3324 = vadd.f32 %v3039, %v3257
        %v3325 = vadd.f32 %v3041, %v3259
        %v3326 = vadd.f32 %v3044, %v3262
        %v3327 = vadd.f32 %v3046, %v3264
        %v3328 = vadd.f32 %v3049, %v3267
        %v3329 = vadd.f32 %v3051, %v3269
        %v3330 = vadd.f32 %v3054, %v3272
        %v3331 = vadd.f32 %v3056, %v3274
        %v3332 = vadd.f32 %v3059, %v3277
        %v3333 = vadd.f32 %v3061, %v3279
        %v3334 = vadd.f32 %v3064, %v3282
        %v3335 = vadd.f32 %v3066, %v3284
        %v3336 = vadd.f32 %v3069, %v3287
        %v3337 = vadd.f32 %v3071, %v3289
        %v3338 = vadd.f32 %v3074, %v3292
        %v3339 = vadd.f32 %v3076, %v3294
        %v3340 = vadd.f32 %v3079, %v3297
        %v3341 = vadd.f32 %v3081, %v3299
        %v3342 = vadd.f32 %v3084, %v3302
        %v3343 = vadd.f32 %v3086, %v3304
        %v3344 = vadd.f32 %v3089, %v3307
        %v3345 = vadd.f32 %v3091, %v3309
        %v3346 = vadd.f32 %v3094, %v3312
        %v3347 = vadd.f32 %v3096, %v3314
        %v3348 = vld [vmem:[%s2630] sm:$0xff]
        %v3349 = vld [vmem:[%s2630 + $0x8] sm:$0xff]
        %v3350 = vld [vmem:[%s2630 + $0x18] sm:$0xff]
        %v3351 = vld [vmem:[%s2630 + $0x20] sm:$0xff]
        %v3352 = vld [vmem:[%s2630 + $0x30] sm:$0xff]
        %v3353 = vld [vmem:[%s2630 + $0x38] sm:$0xff]
        %v3354 = vld [vmem:[%s2630 + $0x48] sm:$0xff]
        %v3355 = vld [vmem:[%s2630 + $0x50] sm:$0xff]
        %v3356 = vld [vmem:[%s2630 + $0x60] sm:$0xff]
        %v3357 = vld [vmem:[%s2630 + $0x68] sm:$0xff]
        %v3358 = vld [vmem:[%s2630 + $0x78] sm:$0xff]
        %v3359 = vld [vmem:[%s2630 + $0x80] sm:$0xff]
        %v3360 = vld [vmem:[%s2630 + $0x90] sm:$0xff]
        %v3361 = vld [vmem:[%s2630 + $0x98] sm:$0xff]
        %v3362 = vld [vmem:[%s2630 + $0xa8] sm:$0xff]
        %v3363 = vld [vmem:[%s2630 + $0xb0] sm:$0xff]
        %v3364 = vld [vmem:[%s2630 + $0xc0] sm:$0xff]
        %v3365 = vld [vmem:[%s2630 + $0xc8] sm:$0xff]
        %v3366 = vld [vmem:[%s2630 + $0xd8] sm:$0xff]
        %v3367 = vld [vmem:[%s2630 + $0xe0] sm:$0xff]
        %v3368 = vld [vmem:[%s2630 + $0xf0] sm:$0xff]
        %v3369 = vld [vmem:[%s2630 + $0xf8] sm:$0xff]
        %v3370 = vld [vmem:[%s2630 + $0x108] sm:$0xff]
        %v3371 = vld [vmem:[%s2630 + $0x110] sm:$0xff]
        %v3372 = vld [vmem:[%s2630 + $0x120] sm:$0xff]
        %v3373 = vld [vmem:[%s2630 + $0x128] sm:$0xff]
        %v3374 = vld [vmem:[%s2630 + $0x138] sm:$0xff]
        %v3375 = vld [vmem:[%s2630 + $0x140] sm:$0xff]
        %v3376 = vld [vmem:[%s2630 + $0x150] sm:$0xff]
        %v3377 = vld [vmem:[%s2630 + $0x158] sm:$0xff]
        %v3378 = vld [vmem:[%s2630 + $0x168] sm:$0xff]
        %v3379 = vld [vmem:[%s2630 + $0x170] sm:$0xff]
        %v3380 = vpack.c.bf16 %v3349, %v3348
        %v3381 = vpack.c.bf16 %v3351, %v3350
        %v3382 = vpack.c.bf16 %v3353, %v3352
        %v3383 = vpack.c.bf16 %v3355, %v3354
        %v3384 = vpack.c.bf16 %v3357, %v3356
        %v3385 = vpack.c.bf16 %v3359, %v3358
        %v3386 = vpack.c.bf16 %v3361, %v3360
        %v3387 = vpack.c.bf16 %v3363, %v3362
        %v3388 = vpack.c.bf16 %v3365, %v3364
        %v3389 = vpack.c.bf16 %v3367, %v3366
        %v3390 = vpack.c.bf16 %v3369, %v3368
        %v3391 = vpack.c.bf16 %v3371, %v3370
        %v3392 = vpack.c.bf16 %v3373, %v3372
        %v3393 = vpack.c.bf16 %v3375, %v3374
        %v3394 = vpack.c.bf16 %v3377, %v3376
        %v3395 = vpack.c.bf16 %v3379, %v3378
        %s3396 = scalar_lea.vmem [#allocation9], 96
        %v3397 = vld [vmem:[%s3396] sm:$0xf]
        %v3398 = vld [vmem:[%s3396 + $0x4] sm:$0xf]
        %v3399 = vld [vmem:[%s3396 + $0x8] sm:$0xf]
        %v3400 = vld [vmem:[%s3396 + $0xc] sm:$0xf]
        %v3401 = vld [vmem:[%s3396 + $0x10] sm:$0xf]
        %v3402 = vld [vmem:[%s3396 + $0x14] sm:$0xf]
        %v3403 = vld [vmem:[%s3396 + $0x18] sm:$0xf]
        %v3404 = vld [vmem:[%s3396 + $0x1c] sm:$0xf]
        %v3413 = vunpack.c.l.b16 %v3397
        %v3414 = vunpack.c.l.b16 %v3398
        %v3415 = vunpack.c.l.b16 %v3399
        %v3416 = vunpack.c.l.b16 %v3400
        %v3417 = vunpack.c.l.b16 %v3401
        %v3418 = vunpack.c.l.b16 %v3402
        %v3419 = vunpack.c.l.b16 %v3403
        %v3420 = vunpack.c.l.b16 %v3404
        %v3421 = vpack.c.b16 %v3414, %v3413
        %v3422 = vpack.c.b16 %v3416, %v3415
        %v3423 = vpack.c.b16 %v3418, %v3417
        %v3424 = vpack.c.b16 %v3420, %v3419
        %v3430 = vsel %vm2574, %v3380, 0
        %v3433 = vsel %vm2574, %v3381, 0
        %v3436 = vsel %vm2574, %v3382, 0
        %v3439 = vsel %vm2574, %v3383, 0
        %v3442 = vsel %vm2574, %v3384, 0
        %v3445 = vsel %vm2574, %v3385, 0
        %v3448 = vsel %vm2574, %v3386, 0
        %v3451 = vsel %vm2574, %v3387, 0
        %v3454 = vsel %vm2574, %v3388, 0
        %v3457 = vsel %vm2574, %v3389, 0
        %v3460 = vsel %vm2574, %v3390, 0
        %v3463 = vsel %vm2574, %v3391, 0
        %v3466 = vsel %vm2574, %v3392, 0
        %v3469 = vsel %vm2574, %v3393, 0
        %v3472 = vsel %vm2574, %v3394, 0
        %v3475 = vsel %vm2574, %v3395, 0
        %3477 = vmatpush.bf16.msra.mxu0 0
        %3478 = vmatpush.bf16.msra.mxu0 0
        %3479 = vmatpush.bf16.msra.mxu0 0
        %3480 = vmatpush.bf16.msra.mxu0 0
        %3481 = vmatpush.bf16.msra.mxu0 %v3424
        %3482 = vmatpush.bf16.msra.mxu0 %v3423
        %3483 = vmatpush.bf16.msra.mxu0 %v3422
        %3484 = vmatpush.bf16.msra.mxu0 %v3421
        %3485 = vmatmul.bf16.gmra.mxu0 %v3430
        %v3486 = vpop.f32.mrf.mxu0
        %v3487 = vadd.f32 0.0, %v3486
        %v3488 = vpop.f32.mrf.mxu0
        %v3489 = vadd.f32 0.0, %v3488
        %3490 = vmatmul.bf16.gmra.mxu0 %v3433
        %v3491 = vpop.f32.mrf.mxu0
        %v3492 = vadd.f32 0.0, %v3491
        %v3493 = vpop.f32.mrf.mxu0
        %v3494 = vadd.f32 0.0, %v3493
        %3495 = vmatmul.bf16.gmra.mxu0 %v3436
        %v3496 = vpop.f32.mrf.mxu0
        %v3497 = vadd.f32 0.0, %v3496
        %v3498 = vpop.f32.mrf.mxu0
        %v3499 = vadd.f32 0.0, %v3498
        %3500 = vmatmul.bf16.gmra.mxu0 %v3439
        %v3501 = vpop.f32.mrf.mxu0
        %v3502 = vadd.f32 0.0, %v3501
        %v3503 = vpop.f32.mrf.mxu0
        %v3504 = vadd.f32 0.0, %v3503
        %3505 = vmatmul.bf16.gmra.mxu0 %v3442
        %v3506 = vpop.f32.mrf.mxu0
        %v3507 = vadd.f32 0.0, %v3506
        %v3508 = vpop.f32.mrf.mxu0
        %v3509 = vadd.f32 0.0, %v3508
        %3510 = vmatmul.bf16.gmra.mxu0 %v3445
        %v3511 = vpop.f32.mrf.mxu0
        %v3512 = vadd.f32 0.0, %v3511
        %v3513 = vpop.f32.mrf.mxu0
        %v3514 = vadd.f32 0.0, %v3513
        %3515 = vmatmul.bf16.gmra.mxu0 %v3448
        %v3516 = vpop.f32.mrf.mxu0
        %v3517 = vadd.f32 0.0, %v3516
        %v3518 = vpop.f32.mrf.mxu0
        %v3519 = vadd.f32 0.0, %v3518
        %3520 = vmatmul.bf16.gmra.mxu0 %v3451
        %v3521 = vpop.f32.mrf.mxu0
        %v3522 = vadd.f32 0.0, %v3521
        %v3523 = vpop.f32.mrf.mxu0
        %v3524 = vadd.f32 0.0, %v3523
        %3525 = vmatmul.bf16.gmra.mxu0 %v3454
        %v3526 = vpop.f32.mrf.mxu0
        %v3527 = vadd.f32 0.0, %v3526
        %v3528 = vpop.f32.mrf.mxu0
        %v3529 = vadd.f32 0.0, %v3528
        %3530 = vmatmul.bf16.gmra.mxu0 %v3457
        %v3531 = vpop.f32.mrf.mxu0
        %v3532 = vadd.f32 0.0, %v3531
        %v3533 = vpop.f32.mrf.mxu0
        %v3534 = vadd.f32 0.0, %v3533
        %3535 = vmatmul.bf16.gmra.mxu0 %v3460
        %v3536 = vpop.f32.mrf.mxu0
        %v3537 = vadd.f32 0.0, %v3536
        %v3538 = vpop.f32.mrf.mxu0
        %v3539 = vadd.f32 0.0, %v3538
        %3540 = vmatmul.bf16.gmra.mxu0 %v3463
        %v3541 = vpop.f32.mrf.mxu0
        %v3542 = vadd.f32 0.0, %v3541
        %v3543 = vpop.f32.mrf.mxu0
        %v3544 = vadd.f32 0.0, %v3543
        %3545 = vmatmul.bf16.gmra.mxu0 %v3466
        %v3546 = vpop.f32.mrf.mxu0
        %v3547 = vadd.f32 0.0, %v3546
        %v3548 = vpop.f32.mrf.mxu0
        %v3549 = vadd.f32 0.0, %v3548
        %3550 = vmatmul.bf16.gmra.mxu0 %v3469
        %v3551 = vpop.f32.mrf.mxu0
        %v3552 = vadd.f32 0.0, %v3551
        %v3553 = vpop.f32.mrf.mxu0
        %v3554 = vadd.f32 0.0, %v3553
        %3555 = vmatmul.bf16.gmra.mxu0 %v3472
        %v3556 = vpop.f32.mrf.mxu0
        %v3557 = vadd.f32 0.0, %v3556
        %v3558 = vpop.f32.mrf.mxu0
        %v3559 = vadd.f32 0.0, %v3558
        %3560 = vmatmul.bf16.gmra.mxu0 %v3475
        %v3561 = vpop.f32.mrf.mxu0
        %v3562 = vadd.f32 0.0, %v3561
        %v3563 = vpop.f32.mrf.mxu0
        %v3564 = vadd.f32 0.0, %v3563
        %3565 = vdwg.mxu0
        %v3566 = vadd.f32 %v3316, %v3487
        %v3567 = vadd.f32 %v3317, %v3489
        %v3568 = vadd.f32 %v3318, %v3492
        %v3569 = vadd.f32 %v3319, %v3494
        %v3570 = vadd.f32 %v3320, %v3497
        %v3571 = vadd.f32 %v3321, %v3499
        %v3572 = vadd.f32 %v3322, %v3502
        %v3573 = vadd.f32 %v3323, %v3504
        %v3574 = vadd.f32 %v3324, %v3507
        %v3575 = vadd.f32 %v3325, %v3509
        %v3576 = vadd.f32 %v3326, %v3512
        %v3577 = vadd.f32 %v3327, %v3514
        %v3578 = vadd.f32 %v3328, %v3517
        %v3579 = vadd.f32 %v3329, %v3519
        %v3580 = vadd.f32 %v3330, %v3522
        %v3581 = vadd.f32 %v3331, %v3524
        %v3582 = vadd.f32 %v3332, %v3527
        %v3583 = vadd.f32 %v3333, %v3529
        %v3584 = vadd.f32 %v3334, %v3532
        %v3585 = vadd.f32 %v3335, %v3534
        %v3586 = vadd.f32 %v3336, %v3537
        %v3587 = vadd.f32 %v3337, %v3539
        %v3588 = vadd.f32 %v3338, %v3542
        %v3589 = vadd.f32 %v3339, %v3544
        %v3590 = vadd.f32 %v3340, %v3547
        %v3591 = vadd.f32 %v3341, %v3549
        %v3592 = vadd.f32 %v3342, %v3552
        %v3593 = vadd.f32 %v3343, %v3554
        %v3594 = vadd.f32 %v3344, %v3557
        %v3595 = vadd.f32 %v3345, %v3559
        %v3596 = vadd.f32 %v3346, %v3562
        %v3597 = vadd.f32 %v3347, %v3564
        %v3598 = vld [vmem:[%s2630 + $0x1] sm:$0xff]
        %v3599 = vld [vmem:[%s2630 + $0x9] sm:$0xff]
        %v3600 = vld [vmem:[%s2630 + $0x19] sm:$0xff]
        %v3601 = vld [vmem:[%s2630 + $0x21] sm:$0xff]
        %v3602 = vld [vmem:[%s2630 + $0x31] sm:$0xff]
        %v3603 = vld [vmem:[%s2630 + $0x39] sm:$0xff]
        %v3604 = vld [vmem:[%s2630 + $0x49] sm:$0xff]
        %v3605 = vld [vmem:[%s2630 + $0x51] sm:$0xff]
        %v3606 = vld [vmem:[%s2630 + $0x61] sm:$0xff]
        %v3607 = vld [vmem:[%s2630 + $0x69] sm:$0xff]
        %v3608 = vld [vmem:[%s2630 + $0x79] sm:$0xff]
        %v3609 = vld [vmem:[%s2630 + $0x81] sm:$0xff]
        %v3610 = vld [vmem:[%s2630 + $0x91] sm:$0xff]
        %v3611 = vld [vmem:[%s2630 + $0x99] sm:$0xff]
        %v3612 = vld [vmem:[%s2630 + $0xa9] sm:$0xff]
        %v3613 = vld [vmem:[%s2630 + $0xb1] sm:$0xff]
        %v3614 = vld [vmem:[%s2630 + $0xc1] sm:$0xff]
        %v3615 = vld [vmem:[%s2630 + $0xc9] sm:$0xff]
        %v3616 = vld [vmem:[%s2630 + $0xd9] sm:$0xff]
        %v3617 = vld [vmem:[%s2630 + $0xe1] sm:$0xff]
        %v3618 = vld [vmem:[%s2630 + $0xf1] sm:$0xff]
        %v3619 = vld [vmem:[%s2630 + $0xf9] sm:$0xff]
        %v3620 = vld [vmem:[%s2630 + $0x109] sm:$0xff]
        %v3621 = vld [vmem:[%s2630 + $0x111] sm:$0xff]
        %v3622 = vld [vmem:[%s2630 + $0x121] sm:$0xff]
        %v3623 = vld [vmem:[%s2630 + $0x129] sm:$0xff]
        %v3624 = vld [vmem:[%s2630 + $0x139] sm:$0xff]
        %v3625 = vld [vmem:[%s2630 + $0x141] sm:$0xff]
        %v3626 = vld [vmem:[%s2630 + $0x151] sm:$0xff]
        %v3627 = vld [vmem:[%s2630 + $0x159] sm:$0xff]
        %v3628 = vld [vmem:[%s2630 + $0x169] sm:$0xff]
        %v3629 = vld [vmem:[%s2630 + $0x171] sm:$0xff]
        %v3630 = vpack.c.bf16 %v3599, %v3598
        %v3631 = vpack.c.bf16 %v3601, %v3600
        %v3632 = vpack.c.bf16 %v3603, %v3602
        %v3633 = vpack.c.bf16 %v3605, %v3604
        %v3634 = vpack.c.bf16 %v3607, %v3606
        %v3635 = vpack.c.bf16 %v3609, %v3608
        %v3636 = vpack.c.bf16 %v3611, %v3610
        %v3637 = vpack.c.bf16 %v3613, %v3612
        %v3638 = vpack.c.bf16 %v3615, %v3614
        %v3639 = vpack.c.bf16 %v3617, %v3616
        %v3640 = vpack.c.bf16 %v3619, %v3618
        %v3641 = vpack.c.bf16 %v3621, %v3620
        %v3642 = vpack.c.bf16 %v3623, %v3622
        %v3643 = vpack.c.bf16 %v3625, %v3624
        %v3644 = vpack.c.bf16 %v3627, %v3626
        %v3645 = vpack.c.bf16 %v3629, %v3628
        %s3646 = scalar_lea.vmem [#allocation9], 128
        %v3647 = vld [vmem:[%s3646] sm:$0xf]
        %v3648 = vld [vmem:[%s3646 + $0x4] sm:$0xf]
        %v3649 = vld [vmem:[%s3646 + $0x8] sm:$0xf]
        %v3650 = vld [vmem:[%s3646 + $0xc] sm:$0xf]
        %v3651 = vld [vmem:[%s3646 + $0x10] sm:$0xf]
        %v3652 = vld [vmem:[%s3646 + $0x14] sm:$0xf]
        %v3653 = vld [vmem:[%s3646 + $0x18] sm:$0xf]
        %v3654 = vld [vmem:[%s3646 + $0x1c] sm:$0xf]
        %v3663 = vunpack.c.l.b16 %v3647
        %v3664 = vunpack.c.l.b16 %v3648
        %v3665 = vunpack.c.l.b16 %v3649
        %v3666 = vunpack.c.l.b16 %v3650
        %v3667 = vunpack.c.l.b16 %v3651
        %v3668 = vunpack.c.l.b16 %v3652
        %v3669 = vunpack.c.l.b16 %v3653
        %v3670 = vunpack.c.l.b16 %v3654
        %v3671 = vpack.c.b16 %v3664, %v3663
        %v3672 = vpack.c.b16 %v3666, %v3665
        %v3673 = vpack.c.b16 %v3668, %v3667
        %v3674 = vpack.c.b16 %v3670, %v3669
        %v3680 = vsel %vm2574, %v3630, 0
        %v3683 = vsel %vm2574, %v3631, 0
        %v3686 = vsel %vm2574, %v3632, 0
        %v3689 = vsel %vm2574, %v3633, 0
        %v3692 = vsel %vm2574, %v3634, 0
        %v3695 = vsel %vm2574, %v3635, 0
        %v3698 = vsel %vm2574, %v3636, 0
        %v3701 = vsel %vm2574, %v3637, 0
        %v3704 = vsel %vm2574, %v3638, 0
        %v3707 = vsel %vm2574, %v3639, 0
        %v3710 = vsel %vm2574, %v3640, 0
        %v3713 = vsel %vm2574, %v3641, 0
        %v3716 = vsel %vm2574, %v3642, 0
        %v3719 = vsel %vm2574, %v3643, 0
        %v3722 = vsel %vm2574, %v3644, 0
        %v3725 = vsel %vm2574, %v3645, 0
        %3727 = vmatpush.bf16.msra.mxu0 0
        %3728 = vmatpush.bf16.msra.mxu0 0
        %3729 = vmatpush.bf16.msra.mxu0 0
        %3730 = vmatpush.bf16.msra.mxu0 0
        %3731 = vmatpush.bf16.msra.mxu0 %v3674
        %3732 = vmatpush.bf16.msra.mxu0 %v3673
        %3733 = vmatpush.bf16.msra.mxu0 %v3672
        %3734 = vmatpush.bf16.msra.mxu0 %v3671
        %3735 = vmatmul.bf16.gmra.mxu0 %v3680
        %v3736 = vpop.f32.mrf.mxu0
        %v3737 = vadd.f32 0.0, %v3736
        %v3738 = vpop.f32.mrf.mxu0
        %v3739 = vadd.f32 0.0, %v3738
        %3740 = vmatmul.bf16.gmra.mxu0 %v3683
        %v3741 = vpop.f32.mrf.mxu0
        %v3742 = vadd.f32 0.0, %v3741
        %v3743 = vpop.f32.mrf.mxu0
        %v3744 = vadd.f32 0.0, %v3743
        %3745 = vmatmul.bf16.gmra.mxu0 %v3686
        %v3746 = vpop.f32.mrf.mxu0
        %v3747 = vadd.f32 0.0, %v3746
        %v3748 = vpop.f32.mrf.mxu0
        %v3749 = vadd.f32 0.0, %v3748
        %3750 = vmatmul.bf16.gmra.mxu0 %v3689
        %v3751 = vpop.f32.mrf.mxu0
        %v3752 = vadd.f32 0.0, %v3751
        %v3753 = vpop.f32.mrf.mxu0
        %v3754 = vadd.f32 0.0, %v3753
        %3755 = vmatmul.bf16.gmra.mxu0 %v3692
        %v3756 = vpop.f32.mrf.mxu0
        %v3757 = vadd.f32 0.0, %v3756
        %v3758 = vpop.f32.mrf.mxu0
        %v3759 = vadd.f32 0.0, %v3758
        %3760 = vmatmul.bf16.gmra.mxu0 %v3695
        %v3761 = vpop.f32.mrf.mxu0
        %v3762 = vadd.f32 0.0, %v3761
        %v3763 = vpop.f32.mrf.mxu0
        %v3764 = vadd.f32 0.0, %v3763
        %3765 = vmatmul.bf16.gmra.mxu0 %v3698
        %v3766 = vpop.f32.mrf.mxu0
        %v3767 = vadd.f32 0.0, %v3766
        %v3768 = vpop.f32.mrf.mxu0
        %v3769 = vadd.f32 0.0, %v3768
        %3770 = vmatmul.bf16.gmra.mxu0 %v3701
        %v3771 = vpop.f32.mrf.mxu0
        %v3772 = vadd.f32 0.0, %v3771
        %v3773 = vpop.f32.mrf.mxu0
        %v3774 = vadd.f32 0.0, %v3773
        %3775 = vmatmul.bf16.gmra.mxu0 %v3704
        %v3776 = vpop.f32.mrf.mxu0
        %v3777 = vadd.f32 0.0, %v3776
        %v3778 = vpop.f32.mrf.mxu0
        %v3779 = vadd.f32 0.0, %v3778
        %3780 = vmatmul.bf16.gmra.mxu0 %v3707
        %v3781 = vpop.f32.mrf.mxu0
        %v3782 = vadd.f32 0.0, %v3781
        %v3783 = vpop.f32.mrf.mxu0
        %v3784 = vadd.f32 0.0, %v3783
        %3785 = vmatmul.bf16.gmra.mxu0 %v3710
        %v3786 = vpop.f32.mrf.mxu0
        %v3787 = vadd.f32 0.0, %v3786
        %v3788 = vpop.f32.mrf.mxu0
        %v3789 = vadd.f32 0.0, %v3788
        %3790 = vmatmul.bf16.gmra.mxu0 %v3713
        %v3791 = vpop.f32.mrf.mxu0
        %v3792 = vadd.f32 0.0, %v3791
        %v3793 = vpop.f32.mrf.mxu0
        %v3794 = vadd.f32 0.0, %v3793
        %3795 = vmatmul.bf16.gmra.mxu0 %v3716
        %v3796 = vpop.f32.mrf.mxu0
        %v3797 = vadd.f32 0.0, %v3796
        %v3798 = vpop.f32.mrf.mxu0
        %v3799 = vadd.f32 0.0, %v3798
        %3800 = vmatmul.bf16.gmra.mxu0 %v3719
        %v3801 = vpop.f32.mrf.mxu0
        %v3802 = vadd.f32 0.0, %v3801
        %v3803 = vpop.f32.mrf.mxu0
        %v3804 = vadd.f32 0.0, %v3803
        %3805 = vmatmul.bf16.gmra.mxu0 %v3722
        %v3806 = vpop.f32.mrf.mxu0
        %v3807 = vadd.f32 0.0, %v3806
        %v3808 = vpop.f32.mrf.mxu0
        %v3809 = vadd.f32 0.0, %v3808
        %3810 = vmatmul.bf16.gmra.mxu0 %v3725
        %v3811 = vpop.f32.mrf.mxu0
        %v3812 = vadd.f32 0.0, %v3811
        %v3813 = vpop.f32.mrf.mxu0
        %v3814 = vadd.f32 0.0, %v3813
        %3815 = vdwg.mxu0
        %v3816 = vadd.f32 %v3566, %v3737
        %v3817 = vadd.f32 %v3567, %v3739
        %v3818 = vadd.f32 %v3568, %v3742
        %v3819 = vadd.f32 %v3569, %v3744
        %v3820 = vadd.f32 %v3570, %v3747
        %v3821 = vadd.f32 %v3571, %v3749
        %v3822 = vadd.f32 %v3572, %v3752
        %v3823 = vadd.f32 %v3573, %v3754
        %v3824 = vadd.f32 %v3574, %v3757
        %v3825 = vadd.f32 %v3575, %v3759
        %v3826 = vadd.f32 %v3576, %v3762
        %v3827 = vadd.f32 %v3577, %v3764
        %v3828 = vadd.f32 %v3578, %v3767
        %v3829 = vadd.f32 %v3579, %v3769
        %v3830 = vadd.f32 %v3580, %v3772
        %v3831 = vadd.f32 %v3581, %v3774
        %v3832 = vadd.f32 %v3582, %v3777
        %v3833 = vadd.f32 %v3583, %v3779
        %v3834 = vadd.f32 %v3584, %v3782
        %v3835 = vadd.f32 %v3585, %v3784
        %v3836 = vadd.f32 %v3586, %v3787
        %v3837 = vadd.f32 %v3587, %v3789
        %v3838 = vadd.f32 %v3588, %v3792
        %v3839 = vadd.f32 %v3589, %v3794
        %v3840 = vadd.f32 %v3590, %v3797
        %v3841 = vadd.f32 %v3591, %v3799
        %v3842 = vadd.f32 %v3592, %v3802
        %v3843 = vadd.f32 %v3593, %v3804
        %v3844 = vadd.f32 %v3594, %v3807
        %v3845 = vadd.f32 %v3595, %v3809
        %v3846 = vadd.f32 %v3596, %v3812
        %v3847 = vadd.f32 %v3597, %v3814
        %v3848 = vld [vmem:[%s2630 + $0x2] sm:$0xff]
        %v3849 = vld [vmem:[%s2630 + $0xa] sm:$0xff]
        %v3850 = vld [vmem:[%s2630 + $0x1a] sm:$0xff]
        %v3851 = vld [vmem:[%s2630 + $0x22] sm:$0xff]
        %v3852 = vld [vmem:[%s2630 + $0x32] sm:$0xff]
        %v3853 = vld [vmem:[%s2630 + $0x3a] sm:$0xff]
        %v3854 = vld [vmem:[%s2630 + $0x4a] sm:$0xff]
        %v3855 = vld [vmem:[%s2630 + $0x52] sm:$0xff]
        %v3856 = vld [vmem:[%s2630 + $0x62] sm:$0xff]
        %v3857 = vld [vmem:[%s2630 + $0x6a] sm:$0xff]
        %v3858 = vld [vmem:[%s2630 + $0x7a] sm:$0xff]
        %v3859 = vld [vmem:[%s2630 + $0x82] sm:$0xff]
        %v3860 = vld [vmem:[%s2630 + $0x92] sm:$0xff]
        %v3861 = vld [vmem:[%s2630 + $0x9a] sm:$0xff]
        %v3862 = vld [vmem:[%s2630 + $0xaa] sm:$0xff]
        %v3863 = vld [vmem:[%s2630 + $0xb2] sm:$0xff]
        %v3864 = vld [vmem:[%s2630 + $0xc2] sm:$0xff]
        %v3865 = vld [vmem:[%s2630 + $0xca] sm:$0xff]
        %v3866 = vld [vmem:[%s2630 + $0xda] sm:$0xff]
        %v3867 = vld [vmem:[%s2630 + $0xe2] sm:$0xff]
        %v3868 = vld [vmem:[%s2630 + $0xf2] sm:$0xff]
        %v3869 = vld [vmem:[%s2630 + $0xfa] sm:$0xff]
        %v3870 = vld [vmem:[%s2630 + $0x10a] sm:$0xff]
        %v3871 = vld [vmem:[%s2630 + $0x112] sm:$0xff]
        %v3872 = vld [vmem:[%s2630 + $0x122] sm:$0xff]
        %v3873 = vld [vmem:[%s2630 + $0x12a] sm:$0xff]
        %v3874 = vld [vmem:[%s2630 + $0x13a] sm:$0xff]
        %v3875 = vld [vmem:[%s2630 + $0x142] sm:$0xff]
        %v3876 = vld [vmem:[%s2630 + $0x152] sm:$0xff]
        %v3877 = vld [vmem:[%s2630 + $0x15a] sm:$0xff]
        %v3878 = vld [vmem:[%s2630 + $0x16a] sm:$0xff]
        %v3879 = vld [vmem:[%s2630 + $0x172] sm:$0xff]
        %v3880 = vpack.c.bf16 %v3849, %v3848
        %v3881 = vpack.c.bf16 %v3851, %v3850
        %v3882 = vpack.c.bf16 %v3853, %v3852
        %v3883 = vpack.c.bf16 %v3855, %v3854
        %v3884 = vpack.c.bf16 %v3857, %v3856
        %v3885 = vpack.c.bf16 %v3859, %v3858
        %v3886 = vpack.c.bf16 %v3861, %v3860
        %v3887 = vpack.c.bf16 %v3863, %v3862
        %v3888 = vpack.c.bf16 %v3865, %v3864
        %v3889 = vpack.c.bf16 %v3867, %v3866
        %v3890 = vpack.c.bf16 %v3869, %v3868
        %v3891 = vpack.c.bf16 %v3871, %v3870
        %v3892 = vpack.c.bf16 %v3873, %v3872
        %v3893 = vpack.c.bf16 %v3875, %v3874
        %v3894 = vpack.c.bf16 %v3877, %v3876
        %v3895 = vpack.c.bf16 %v3879, %v3878
        %s3896 = scalar_lea.vmem [#allocation9], 160
        %v3897 = vld [vmem:[%s3896] sm:$0xf]
        %v3898 = vld [vmem:[%s3896 + $0x4] sm:$0xf]
        %v3899 = vld [vmem:[%s3896 + $0x8] sm:$0xf]
        %v3900 = vld [vmem:[%s3896 + $0xc] sm:$0xf]
        %v3901 = vld [vmem:[%s3896 + $0x10] sm:$0xf]
        %v3902 = vld [vmem:[%s3896 + $0x14] sm:$0xf]
        %v3903 = vld [vmem:[%s3896 + $0x18] sm:$0xf]
        %v3904 = vld [vmem:[%s3896 + $0x1c] sm:$0xf]
        %v3913 = vunpack.c.l.b16 %v3897
        %v3914 = vunpack.c.l.b16 %v3898
        %v3915 = vunpack.c.l.b16 %v3899
        %v3916 = vunpack.c.l.b16 %v3900
        %v3917 = vunpack.c.l.b16 %v3901
        %v3918 = vunpack.c.l.b16 %v3902
        %v3919 = vunpack.c.l.b16 %v3903
        %v3920 = vunpack.c.l.b16 %v3904
        %v3921 = vpack.c.b16 %v3914, %v3913
        %v3922 = vpack.c.b16 %v3916, %v3915
        %v3923 = vpack.c.b16 %v3918, %v3917
        %v3924 = vpack.c.b16 %v3920, %v3919
        %v3930 = vsel %vm2574, %v3880, 0
        %v3933 = vsel %vm2574, %v3881, 0
        %v3936 = vsel %vm2574, %v3882, 0
        %v3939 = vsel %vm2574, %v3883, 0
        %v3942 = vsel %vm2574, %v3884, 0
        %v3945 = vsel %vm2574, %v3885, 0
        %v3948 = vsel %vm2574, %v3886, 0
        %v3951 = vsel %vm2574, %v3887, 0
        %v3954 = vsel %vm2574, %v3888, 0
        %v3957 = vsel %vm2574, %v3889, 0
        %v3960 = vsel %vm2574, %v3890, 0
        %v3963 = vsel %vm2574, %v3891, 0
        %v3966 = vsel %vm2574, %v3892, 0
        %v3969 = vsel %vm2574, %v3893, 0
        %v3972 = vsel %vm2574, %v3894, 0
        %v3975 = vsel %vm2574, %v3895, 0
        %3977 = vmatpush.bf16.msra.mxu0 0
        %3978 = vmatpush.bf16.msra.mxu0 0
        %3979 = vmatpush.bf16.msra.mxu0 0
        %3980 = vmatpush.bf16.msra.mxu0 0
        %3981 = vmatpush.bf16.msra.mxu0 %v3924
        %3982 = vmatpush.bf16.msra.mxu0 %v3923
        %3983 = vmatpush.bf16.msra.mxu0 %v3922
        %3984 = vmatpush.bf16.msra.mxu0 %v3921
        %3985 = vmatmul.bf16.gmra.mxu0 %v3930
        %v3986 = vpop.f32.mrf.mxu0
        %v3987 = vadd.f32 0.0, %v3986
        %v3988 = vpop.f32.mrf.mxu0
        %v3989 = vadd.f32 0.0, %v3988
        %3990 = vmatmul.bf16.gmra.mxu0 %v3933
        %v3991 = vpop.f32.mrf.mxu0
        %v3992 = vadd.f32 0.0, %v3991
        %v3993 = vpop.f32.mrf.mxu0
        %v3994 = vadd.f32 0.0, %v3993
        %3995 = vmatmul.bf16.gmra.mxu0 %v3936
        %v3996 = vpop.f32.mrf.mxu0
        %v3997 = vadd.f32 0.0, %v3996
        %v3998 = vpop.f32.mrf.mxu0
        %v3999 = vadd.f32 0.0, %v3998
        %4000 = vmatmul.bf16.gmra.mxu0 %v3939
        %v4001 = vpop.f32.mrf.mxu0
        %v4002 = vadd.f32 0.0, %v4001
        %v4003 = vpop.f32.mrf.mxu0
        %v4004 = vadd.f32 0.0, %v4003
        %4005 = vmatmul.bf16.gmra.mxu0 %v3942
        %v4006 = vpop.f32.mrf.mxu0
        %v4007 = vadd.f32 0.0, %v4006
        %v4008 = vpop.f32.mrf.mxu0
        %v4009 = vadd.f32 0.0, %v4008
        %4010 = vmatmul.bf16.gmra.mxu0 %v3945
        %v4011 = vpop.f32.mrf.mxu0
        %v4012 = vadd.f32 0.0, %v4011
        %v4013 = vpop.f32.mrf.mxu0
        %v4014 = vadd.f32 0.0, %v4013
        %4015 = vmatmul.bf16.gmra.mxu0 %v3948
        %v4016 = vpop.f32.mrf.mxu0
        %v4017 = vadd.f32 0.0, %v4016
        %v4018 = vpop.f32.mrf.mxu0
        %v4019 = vadd.f32 0.0, %v4018
        %4020 = vmatmul.bf16.gmra.mxu0 %v3951
        %v4021 = vpop.f32.mrf.mxu0
        %v4022 = vadd.f32 0.0, %v4021
        %v4023 = vpop.f32.mrf.mxu0
        %v4024 = vadd.f32 0.0, %v4023
        %4025 = vmatmul.bf16.gmra.mxu0 %v3954
        %v4026 = vpop.f32.mrf.mxu0
        %v4027 = vadd.f32 0.0, %v4026
        %v4028 = vpop.f32.mrf.mxu0
        %v4029 = vadd.f32 0.0, %v4028
        %4030 = vmatmul.bf16.gmra.mxu0 %v3957
        %v4031 = vpop.f32.mrf.mxu0
        %v4032 = vadd.f32 0.0, %v4031
        %v4033 = vpop.f32.mrf.mxu0
        %v4034 = vadd.f32 0.0, %v4033
        %4035 = vmatmul.bf16.gmra.mxu0 %v3960
        %v4036 = vpop.f32.mrf.mxu0
        %v4037 = vadd.f32 0.0, %v4036
        %v4038 = vpop.f32.mrf.mxu0
        %v4039 = vadd.f32 0.0, %v4038
        %4040 = vmatmul.bf16.gmra.mxu0 %v3963
        %v4041 = vpop.f32.mrf.mxu0
        %v4042 = vadd.f32 0.0, %v4041
        %v4043 = vpop.f32.mrf.mxu0
        %v4044 = vadd.f32 0.0, %v4043
        %4045 = vmatmul.bf16.gmra.mxu0 %v3966
        %v4046 = vpop.f32.mrf.mxu0
        %v4047 = vadd.f32 0.0, %v4046
        %v4048 = vpop.f32.mrf.mxu0
        %v4049 = vadd.f32 0.0, %v4048
        %4050 = vmatmul.bf16.gmra.mxu0 %v3969
        %v4051 = vpop.f32.mrf.mxu0
        %v4052 = vadd.f32 0.0, %v4051
        %v4053 = vpop.f32.mrf.mxu0
        %v4054 = vadd.f32 0.0, %v4053
        %4055 = vmatmul.bf16.gmra.mxu0 %v3972
        %v4056 = vpop.f32.mrf.mxu0
        %v4057 = vadd.f32 0.0, %v4056
        %v4058 = vpop.f32.mrf.mxu0
        %v4059 = vadd.f32 0.0, %v4058
        %4060 = vmatmul.bf16.gmra.mxu0 %v3975
        %v4061 = vpop.f32.mrf.mxu0
        %v4062 = vadd.f32 0.0, %v4061
        %v4063 = vpop.f32.mrf.mxu0
        %v4064 = vadd.f32 0.0, %v4063
        %4065 = vdwg.mxu0
        %v4066 = vadd.f32 %v3816, %v3987
        %v4067 = vadd.f32 %v3817, %v3989
        %v4068 = vadd.f32 %v3818, %v3992
        %v4069 = vadd.f32 %v3819, %v3994
        %v4070 = vadd.f32 %v3820, %v3997
        %v4071 = vadd.f32 %v3821, %v3999
        %v4072 = vadd.f32 %v3822, %v4002
        %v4073 = vadd.f32 %v3823, %v4004
        %v4074 = vadd.f32 %v3824, %v4007
        %v4075 = vadd.f32 %v3825, %v4009
        %v4076 = vadd.f32 %v3826, %v4012
        %v4077 = vadd.f32 %v3827, %v4014
        %v4078 = vadd.f32 %v3828, %v4017
        %v4079 = vadd.f32 %v3829, %v4019
        %v4080 = vadd.f32 %v3830, %v4022
        %v4081 = vadd.f32 %v3831, %v4024
        %v4082 = vadd.f32 %v3832, %v4027
        %v4083 = vadd.f32 %v3833, %v4029
        %v4084 = vadd.f32 %v3834, %v4032
        %v4085 = vadd.f32 %v3835, %v4034
        %v4086 = vadd.f32 %v3836, %v4037
        %v4087 = vadd.f32 %v3837, %v4039
        %v4088 = vadd.f32 %v3838, %v4042
        %v4089 = vadd.f32 %v3839, %v4044
        %v4090 = vadd.f32 %v3840, %v4047
        %v4091 = vadd.f32 %v3841, %v4049
        %v4092 = vadd.f32 %v3842, %v4052
        %v4093 = vadd.f32 %v3843, %v4054
        %v4094 = vadd.f32 %v3844, %v4057
        %v4095 = vadd.f32 %v3845, %v4059
        %v4096 = vadd.f32 %v3846, %v4062
        %v4097 = vadd.f32 %v3847, %v4064
        %s4098 = scalar_lea.vmem [#allocation3], 48
        %v4099 = vld [vmem:[%s4098] sm:$0xff]
        %v4100 = vld [vmem:[%s4098 + $0x8] sm:$0xff]
        %v4101 = vld [vmem:[%s4098 + $0x18] sm:$0xff]
        %v4102 = vld [vmem:[%s4098 + $0x20] sm:$0xff]
        %v4103 = vld [vmem:[%s4098 + $0x30] sm:$0xff]
        %v4104 = vld [vmem:[%s4098 + $0x38] sm:$0xff]
        %v4105 = vld [vmem:[%s4098 + $0x48] sm:$0xff]
        %v4106 = vld [vmem:[%s4098 + $0x50] sm:$0xff]
        %v4107 = vld [vmem:[%s4098 + $0x60] sm:$0xff]
        %v4108 = vld [vmem:[%s4098 + $0x68] sm:$0xff]
        %v4109 = vld [vmem:[%s4098 + $0x78] sm:$0xff]
        %v4110 = vld [vmem:[%s4098 + $0x80] sm:$0xff]
        %v4111 = vld [vmem:[%s4098 + $0x90] sm:$0xff]
        %v4112 = vld [vmem:[%s4098 + $0x98] sm:$0xff]
        %v4113 = vld [vmem:[%s4098 + $0xa8] sm:$0xff]
        %v4114 = vld [vmem:[%s4098 + $0xb0] sm:$0xff]
        %v4115 = vld [vmem:[%s4098 + $0xc0] sm:$0xff]
        %v4116 = vld [vmem:[%s4098 + $0xc8] sm:$0xff]
        %v4117 = vld [vmem:[%s4098 + $0xd8] sm:$0xff]
        %v4118 = vld [vmem:[%s4098 + $0xe0] sm:$0xff]
        %v4119 = vld [vmem:[%s4098 + $0xf0] sm:$0xff]
        %v4120 = vld [vmem:[%s4098 + $0xf8] sm:$0xff]
        %v4121 = vld [vmem:[%s4098 + $0x108] sm:$0xff]
        %v4122 = vld [vmem:[%s4098 + $0x110] sm:$0xff]
        %v4123 = vld [vmem:[%s4098 + $0x120] sm:$0xff]
        %v4124 = vld [vmem:[%s4098 + $0x128] sm:$0xff]
        %v4125 = vld [vmem:[%s4098 + $0x138] sm:$0xff]
        %v4126 = vld [vmem:[%s4098 + $0x140] sm:$0xff]
        %v4127 = vld [vmem:[%s4098 + $0x150] sm:$0xff]
        %v4128 = vld [vmem:[%s4098 + $0x158] sm:$0xff]
        %v4129 = vld [vmem:[%s4098 + $0x168] sm:$0xff]
        %v4130 = vld [vmem:[%s4098 + $0x170] sm:$0xff]
        %v4131 = vpack.c.bf16 %v4100, %v4099
        %v4132 = vpack.c.bf16 %v4102, %v4101
        %v4133 = vpack.c.bf16 %v4104, %v4103
        %v4134 = vpack.c.bf16 %v4106, %v4105
        %v4135 = vpack.c.bf16 %v4108, %v4107
        %v4136 = vpack.c.bf16 %v4110, %v4109
        %v4137 = vpack.c.bf16 %v4112, %v4111
        %v4138 = vpack.c.bf16 %v4114, %v4113
        %v4139 = vpack.c.bf16 %v4116, %v4115
        %v4140 = vpack.c.bf16 %v4118, %v4117
        %v4141 = vpack.c.bf16 %v4120, %v4119
        %v4142 = vpack.c.bf16 %v4122, %v4121
        %v4143 = vpack.c.bf16 %v4124, %v4123
        %v4144 = vpack.c.bf16 %v4126, %v4125
        %v4145 = vpack.c.bf16 %v4128, %v4127
        %v4146 = vpack.c.bf16 %v4130, %v4129
        %s4147 = scalar_lea.vmem [#allocation9], 192
        %v4148 = vld [vmem:[%s4147] sm:$0xf]
        %v4149 = vld [vmem:[%s4147 + $0x4] sm:$0xf]
        %v4150 = vld [vmem:[%s4147 + $0x8] sm:$0xf]
        %v4151 = vld [vmem:[%s4147 + $0xc] sm:$0xf]
        %v4152 = vld [vmem:[%s4147 + $0x10] sm:$0xf]
        %v4153 = vld [vmem:[%s4147 + $0x14] sm:$0xf]
        %v4154 = vld [vmem:[%s4147 + $0x18] sm:$0xf]
        %v4155 = vld [vmem:[%s4147 + $0x1c] sm:$0xf]
        %v4164 = vunpack.c.l.b16 %v4148
        %v4165 = vunpack.c.l.b16 %v4149
        %v4166 = vunpack.c.l.b16 %v4150
        %v4167 = vunpack.c.l.b16 %v4151
        %v4168 = vunpack.c.l.b16 %v4152
        %v4169 = vunpack.c.l.b16 %v4153
        %v4170 = vunpack.c.l.b16 %v4154
        %v4171 = vunpack.c.l.b16 %v4155
        %v4172 = vpack.c.b16 %v4165, %v4164
        %v4173 = vpack.c.b16 %v4167, %v4166
        %v4174 = vpack.c.b16 %v4169, %v4168
        %v4175 = vpack.c.b16 %v4171, %v4170
        %v4181 = vsel %vm2574, %v4131, 0
        %v4184 = vsel %vm2574, %v4132, 0
        %v4187 = vsel %vm2574, %v4133, 0
        %v4190 = vsel %vm2574, %v4134, 0
        %v4193 = vsel %vm2574, %v4135, 0
        %v4196 = vsel %vm2574, %v4136, 0
        %v4199 = vsel %vm2574, %v4137, 0
        %v4202 = vsel %vm2574, %v4138, 0
        %v4205 = vsel %vm2574, %v4139, 0
        %v4208 = vsel %vm2574, %v4140, 0
        %v4211 = vsel %vm2574, %v4141, 0
        %v4214 = vsel %vm2574, %v4142, 0
        %v4217 = vsel %vm2574, %v4143, 0
        %v4220 = vsel %vm2574, %v4144, 0
        %v4223 = vsel %vm2574, %v4145, 0
        %v4226 = vsel %vm2574, %v4146, 0
        %4228 = vmatpush.bf16.msra.mxu0 0
        %4229 = vmatpush.bf16.msra.mxu0 0
        %4230 = vmatpush.bf16.msra.mxu0 0
        %4231 = vmatpush.bf16.msra.mxu0 0
        %4232 = vmatpush.bf16.msra.mxu0 %v4175
        %4233 = vmatpush.bf16.msra.mxu0 %v4174
        %4234 = vmatpush.bf16.msra.mxu0 %v4173
        %4235 = vmatpush.bf16.msra.mxu0 %v4172
        %4236 = vmatmul.bf16.gmra.mxu0 %v4181
        %v4237 = vpop.f32.mrf.mxu0
        %v4238 = vadd.f32 0.0, %v4237
        %v4239 = vpop.f32.mrf.mxu0
        %v4240 = vadd.f32 0.0, %v4239
        %4241 = vmatmul.bf16.gmra.mxu0 %v4184
        %v4242 = vpop.f32.mrf.mxu0
        %v4243 = vadd.f32 0.0, %v4242
        %v4244 = vpop.f32.mrf.mxu0
        %v4245 = vadd.f32 0.0, %v4244
        %4246 = vmatmul.bf16.gmra.mxu0 %v4187
        %v4247 = vpop.f32.mrf.mxu0
        %v4248 = vadd.f32 0.0, %v4247
        %v4249 = vpop.f32.mrf.mxu0
        %v4250 = vadd.f32 0.0, %v4249
        %4251 = vmatmul.bf16.gmra.mxu0 %v4190
        %v4252 = vpop.f32.mrf.mxu0
        %v4253 = vadd.f32 0.0, %v4252
        %v4254 = vpop.f32.mrf.mxu0
        %v4255 = vadd.f32 0.0, %v4254
        %4256 = vmatmul.bf16.gmra.mxu0 %v4193
        %v4257 = vpop.f32.mrf.mxu0
        %v4258 = vadd.f32 0.0, %v4257
        %v4259 = vpop.f32.mrf.mxu0
        %v4260 = vadd.f32 0.0, %v4259
        %4261 = vmatmul.bf16.gmra.mxu0 %v4196
        %v4262 = vpop.f32.mrf.mxu0
        %v4263 = vadd.f32 0.0, %v4262
        %v4264 = vpop.f32.mrf.mxu0
        %v4265 = vadd.f32 0.0, %v4264
        %4266 = vmatmul.bf16.gmra.mxu0 %v4199
        %v4267 = vpop.f32.mrf.mxu0
        %v4268 = vadd.f32 0.0, %v4267
        %v4269 = vpop.f32.mrf.mxu0
        %v4270 = vadd.f32 0.0, %v4269
        %4271 = vmatmul.bf16.gmra.mxu0 %v4202
        %v4272 = vpop.f32.mrf.mxu0
        %v4273 = vadd.f32 0.0, %v4272
        %v4274 = vpop.f32.mrf.mxu0
        %v4275 = vadd.f32 0.0, %v4274
        %4276 = vmatmul.bf16.gmra.mxu0 %v4205
        %v4277 = vpop.f32.mrf.mxu0
        %v4278 = vadd.f32 0.0, %v4277
        %v4279 = vpop.f32.mrf.mxu0
        %v4280 = vadd.f32 0.0, %v4279
        %4281 = vmatmul.bf16.gmra.mxu0 %v4208
        %v4282 = vpop.f32.mrf.mxu0
        %v4283 = vadd.f32 0.0, %v4282
        %v4284 = vpop.f32.mrf.mxu0
        %v4285 = vadd.f32 0.0, %v4284
        %4286 = vmatmul.bf16.gmra.mxu0 %v4211
        %v4287 = vpop.f32.mrf.mxu0
        %v4288 = vadd.f32 0.0, %v4287
        %v4289 = vpop.f32.mrf.mxu0
        %v4290 = vadd.f32 0.0, %v4289
        %4291 = vmatmul.bf16.gmra.mxu0 %v4214
        %v4292 = vpop.f32.mrf.mxu0
        %v4293 = vadd.f32 0.0, %v4292
        %v4294 = vpop.f32.mrf.mxu0
        %v4295 = vadd.f32 0.0, %v4294
        %4296 = vmatmul.bf16.gmra.mxu0 %v4217
        %v4297 = vpop.f32.mrf.mxu0
        %v4298 = vadd.f32 0.0, %v4297
        %v4299 = vpop.f32.mrf.mxu0
        %v4300 = vadd.f32 0.0, %v4299
        %4301 = vmatmul.bf16.gmra.mxu0 %v4220
        %v4302 = vpop.f32.mrf.mxu0
        %v4303 = vadd.f32 0.0, %v4302
        %v4304 = vpop.f32.mrf.mxu0
        %v4305 = vadd.f32 0.0, %v4304
        %4306 = vmatmul.bf16.gmra.mxu0 %v4223
        %v4307 = vpop.f32.mrf.mxu0
        %v4308 = vadd.f32 0.0, %v4307
        %v4309 = vpop.f32.mrf.mxu0
        %v4310 = vadd.f32 0.0, %v4309
        %4311 = vmatmul.bf16.gmra.mxu0 %v4226
        %v4312 = vpop.f32.mrf.mxu0
        %v4313 = vadd.f32 0.0, %v4312
        %v4314 = vpop.f32.mrf.mxu0
        %v4315 = vadd.f32 0.0, %v4314
        %4316 = vdwg.mxu0
        %v4317 = vadd.f32 %v4066, %v4238
        %v4318 = vadd.f32 %v4067, %v4240
        %v4319 = vadd.f32 %v4068, %v4243
        %v4320 = vadd.f32 %v4069, %v4245
        %v4321 = vadd.f32 %v4070, %v4248
        %v4322 = vadd.f32 %v4071, %v4250
        %v4323 = vadd.f32 %v4072, %v4253
        %v4324 = vadd.f32 %v4073, %v4255
        %v4325 = vadd.f32 %v4074, %v4258
        %v4326 = vadd.f32 %v4075, %v4260
        %v4327 = vadd.f32 %v4076, %v4263
        %v4328 = vadd.f32 %v4077, %v4265
        %v4329 = vadd.f32 %v4078, %v4268
        %v4330 = vadd.f32 %v4079, %v4270
        %v4331 = vadd.f32 %v4080, %v4273
        %v4332 = vadd.f32 %v4081, %v4275
        %v4333 = vadd.f32 %v4082, %v4278
        %v4334 = vadd.f32 %v4083, %v4280
        %v4335 = vadd.f32 %v4084, %v4283
        %v4336 = vadd.f32 %v4085, %v4285
        %v4337 = vadd.f32 %v4086, %v4288
        %v4338 = vadd.f32 %v4087, %v4290
        %v4339 = vadd.f32 %v4088, %v4293
        %v4340 = vadd.f32 %v4089, %v4295
        %v4341 = vadd.f32 %v4090, %v4298
        %v4342 = vadd.f32 %v4091, %v4300
        %v4343 = vadd.f32 %v4092, %v4303
        %v4344 = vadd.f32 %v4093, %v4305
        %v4345 = vadd.f32 %v4094, %v4308
        %v4346 = vadd.f32 %v4095, %v4310
        %v4347 = vadd.f32 %v4096, %v4313
        %v4348 = vadd.f32 %v4097, %v4315
        %v4349 = vld [vmem:[%s4098 + $0x1] sm:$0xff]
        %v4350 = vld [vmem:[%s4098 + $0x9] sm:$0xff]
        %v4351 = vld [vmem:[%s4098 + $0x19] sm:$0xff]
        %v4352 = vld [vmem:[%s4098 + $0x21] sm:$0xff]
        %v4353 = vld [vmem:[%s4098 + $0x31] sm:$0xff]
        %v4354 = vld [vmem:[%s4098 + $0x39] sm:$0xff]
        %v4355 = vld [vmem:[%s4098 + $0x49] sm:$0xff]
        %v4356 = vld [vmem:[%s4098 + $0x51] sm:$0xff]
        %v4357 = vld [vmem:[%s4098 + $0x61] sm:$0xff]
        %v4358 = vld [vmem:[%s4098 + $0x69] sm:$0xff]
        %v4359 = vld [vmem:[%s4098 + $0x79] sm:$0xff]
        %v4360 = vld [vmem:[%s4098 + $0x81] sm:$0xff]
        %v4361 = vld [vmem:[%s4098 + $0x91] sm:$0xff]
        %v4362 = vld [vmem:[%s4098 + $0x99] sm:$0xff]
        %v4363 = vld [vmem:[%s4098 + $0xa9] sm:$0xff]
        %v4364 = vld [vmem:[%s4098 + $0xb1] sm:$0xff]
        %v4365 = vld [vmem:[%s4098 + $0xc1] sm:$0xff]
        %v4366 = vld [vmem:[%s4098 + $0xc9] sm:$0xff]
        %v4367 = vld [vmem:[%s4098 + $0xd9] sm:$0xff]
        %v4368 = vld [vmem:[%s4098 + $0xe1] sm:$0xff]
        %v4369 = vld [vmem:[%s4098 + $0xf1] sm:$0xff]
        %v4370 = vld [vmem:[%s4098 + $0xf9] sm:$0xff]
        %v4371 = vld [vmem:[%s4098 + $0x109] sm:$0xff]
        %v4372 = vld [vmem:[%s4098 + $0x111] sm:$0xff]
        %v4373 = vld [vmem:[%s4098 + $0x121] sm:$0xff]
        %v4374 = vld [vmem:[%s4098 + $0x129] sm:$0xff]
        %v4375 = vld [vmem:[%s4098 + $0x139] sm:$0xff]
        %v4376 = vld [vmem:[%s4098 + $0x141] sm:$0xff]
        %v4377 = vld [vmem:[%s4098 + $0x151] sm:$0xff]
        %v4378 = vld [vmem:[%s4098 + $0x159] sm:$0xff]
        %v4379 = vld [vmem:[%s4098 + $0x169] sm:$0xff]
        %v4380 = vld [vmem:[%s4098 + $0x171] sm:$0xff]
        %v4381 = vpack.c.bf16 %v4350, %v4349
        %v4382 = vpack.c.bf16 %v4352, %v4351
        %v4383 = vpack.c.bf16 %v4354, %v4353
        %v4384 = vpack.c.bf16 %v4356, %v4355
        %v4385 = vpack.c.bf16 %v4358, %v4357
        %v4386 = vpack.c.bf16 %v4360, %v4359
        %v4387 = vpack.c.bf16 %v4362, %v4361
        %v4388 = vpack.c.bf16 %v4364, %v4363
        %v4389 = vpack.c.bf16 %v4366, %v4365
        %v4390 = vpack.c.bf16 %v4368, %v4367
        %v4391 = vpack.c.bf16 %v4370, %v4369
        %v4392 = vpack.c.bf16 %v4372, %v4371
        %v4393 = vpack.c.bf16 %v4374, %v4373
        %v4394 = vpack.c.bf16 %v4376, %v4375
        %v4395 = vpack.c.bf16 %v4378, %v4377
        %v4396 = vpack.c.bf16 %v4380, %v4379
        %s4397 = scalar_lea.vmem [#allocation9], 224
        %v4398 = vld [vmem:[%s4397] sm:$0xf]
        %v4399 = vld [vmem:[%s4397 + $0x4] sm:$0xf]
        %v4400 = vld [vmem:[%s4397 + $0x8] sm:$0xf]
        %v4401 = vld [vmem:[%s4397 + $0xc] sm:$0xf]
        %v4402 = vld [vmem:[%s4397 + $0x10] sm:$0xf]
        %v4403 = vld [vmem:[%s4397 + $0x14] sm:$0xf]
        %v4404 = vld [vmem:[%s4397 + $0x18] sm:$0xf]
        %v4405 = vld [vmem:[%s4397 + $0x1c] sm:$0xf]
        %v4414 = vunpack.c.l.b16 %v4398
        %v4415 = vunpack.c.l.b16 %v4399
        %v4416 = vunpack.c.l.b16 %v4400
        %v4417 = vunpack.c.l.b16 %v4401
        %v4418 = vunpack.c.l.b16 %v4402
        %v4419 = vunpack.c.l.b16 %v4403
        %v4420 = vunpack.c.l.b16 %v4404
        %v4421 = vunpack.c.l.b16 %v4405
        %v4422 = vpack.c.b16 %v4415, %v4414
        %v4423 = vpack.c.b16 %v4417, %v4416
        %v4424 = vpack.c.b16 %v4419, %v4418
        %v4425 = vpack.c.b16 %v4421, %v4420
        %v4431 = vsel %vm2574, %v4381, 0
        %v4434 = vsel %vm2574, %v4382, 0
        %v4437 = vsel %vm2574, %v4383, 0
        %v4440 = vsel %vm2574, %v4384, 0
        %v4443 = vsel %vm2574, %v4385, 0
        %v4446 = vsel %vm2574, %v4386, 0
        %v4449 = vsel %vm2574, %v4387, 0
        %v4452 = vsel %vm2574, %v4388, 0
        %v4455 = vsel %vm2574, %v4389, 0
        %v4458 = vsel %vm2574, %v4390, 0
        %v4461 = vsel %vm2574, %v4391, 0
        %v4464 = vsel %vm2574, %v4392, 0
        %v4467 = vsel %vm2574, %v4393, 0
        %v4470 = vsel %vm2574, %v4394, 0
        %v4473 = vsel %vm2574, %v4395, 0
        %v4476 = vsel %vm2574, %v4396, 0
        %4478 = vmatpush.bf16.msra.mxu0 0
        %4479 = vmatpush.bf16.msra.mxu0 0
        %4480 = vmatpush.bf16.msra.mxu0 0
        %4481 = vmatpush.bf16.msra.mxu0 0
        %4482 = vmatpush.bf16.msra.mxu0 %v4425
        %4483 = vmatpush.bf16.msra.mxu0 %v4424
        %4484 = vmatpush.bf16.msra.mxu0 %v4423
        %4485 = vmatpush.bf16.msra.mxu0 %v4422
        %4486 = vmatmul.bf16.gmra.mxu0 %v4431
        %v4487 = vpop.f32.mrf.mxu0
        %v4488 = vadd.f32 0.0, %v4487
        %v4489 = vpop.f32.mrf.mxu0
        %v4490 = vadd.f32 0.0, %v4489
        %4491 = vmatmul.bf16.gmra.mxu0 %v4434
        %v4492 = vpop.f32.mrf.mxu0
        %v4493 = vadd.f32 0.0, %v4492
        %v4494 = vpop.f32.mrf.mxu0
        %v4495 = vadd.f32 0.0, %v4494
        %4496 = vmatmul.bf16.gmra.mxu0 %v4437
        %v4497 = vpop.f32.mrf.mxu0
        %v4498 = vadd.f32 0.0, %v4497
        %v4499 = vpop.f32.mrf.mxu0
        %v4500 = vadd.f32 0.0, %v4499
        %4501 = vmatmul.bf16.gmra.mxu0 %v4440
        %v4502 = vpop.f32.mrf.mxu0
        %v4503 = vadd.f32 0.0, %v4502
        %v4504 = vpop.f32.mrf.mxu0
        %v4505 = vadd.f32 0.0, %v4504
        %4506 = vmatmul.bf16.gmra.mxu0 %v4443
        %v4507 = vpop.f32.mrf.mxu0
        %v4508 = vadd.f32 0.0, %v4507
        %v4509 = vpop.f32.mrf.mxu0
        %v4510 = vadd.f32 0.0, %v4509
        %4511 = vmatmul.bf16.gmra.mxu0 %v4446
        %v4512 = vpop.f32.mrf.mxu0
        %v4513 = vadd.f32 0.0, %v4512
        %v4514 = vpop.f32.mrf.mxu0
        %v4515 = vadd.f32 0.0, %v4514
        %4516 = vmatmul.bf16.gmra.mxu0 %v4449
        %v4517 = vpop.f32.mrf.mxu0
        %v4518 = vadd.f32 0.0, %v4517
        %v4519 = vpop.f32.mrf.mxu0
        %v4520 = vadd.f32 0.0, %v4519
        %4521 = vmatmul.bf16.gmra.mxu0 %v4452
        %v4522 = vpop.f32.mrf.mxu0
        %v4523 = vadd.f32 0.0, %v4522
        %v4524 = vpop.f32.mrf.mxu0
        %v4525 = vadd.f32 0.0, %v4524
        %4526 = vmatmul.bf16.gmra.mxu0 %v4455
        %v4527 = vpop.f32.mrf.mxu0
        %v4528 = vadd.f32 0.0, %v4527
        %v4529 = vpop.f32.mrf.mxu0
        %v4530 = vadd.f32 0.0, %v4529
        %4531 = vmatmul.bf16.gmra.mxu0 %v4458
        %v4532 = vpop.f32.mrf.mxu0
        %v4533 = vadd.f32 0.0, %v4532
        %v4534 = vpop.f32.mrf.mxu0
        %v4535 = vadd.f32 0.0, %v4534
        %4536 = vmatmul.bf16.gmra.mxu0 %v4461
        %v4537 = vpop.f32.mrf.mxu0
        %v4538 = vadd.f32 0.0, %v4537
        %v4539 = vpop.f32.mrf.mxu0
        %v4540 = vadd.f32 0.0, %v4539
        %4541 = vmatmul.bf16.gmra.mxu0 %v4464
        %v4542 = vpop.f32.mrf.mxu0
        %v4543 = vadd.f32 0.0, %v4542
        %v4544 = vpop.f32.mrf.mxu0
        %v4545 = vadd.f32 0.0, %v4544
        %4546 = vmatmul.bf16.gmra.mxu0 %v4467
        %v4547 = vpop.f32.mrf.mxu0
        %v4548 = vadd.f32 0.0, %v4547
        %v4549 = vpop.f32.mrf.mxu0
        %v4550 = vadd.f32 0.0, %v4549
        %4551 = vmatmul.bf16.gmra.mxu0 %v4470
        %v4552 = vpop.f32.mrf.mxu0
        %v4553 = vadd.f32 0.0, %v4552
        %v4554 = vpop.f32.mrf.mxu0
        %v4555 = vadd.f32 0.0, %v4554
        %4556 = vmatmul.bf16.gmra.mxu0 %v4473
        %v4557 = vpop.f32.mrf.mxu0
        %v4558 = vadd.f32 0.0, %v4557
        %v4559 = vpop.f32.mrf.mxu0
        %v4560 = vadd.f32 0.0, %v4559
        %4561 = vmatmul.bf16.gmra.mxu0 %v4476
        %v4562 = vpop.f32.mrf.mxu0
        %v4563 = vadd.f32 0.0, %v4562
        %v4564 = vpop.f32.mrf.mxu0
        %v4565 = vadd.f32 0.0, %v4564
        %4566 = vdwg.mxu0
        %v4567 = vadd.f32 %v4317, %v4488
        %v4568 = vadd.f32 %v4318, %v4490
        %v4569 = vadd.f32 %v4319, %v4493
        %v4570 = vadd.f32 %v4320, %v4495
        %v4571 = vadd.f32 %v4321, %v4498
        %v4572 = vadd.f32 %v4322, %v4500
        %v4573 = vadd.f32 %v4323, %v4503
        %v4574 = vadd.f32 %v4324, %v4505
        %v4575 = vadd.f32 %v4325, %v4508
        %v4576 = vadd.f32 %v4326, %v4510
        %v4577 = vadd.f32 %v4327, %v4513
        %v4578 = vadd.f32 %v4328, %v4515
        %v4579 = vadd.f32 %v4329, %v4518
        %v4580 = vadd.f32 %v4330, %v4520
        %v4581 = vadd.f32 %v4331, %v4523
        %v4582 = vadd.f32 %v4332, %v4525
        %v4583 = vadd.f32 %v4333, %v4528
        %v4584 = vadd.f32 %v4334, %v4530
        %v4585 = vadd.f32 %v4335, %v4533
        %v4586 = vadd.f32 %v4336, %v4535
        %v4587 = vadd.f32 %v4337, %v4538
        %v4588 = vadd.f32 %v4338, %v4540
        %v4589 = vadd.f32 %v4339, %v4543
        %v4590 = vadd.f32 %v4340, %v4545
        %v4591 = vadd.f32 %v4341, %v4548
        %v4592 = vadd.f32 %v4342, %v4550
        %v4593 = vadd.f32 %v4343, %v4553
        %v4594 = vadd.f32 %v4344, %v4555
        %v4595 = vadd.f32 %v4345, %v4558
        %v4596 = vadd.f32 %v4346, %v4560
        %v4597 = vadd.f32 %v4347, %v4563
        %v4598 = vadd.f32 %v4348, %v4565
        %v4599 = vld [vmem:[%s4098 + $0x2] sm:$0xff]
        %v4600 = vld [vmem:[%s4098 + $0xa] sm:$0xff]
        %v4601 = vld [vmem:[%s4098 + $0x1a] sm:$0xff]
        %v4602 = vld [vmem:[%s4098 + $0x22] sm:$0xff]
        %v4603 = vld [vmem:[%s4098 + $0x32] sm:$0xff]
        %v4604 = vld [vmem:[%s4098 + $0x3a] sm:$0xff]
        %v4605 = vld [vmem:[%s4098 + $0x4a] sm:$0xff]
        %v4606 = vld [vmem:[%s4098 + $0x52] sm:$0xff]
        %v4607 = vld [vmem:[%s4098 + $0x62] sm:$0xff]
        %v4608 = vld [vmem:[%s4098 + $0x6a] sm:$0xff]
        %v4609 = vld [vmem:[%s4098 + $0x7a] sm:$0xff]
        %v4610 = vld [vmem:[%s4098 + $0x82] sm:$0xff]
        %v4611 = vld [vmem:[%s4098 + $0x92] sm:$0xff]
        %v4612 = vld [vmem:[%s4098 + $0x9a] sm:$0xff]
        %v4613 = vld [vmem:[%s4098 + $0xaa] sm:$0xff]
        %v4614 = vld [vmem:[%s4098 + $0xb2] sm:$0xff]
        %v4615 = vld [vmem:[%s4098 + $0xc2] sm:$0xff]
        %v4616 = vld [vmem:[%s4098 + $0xca] sm:$0xff]
        %v4617 = vld [vmem:[%s4098 + $0xda] sm:$0xff]
        %v4618 = vld [vmem:[%s4098 + $0xe2] sm:$0xff]
        %v4619 = vld [vmem:[%s4098 + $0xf2] sm:$0xff]
        %v4620 = vld [vmem:[%s4098 + $0xfa] sm:$0xff]
        %v4621 = vld [vmem:[%s4098 + $0x10a] sm:$0xff]
        %v4622 = vld [vmem:[%s4098 + $0x112] sm:$0xff]
        %v4623 = vld [vmem:[%s4098 + $0x122] sm:$0xff]
        %v4624 = vld [vmem:[%s4098 + $0x12a] sm:$0xff]
        %v4625 = vld [vmem:[%s4098 + $0x13a] sm:$0xff]
        %v4626 = vld [vmem:[%s4098 + $0x142] sm:$0xff]
        %v4627 = vld [vmem:[%s4098 + $0x152] sm:$0xff]
        %v4628 = vld [vmem:[%s4098 + $0x15a] sm:$0xff]
        %v4629 = vld [vmem:[%s4098 + $0x16a] sm:$0xff]
        %v4630 = vld [vmem:[%s4098 + $0x172] sm:$0xff]
        %v4631 = vpack.c.bf16 %v4600, %v4599
        %v4632 = vpack.c.bf16 %v4602, %v4601
        %v4633 = vpack.c.bf16 %v4604, %v4603
        %v4634 = vpack.c.bf16 %v4606, %v4605
        %v4635 = vpack.c.bf16 %v4608, %v4607
        %v4636 = vpack.c.bf16 %v4610, %v4609
        %v4637 = vpack.c.bf16 %v4612, %v4611
        %v4638 = vpack.c.bf16 %v4614, %v4613
        %v4639 = vpack.c.bf16 %v4616, %v4615
        %v4640 = vpack.c.bf16 %v4618, %v4617
        %v4641 = vpack.c.bf16 %v4620, %v4619
        %v4642 = vpack.c.bf16 %v4622, %v4621
        %v4643 = vpack.c.bf16 %v4624, %v4623
        %v4644 = vpack.c.bf16 %v4626, %v4625
        %v4645 = vpack.c.bf16 %v4628, %v4627
        %v4646 = vpack.c.bf16 %v4630, %v4629
        %s4647 = scalar_lea.vmem [#allocation9], 256
        %v4648 = vld [vmem:[%s4647] sm:$0xf]
        %v4649 = vld [vmem:[%s4647 + $0x4] sm:$0xf]
        %v4650 = vld [vmem:[%s4647 + $0x8] sm:$0xf]
        %v4651 = vld [vmem:[%s4647 + $0xc] sm:$0xf]
        %v4652 = vld [vmem:[%s4647 + $0x10] sm:$0xf]
        %v4653 = vld [vmem:[%s4647 + $0x14] sm:$0xf]
        %v4654 = vld [vmem:[%s4647 + $0x18] sm:$0xf]
        %v4655 = vld [vmem:[%s4647 + $0x1c] sm:$0xf]
        %v4664 = vunpack.c.l.b16 %v4648
        %v4665 = vunpack.c.l.b16 %v4649
        %v4666 = vunpack.c.l.b16 %v4650
        %v4667 = vunpack.c.l.b16 %v4651
        %v4668 = vunpack.c.l.b16 %v4652
        %v4669 = vunpack.c.l.b16 %v4653
        %v4670 = vunpack.c.l.b16 %v4654
        %v4671 = vunpack.c.l.b16 %v4655
        %v4672 = vpack.c.b16 %v4665, %v4664
        %v4673 = vpack.c.b16 %v4667, %v4666
        %v4674 = vpack.c.b16 %v4669, %v4668
        %v4675 = vpack.c.b16 %v4671, %v4670
        %v4681 = vsel %vm2574, %v4631, 0
        %v4684 = vsel %vm2574, %v4632, 0
        %v4687 = vsel %vm2574, %v4633, 0
        %v4690 = vsel %vm2574, %v4634, 0
        %v4693 = vsel %vm2574, %v4635, 0
        %v4696 = vsel %vm2574, %v4636, 0
        %v4699 = vsel %vm2574, %v4637, 0
        %v4702 = vsel %vm2574, %v4638, 0
        %v4705 = vsel %vm2574, %v4639, 0
        %v4708 = vsel %vm2574, %v4640, 0
        %v4711 = vsel %vm2574, %v4641, 0
        %v4714 = vsel %vm2574, %v4642, 0
        %v4717 = vsel %vm2574, %v4643, 0
        %v4720 = vsel %vm2574, %v4644, 0
        %v4723 = vsel %vm2574, %v4645, 0
        %v4726 = vsel %vm2574, %v4646, 0
        %4728 = vmatpush.bf16.msra.mxu0 0
        %4729 = vmatpush.bf16.msra.mxu0 0
        %4730 = vmatpush.bf16.msra.mxu0 0
        %4731 = vmatpush.bf16.msra.mxu0 0
        %4732 = vmatpush.bf16.msra.mxu0 %v4675
        %4733 = vmatpush.bf16.msra.mxu0 %v4674
        %4734 = vmatpush.bf16.msra.mxu0 %v4673
        %4735 = vmatpush.bf16.msra.mxu0 %v4672
        %4736 = vmatmul.bf16.gmra.mxu0 %v4681
        %v4737 = vpop.f32.mrf.mxu0
        %v4738 = vadd.f32 0.0, %v4737
        %v4739 = vpop.f32.mrf.mxu0
        %v4740 = vadd.f32 0.0, %v4739
        %4741 = vmatmul.bf16.gmra.mxu0 %v4684
        %v4742 = vpop.f32.mrf.mxu0
        %v4743 = vadd.f32 0.0, %v4742
        %v4744 = vpop.f32.mrf.mxu0
        %v4745 = vadd.f32 0.0, %v4744
        %4746 = vmatmul.bf16.gmra.mxu0 %v4687
        %v4747 = vpop.f32.mrf.mxu0
        %v4748 = vadd.f32 0.0, %v4747
        %v4749 = vpop.f32.mrf.mxu0
        %v4750 = vadd.f32 0.0, %v4749
        %4751 = vmatmul.bf16.gmra.mxu0 %v4690
        %v4752 = vpop.f32.mrf.mxu0
        %v4753 = vadd.f32 0.0, %v4752
        %v4754 = vpop.f32.mrf.mxu0
        %v4755 = vadd.f32 0.0, %v4754
        %4756 = vmatmul.bf16.gmra.mxu0 %v4693
        %v4757 = vpop.f32.mrf.mxu0
        %v4758 = vadd.f32 0.0, %v4757
        %v4759 = vpop.f32.mrf.mxu0
        %v4760 = vadd.f32 0.0, %v4759
        %4761 = vmatmul.bf16.gmra.mxu0 %v4696
        %v4762 = vpop.f32.mrf.mxu0
        %v4763 = vadd.f32 0.0, %v4762
        %v4764 = vpop.f32.mrf.mxu0
        %v4765 = vadd.f32 0.0, %v4764
        %4766 = vmatmul.bf16.gmra.mxu0 %v4699
        %v4767 = vpop.f32.mrf.mxu0
        %v4768 = vadd.f32 0.0, %v4767
        %v4769 = vpop.f32.mrf.mxu0
        %v4770 = vadd.f32 0.0, %v4769
        %4771 = vmatmul.bf16.gmra.mxu0 %v4702
        %v4772 = vpop.f32.mrf.mxu0
        %v4773 = vadd.f32 0.0, %v4772
        %v4774 = vpop.f32.mrf.mxu0
        %v4775 = vadd.f32 0.0, %v4774
        %4776 = vmatmul.bf16.gmra.mxu0 %v4705
        %v4777 = vpop.f32.mrf.mxu0
        %v4778 = vadd.f32 0.0, %v4777
        %v4779 = vpop.f32.mrf.mxu0
        %v4780 = vadd.f32 0.0, %v4779
        %4781 = vmatmul.bf16.gmra.mxu0 %v4708
        %v4782 = vpop.f32.mrf.mxu0
        %v4783 = vadd.f32 0.0, %v4782
        %v4784 = vpop.f32.mrf.mxu0
        %v4785 = vadd.f32 0.0, %v4784
        %4786 = vmatmul.bf16.gmra.mxu0 %v4711
        %v4787 = vpop.f32.mrf.mxu0
        %v4788 = vadd.f32 0.0, %v4787
        %v4789 = vpop.f32.mrf.mxu0
        %v4790 = vadd.f32 0.0, %v4789
        %4791 = vmatmul.bf16.gmra.mxu0 %v4714
        %v4792 = vpop.f32.mrf.mxu0
        %v4793 = vadd.f32 0.0, %v4792
        %v4794 = vpop.f32.mrf.mxu0
        %v4795 = vadd.f32 0.0, %v4794
        %4796 = vmatmul.bf16.gmra.mxu0 %v4717
        %v4797 = vpop.f32.mrf.mxu0
        %v4798 = vadd.f32 0.0, %v4797
        %v4799 = vpop.f32.mrf.mxu0
        %v4800 = vadd.f32 0.0, %v4799
        %4801 = vmatmul.bf16.gmra.mxu0 %v4720
        %v4802 = vpop.f32.mrf.mxu0
        %v4803 = vadd.f32 0.0, %v4802
        %v4804 = vpop.f32.mrf.mxu0
        %v4805 = vadd.f32 0.0, %v4804
        %4806 = vmatmul.bf16.gmra.mxu0 %v4723
        %v4807 = vpop.f32.mrf.mxu0
        %v4808 = vadd.f32 0.0, %v4807
        %v4809 = vpop.f32.mrf.mxu0
        %v4810 = vadd.f32 0.0, %v4809
        %4811 = vmatmul.bf16.gmra.mxu0 %v4726
        %v4812 = vpop.f32.mrf.mxu0
        %v4813 = vadd.f32 0.0, %v4812
        %v4814 = vpop.f32.mrf.mxu0
        %v4815 = vadd.f32 0.0, %v4814
        %4816 = vdwg.mxu0
        %v4817 = vadd.f32 %v4567, %v4738
        %v4818 = vadd.f32 %v4568, %v4740
        %v4819 = vadd.f32 %v4569, %v4743
        %v4820 = vadd.f32 %v4570, %v4745
        %v4821 = vadd.f32 %v4571, %v4748
        %v4822 = vadd.f32 %v4572, %v4750
        %v4823 = vadd.f32 %v4573, %v4753
        %v4824 = vadd.f32 %v4574, %v4755
        %v4825 = vadd.f32 %v4575, %v4758
        %v4826 = vadd.f32 %v4576, %v4760
        %v4827 = vadd.f32 %v4577, %v4763
        %v4828 = vadd.f32 %v4578, %v4765
        %v4829 = vadd.f32 %v4579, %v4768
        %v4830 = vadd.f32 %v4580, %v4770
        %v4831 = vadd.f32 %v4581, %v4773
        %v4832 = vadd.f32 %v4582, %v4775
        %v4833 = vadd.f32 %v4583, %v4778
        %v4834 = vadd.f32 %v4584, %v4780
        %v4835 = vadd.f32 %v4585, %v4783
        %v4836 = vadd.f32 %v4586, %v4785
        %v4837 = vadd.f32 %v4587, %v4788
        %v4838 = vadd.f32 %v4588, %v4790
        %v4839 = vadd.f32 %v4589, %v4793
        %v4840 = vadd.f32 %v4590, %v4795
        %v4841 = vadd.f32 %v4591, %v4798
        %v4842 = vadd.f32 %v4592, %v4800
        %v4843 = vadd.f32 %v4593, %v4803
        %v4844 = vadd.f32 %v4594, %v4805
        %v4845 = vadd.f32 %v4595, %v4808
        %v4846 = vadd.f32 %v4596, %v4810
        %v4847 = vadd.f32 %v4597, %v4813
        %v4848 = vadd.f32 %v4598, %v4815
        %v4849 = vld [vmem:[%s4] sm:$0x1]
        %v4851 = vperm.slane %v4849, 0
        %v4853 = vadd.f32 %v4817, %v4851
        %v4854 = vadd.f32 %v4818, %v4851
        %v4855 = vadd.f32 %v4819, %v4851
        %v4856 = vadd.f32 %v4820, %v4851
        %v4857 = vadd.f32 %v4821, %v4851
        %v4858 = vadd.f32 %v4822, %v4851
        %v4859 = vadd.f32 %v4823, %v4851
        %v4860 = vadd.f32 %v4824, %v4851
        %v4861 = vadd.f32 %v4825, %v4851
        %v4862 = vadd.f32 %v4826, %v4851
        %v4863 = vadd.f32 %v4827, %v4851
        %v4864 = vadd.f32 %v4828, %v4851
        %v4865 = vadd.f32 %v4829, %v4851
        %v4866 = vadd.f32 %v4830, %v4851
        %v4867 = vadd.f32 %v4831, %v4851
        %v4868 = vadd.f32 %v4832, %v4851
        %v4869 = vadd.f32 %v4833, %v4851
        %v4870 = vadd.f32 %v4834, %v4851
        %v4871 = vadd.f32 %v4835, %v4851
        %v4872 = vadd.f32 %v4836, %v4851
        %v4873 = vadd.f32 %v4837, %v4851
        %v4874 = vadd.f32 %v4838, %v4851
        %v4875 = vadd.f32 %v4839, %v4851
        %v4876 = vadd.f32 %v4840, %v4851
        %v4877 = vadd.f32 %v4841, %v4851
        %v4878 = vadd.f32 %v4842, %v4851
        %v4879 = vadd.f32 %v4843, %v4851
        %v4880 = vadd.f32 %v4844, %v4851
        %v4881 = vadd.f32 %v4845, %v4851
        %v4882 = vadd.f32 %v4846, %v4851
        %v4883 = vadd.f32 %v4847, %v4851
        %v4884 = vadd.f32 %v4848, %v4851
        %v4885 = vld [vmem:[%s431 + $0x1] sm:$0xff]
        %v4886 = vld [vmem:[%s431 + $0x9] sm:$0xff]
        %v4887 = vld [vmem:[%s431 + $0x19] sm:$0xff]
        %v4888 = vld [vmem:[%s431 + $0x21] sm:$0xff]
        %v4889 = vld [vmem:[%s431 + $0x31] sm:$0xff]
        %v4890 = vld [vmem:[%s431 + $0x39] sm:$0xff]
        %v4891 = vld [vmem:[%s431 + $0x49] sm:$0xff]
        %v4892 = vld [vmem:[%s431 + $0x51] sm:$0xff]
        %v4893 = vld [vmem:[%s431 + $0x61] sm:$0xff]
        %v4894 = vld [vmem:[%s431 + $0x69] sm:$0xff]
        %v4895 = vld [vmem:[%s431 + $0x79] sm:$0xff]
        %v4896 = vld [vmem:[%s431 + $0x81] sm:$0xff]
        %v4897 = vld [vmem:[%s431 + $0x91] sm:$0xff]
        %v4898 = vld [vmem:[%s431 + $0x99] sm:$0xff]
        %v4899 = vld [vmem:[%s431 + $0xa9] sm:$0xff]
        %v4900 = vld [vmem:[%s431 + $0xb1] sm:$0xff]
        %v4901 = vld [vmem:[%s431 + $0xc1] sm:$0xff]
        %v4902 = vld [vmem:[%s431 + $0xc9] sm:$0xff]
        %v4903 = vld [vmem:[%s431 + $0xd9] sm:$0xff]
        %v4904 = vld [vmem:[%s431 + $0xe1] sm:$0xff]
        %v4905 = vld [vmem:[%s431 + $0xf1] sm:$0xff]
        %v4906 = vld [vmem:[%s431 + $0xf9] sm:$0xff]
        %v4907 = vld [vmem:[%s431 + $0x109] sm:$0xff]
        %v4908 = vld [vmem:[%s431 + $0x111] sm:$0xff]
        %v4909 = vld [vmem:[%s431 + $0x121] sm:$0xff]
        %v4910 = vld [vmem:[%s431 + $0x129] sm:$0xff]
        %v4911 = vld [vmem:[%s431 + $0x139] sm:$0xff]
        %v4912 = vld [vmem:[%s431 + $0x141] sm:$0xff]
        %v4913 = vld [vmem:[%s431 + $0x151] sm:$0xff]
        %v4914 = vld [vmem:[%s431 + $0x159] sm:$0xff]
        %v4915 = vld [vmem:[%s431 + $0x169] sm:$0xff]
        %v4916 = vld [vmem:[%s431 + $0x171] sm:$0xff]
        %v4917 = vpack.c.bf16 %v4886, %v4885
        %v4918 = vpack.c.bf16 %v4888, %v4887
        %v4919 = vpack.c.bf16 %v4890, %v4889
        %v4920 = vpack.c.bf16 %v4892, %v4891
        %v4921 = vpack.c.bf16 %v4894, %v4893
        %v4922 = vpack.c.bf16 %v4896, %v4895
        %v4923 = vpack.c.bf16 %v4898, %v4897
        %v4924 = vpack.c.bf16 %v4900, %v4899
        %v4925 = vpack.c.bf16 %v4902, %v4901
        %v4926 = vpack.c.bf16 %v4904, %v4903
        %v4927 = vpack.c.bf16 %v4906, %v4905
        %v4928 = vpack.c.bf16 %v4908, %v4907
        %v4929 = vpack.c.bf16 %v4910, %v4909
        %v4930 = vpack.c.bf16 %v4912, %v4911
        %v4931 = vpack.c.bf16 %v4914, %v4913
        %v4932 = vpack.c.bf16 %v4916, %v4915
        %v4933 = vld [vmem:[#allocation10] sm:$0xf]
        %v4934 = vld [vmem:[#allocation10 + $0x4] sm:$0xf]
        %v4935 = vld [vmem:[#allocation10 + $0x8] sm:$0xf]
        %v4936 = vld [vmem:[#allocation10 + $0xc] sm:$0xf]
        %v4937 = vld [vmem:[%s6] sm:$0x1]
        %v4939 = vperm.slane %v4937, 0
        %v4945 = vunpack.c.l.b16 %v4933
        %v4946 = vunpack.c.l.b16 %v4934
        %v4947 = vunpack.c.l.b16 %v4935
        %v4948 = vunpack.c.l.b16 %v4936
        %v4949 = vpack.c.b16 %v4946, %v4945
        %v4950 = vpack.c.b16 %v4948, %v4947
        %v4954 = vsel %vm375, %v4917, 0
        %v4957 = vsel %vm375, %v4918, 0
        %v4960 = vsel %vm375, %v4919, 0
        %v4963 = vsel %vm375, %v4920, 0
        %v4966 = vsel %vm375, %v4921, 0
        %v4969 = vsel %vm375, %v4922, 0
        %v4972 = vsel %vm375, %v4923, 0
        %v4975 = vsel %vm375, %v4924, 0
        %v4978 = vsel %vm375, %v4925, 0
        %v4981 = vsel %vm375, %v4926, 0
        %v4984 = vsel %vm375, %v4927, 0
        %v4987 = vsel %vm375, %v4928, 0
        %v4990 = vsel %vm375, %v4929, 0
        %v4993 = vsel %vm375, %v4930, 0
        %v4996 = vsel %vm375, %v4931, 0
        %v4999 = vsel %vm375, %v4932, 0
        %5001 = vmatpush.bf16.msra.mxu0 0
        %5002 = vmatpush.bf16.msra.mxu0 0
        %5003 = vmatpush.bf16.msra.mxu0 0
        %5004 = vmatpush.bf16.msra.mxu0 0
        %5005 = vmatpush.bf16.msra.mxu0 0
        %5006 = vmatpush.bf16.msra.mxu0 0
        %5007 = vmatpush.bf16.msra.mxu0 %v4950
        %5008 = vmatpush.bf16.msra.mxu0 %v4949
        %5009 = vmatmul.bf16.gmra.mxu0 %v4954
        %v5010 = vpop.f32.mrf.mxu0
        %v5011 = vadd.f32 %v4939, %v5010
        %v5012 = vpop.f32.mrf.mxu0
        %v5013 = vadd.f32 %v4939, %v5012
        %5014 = vmatmul.bf16.gmra.mxu0 %v4957
        %v5015 = vpop.f32.mrf.mxu0
        %v5016 = vadd.f32 %v4939, %v5015
        %v5017 = vpop.f32.mrf.mxu0
        %v5018 = vadd.f32 %v4939, %v5017
        %5019 = vmatmul.bf16.gmra.mxu0 %v4960
        %v5020 = vpop.f32.mrf.mxu0
        %v5021 = vadd.f32 %v4939, %v5020
        %v5022 = vpop.f32.mrf.mxu0
        %v5023 = vadd.f32 %v4939, %v5022
        %5024 = vmatmul.bf16.gmra.mxu0 %v4963
        %v5025 = vpop.f32.mrf.mxu0
        %v5026 = vadd.f32 %v4939, %v5025
        %v5027 = vpop.f32.mrf.mxu0
        %v5028 = vadd.f32 %v4939, %v5027
        %5029 = vmatmul.bf16.gmra.mxu0 %v4966
        %v5030 = vpop.f32.mrf.mxu0
        %v5031 = vadd.f32 %v4939, %v5030
        %v5032 = vpop.f32.mrf.mxu0
        %v5033 = vadd.f32 %v4939, %v5032
        %5034 = vmatmul.bf16.gmra.mxu0 %v4969
        %v5035 = vpop.f32.mrf.mxu0
        %v5036 = vadd.f32 %v4939, %v5035
        %v5037 = vpop.f32.mrf.mxu0
        %v5038 = vadd.f32 %v4939, %v5037
        %5039 = vmatmul.bf16.gmra.mxu0 %v4972
        %v5040 = vpop.f32.mrf.mxu0
        %v5041 = vadd.f32 %v4939, %v5040
        %v5042 = vpop.f32.mrf.mxu0
        %v5043 = vadd.f32 %v4939, %v5042
        %5044 = vmatmul.bf16.gmra.mxu0 %v4975
        %v5045 = vpop.f32.mrf.mxu0
        %v5046 = vadd.f32 %v4939, %v5045
        %v5047 = vpop.f32.mrf.mxu0
        %v5048 = vadd.f32 %v4939, %v5047
        %5049 = vmatmul.bf16.gmra.mxu0 %v4978
        %v5050 = vpop.f32.mrf.mxu0
        %v5051 = vadd.f32 %v4939, %v5050
        %v5052 = vpop.f32.mrf.mxu0
        %v5053 = vadd.f32 %v4939, %v5052
        %5054 = vmatmul.bf16.gmra.mxu0 %v4981
        %v5055 = vpop.f32.mrf.mxu0
        %v5056 = vadd.f32 %v4939, %v5055
        %v5057 = vpop.f32.mrf.mxu0
        %v5058 = vadd.f32 %v4939, %v5057
        %5059 = vmatmul.bf16.gmra.mxu0 %v4984
        %v5060 = vpop.f32.mrf.mxu0
        %v5061 = vadd.f32 %v4939, %v5060
        %v5062 = vpop.f32.mrf.mxu0
        %v5063 = vadd.f32 %v4939, %v5062
        %5064 = vmatmul.bf16.gmra.mxu0 %v4987
        %v5065 = vpop.f32.mrf.mxu0
        %v5066 = vadd.f32 %v4939, %v5065
        %v5067 = vpop.f32.mrf.mxu0
        %v5068 = vadd.f32 %v4939, %v5067
        %5069 = vmatmul.bf16.gmra.mxu0 %v4990
        %v5070 = vpop.f32.mrf.mxu0
        %v5071 = vadd.f32 %v4939, %v5070
        %v5072 = vpop.f32.mrf.mxu0
        %v5073 = vadd.f32 %v4939, %v5072
        %5074 = vmatmul.bf16.gmra.mxu0 %v4993
        %v5075 = vpop.f32.mrf.mxu0
        %v5076 = vadd.f32 %v4939, %v5075
        %v5077 = vpop.f32.mrf.mxu0
        %v5078 = vadd.f32 %v4939, %v5077
        %5079 = vmatmul.bf16.gmra.mxu0 %v4996
        %v5080 = vpop.f32.mrf.mxu0
        %v5081 = vadd.f32 %v4939, %v5080
        %v5082 = vpop.f32.mrf.mxu0
        %v5083 = vadd.f32 %v4939, %v5082
        %5084 = vmatmul.bf16.gmra.mxu0 %v4999
        %v5085 = vpop.f32.mrf.mxu0
        %v5086 = vadd.f32 %v4939, %v5085
        %v5087 = vpop.f32.mrf.mxu0
        %v5088 = vadd.f32 %v4939, %v5087
        %5089 = vdwg.mxu0
        %v5090 = vadd.f32 %v4853, %v5011
        %v5091 = vadd.f32 %v4854, %v5013
        %v5092 = vadd.f32 %v4855, %v5016
        %v5093 = vadd.f32 %v4856, %v5018
        %v5094 = vadd.f32 %v4857, %v5021
        %v5095 = vadd.f32 %v4858, %v5023
        %v5096 = vadd.f32 %v4859, %v5026
        %v5097 = vadd.f32 %v4860, %v5028
        %v5098 = vadd.f32 %v4861, %v5031
        %v5099 = vadd.f32 %v4862, %v5033
        %v5100 = vadd.f32 %v4863, %v5036
        %v5101 = vadd.f32 %v4864, %v5038
        %v5102 = vadd.f32 %v4865, %v5041
        %v5103 = vadd.f32 %v4866, %v5043
        %v5104 = vadd.f32 %v4867, %v5046
        %v5105 = vadd.f32 %v4868, %v5048
        %v5106 = vadd.f32 %v4869, %v5051
        %v5107 = vadd.f32 %v4870, %v5053
        %v5108 = vadd.f32 %v4871, %v5056
        %v5109 = vadd.f32 %v4872, %v5058
        %v5110 = vadd.f32 %v4873, %v5061
        %v5111 = vadd.f32 %v4874, %v5063
        %v5112 = vadd.f32 %v4875, %v5066
        %v5113 = vadd.f32 %v4876, %v5068
        %v5114 = vadd.f32 %v4877, %v5071
        %v5115 = vadd.f32 %v4878, %v5073
        %v5116 = vadd.f32 %v4879, %v5076
        %v5117 = vadd.f32 %v4880, %v5078
        %v5118 = vadd.f32 %v4881, %v5081
        %v5119 = vadd.f32 %v4882, %v5083
        %v5120 = vadd.f32 %v4883, %v5086
        %v5121 = vadd.f32 %v4884, %v5088
        %v5122 = vmax.f32 %v5090, 0.0
        %v5123 = vmax.f32 %v5091, 0.0
        %v5124 = vmax.f32 %v5092, 0.0
        %v5125 = vmax.f32 %v5093, 0.0
        %v5126 = vmax.f32 %v5094, 0.0
        %v5127 = vmax.f32 %v5095, 0.0
        %v5128 = vmax.f32 %v5096, 0.0
        %v5129 = vmax.f32 %v5097, 0.0
        %v5130 = vmax.f32 %v5098, 0.0
        %v5131 = vmax.f32 %v5099, 0.0
        %v5132 = vmax.f32 %v5100, 0.0
        %v5133 = vmax.f32 %v5101, 0.0
        %v5134 = vmax.f32 %v5102, 0.0
        %v5135 = vmax.f32 %v5103, 0.0
        %v5136 = vmax.f32 %v5104, 0.0
        %v5137 = vmax.f32 %v5105, 0.0
        %v5138 = vmax.f32 %v5106, 0.0
        %v5139 = vmax.f32 %v5107, 0.0
        %v5140 = vmax.f32 %v5108, 0.0
        %v5141 = vmax.f32 %v5109, 0.0
        %v5142 = vmax.f32 %v5110, 0.0
        %v5143 = vmax.f32 %v5111, 0.0
        %v5144 = vmax.f32 %v5112, 0.0
        %v5145 = vmax.f32 %v5113, 0.0
        %v5146 = vmax.f32 %v5114, 0.0
        %v5147 = vmax.f32 %v5115, 0.0
        %v5148 = vmax.f32 %v5116, 0.0
        %v5149 = vmax.f32 %v5117, 0.0
        %v5150 = vmax.f32 %v5118, 0.0
        %v5151 = vmax.f32 %v5119, 0.0
        %v5152 = vmax.f32 %v5120, 0.0
        %v5153 = vmax.f32 %v5121, 0.0
        %5154 = vst.msk [vmem:[%s336] sm:$0xff] %vm2574, %v5122
        %5155 = vst.msk [vmem:[%s336 + $0x8] sm:$0xff] %vm2574, %v5123
        %5156 = vst.msk [vmem:[%s336 + $0x10] sm:$0xff] %vm2574, %v5124
        %5157 = vst.msk [vmem:[%s336 + $0x18] sm:$0xff] %vm2574, %v5125
        %5158 = vst.msk [vmem:[%s336 + $0x20] sm:$0xff] %vm2574, %v5126
        %5159 = vst.msk [vmem:[%s336 + $0x28] sm:$0xff] %vm2574, %v5127
        %5160 = vst.msk [vmem:[%s336 + $0x30] sm:$0xff] %vm2574, %v5128
        %5161 = vst.msk [vmem:[%s336 + $0x38] sm:$0xff] %vm2574, %v5129
        %5162 = vst.msk [vmem:[%s336 + $0x40] sm:$0xff] %vm2574, %v5130
        %5163 = vst.msk [vmem:[%s336 + $0x48] sm:$0xff] %vm2574, %v5131
        %5164 = vst.msk [vmem:[%s336 + $0x50] sm:$0xff] %vm2574, %v5132
        %5165 = vst.msk [vmem:[%s336 + $0x58] sm:$0xff] %vm2574, %v5133
        %5166 = vst.msk [vmem:[%s336 + $0x60] sm:$0xff] %vm2574, %v5134
        %5167 = vst.msk [vmem:[%s336 + $0x68] sm:$0xff] %vm2574, %v5135
        %5168 = vst.msk [vmem:[%s336 + $0x70] sm:$0xff] %vm2574, %v5136
        %5169 = vst.msk [vmem:[%s336 + $0x78] sm:$0xff] %vm2574, %v5137
        %5170 = vst.msk [vmem:[%s336 + $0x80] sm:$0xff] %vm2574, %v5138
        %5171 = vst.msk [vmem:[%s336 + $0x88] sm:$0xff] %vm2574, %v5139
        %5172 = vst.msk [vmem:[%s336 + $0x90] sm:$0xff] %vm2574, %v5140
        %5173 = vst.msk [vmem:[%s336 + $0x98] sm:$0xff] %vm2574, %v5141
        %5174 = vst.msk [vmem:[%s336 + $0xa0] sm:$0xff] %vm2574, %v5142
        %5175 = vst.msk [vmem:[%s336 + $0xa8] sm:$0xff] %vm2574, %v5143
        %5176 = vst.msk [vmem:[%s336 + $0xb0] sm:$0xff] %vm2574, %v5144
        %5177 = vst.msk [vmem:[%s336 + $0xb8] sm:$0xff] %vm2574, %v5145
        %5178 = vst.msk [vmem:[%s336 + $0xc0] sm:$0xff] %vm2574, %v5146
        %5179 = vst.msk [vmem:[%s336 + $0xc8] sm:$0xff] %vm2574, %v5147
        %5180 = vst.msk [vmem:[%s336 + $0xd0] sm:$0xff] %vm2574, %v5148
        %5181 = vst.msk [vmem:[%s336 + $0xd8] sm:$0xff] %vm2574, %v5149
        %5182 = vst.msk [vmem:[%s336 + $0xe0] sm:$0xff] %vm2574, %v5150
        %5183 = vst.msk [vmem:[%s336 + $0xe8] sm:$0xff] %vm2574, %v5151
        %5184 = vst.msk [vmem:[%s336 + $0xf0] sm:$0xff] %vm2574, %v5152
        %5185 = vst.msk [vmem:[%s336 + $0xf8] sm:$0xff] %vm2574, %v5153
        %s5186 = sand.u32 %s184, 1
        %s5187 = scalar_lea.sflag [#allocation6], %s5186
        %s5188 = sand.u32 %s184, 1
        %s5189 = smul.addr %s5188, 256
        %s5190 = scalar_lea.vmem [#allocation12], %s5189
        // Predicated region
        $region65: #{_lambda_.3} parent=47 // pred_check
          %p5191 = pneg %p194
        $region66: #{_lambda_.3} parent=47 // pred_check_branch
          %5193 = sbr.rel (%p5191) target = $region68
        $region67: #{_lambda_.3} parent=47 // pred_region
          %5195 = vsyncadd %s5187, 0
          %s5196 = smul.addr %s24, 32
          %s5197 = smul.addr %s5196, 8
          %s5198 = scalar_lea.hbm %s7, %s5197
          %s5199 = sshll.u32 %s5190, 4
          %s5200 = int_to_ptr.vmem [resolvable:$true] %s5199
          %s5201 = sshll.u32 %s5198, 4
          %s5202 = int_to_ptr.hbm [resolvable:$true] %s5201
          %5207 = dma.vmem_to_hbm [thread:$0]  %s5200, 4096, %s5202, %s5187, 128, 128, 8
        $region68: #{_lambda_.3} parent=47 // pred_fallthru
          _
      $region48: #{_lambda_.3} parent=5 // pred_fallthru
        _
      %p5208 = scmp.le.s32.totalorder 2, %s19
      // Predicated region
      $region69: #{_lambda_.3} parent=5 // pred_check
        %p5209 = pneg %p5208
      $region70: #{_lambda_.3} parent=5 // pred_check_branch
        %5211 = sbr.rel (%p5209) target = $region72
      $region71: #{_lambda_.3} parent=5 // pred_region
        %s5212 = ssub.s32 %s19, 2
        // Predicated region
        $region73: #{_lambda_.3} parent=71 // pred_check
          %p5213 = pneg %p200
        $region74: #{_lambda_.3} parent=71 // pred_check_branch
          %5215 = sbr.rel (%p5213) target = $region76
        $region75: #{_lambda_.3} parent=71 // pred_region
          %s5216 = sand.u32 %s185, 1
          %s5217 = scalar_lea.sflag [#allocation6], %s5216
          %s5218 = sand.u32 %s185, 1
          %s5219 = smul.addr %s5218, 256
          %s5220 = scalar_lea.vmem [#allocation12], %s5219
          %5222 = dma.done %s5217, 4096
        $region76: #{_lambda_.3} parent=71 // pred_fallthru
          _
      $region72: #{_lambda_.3} parent=5 // pred_fallthru
        _
    $region6: #{_lambda_.3} parent=1 // loop_footer
      %s23 = sadd.s32 1, %s19
    $region7: #{_lambda_.3} parent=1 // loop_footer_branch
      %18 = sbr.rel target = $region3
    $region8: #{_lambda_.3} parent=1 // loop_exit
      _
    %5223 = vsyncpa [#allocation5], 1
    %s5224 = scalar_lea.sflag [#allocation5], 1
    %5225 = vsyncpa %s5224, 1
    %5226 = vsyncpa [#allocation8], 1
    %5227 = vsyncpa [#allocation11], 1
    %5228 = vsyncpa [#allocation6], 1
    %s5229 = scalar_lea.sflag [#allocation6], 1
    %5230 = vsyncpa %s5229, 1

</llo_original>
